<compile_context>
chip_gen: v7x
topology: tpu7x:2x2x1
jax: 0.10.0
libtpu: 0.0.40
codegen_flags: <defaults>
</compile_context>

<pallas_src>
import functools

import jax
import jax.numpy as jnp
from jax import lax
from jax.experimental import pallas as pl
from jax.experimental.pallas import tpu as pltpu

EPS = 1e-5
# v7x: keep the per-call VMEM footprint well under its 64 MiB/TC physical capacity;
# v5e/v6e (128 MiB physical) could go higher, but 48 MiB is ample for these tiles.
_VMEM_LIMIT = 48 * 1024 * 1024


def _row_tile(m, cap=1024):
    """Largest row tile <= cap dividing m, preferring >=2 grid steps so the
    'parallel' grid axis keeps both v7x TensorCores busy.  Mem-bound stages want
    the biggest tile that fits (512-1024 rows ~ 85% of HBM roofline)."""
    best = None
    for t in (1024, 512, 256, 128, 64, 32, 16, 8):
        if t <= cap and t <= m and m % t == 0:
            if best is None:
                best = t
            if m // t >= 2:
                return t
    return best if best is not None else m


# ---------------------------------------------------------------------------
# Kernel 1: conv1 (1x1, inplanes->planes) + partial bn1 statistics of its output.
# Output stored bf16; stats computed from the f32 MXU accumulator.
# ---------------------------------------------------------------------------
def _conv1x1_stats_kernel(x_ref, w_ref, z_ref, st_ref):
    z = jnp.dot(x_ref[...].astype(jnp.bfloat16), w_ref[...],
                preferred_element_type=jnp.float32)
    z_ref[...] = z.astype(z_ref.dtype)
    st_ref[0, 0:1, :] = jnp.sum(z, axis=0, keepdims=True)
    st_ref[0, 1:2, :] = jnp.sum(z * z, axis=0, keepdims=True)


# ---------------------------------------------------------------------------
# Kernel 2: fold bn1+relu, conv2 (3x3, stride 1, pad 1) as 9 accumulated MXU dots
# on row-shifted views of a zero-padded flat scratch, + partial bn2 statistics.
# One image per grid step.  All scratch stores are aligned and contiguous; the
# left/right image-column boundary is handled with an iota mask (VPU slack).
# ---------------------------------------------------------------------------
def _bn_relu_conv3x3_stats_kernel(z1_ref, s_ref, t_ref, w_ref, z2_ref, st_ref,
                                  flat_ref, *, width, padr):
    hw, p = z1_ref.shape

    # bn1 fold + relu in f32, staged into the padded flat scratch.
    a = jnp.maximum(z1_ref[...].astype(jnp.float32) * s_ref[...] + t_ref[...], 0.0)
    flat_ref[0:padr, :] = jnp.zeros((padr, p), jnp.float32)
    flat_ref[padr + hw:padr + hw + padr, :] = jnp.zeros((padr, p), jnp.float32)
    flat_ref[padr:padr + hw, :] = a

    # Column-boundary masks (row-major flattening: shifting by +-1 row index would
    # otherwise wrap between image columns 0 and W-1).
    xcol = lax.broadcasted_iota(jnp.int32, (hw, 1), 0) % width
    mask_l = xcol >= 1            # windows with dj == 0 read column x-1
    mask_r = xcol <= width - 2    # windows with dj == 2 read column x+1

    acc = jnp.zeros((hw, p), jnp.float32)
    for di in range(3):
        for dj in range(3):
            off = (di - 1) * width + (dj - 1)
            col = flat_ref[padr + off:padr + off + hw, :]
            if dj == 0:
                col = jnp.where(mask_l, col, 0.0)
            elif dj == 2:
                col = jnp.where(mask_r, col, 0.0)
            acc = acc + jnp.dot(col.astype(jnp.bfloat16), w_ref[di * 3 + dj],
                                preferred_element_type=jnp.float32)

    z2_ref[...] = acc.astype(z2_ref.dtype)
    st_ref[0, 0:1, :] = jnp.sum(acc, axis=0, keepdims=True)
    st_ref[0, 1:2, :] = jnp.sum(acc * acc, axis=0, keepdims=True)


# ---------------------------------------------------------------------------
# Kernel 3: fold bn2+tanh, conv3 (Second_GCHOC approx, 1x1 planes->4*planes),
# + partial bn3 statistics.
# ---------------------------------------------------------------------------
def _bn_tanh_conv1x1_stats_kernel(z2_ref, s_ref, t_ref, w_ref, z_ref, st_ref):
    a = jnp.tanh(z2_ref[...].astype(jnp.float32) * s_ref[...] + t_ref[...])
    z = jnp.dot(a.astype(jnp.bfloat16), w_ref[...],
                preferred_element_type=jnp.float32)
    z_ref[...] = z.astype(z_ref.dtype)
    st_ref[0, 0:1, :] = jnp.sum(z, axis=0, keepdims=True)
    st_ref[0, 1:2, :] = jnp.sum(z * z, axis=0, keepdims=True)


# ---------------------------------------------------------------------------
# Kernel 4: fold bn3, residual add, final ReLU (pure elementwise, row-tiled,
# lane-dense 128-wide blocks when the wrapper can reshape to them).
# ---------------------------------------------------------------------------
def _bn_residual_relu_kernel(z3_ref, s_ref, t_ref, x_ref, o_ref):
    o_ref[...] = jnp.maximum(
        z3_ref[...].astype(jnp.float32) * s_ref[...] + t_ref[...] + x_ref[...], 0.0)


def _bn_scale_shift(partials, gamma, beta, count):
    """Reduce per-tile (sum, sum_sq) partials to folded BN scale/shift (training
    mode, biased variance, eps=1e-5).  Single-pass E[y^2]-E[y]^2 in f32; fine for
    post-normalization-scale activations (use Welford/two-pass for huge means)."""
    s = jnp.sum(partials[:, 0, :], axis=0)
    ss = jnp.sum(partials[:, 1, :], axis=0)
    mean = s / count
    var = jnp.maximum(ss / count - mean * mean, 0.0)
    scale = gamma * lax.rsqrt(var + EPS)
    shift = beta - mean * scale
    return scale[None].astype(jnp.float32), shift[None].astype(jnp.float32)


def vol_bottleneck_nhwc(x_nhwc, params):
    """Transpose-free Vol_Bottleneck forward (stride=1, downsample=None), NHWC."""
    (w1_pt, w2_pt, w3_pt, g1, b1, g2, b2, g3, b3) = params
    N, H, W, Cin = x_nhwc.shape
    P = w1_pt.shape[0]          # planes
    Cout = w3_pt.shape[0]       # 4 * planes
    assert Cin == Cout, "downsample=None requires inplanes == 4*planes"

    M = N * H * W
    HW = H * W
    TM = _row_tile(M)
    G = M // TM

    # MXU weights pre-cast to bf16 (all BN / statistics math stays f32).
    w1 = w1_pt.T.astype(jnp.bfloat16)                                        # (Cin, P)
    w2 = jnp.transpose(w2_pt, (2, 3, 1, 0)).reshape(9, P, P).astype(jnp.bfloat16)
    w3 = w3_pt.T.astype(jnp.bfloat16)                                        # (P, Cout)

    xf = x_nhwc.reshape(M, Cin)          # free reshape; residual read stays f32

    parallel = pltpu.CompilerParams(
        dimension_semantics=("parallel",), vmem_limit_bytes=_VMEM_LIMIT)

    # --- stage 1: conv1 (1x1) + bn1 partial stats (z1 stored bf16) --------------
    z1, st1 = pl.pallas_call(
        _conv1x1_stats_kernel,
        grid=(G,),
        in_specs=[pl.BlockSpec((TM, Cin), lambda i: (i, 0)),
                  pl.BlockSpec((Cin, P), lambda i: (0, 0))],
        out_specs=(pl.BlockSpec((TM, P), lambda i: (i, 0)),
                   pl.BlockSpec((1, 2, P), lambda i: (i, 0, 0))),
        out_shape=(jax.ShapeDtypeStruct((M, P), jnp.bfloat16),
                   jax.ShapeDtypeStruct((G, 2, P), jnp.float32)),
        compiler_params=parallel,
        cost_estimate=pl.CostEstimate(flops=2 * M * Cin * P, transcendentals=0,
                                      bytes_accessed=4 * M * Cin + 2 * M * P),
    )(xf, w1)
    s1, t1 = _bn_scale_shift(st1, g1, b1, M)

    # --- stage 2: bn1+relu fold, conv2 (3x3) as 9 shifted dots + bn2 partial stats
    # TODO(synk): for v7x with small/odd N, tile stage 2 over (N, row-blocks of H)
    # with a 1-row halo for finer megacore load balance.
    PADR = ((W + 1 + 31) // 32) * 32      # aligned zero-pad rows above/below the image
    conv2_kernel = functools.partial(_bn_relu_conv3x3_stats_kernel,
                                     width=W, padr=PADR)
    z2, st2 = pl.pallas_call(
        conv2_kernel,
        grid=(N,),
        in_specs=[pl.BlockSpec((HW, P), lambda n: (n, 0)),
                  pl.BlockSpec((1, P), lambda n: (0, 0)),
                  pl.BlockSpec((1, P), lambda n: (0, 0)),
                  pl.BlockSpec((9, P, P), lambda n: (0, 0, 0))],
        out_specs=(pl.BlockSpec((HW, P), lambda n: (n, 0)),
                   pl.BlockSpec((1, 2, P), lambda n: (n, 0, 0))),
        out_shape=(jax.ShapeDtypeStruct((M, P), jnp.bfloat16),
                   jax.ShapeDtypeStruct((N, 2, P), jnp.float32)),
        scratch_shapes=[pltpu.VMEM((2 * PADR + HW, P), jnp.float32)],
        compiler_params=parallel,
        cost_estimate=pl.CostEstimate(flops=2 * M * 9 * P * P, transcendentals=0,
                                      bytes_accessed=2 * 2 * M * P),
    )(z1, s1, t1, w2)
    s2, t2 = _bn_scale_shift(st2, g2, b2, M)

    # --- stage 3: bn2+tanh fold, conv3 (1x1 approx) + bn3 partial stats ----------
    z3, st3 = pl.pallas_call(
        _bn_tanh_conv1x1_stats_kernel,
        grid=(G,),
        in_specs=[pl.BlockSpec((TM, P), lambda i: (i, 0)),
                  pl.BlockSpec((1, P), lambda i: (0, 0)),
                  pl.BlockSpec((1, P), lambda i: (0, 0)),
                  pl.BlockSpec((P, Cout), lambda i: (0, 0))],
        out_specs=(pl.BlockSpec((TM, Cout), lambda i: (i, 0)),
                   pl.BlockSpec((1, 2, Cout), lambda i: (i, 0, 0))),
        out_shape=(jax.ShapeDtypeStruct((M, Cout), jnp.bfloat16),
                   jax.ShapeDtypeStruct((G, 2, Cout), jnp.float32)),
        compiler_params=parallel,
        cost_estimate=pl.CostEstimate(flops=2 * M * P * Cout, transcendentals=M * P,
                                      bytes_accessed=2 * M * (P + Cout)),
    )(z2, s2, t2, w3)
    s3, t3 = _bn_scale_shift(st3, g3, b3, M)

    # --- stage 4: bn3 fold + residual add + relu (lane-dense when possible) ------
    if Cout % 128 == 0:
        # Already >=128 lanes wide: stores are dense as-is.
        z3v, xv, s3v, t3v, C4, M4 = z3, xf, s3, t3, Cout, M
    elif 128 % Cout == 0 and (M * Cout) % 128 == 0:
        # Free row-major reshape to 128-wide lanes; BN scale/shift lane-tiled.
        rep = 128 // Cout
        C4, M4 = 128, (M * Cout) // 128
        z3v = z3.reshape(M4, C4)
        xv = xf.reshape(M4, C4)
        s3v = jnp.tile(s3, (1, rep))
        t3v = jnp.tile(t3, (1, rep))
    else:
        z3v, xv, s3v, t3v, C4, M4 = z3, xf, s3, t3, Cout, M

    TM4 = _row_tile(M4)
    G4 = M4 // TM4
    out_flat = pl.pallas_call(
        _bn_residual_relu_kernel,
        grid=(G4,),
        in_specs=[pl.BlockSpec((TM4, C4), lambda i: (i, 0)),
                  pl.BlockSpec((1, C4), lambda i: (0, 0)),
                  pl.BlockSpec((1, C4), lambda i: (0, 0)),
                  pl.BlockSpec((TM4, C4), lambda i: (i, 0))],
        out_specs=pl.BlockSpec((TM4, C4), lambda i: (i, 0)),
        out_shape=jax.ShapeDtypeStruct((M4, C4), jnp.float32),
        compiler_params=parallel,
        cost_estimate=pl.CostEstimate(flops=3 * M * Cout, transcendentals=0,
                                      bytes_accessed=(2 + 4 + 4) * M * Cout),
    )(z3v, s3v, t3v, xv)

    return out_flat.reshape(N, H, W, Cout)


def vol_bottleneck(x_nchw, params):
    """NCHW drop-in matching the PyTorch module.  The two boundary layout
    transposes are the only wrapper-level data movement; NHWC networks should call
    vol_bottleneck_nhwc directly and skip them entirely."""
    out_nhwc = vol_bottleneck_nhwc(jnp.transpose(x_nchw, (0, 2, 3, 1)), params)
    return jnp.transpose(out_nhwc, (0, 3, 1, 2))


def make_params(key, inplanes, planes):
    expansion = 4
    ks = jax.random.split(key, 9)
    w1 = jax.random.normal(ks[0], (planes, inplanes), jnp.float32) * (2.0 / inplanes) ** 0.5
    w2 = jax.random.normal(ks[1], (planes, planes, 3, 3), jnp.float32) * (2.0 / (9 * planes)) ** 0.5
    # TODO(synk): Second_GCHOC definition unavailable; approximated as 1x1 conv.
    w3 = jax.random.normal(ks[2], (planes * expansion, planes), jnp.float32) * (2.0 / planes) ** 0.5

    def bn(kg, kb, c):
        return (1.0 + 0.1 * jax.random.normal(kg, (c,), jnp.float32),
                0.1 * jax.random.normal(kb, (c,), jnp.float32))

    g1, b1 = bn(ks[3], ks[4], planes)
    g2, b2 = bn(ks[5], ks[6], planes)
    g3, b3 = bn(ks[7], ks[8], planes * expansion)
    return (w1, w2, w3, g1, b1, g2, b2, g3, b3)


def _reference_forward(x, params):
    """Pure-JAX f32 reference of the same forward pass (for validation)."""
    (w1, w2, w3, g1, b1, g2, b2, g3, b3) = params

    def bn(y, g, b):
        mean = jnp.mean(y, axis=(0, 2, 3), keepdims=True)
        var = jnp.mean((y - mean) ** 2, axis=(0, 2, 3), keepdims=True)
        return ((y - mean) * lax.rsqrt(var + EPS) * g.reshape(1, -1, 1, 1)
                + b.reshape(1, -1, 1, 1))

    y = jnp.einsum('nchw,pc->nphw', x, w1)
    y = jnp.maximum(bn(y, g1, b1), 0.0)
    y = lax.conv_general_dilated(y, w2, (1, 1), 'SAME',
                                 dimension_numbers=('NCHW', 'OIHW', 'NCHW'))
    y = jnp.tanh(bn(y, g2, b2))
    y = jnp.einsum('nchw,oc->nohw', y, w3)
    y = bn(y, g3, b3)
    return jnp.maximum(y + x, 0.0)


if __name__ == "__main__":
    key = jax.random.PRNGKey(0)
    k_x, k_p = jax.random.split(key)

    # planes=8 -> inplanes = 4*planes = 32 (downsample=None residual constraint).
    N, planes, H, W = 2, 8, 16, 16
    inplanes = 4 * planes
    x = jax.random.normal(k_x, (N, inplanes, H, W), jnp.float32)
    params = make_params(k_p, inplanes, planes)

    out = jax.jit(vol_bottleneck)(x, params)
    jax.block_until_ready(out)

    assert out.shape == (N, inplanes, H, W)
    assert bool(jnp.all(out >= 0.0))  # final ReLU

    ref = _reference_forward(x, params)
    rel = float(jnp.max(jnp.abs(out - ref)) / (jnp.max(jnp.abs(ref)) + 1e-6))
    assert rel < 0.1, f"mismatch vs f32 reference (bf16 activation tolerance): {rel}"

    print("KERNEL_OK")
</pallas_src>

<mosaic_0001>
module attributes {stable_mosaic.version = 11 : i64} {
  func.func @_conv1x1_stats_kernel(%arg0: i32, %arg1: memref<256x32xf32, #tpu.memory_space<vmem>>, %arg2: memref<32x8xbf16, #tpu.memory_space<vmem>>, %arg3: memref<256x8xbf16, #tpu.memory_space<vmem>>, %arg4: memref<1x2x8xf32, #tpu.memory_space<vmem>>) attributes {dimension_semantics = [#tpu.dimension_semantics<parallel>], iteration_bounds = array<i64: 2>, scalar_prefetch = 0 : i64, scratch_operands = 0 : i64, tpu.core_type = #tpu.core_type<tc>, window_params = [{transform_indices = @transform_0, window_bounds = array<i64: 256, 32>}, {pipeline_mode = #tpu.pipeline_mode<synchronous>, transform_indices = @transform_1, window_bounds = array<i64: 32, 8>}, {transform_indices = @transform_2, window_bounds = array<i64: 256, 8>}, {transform_indices = @transform_3, window_bounds = array<i64: 1, 2, 8>}]} {
    %c0 = arith.constant 0 : index
    %c0_0 = arith.constant 0 : index
    %0 = vector.load %arg1[%c0, %c0_0] : memref<256x32xf32, #tpu.memory_space<vmem>>, vector<256x32xf32>
    %1 = arith.truncf %0 : vector<256x32xf32> to vector<256x32xbf16>
    %c0_1 = arith.constant 0 : index
    %c0_2 = arith.constant 0 : index
    %2 = vector.load %arg2[%c0_1, %c0_2] : memref<32x8xbf16, #tpu.memory_space<vmem>>, vector<32x8xbf16>
    %cst = arith.constant dense<0.000000e+00> : vector<256x8xf32>
    %3 = tpu.matmul %1, %2, %cst {dimension_numbers = #tpu.dot_dimension_numbers<[1], [0], [0], [1], [0, 0, 1, 1], [], []>} : vector<256x32xbf16>, vector<32x8xbf16>, vector<256x8xf32> -> vector<256x8xf32>
    %4 = arith.truncf %3 : vector<256x8xf32> to vector<256x8xbf16>
    %c0_3 = arith.constant 0 : index
    %c0_4 = arith.constant 0 : index
    %5 = vector.load %arg3[%c0_3, %c0_4] : memref<256x8xbf16, #tpu.memory_space<vmem>>, vector<256x8xbf16>
    tpu.vector_store %arg3[%c0_3, %c0_4], %4 {strides = array<i32>} : memref<256x8xbf16, #tpu.memory_space<vmem>>, vector<256x8xbf16>,
    %cst_5 = arith.constant dense<0.000000e+00> : vector<8xf32>
    %6 = vector.multi_reduction <add>, %3, %cst_5 [0] : vector<256x8xf32> to vector<8xf32>
    %7 = vector.shape_cast %6 : vector<8xf32> to vector<1x8xf32>
    %c0_6 = arith.constant 0 : index
    %c0_7 = arith.constant 0 : index
    %c0_8 = arith.constant 0 : index
    %8 = vector.load %arg4[%c0_6, %c0_7, %c0_8] : memref<1x2x8xf32, #tpu.memory_space<vmem>>, vector<1x1x8xf32>
    %9 = vector.shape_cast %8 : vector<1x1x8xf32> to vector<1x8xf32>
    %10 = vector.shape_cast %7 : vector<1x8xf32> to vector<1x1x8xf32>
    tpu.vector_store %arg4[%c0_6, %c0_7, %c0_8], %10 {strides = array<i32>} : memref<1x2x8xf32, #tpu.memory_space<vmem>>, vector<1x1x8xf32>,
    %11 = arith.mulf %3, %3 : vector<256x8xf32>
    %cst_9 = arith.constant dense<0.000000e+00> : vector<8xf32>
    %12 = vector.multi_reduction <add>, %11, %cst_9 [0] : vector<256x8xf32> to vector<8xf32>
    %13 = vector.shape_cast %12 : vector<8xf32> to vector<1x8xf32>
    %c0_10 = arith.constant 0 : index
    %c1 = arith.constant 1 : index
    %c0_11 = arith.constant 0 : index
    %14 = vector.load %arg4[%c0_10, %c1, %c0_11] : memref<1x2x8xf32, #tpu.memory_space<vmem>>, vector<1x1x8xf32>
    %15 = vector.shape_cast %14 : vector<1x1x8xf32> to vector<1x8xf32>
    %16 = vector.shape_cast %13 : vector<1x8xf32> to vector<1x1x8xf32>
    tpu.vector_store %arg4[%c0_10, %c1, %c0_11], %16 {strides = array<i32>} : memref<1x2x8xf32, #tpu.memory_space<vmem>>, vector<1x1x8xf32>,
    return
  }
  func.func @transform_0(%arg0: i32) -> (i32, i32) {
    %c0_i32 = arith.constant 0 : i32
    %c0_i32_0 = arith.constant 0 : i32
    return %arg0, %c0_i32 : i32, i32
  }
  func.func @transform_1(%arg0: i32) -> (i32, i32) {
    %c0_i32 = arith.constant 0 : i32
    %c0_i32_0 = arith.constant 0 : i32
    %c0_i32_1 = arith.constant 0 : i32
    return %c0_i32, %c0_i32_0 : i32, i32
  }
  func.func @transform_2(%arg0: i32) -> (i32, i32) {
    %c0_i32 = arith.constant 0 : i32
    %c0_i32_0 = arith.constant 0 : i32
    return %arg0, %c0_i32 : i32, i32
  }
  func.func @transform_3(%arg0: i32) -> (i32, i32, i32) {
    %c0_i32 = arith.constant 0 : i32
    %c0_i32_0 = arith.constant 0 : i32
    %c0_i32_1 = arith.constant 0 : i32
    return %arg0, %c0_i32, %c0_i32_0 : i32, i32, i32
  }
}

module attributes {stable_mosaic.version = 11 : i64} {
  func.func @_bn_relu_conv3x3_stats_kernel(%arg0: i32, %arg1: memref<256x8xbf16, #tpu.memory_space<vmem>>, %arg2: memref<1x8xf32, #tpu.memory_space<vmem>>, %arg3: memref<1x8xf32, #tpu.memory_space<vmem>>, %arg4: memref<9x8x8xbf16, #tpu.memory_space<vmem>>, %arg5: memref<256x8xbf16, #tpu.memory_space<vmem>>, %arg6: memref<1x2x8xf32, #tpu.memory_space<vmem>>, %arg7: memref<320x8xf32, #tpu.memory_space<vmem>>) attributes {dimension_semantics = [#tpu.dimension_semantics<parallel>], iteration_bounds = array<i64: 2>, scalar_prefetch = 0 : i64, scratch_operands = 1 : i64, tpu.core_type = #tpu.core_type<tc>, window_params = [{transform_indices = @transform_0, window_bounds = array<i64: 256, 8>}, {pipeline_mode = #tpu.pipeline_mode<synchronous>, transform_indices = @transform_1, window_bounds = array<i64: 1, 8>}, {pipeline_mode = #tpu.pipeline_mode<synchronous>, transform_indices = @transform_2, window_bounds = array<i64: 1, 8>}, {pipeline_mode = #tpu.pipeline_mode<synchronous>, transform_indices = @transform_3, window_bounds = array<i64: 9, 8, 8>}, {transform_indices = @transform_4, window_bounds = array<i64: 256, 8>}, {transform_indices = @transform_5, window_bounds = array<i64: 1, 2, 8>}]} {
    %c0 = arith.constant 0 : index
    %c0_0 = arith.constant 0 : index
    %0 = vector.load %arg1[%c0, %c0_0] : memref<256x8xbf16, #tpu.memory_space<vmem>>, vector<256x8xbf16>
    %1 = arith.extf %0 : vector<256x8xbf16> to vector<256x8xf32>
    %c0_1 = arith.constant 0 : index
    %c0_2 = arith.constant 0 : index
    %2 = vector.load %arg2[%c0_1, %c0_2] : memref<1x8xf32, #tpu.memory_space<vmem>>, vector<1x8xf32>
    %3 = vector.broadcast %2 : vector<1x8xf32> to vector<256x8xf32>
    %4 = arith.mulf %1, %3 : vector<256x8xf32>
    %c0_3 = arith.constant 0 : index
    %c0_4 = arith.constant 0 : index
    %5 = vector.load %arg3[%c0_3, %c0_4] : memref<1x8xf32, #tpu.memory_space<vmem>>, vector<1x8xf32>
    %6 = vector.broadcast %5 : vector<1x8xf32> to vector<256x8xf32>
    %7 = arith.addf %4, %6 : vector<256x8xf32>
    %cst = arith.constant 0.000000e+00 : f32
    %8 = vector.broadcast %cst : f32 to vector<256x8xf32>
    %9 = arith.maximumf %7, %8 : vector<256x8xf32>
    %cst_5 = arith.constant 0.000000e+00 : f32
    %10 = vector.broadcast %cst_5 : f32 to vector<32x8xf32>
    %c0_6 = arith.constant 0 : index
    %c0_7 = arith.constant 0 : index
    %11 = vector.load %arg7[%c0_6, %c0_7] : memref<320x8xf32, #tpu.memory_space<vmem>>, vector<32x8xf32>
    tpu.vector_store %arg7[%c0_6, %c0_7], %10 {strides = array<i32>} : memref<320x8xf32, #tpu.memory_space<vmem>>, vector<32x8xf32>,
    %cst_8 = arith.constant 0.000000e+00 : f32
    %12 = vector.broadcast %cst_8 : f32 to vector<32x8xf32>
    %c288 = arith.constant 288 : index
    %c0_9 = arith.constant 0 : index
    %13 = vector.load %arg7[%c288, %c0_9] : memref<320x8xf32, #tpu.memory_space<vmem>>, vector<32x8xf32>
    tpu.vector_store %arg7[%c288, %c0_9], %12 {strides = array<i32>} : memref<320x8xf32, #tpu.memory_space<vmem>>, vector<32x8xf32>,
    %c32 = arith.constant 32 : index
    %c0_10 = arith.constant 0 : index
    %14 = vector.load %arg7[%c32, %c0_10] : memref<320x8xf32, #tpu.memory_space<vmem>>, vector<256x8xf32>
    tpu.vector_store %arg7[%c32, %c0_10], %9 {strides = array<i32>} : memref<320x8xf32, #tpu.memory_space<vmem>>, vector<256x8xf32>,
    %15 = tpu.iota {dimensions = array<i32: 0>} : vector<256x1xi32>
    %c16_i32 = arith.constant 16 : i32
    %c0_i32 = arith.constant 0 : i32
    %16 = arith.cmpi eq, %c16_i32, %c0_i32 : i32
    %c1_i32 = arith.constant 1 : i32
    %17 = arith.select %16, %c1_i32, %c16_i32 : i32
    %18 = vector.broadcast %17 : i32 to vector<256x1xi32>
    %19 = arith.remsi %15, %18 : vector<256x1xi32>
    %c0_i32_11 = arith.constant 0 : i32
    %20 = vector.broadcast %c0_i32_11 : i32 to vector<256x1xi32>
    %21 = arith.cmpi ne, %19, %20 : vector<256x1xi32>
    %c0_i32_12 = arith.constant 0 : i32
    %22 = vector.broadcast %c0_i32_12 : i32 to vector<256x1xi32>
    %23 = arith.cmpi slt, %19, %22 : vector<256x1xi32>
    %c0_i32_13 = arith.constant 0 : i32
    %24 = arith.cmpi slt, %17, %c0_i32_13 : i32
    %25 = vector.broadcast %24 : i1 to vector<256x1xi1>
    %26 = vector.broadcast %25 : vector<256x1xi1> to vector<256x1xi1>
    %27 = arith.xori %23, %26 : vector<256x1xi1>
    %28 = arith.andi %27, %21 : vector<256x1xi1>
    %29 = vector.broadcast %17 : i32 to vector<256x1xi32>
    %30 = arith.addi %19, %29 : vector<256x1xi32>
    %31 = arith.select %28, %30, %19 : vector<256x1xi1>, vector<256x1xi32>
    %c1_i32_14 = arith.constant 1 : i32
    %32 = vector.broadcast %c1_i32_14 : i32 to vector<256x1xi32>
    %33 = arith.cmpi sge, %31, %32 : vector<256x1xi32>
    %c14_i32 = arith.constant 14 : i32
    %34 = vector.broadcast %c14_i32 : i32 to vector<256x1xi32>
    %35 = arith.cmpi sle, %31, %34 : vector<256x1xi32>
    %cst_15 = arith.constant 0.000000e+00 : f32
    %36 = vector.broadcast %cst_15 : f32 to vector<256x8xf32>
    %c15 = arith.constant 15 : index
    %c0_16 = arith.constant 0 : index
    %37 = vector.load %arg7[%c15, %c0_16] : memref<320x8xf32, #tpu.memory_space<vmem>>, vector<256x8xf32>
    %cst_17 = arith.constant 0.000000e+00 : f32
    %38 = vector.shape_cast %33 : vector<256x1xi1> to vector<256x1xi1>
    %39 = vector.broadcast %38 : vector<256x1xi1> to vector<256x8xi1>
    %40 = vector.broadcast %cst_17 : f32 to vector<256x8xf32>
    %41 = arith.select %39, %37, %40 : vector<256x8xi1>, vector<256x8xf32>
    %42 = arith.truncf %41 : vector<256x8xf32> to vector<256x8xbf16>
    %c0_18 = arith.constant 0 : index
    %c0_19 = arith.constant 0 : index
    %c0_20 = arith.constant 0 : index
    %43 = vector.load %arg4[%c0_18, %c0_19, %c0_20] : memref<9x8x8xbf16, #tpu.memory_space<vmem>>, vector<1x8x8xbf16>
    %44 = vector.shape_cast %43 : vector<1x8x8xbf16> to vector<8x8xbf16>
    %cst_21 = arith.constant dense<0.000000e+00> : vector<256x8xf32>
    %45 = tpu.matmul %42, %44, %cst_21 {dimension_numbers = #tpu.dot_dimension_numbers<[1], [0], [0], [1], [0, 0, 1, 1], [], []>} : vector<256x8xbf16>, vector<8x8xbf16>, vector<256x8xf32> -> vector<256x8xf32>
    %46 = arith.addf %36, %45 : vector<256x8xf32>
    %c16 = arith.constant 16 : index
    %c0_22 = arith.constant 0 : index
    %47 = vector.load %arg7[%c16, %c0_22] : memref<320x8xf32, #tpu.memory_space<vmem>>, vector<256x8xf32>
    %48 = arith.truncf %47 : vector<256x8xf32> to vector<256x8xbf16>
    %c1 = arith.constant 1 : index
    %c0_23 = arith.constant 0 : index
    %c0_24 = arith.constant 0 : index
    %49 = vector.load %arg4[%c1, %c0_23, %c0_24] : memref<9x8x8xbf16, #tpu.memory_space<vmem>>, vector<1x8x8xbf16>
    %50 = vector.shape_cast %49 : vector<1x8x8xbf16> to vector<8x8xbf16>
    %cst_25 = arith.constant dense<0.000000e+00> : vector<256x8xf32>
    %51 = tpu.matmul %48, %50, %cst_25 {dimension_numbers = #tpu.dot_dimension_numbers<[1], [0], [0], [1], [0, 0, 1, 1], [], []>} : vector<256x8xbf16>, vector<8x8xbf16>, vector<256x8xf32> -> vector<256x8xf32>
    %52 = arith.addf %46, %51 : vector<256x8xf32>
    %c17 = arith.constant 17 : index
    %c0_26 = arith.constant 0 : index
    %53 = vector.load %arg7[%c17, %c0_26] : memref<320x8xf32, #tpu.memory_space<vmem>>, vector<256x8xf32>
    %cst_27 = arith.constant 0.000000e+00 : f32
    %54 = vector.shape_cast %35 : vector<256x1xi1> to vector<256x1xi1>
    %55 = vector.broadcast %54 : vector<256x1xi1> to vector<256x8xi1>
    %56 = vector.broadcast %cst_27 : f32 to vector<256x8xf32>
    %57 = arith.select %55, %53, %56 : vector<256x8xi1>, vector<256x8xf32>
    %58 = arith.truncf %57 : vector<256x8xf32> to vector<256x8xbf16>
    %c2 = arith.constant 2 : index
    %c0_28 = arith.constant 0 : index
    %c0_29 = arith.constant 0 : index
    %59 = vector.load %arg4[%c2, %c0_28, %c0_29] : memref<9x8x8xbf16, #tpu.memory_space<vmem>>, vector<1x8x8xbf16>
    %60 = vector.shape_cast %59 : vector<1x8x8xbf16> to vector<8x8xbf16>
    %cst_30 = arith.constant dense<0.000000e+00> : vector<256x8xf32>
    %61 = tpu.matmul %58, %60, %cst_30 {dimension_numbers = #tpu.dot_dimension_numbers<[1], [0], [0], [1], [0, 0, 1, 1], [], []>} : vector<256x8xbf16>, vector<8x8xbf16>, vector<256x8xf32> -> vector<256x8xf32>
    %62 = arith.addf %52, %61 : vector<256x8xf32>
    %c31 = arith.constant 31 : index
    %c0_31 = arith.constant 0 : index
    %63 = vector.load %arg7[%c31, %c0_31] : memref<320x8xf32, #tpu.memory_space<vmem>>, vector<256x8xf32>
    %cst_32 = arith.constant 0.000000e+00 : f32
    %64 = vector.shape_cast %33 : vector<256x1xi1> to vector<256x1xi1>
    %65 = vector.broadcast %64 : vector<256x1xi1> to vector<256x8xi1>
    %66 = vector.broadcast %cst_32 : f32 to vector<256x8xf32>
    %67 = arith.select %65, %63, %66 : vector<256x8xi1>, vector<256x8xf32>
    %68 = arith.truncf %67 : vector<256x8xf32> to vector<256x8xbf16>
    %c3 = arith.constant 3 : index
    %c0_33 = arith.constant 0 : index
    %c0_34 = arith.constant 0 : index
    %69 = vector.load %arg4[%c3, %c0_33, %c0_34] : memref<9x8x8xbf16, #tpu.memory_space<vmem>>, vector<1x8x8xbf16>
    %70 = vector.shape_cast %69 : vector<1x8x8xbf16> to vector<8x8xbf16>
    %cst_35 = arith.constant dense<0.000000e+00> : vector<256x8xf32>
    %71 = tpu.matmul %68, %70, %cst_35 {dimension_numbers = #tpu.dot_dimension_numbers<[1], [0], [0], [1], [0, 0, 1, 1], [], []>} : vector<256x8xbf16>, vector<8x8xbf16>, vector<256x8xf32> -> vector<256x8xf32>
    %72 = arith.addf %62, %71 : vector<256x8xf32>
    %c32_36 = arith.constant 32 : index
    %c0_37 = arith.constant 0 : index
    %73 = vector.load %arg7[%c32_36, %c0_37] : memref<320x8xf32, #tpu.memory_space<vmem>>, vector<256x8xf32>
    %74 = arith.truncf %73 : vector<256x8xf32> to vector<256x8xbf16>
    %c4 = arith.constant 4 : index
    %c0_38 = arith.constant 0 : index
    %c0_39 = arith.constant 0 : index
    %75 = vector.load %arg4[%c4, %c0_38, %c0_39] : memref<9x8x8xbf16, #tpu.memory_space<vmem>>, vector<1x8x8xbf16>
    %76 = vector.shape_cast %75 : vector<1x8x8xbf16> to vector<8x8xbf16>
    %cst_40 = arith.constant dense<0.000000e+00> : vector<256x8xf32>
    %77 = tpu.matmul %74, %76, %cst_40 {dimension_numbers = #tpu.dot_dimension_numbers<[1], [0], [0], [1], [0, 0, 1, 1], [], []>} : vector<256x8xbf16>, vector<8x8xbf16>, vector<256x8xf32> -> vector<256x8xf32>
    %78 = arith.addf %72, %77 : vector<256x8xf32>
    %c33 = arith.constant 33 : index
    %c0_41 = arith.constant 0 : index
    %79 = vector.load %arg7[%c33, %c0_41] : memref<320x8xf32, #tpu.memory_space<vmem>>, vector<256x8xf32>
    %cst_42 = arith.constant 0.000000e+00 : f32
    %80 = vector.shape_cast %35 : vector<256x1xi1> to vector<256x1xi1>
    %81 = vector.broadcast %80 : vector<256x1xi1> to vector<256x8xi1>
    %82 = vector.broadcast %cst_42 : f32 to vector<256x8xf32>
    %83 = arith.select %81, %79, %82 : vector<256x8xi1>, vector<256x8xf32>
    %84 = arith.truncf %83 : vector<256x8xf32> to vector<256x8xbf16>
    %c5 = arith.constant 5 : index
    %c0_43 = arith.constant 0 : index
    %c0_44 = arith.constant 0 : index
    %85 = vector.load %arg4[%c5, %c0_43, %c0_44] : memref<9x8x8xbf16, #tpu.memory_space<vmem>>, vector<1x8x8xbf16>
    %86 = vector.shape_cast %85 : vector<1x8x8xbf16> to vector<8x8xbf16>
    %cst_45 = arith.constant dense<0.000000e+00> : vector<256x8xf32>
    %87 = tpu.matmul %84, %86, %cst_45 {dimension_numbers = #tpu.dot_dimension_numbers<[1], [0], [0], [1], [0, 0, 1, 1], [], []>} : vector<256x8xbf16>, vector<8x8xbf16>, vector<256x8xf32> -> vector<256x8xf32>
    %88 = arith.addf %78, %87 : vector<256x8xf32>
    %c47 = arith.constant 47 : index
    %c0_46 = arith.constant 0 : index
    %89 = vector.load %arg7[%c47, %c0_46] : memref<320x8xf32, #tpu.memory_space<vmem>>, vector<256x8xf32>
    %cst_47 = arith.constant 0.000000e+00 : f32
    %90 = vector.shape_cast %33 : vector<256x1xi1> to vector<256x1xi1>
    %91 = vector.broadcast %90 : vector<256x1xi1> to vector<256x8xi1>
    %92 = vector.broadcast %cst_47 : f32 to vector<256x8xf32>
    %93 = arith.select %91, %89, %92 : vector<256x8xi1>, vector<256x8xf32>
    %94 = arith.truncf %93 : vector<256x8xf32> to vector<256x8xbf16>
    %c6 = arith.constant 6 : index
    %c0_48 = arith.constant 0 : index
    %c0_49 = arith.constant 0 : index
    %95 = vector.load %arg4[%c6, %c0_48, %c0_49] : memref<9x8x8xbf16, #tpu.memory_space<vmem>>, vector<1x8x8xbf16>
    %96 = vector.shape_cast %95 : vector<1x8x8xbf16> to vector<8x8xbf16>
    %cst_50 = arith.constant dense<0.000000e+00> : vector<256x8xf32>
    %97 = tpu.matmul %94, %96, %cst_50 {dimension_numbers = #tpu.dot_dimension_numbers<[1], [0], [0], [1], [0, 0, 1, 1], [], []>} : vector<256x8xbf16>, vector<8x8xbf16>, vector<256x8xf32> -> vector<256x8xf32>
    %98 = arith.addf %88, %97 : vector<256x8xf32>
    %c48 = arith.constant 48 : index
    %c0_51 = arith.constant 0 : index
    %99 = vector.load %arg7[%c48, %c0_51] : memref<320x8xf32, #tpu.memory_space<vmem>>, vector<256x8xf32>
    %100 = arith.truncf %99 : vector<256x8xf32> to vector<256x8xbf16>
    %c7 = arith.constant 7 : index
    %c0_52 = arith.constant 0 : index
    %c0_53 = arith.constant 0 : index
    %101 = vector.load %arg4[%c7, %c0_52, %c0_53] : memref<9x8x8xbf16, #tpu.memory_space<vmem>>, vector<1x8x8xbf16>
    %102 = vector.shape_cast %101 : vector<1x8x8xbf16> to vector<8x8xbf16>
    %cst_54 = arith.constant dense<0.000000e+00> : vector<256x8xf32>
    %103 = tpu.matmul %100, %102, %cst_54 {dimension_numbers = #tpu.dot_dimension_numbers<[1], [0], [0], [1], [0, 0, 1, 1], [], []>} : vector<256x8xbf16>, vector<8x8xbf16>, vector<256x8xf32> -> vector<256x8xf32>
    %104 = arith.addf %98, %103 : vector<256x8xf32>
    %c49 = arith.constant 49 : index
    %c0_55 = arith.constant 0 : index
    %105 = vector.load %arg7[%c49, %c0_55] : memref<320x8xf32, #tpu.memory_space<vmem>>, vector<256x8xf32>
    %cst_56 = arith.constant 0.000000e+00 : f32
    %106 = vector.shape_cast %35 : vector<256x1xi1> to vector<256x1xi1>
    %107 = vector.broadcast %106 : vector<256x1xi1> to vector<256x8xi1>
    %108 = vector.broadcast %cst_56 : f32 to vector<256x8xf32>
    %109 = arith.select %107, %105, %108 : vector<256x8xi1>, vector<256x8xf32>
    %110 = arith.truncf %109 : vector<256x8xf32> to vector<256x8xbf16>
    %c8 = arith.constant 8 : index
    %c0_57 = arith.constant 0 : index
    %c0_58 = arith.constant 0 : index
    %111 = vector.load %arg4[%c8, %c0_57, %c0_58] : memref<9x8x8xbf16, #tpu.memory_space<vmem>>, vector<1x8x8xbf16>
    %112 = vector.shape_cast %111 : vector<1x8x8xbf16> to vector<8x8xbf16>
    %cst_59 = arith.constant dense<0.000000e+00> : vector<256x8xf32>
    %113 = tpu.matmul %110, %112, %cst_59 {dimension_numbers = #tpu.dot_dimension_numbers<[1], [0], [0], [1], [0, 0, 1, 1], [], []>} : vector<256x8xbf16>, vector<8x8xbf16>, vector<256x8xf32> -> vector<256x8xf32>
    %114 = arith.addf %104, %113 : vector<256x8xf32>
    %115 = arith.truncf %114 : vector<256x8xf32> to vector<256x8xbf16>
    %c0_60 = arith.constant 0 : index
    %c0_61 = arith.constant 0 : index
    %116 = vector.load %arg5[%c0_60, %c0_61] : memref<256x8xbf16, #tpu.memory_space<vmem>>, vector<256x8xbf16>
    tpu.vector_store %arg5[%c0_60, %c0_61], %115 {strides = array<i32>} : memref<256x8xbf16, #tpu.memory_space<vmem>>, vector<256x8xbf16>,
    %cst_62 = arith.constant dense<0.000000e+00> : vector<8xf32>
    %117 = vector.multi_reduction <add>, %114, %cst_62 [0] : vector<256x8xf32> to vector<8xf32>
    %118 = vector.shape_cast %117 : vector<8xf32> to vector<1x8xf32>
    %c0_63 = arith.constant 0 : index
    %c0_64 = arith.constant 0 : index
    %c0_65 = arith.constant 0 : index
    %119 = vector.load %arg6[%c0_63, %c0_64, %c0_65] : memref<1x2x8xf32, #tpu.memory_space<vmem>>, vector<1x1x8xf32>
    %120 = vector.shape_cast %119 : vector<1x1x8xf32> to vector<1x8xf32>
    %121 = vector.shape_cast %118 : vector<1x8xf32> to vector<1x1x8xf32>
    tpu.vector_store %arg6[%c0_63, %c0_64, %c0_65], %121 {strides = array<i32>} : memref<1x2x8xf32, #tpu.memory_space<vmem>>, vector<1x1x8xf32>,
    %122 = arith.mulf %114, %114 : vector<256x8xf32>
    %cst_66 = arith.constant dense<0.000000e+00> : vector<8xf32>
    %123 = vector.multi_reduction <add>, %122, %cst_66 [0] : vector<256x8xf32> to vector<8xf32>
    %124 = vector.shape_cast %123 : vector<8xf32> to vector<1x8xf32>
    %c0_67 = arith.constant 0 : index
    %c1_68 = arith.constant 1 : index
    %c0_69 = arith.constant 0 : index
    %125 = vector.load %arg6[%c0_67, %c1_68, %c0_69] : memref<1x2x8xf32, #tpu.memory_space<vmem>>, vector<1x1x8xf32>
    %126 = vector.shape_cast %125 : vector<1x1x8xf32> to vector<1x8xf32>
    %127 = vector.shape_cast %124 : vector<1x8xf32> to vector<1x1x8xf32>
    tpu.vector_store %arg6[%c0_67, %c1_68, %c0_69], %127 {strides = array<i32>} : memref<1x2x8xf32, #tpu.memory_space<vmem>>, vector<1x1x8xf32>,
    return
  }
  func.func @transform_0(%arg0: i32) -> (i32, i32) {
    %c0_i32 = arith.constant 0 : i32
    %c0_i32_0 = arith.constant 0 : i32
    return %arg0, %c0_i32 : i32, i32
  }
  func.func @transform_1(%arg0: i32) -> (i32, i32) {
    %c0_i32 = arith.constant 0 : i32
    %c0_i32_0 = arith.constant 0 : i32
    %c0_i32_1 = arith.constant 0 : i32
    return %c0_i32, %c0_i32_0 : i32, i32
  }
  func.func @transform_2(%arg0: i32) -> (i32, i32) {
    %c0_i32 = arith.constant 0 : i32
    %c0_i32_0 = arith.constant 0 : i32
    %c0_i32_1 = arith.constant 0 : i32
    return %c0_i32, %c0_i32_0 : i32, i32
  }
  func.func @transform_3(%arg0: i32) -> (i32, i32, i32) {
    %c0_i32 = arith.constant 0 : i32
    %c0_i32_0 = arith.constant 0 : i32
    %c0_i32_1 = arith.constant 0 : i32
    %c0_i32_2 = arith.constant 0 : i32
    return %c0_i32, %c0_i32_0, %c0_i32_1 : i32, i32, i32
  }
  func.func @transform_4(%arg0: i32) -> (i32, i32) {
    %c0_i32 = arith.constant 0 : i32
    %c0_i32_0 = arith.constant 0 : i32
    return %arg0, %c0_i32 : i32, i32
  }
  func.func @transform_5(%arg0: i32) -> (i32, i32, i32) {
    %c0_i32 = arith.constant 0 : i32
    %c0_i32_0 = arith.constant 0 : i32
    %c0_i32_1 = arith.constant 0 : i32
    return %arg0, %c0_i32, %c0_i32_0 : i32, i32, i32
  }
}

module attributes {stable_mosaic.version = 11 : i64} {
  func.func @_bn_tanh_conv1x1_stats_kernel(%arg0: i32, %arg1: memref<256x8xbf16, #tpu.memory_space<vmem>>, %arg2: memref<1x8xf32, #tpu.memory_space<vmem>>, %arg3: memref<1x8xf32, #tpu.memory_space<vmem>>, %arg4: memref<8x32xbf16, #tpu.memory_space<vmem>>, %arg5: memref<256x32xbf16, #tpu.memory_space<vmem>>, %arg6: memref<1x2x32xf32, #tpu.memory_space<vmem>>) attributes {dimension_semantics = [#tpu.dimension_semantics<parallel>], iteration_bounds = array<i64: 2>, scalar_prefetch = 0 : i64, scratch_operands = 0 : i64, tpu.core_type = #tpu.core_type<tc>, window_params = [{transform_indices = @transform_0, window_bounds = array<i64: 256, 8>}, {pipeline_mode = #tpu.pipeline_mode<synchronous>, transform_indices = @transform_1, window_bounds = array<i64: 1, 8>}, {pipeline_mode = #tpu.pipeline_mode<synchronous>, transform_indices = @transform_2, window_bounds = array<i64: 1, 8>}, {pipeline_mode = #tpu.pipeline_mode<synchronous>, transform_indices = @transform_3, window_bounds = array<i64: 8, 32>}, {transform_indices = @transform_4, window_bounds = array<i64: 256, 32>}, {transform_indices = @transform_5, window_bounds = array<i64: 1, 2, 32>}]} {
    %c0 = arith.constant 0 : index
    %c0_0 = arith.constant 0 : index
    %0 = vector.load %arg1[%c0, %c0_0] : memref<256x8xbf16, #tpu.memory_space<vmem>>, vector<256x8xbf16>
    %1 = arith.extf %0 : vector<256x8xbf16> to vector<256x8xf32>
    %c0_1 = arith.constant 0 : index
    %c0_2 = arith.constant 0 : index
    %2 = vector.load %arg2[%c0_1, %c0_2] : memref<1x8xf32, #tpu.memory_space<vmem>>, vector<1x8xf32>
    %3 = vector.broadcast %2 : vector<1x8xf32> to vector<256x8xf32>
    %4 = arith.mulf %1, %3 : vector<256x8xf32>
    %c0_3 = arith.constant 0 : index
    %c0_4 = arith.constant 0 : index
    %5 = vector.load %arg3[%c0_3, %c0_4] : memref<1x8xf32, #tpu.memory_space<vmem>>, vector<1x8xf32>
    %6 = vector.broadcast %5 : vector<1x8xf32> to vector<256x8xf32>
    %7 = arith.addf %4, %6 : vector<256x8xf32>
    %8 = math.tanh %7 : vector<256x8xf32>
    %9 = arith.truncf %8 : vector<256x8xf32> to vector<256x8xbf16>
    %c0_5 = arith.constant 0 : index
    %c0_6 = arith.constant 0 : index
    %10 = vector.load %arg4[%c0_5, %c0_6] : memref<8x32xbf16, #tpu.memory_space<vmem>>, vector<8x32xbf16>
    %cst = arith.constant dense<0.000000e+00> : vector<256x32xf32>
    %11 = tpu.matmul %9, %10, %cst {dimension_numbers = #tpu.dot_dimension_numbers<[1], [0], [0], [1], [0, 0, 1, 1], [], []>} : vector<256x8xbf16>, vector<8x32xbf16>, vector<256x32xf32> -> vector<256x32xf32>
    %12 = arith.truncf %11 : vector<256x32xf32> to vector<256x32xbf16>
    %c0_7 = arith.constant 0 : index
    %c0_8 = arith.constant 0 : index
    %13 = vector.load %arg5[%c0_7, %c0_8] : memref<256x32xbf16, #tpu.memory_space<vmem>>, vector<256x32xbf16>
    tpu.vector_store %arg5[%c0_7, %c0_8], %12 {strides = array<i32>} : memref<256x32xbf16, #tpu.memory_space<vmem>>, vector<256x32xbf16>,
    %cst_9 = arith.constant dense<0.000000e+00> : vector<32xf32>
    %14 = vector.multi_reduction <add>, %11, %cst_9 [0] : vector<256x32xf32> to vector<32xf32>
    %15 = vector.shape_cast %14 : vector<32xf32> to vector<1x32xf32>
    %c0_10 = arith.constant 0 : index
    %c0_11 = arith.constant 0 : index
    %c0_12 = arith.constant 0 : index
    %16 = vector.load %arg6[%c0_10, %c0_11, %c0_12] : memref<1x2x32xf32, #tpu.memory_space<vmem>>, vector<1x1x32xf32>
    %17 = vector.shape_cast %16 : vector<1x1x32xf32> to vector<1x32xf32>
    %18 = vector.shape_cast %15 : vector<1x32xf32> to vector<1x1x32xf32>
    tpu.vector_store %arg6[%c0_10, %c0_11, %c0_12], %18 {strides = array<i32>} : memref<1x2x32xf32, #tpu.memory_space<vmem>>, vector<1x1x32xf32>,
    %19 = arith.mulf %11, %11 : vector<256x32xf32>
    %cst_13 = arith.constant dense<0.000000e+00> : vector<32xf32>
    %20 = vector.multi_reduction <add>, %19, %cst_13 [0] : vector<256x32xf32> to vector<32xf32>
    %21 = vector.shape_cast %20 : vector<32xf32> to vector<1x32xf32>
    %c0_14 = arith.constant 0 : index
    %c1 = arith.constant 1 : index
    %c0_15 = arith.constant 0 : index
    %22 = vector.load %arg6[%c0_14, %c1, %c0_15] : memref<1x2x32xf32, #tpu.memory_space<vmem>>, vector<1x1x32xf32>
    %23 = vector.shape_cast %22 : vector<1x1x32xf32> to vector<1x32xf32>
    %24 = vector.shape_cast %21 : vector<1x32xf32> to vector<1x1x32xf32>
    tpu.vector_store %arg6[%c0_14, %c1, %c0_15], %24 {strides = array<i32>} : memref<1x2x32xf32, #tpu.memory_space<vmem>>, vector<1x1x32xf32>,
    return
  }
  func.func @transform_0(%arg0: i32) -> (i32, i32) {
    %c0_i32 = arith.constant 0 : i32
    %c0_i32_0 = arith.constant 0 : i32
    return %arg0, %c0_i32 : i32, i32
  }
  func.func @transform_1(%arg0: i32) -> (i32, i32) {
    %c0_i32 = arith.constant 0 : i32
    %c0_i32_0 = arith.constant 0 : i32
    %c0_i32_1 = arith.constant 0 : i32
    return %c0_i32, %c0_i32_0 : i32, i32
  }
  func.func @transform_2(%arg0: i32) -> (i32, i32) {
    %c0_i32 = arith.constant 0 : i32
    %c0_i32_0 = arith.constant 0 : i32
    %c0_i32_1 = arith.constant 0 : i32
    return %c0_i32, %c0_i32_0 : i32, i32
  }
  func.func @transform_3(%arg0: i32) -> (i32, i32) {
    %c0_i32 = arith.constant 0 : i32
    %c0_i32_0 = arith.constant 0 : i32
    %c0_i32_1 = arith.constant 0 : i32
    return %c0_i32, %c0_i32_0 : i32, i32
  }
  func.func @transform_4(%arg0: i32) -> (i32, i32) {
    %c0_i32 = arith.constant 0 : i32
    %c0_i32_0 = arith.constant 0 : i32
    return %arg0, %c0_i32 : i32, i32
  }
  func.func @transform_5(%arg0: i32) -> (i32, i32, i32) {
    %c0_i32 = arith.constant 0 : i32
    %c0_i32_0 = arith.constant 0 : i32
    %c0_i32_1 = arith.constant 0 : i32
    return %arg0, %c0_i32, %c0_i32_0 : i32, i32, i32
  }
}

module attributes {stable_mosaic.version = 11 : i64} {
  func.func @_bn_residual_relu_kernel(%arg0: i32, %arg1: memref<64x128xbf16, #tpu.memory_space<vmem>>, %arg2: memref<1x128xf32, #tpu.memory_space<vmem>>, %arg3: memref<1x128xf32, #tpu.memory_space<vmem>>, %arg4: memref<64x128xf32, #tpu.memory_space<vmem>>, %arg5: memref<64x128xf32, #tpu.memory_space<vmem>>) attributes {dimension_semantics = [#tpu.dimension_semantics<parallel>], iteration_bounds = array<i64: 2>, scalar_prefetch = 0 : i64, scratch_operands = 0 : i64, tpu.core_type = #tpu.core_type<tc>, window_params = [{transform_indices = @transform_0, window_bounds = array<i64: 64, 128>}, {pipeline_mode = #tpu.pipeline_mode<synchronous>, transform_indices = @transform_1, window_bounds = array<i64: 1, 128>}, {pipeline_mode = #tpu.pipeline_mode<synchronous>, transform_indices = @transform_2, window_bounds = array<i64: 1, 128>}, {transform_indices = @transform_3, window_bounds = array<i64: 64, 128>}, {transform_indices = @transform_4, window_bounds = array<i64: 64, 128>}]} {
    %c0 = arith.constant 0 : index
    %c0_0 = arith.constant 0 : index
    %0 = vector.load %arg1[%c0, %c0_0] : memref<64x128xbf16, #tpu.memory_space<vmem>>, vector<64x128xbf16>
    %1 = arith.extf %0 : vector<64x128xbf16> to vector<64x128xf32>
    %c0_1 = arith.constant 0 : index
    %c0_2 = arith.constant 0 : index
    %2 = vector.load %arg2[%c0_1, %c0_2] : memref<1x128xf32, #tpu.memory_space<vmem>>, vector<1x128xf32>
    %3 = vector.broadcast %2 : vector<1x128xf32> to vector<64x128xf32>
    %4 = arith.mulf %1, %3 : vector<64x128xf32>
    %c0_3 = arith.constant 0 : index
    %c0_4 = arith.constant 0 : index
    %5 = vector.load %arg3[%c0_3, %c0_4] : memref<1x128xf32, #tpu.memory_space<vmem>>, vector<1x128xf32>
    %6 = vector.broadcast %5 : vector<1x128xf32> to vector<64x128xf32>
    %7 = arith.addf %4, %6 : vector<64x128xf32>
    %c0_5 = arith.constant 0 : index
    %c0_6 = arith.constant 0 : index
    %8 = vector.load %arg4[%c0_5, %c0_6] : memref<64x128xf32, #tpu.memory_space<vmem>>, vector<64x128xf32>
    %9 = arith.addf %7, %8 : vector<64x128xf32>
    %cst = arith.constant 0.000000e+00 : f32
    %10 = vector.broadcast %cst : f32 to vector<64x128xf32>
    %11 = arith.maximumf %9, %10 : vector<64x128xf32>
    %c0_7 = arith.constant 0 : index
    %c0_8 = arith.constant 0 : index
    %12 = vector.load %arg5[%c0_7, %c0_8] : memref<64x128xf32, #tpu.memory_space<vmem>>, vector<64x128xf32>
    tpu.vector_store %arg5[%c0_7, %c0_8], %11 {strides = array<i32>} : memref<64x128xf32, #tpu.memory_space<vmem>>, vector<64x128xf32>,
    return
  }
  func.func @transform_0(%arg0: i32) -> (i32, i32) {
    %c0_i32 = arith.constant 0 : i32
    %c0_i32_0 = arith.constant 0 : i32
    return %arg0, %c0_i32 : i32, i32
  }
  func.func @transform_1(%arg0: i32) -> (i32, i32) {
    %c0_i32 = arith.constant 0 : i32
    %c0_i32_0 = arith.constant 0 : i32
    %c0_i32_1 = arith.constant 0 : i32
    return %c0_i32, %c0_i32_0 : i32, i32
  }
  func.func @transform_2(%arg0: i32) -> (i32, i32) {
    %c0_i32 = arith.constant 0 : i32
    %c0_i32_0 = arith.constant 0 : i32
    %c0_i32_1 = arith.constant 0 : i32
    return %c0_i32, %c0_i32_0 : i32, i32
  }
  func.func @transform_3(%arg0: i32) -> (i32, i32) {
    %c0_i32 = arith.constant 0 : i32
    %c0_i32_0 = arith.constant 0 : i32
    return %arg0, %c0_i32 : i32, i32
  }
  func.func @transform_4(%arg0: i32) -> (i32, i32) {
    %c0_i32 = arith.constant 0 : i32
    %c0_i32_0 = arith.constant 0 : i32
    return %arg0, %c0_i32 : i32, i32
  }
}

</mosaic_0001>

<llo_original>
// kernel: vol_bottleneck.4
$region0: #{vol_bottleneck.4}
  #allocation0 [shape = 'u32[]', space=smem, size = 0x4, offset = 0x4, fixed_abs, tag = 'smem constant byte address 0x4 - core index']
  #allocation1 [shape = 'u32[144,128]{1,0:T(1,128)}', space=vmem, size = 0x12000, scoped, tag = 'internal scratch']
  %s0 = inlined_call_operand.hbm [shape: f32[512,32], index: 0, kind: input, shape index: {}]
  %s1 = inlined_call_operand.vmem [shape: bf16[32,8], index: 1, kind: input, shape index: {}]
  %s2 = inlined_call_operand.vmem [shape: bf16[512,8], index: 2, kind: output, shape index: {0}]
  %s3 = inlined_call_operand.vmem [shape: f32[2,2,8], index: 3, kind: output, shape index: {1}]
  %4 = xla_tuple %s2, %s3
  %s5 = sld [smem:[#allocation0]]
  $region53: #{vol_bottleneck.4} parent=0
    _
  %s7 = ssub.s32 1, %s5
  %s8 = scalar_select 0, %s7, %s5
  $region1: #{vol_bottleneck.4} parent=0
    #allocation2 [shape = 'u8[262144]{0}', space=vmem, size = 0x40000, scoped, tag = 'input window, operand 0']
    #allocation3 [shape = 's32[2]{0}', space=sflag, size = 0x8, scoped, tag = 'scoped memory for vol_bottleneck.4']
    %9 = vsyncpa [#allocation3], 0
    %s10 = scalar_lea.sflag [#allocation3], 1
    %11 = vsyncpa %s10, 0
    loop: start=0, step=1, limit=4
    $region2: #{vol_bottleneck.4} parent=1 // loop_pre_header
      _
    $region3: #{vol_bottleneck.4} parent=1 // loop_header
      %s13 = sphi 0, %s17
      %p14 = scmp.ge.s32.totalorder %s13, 4
      %s23 = sphi 0, %s25
      %s26 = sphi 0, %s23
      %s27 = sphi 0, %s26
      %s43 = sphi 0, %s27
      %s47 = sphi 0, %s47
      %s49 = sphi 0, %s47
      %s50 = sphi 0, %s49
      %s64 = sphi 0, %s50
      %s70 = sphi 0, %s72
      %s73 = sphi 0, %s70
      %s74 = sphi 0, %s73
      %s90 = sphi 0, %s74
      %s96 = sphi 0, %s98
      %s99 = sphi 0, %s96
      %s100 = sphi 0, %s99
      %s116 = sphi 0, %s100
    $region4: #{vol_bottleneck.4} parent=1 // loop_header_branch
      %16 = sbr.rel (%p14) target = $region8
    $region5: #{vol_bottleneck.4} parent=1 // loop_body
      %s18 = ssub.s32 %s13, 1
      %s19 = ssub.s32 %s13, 2
      %s20 = sadd.s32 %s13, 1
      %s21 = ssub.s32 %s13, %s20
      %p22 = scmp.eq.s32.totalorder %s21, 0
      %s24 = sadd.s32 %s23, 1
      %s25 = scalar_select %p22, %s23, %s24
      %p28 = pneg %p22
      %p29 = scmp.eq.s32.totalorder %s13, 1
      %p30 = por %p28, %p29
      %p31 = scmp.ne.s32.totalorder %s23, %s26
      %p32 = scmp.eq.s32.totalorder %s13, 0
      %p33 = por %p31, %p32
      %p34 = scmp.ne.s32.totalorder %s23, %s26
      %p35 = scmp.eq.s32.totalorder %s18, 1
      %p36 = por %p34, %p35
      %p37 = scmp.ne.s32.totalorder %s26, %s27
      %p38 = scmp.eq.s32.totalorder %s18, 0
      %p39 = por %p37, %p38
      %p40 = scmp.ne.s32.totalorder %s26, %s27
      %p41 = scmp.eq.s32.totalorder %s19, 1
      %p42 = por %p40, %p41
      %p44 = scmp.ne.s32.totalorder %s27, %s43
      %p45 = scmp.eq.s32.totalorder %s19, 0
      %p46 = por %p44, %p45
      %s48 = sadd.s32 %s47, 1
      %p51 = scmp.eq.s32.totalorder %s13, 1
      %p52 = scmp.ne.s32.totalorder %s47, %s49
      %p53 = scmp.eq.s32.totalorder %s13, 0
      %p54 = por %p52, %p53
      %p55 = scmp.ne.s32.totalorder %s47, %s49
      %p56 = scmp.eq.s32.totalorder %s18, 1
      %p57 = por %p55, %p56
      %p58 = scmp.ne.s32.totalorder %s49, %s50
      %p59 = scmp.eq.s32.totalorder %s18, 0
      %p60 = por %p58, %p59
      %p61 = scmp.ne.s32.totalorder %s49, %s50
      %p62 = scmp.eq.s32.totalorder %s19, 1
      %p63 = por %p61, %p62
      %p65 = scmp.ne.s32.totalorder %s50, %s64
      %p66 = scmp.eq.s32.totalorder %s19, 0
      %p67 = por %p65, %p66
      %s68 = ssub.s32 %s13, %s20
      %p69 = scmp.eq.s32.totalorder %s68, 0
      %s71 = sadd.s32 %s70, 1
      %s72 = scalar_select %p69, %s70, %s71
      %p75 = pneg %p69
      %p76 = scmp.eq.s32.totalorder %s13, 1
      %p77 = por %p75, %p76
      %p78 = scmp.ne.s32.totalorder %s70, %s73
      %p79 = scmp.eq.s32.totalorder %s13, 0
      %p80 = por %p78, %p79
      %p81 = scmp.ne.s32.totalorder %s70, %s73
      %p82 = scmp.eq.s32.totalorder %s18, 1
      %p83 = por %p81, %p82
      %p84 = scmp.ne.s32.totalorder %s73, %s74
      %p85 = scmp.eq.s32.totalorder %s18, 0
      %p86 = por %p84, %p85
      %p87 = scmp.ne.s32.totalorder %s73, %s74
      %p88 = scmp.eq.s32.totalorder %s19, 1
      %p89 = por %p87, %p88
      %p91 = scmp.ne.s32.totalorder %s74, %s90
      %p92 = scmp.eq.s32.totalorder %s19, 0
      %p93 = por %p91, %p92
      %s94 = ssub.s32 %s13, %s20
      %p95 = scmp.eq.s32.totalorder %s94, 0
      %s97 = sadd.s32 %s96, 1
      %s98 = scalar_select %p95, %s96, %s97
      %p101 = pneg %p95
      %p102 = scmp.eq.s32.totalorder %s13, 1
      %p103 = por %p101, %p102
      %p104 = scmp.ne.s32.totalorder %s96, %s99
      %p105 = scmp.eq.s32.totalorder %s13, 0
      %p106 = por %p104, %p105
      %p107 = scmp.ne.s32.totalorder %s96, %s99
      %p108 = scmp.eq.s32.totalorder %s18, 1
      %p109 = por %p107, %p108
      %p110 = scmp.ne.s32.totalorder %s99, %s100
      %p111 = scmp.eq.s32.totalorder %s18, 0
      %p112 = por %p110, %p111
      %p113 = scmp.ne.s32.totalorder %s99, %s100
      %p114 = scmp.eq.s32.totalorder %s19, 1
      %p115 = por %p113, %p114
      %p117 = scmp.ne.s32.totalorder %s100, %s116
      %p118 = scmp.eq.s32.totalorder %s19, 0
      %p119 = por %p117, %p118
      %p120 = scmp.le.s32.totalorder 1, %s13
      %p121 = scmp.lt.s32.totalorder %s13, 3
      %p122 = pnand %p120, %p121
      %p123 = pneg %p122
      // Predicated region
      $region9: #{vol_bottleneck.4} parent=5 // pred_check
        _
      $region10: #{vol_bottleneck.4} parent=5 // pred_check_branch
        %125 = sbr.rel (%p122) target = $region12
      $region11: #{vol_bottleneck.4} parent=5 // pred_region
        %s126 = ssub.s32 %s13, 1
        // Predicated region
        $region13: #{vol_bottleneck.4} parent=11 // pred_check
          %p127 = pneg %p60
        $region14: #{vol_bottleneck.4} parent=11 // pred_check_branch
          %129 = sbr.rel (%p127) target = $region16
        $region15: #{vol_bottleneck.4} parent=11 // pred_region
          _
        $region16: #{vol_bottleneck.4} parent=11 // pred_fallthru
          _
      $region12: #{vol_bottleneck.4} parent=5 // pred_fallthru
        _
      %p130 = scmp.lt.s32.totalorder %s13, 2
      // Predicated region
      $region17: #{vol_bottleneck.4} parent=5 // pred_check
        %p131 = pneg %p130
      $region18: #{vol_bottleneck.4} parent=5 // pred_check_branch
        %133 = sbr.rel (%p131) target = $region20
      $region19: #{vol_bottleneck.4} parent=5 // pred_region
        // Predicated region
        $region21: #{vol_bottleneck.4} parent=19 // pred_check
          %p134 = pneg %p33
        $region22: #{vol_bottleneck.4} parent=19 // pred_check_branch
          %136 = sbr.rel (%p134) target = $region24
        $region23: #{vol_bottleneck.4} parent=19 // pred_region
          %s137 = sand.u32 %s23, 1
          %s138 = scalar_lea.sflag [#allocation3], %s137
          %s139 = sand.u32 %s23, 1
          %s140 = smul.addr %s139, 256
          %s141 = scalar_lea.vmem [#allocation2], %s140
          %s142 = smul.u32 32, %s13
          %s144 = ssub.s32 4096, 4096
          %145 = vsyncadd %s138, %s144
          %s146 = smul.addr %s142, 128
          %s147 = scalar_lea.hbm %s0, %s146
          %s148 = sshll.u32 %s141, 4
          %s149 = int_to_ptr.vmem [resolvable:$true] %s148
          %154 = dma.hbm_to_vmem [thread:$0]  %s147, 4096, %s149, %s138, 128, 128, 8
        $region24: #{vol_bottleneck.4} parent=19 // pred_fallthru
          _
      $region20: #{vol_bottleneck.4} parent=5 // pred_fallthru
        _
      %p155 = scmp.le.s32.totalorder 1, %s13
      %p156 = scmp.lt.s32.totalorder %s13, 3
      %p157 = pnand %p155, %p156
      %p158 = pneg %p157
      // Predicated region
      $region25: #{vol_bottleneck.4} parent=5 // pred_check
        _
      $region26: #{vol_bottleneck.4} parent=5 // pred_check_branch
        %160 = sbr.rel (%p157) target = $region28
      $region27: #{vol_bottleneck.4} parent=5 // pred_region
        %s161 = ssub.s32 %s13, 1
        %s162 = sand.u32 %s26, 1
        %s163 = scalar_lea.sflag [#allocation3], %s162
        %s164 = sand.u32 %s26, 1
        %s165 = smul.addr %s164, 256
        %s166 = scalar_lea.vmem [#allocation2], %s165
        // Predicated region
        $region29: #{vol_bottleneck.4} parent=27 // pred_check
          %p167 = pneg %p39
        $region30: #{vol_bottleneck.4} parent=27 // pred_check_branch
          %169 = sbr.rel (%p167) target = $region32
        $region31: #{vol_bottleneck.4} parent=27 // pred_region
          %170 = dma.done %s163, 4096
        $region32: #{vol_bottleneck.4} parent=27 // pred_fallthru
          _
        %s171 = sand.u32 %s26, 1
        %s172 = scalar_lea.sflag [#allocation3], %s171
        %s173 = sand.u32 %s26, 1
        %s174 = smul.addr %s173, 256
        %s175 = scalar_lea.vmem [#allocation2], %s174
        %p176 = pneg %p39
        %p177 = pneg %p36
        %p178 = pneg %p60
        %p179 = pneg %p57
        %p180 = pneg %p86
        %p181 = pneg %p83
        %s182 = smul.u32 32, %s18
        %p183 = scmp.lt.s32.totalorder %s182, 63
        %s184 = scalar_select %p183, %s182, 63
        %s185 = smul.addr %s184, 4
        %s186 = scalar_lea.vmem %s2, %s185
        %p187 = pneg %p112
        %p188 = pneg %p109
        %p189 = scmp.lt.s32.totalorder %s18, 1
        %s190 = scalar_select %p189, %s18, 1
        %s191 = smul.addr %s190, 2
        %s192 = scalar_lea.vmem %s3, %s191
        %s193 = smul.u32 32, %s18
        %s194 = smul.u32 32, %s18
        %p195 = scmp.lt.s32.totalorder %s194, 63
        %s196 = scalar_select %p195, %s194, 63
        %s197 = smul.addr %s196, 4
        %s198 = scalar_lea.vmem %s2, %s197
        %s199 = smul.u32 32, %s18
        %p200 = scmp.lt.s32.totalorder %s18, 1
        %s201 = scalar_select %p200, %s18, 1
        %s202 = smul.addr %s201, 2
        %s203 = scalar_lea.vmem %s3, %s202
        %v205 = vld [vmem:[%s166] sm:$0xff]
        %v206 = vld [vmem:[%s166 + $0x8] sm:$0xff]
        %v207 = vld [vmem:[%s166 + $0x10] sm:$0xff]
        %v208 = vld [vmem:[%s166 + $0x18] sm:$0xff]
        %v209 = vld [vmem:[%s166 + $0x20] sm:$0xff]
        %v210 = vld [vmem:[%s166 + $0x28] sm:$0xff]
        %v211 = vld [vmem:[%s166 + $0x30] sm:$0xff]
        %v212 = vld [vmem:[%s166 + $0x38] sm:$0xff]
        %v213 = vld [vmem:[%s166 + $0x40] sm:$0xff]
        %v214 = vld [vmem:[%s166 + $0x48] sm:$0xff]
        %v215 = vld [vmem:[%s166 + $0x50] sm:$0xff]
        %v216 = vld [vmem:[%s166 + $0x58] sm:$0xff]
        %v217 = vld [vmem:[%s166 + $0x60] sm:$0xff]
        %v218 = vld [vmem:[%s166 + $0x68] sm:$0xff]
        %v219 = vld [vmem:[%s166 + $0x70] sm:$0xff]
        %v220 = vld [vmem:[%s166 + $0x78] sm:$0xff]
        %v221 = vld [vmem:[%s166 + $0x80] sm:$0xff]
        %v222 = vld [vmem:[%s166 + $0x88] sm:$0xff]
        %v223 = vld [vmem:[%s166 + $0x90] sm:$0xff]
        %v224 = vld [vmem:[%s166 + $0x98] sm:$0xff]
        %v225 = vld [vmem:[%s166 + $0xa0] sm:$0xff]
        %v226 = vld [vmem:[%s166 + $0xa8] sm:$0xff]
        %v227 = vld [vmem:[%s166 + $0xb0] sm:$0xff]
        %v228 = vld [vmem:[%s166 + $0xb8] sm:$0xff]
        %v229 = vld [vmem:[%s166 + $0xc0] sm:$0xff]
        %v230 = vld [vmem:[%s166 + $0xc8] sm:$0xff]
        %v231 = vld [vmem:[%s166 + $0xd0] sm:$0xff]
        %v232 = vld [vmem:[%s166 + $0xd8] sm:$0xff]
        %v233 = vld [vmem:[%s166 + $0xe0] sm:$0xff]
        %v234 = vld [vmem:[%s166 + $0xe8] sm:$0xff]
        %v235 = vld [vmem:[%s166 + $0xf0] sm:$0xff]
        %v236 = vld [vmem:[%s166 + $0xf8] sm:$0xff]
        %v237 = vpack.c.bf16 %v206, %v205
        %v238 = vpack.c.bf16 %v208, %v207
        %v239 = vpack.c.bf16 %v210, %v209
        %v240 = vpack.c.bf16 %v212, %v211
        %v241 = vpack.c.bf16 %v214, %v213
        %v242 = vpack.c.bf16 %v216, %v215
        %v243 = vpack.c.bf16 %v218, %v217
        %v244 = vpack.c.bf16 %v220, %v219
        %v245 = vpack.c.bf16 %v222, %v221
        %v246 = vpack.c.bf16 %v224, %v223
        %v247 = vpack.c.bf16 %v226, %v225
        %v248 = vpack.c.bf16 %v228, %v227
        %v249 = vpack.c.bf16 %v230, %v229
        %v250 = vpack.c.bf16 %v232, %v231
        %v251 = vpack.c.bf16 %v234, %v233
        %v252 = vpack.c.bf16 %v236, %v235
        %v253 = vld [vmem:[%s1] sm:$0xf]
        %v254 = vld [vmem:[%s1 + $0x4] sm:$0xf]
        %v255 = vld [vmem:[%s1 + $0x8] sm:$0xf]
        %v256 = vld [vmem:[%s1 + $0xc] sm:$0xf]
        %v261 = vunpack.c.l.b16 %v253
        %v262 = vunpack.c.l.b16 %v254
        %v263 = vunpack.c.l.b16 %v255
        %v264 = vunpack.c.l.b16 %v256
        %v265 = vpack.c.b16 %v262, %v261
        %v266 = vpack.c.b16 %v264, %v263
        %vm269 = vcmask 261120
        %v271 = vsel %vm269, %v237, 0
        %v274 = vsel %vm269, %v238, 0
        %v277 = vsel %vm269, %v239, 0
        %v280 = vsel %vm269, %v240, 0
        %v283 = vsel %vm269, %v241, 0
        %v286 = vsel %vm269, %v242, 0
        %v289 = vsel %vm269, %v243, 0
        %v292 = vsel %vm269, %v244, 0
        %v295 = vsel %vm269, %v245, 0
        %v298 = vsel %vm269, %v246, 0
        %v301 = vsel %vm269, %v247, 0
        %v304 = vsel %vm269, %v248, 0
        %v307 = vsel %vm269, %v249, 0
        %v310 = vsel %vm269, %v250, 0
        %v313 = vsel %vm269, %v251, 0
        %v316 = vsel %vm269, %v252, 0
        %318 = vmatprep.subr.bf16.mxu0 0
        %319 = vmatpush1.bf16.msra.mxu0 %v265
        %320 = vmatprep.subr.bf16.mxu0 0
        %321 = vmatpush1.bf16.msra.mxu0 %v266
        %322 = vmatprep.subr.bf16.mxu0 0
        %323 = vmatpush1.bf16.msra.mxu0 0
        %324 = vmatprep.subr.bf16.mxu0 0
        %325 = vmatpush1.bf16.msra.mxu0 0
        %326 = vmatprep.subr.bf16.mxu0 0
        %327 = vmatpush1.bf16.msra.mxu0 0
        %328 = vmatprep.subr.bf16.mxu0 0
        %329 = vmatpush1.bf16.msra.mxu0 0
        %330 = vmatprep.subr.bf16.mxu0 0
        %331 = vmatpush1.bf16.msra.mxu0 0
        %332 = vmatprep.subr.bf16.mxu0 0
        %333 = vmatpush1.bf16.msra.mxu0 0
        %334 = vmatprep.subr.bf16.mxu0 0
        %335 = vmatpush1.bf16.msra.mxu0 0
        %336 = vmatprep.subr.bf16.mxu0 0
        %337 = vmatpush1.bf16.msra.mxu0 0
        %338 = vmatprep.subr.bf16.mxu0 0
        %339 = vmatpush1.bf16.msra.mxu0 0
        %340 = vmatprep.subr.bf16.mxu0 0
        %341 = vmatpush1.bf16.msra.mxu0 0
        %342 = vmatprep.subr.bf16.mxu0 0
        %343 = vmatpush1.bf16.msra.mxu0 0
        %344 = vmatprep.subr.bf16.mxu0 0
        %345 = vmatpush1.bf16.msra.mxu0 0
        %346 = vmatprep.subr.bf16.mxu0 0
        %347 = vmatpush1.bf16.msra.mxu0 0
        %348 = vmatprep.subr.bf16.mxu0 0
        %349 = vmatpush1.bf16.msra.mxu0 0
        %350 = vmatprep.mubr.bf16.mxu0 0
        %351 = vmatmul.mubr.bf16.gmra.mrb[0].mxu0 %v271
        %v352 = vpop.f32.mrb[0].mxu0
        %v353 = vadd.f32 0.0, %v352
        %v354 = vpop.f32.mrb[0].mxu0
        %v355 = vpop.f32.mrb[0].mxu0
        %v356 = vadd.f32 0.0, %v355
        %v357 = vpop.f32.mrb[0].mxu0
        %358 = vmatprep.mubr.bf16.mxu0 0
        %359 = vmatmul.mubr.bf16.gmra.mrb[0].mxu0 %v274
        %v360 = vpop.f32.mrb[0].mxu0
        %v361 = vadd.f32 0.0, %v360
        %v362 = vpop.f32.mrb[0].mxu0
        %v363 = vpop.f32.mrb[0].mxu0
        %v364 = vadd.f32 0.0, %v363
        %v365 = vpop.f32.mrb[0].mxu0
        %366 = vmatprep.mubr.bf16.mxu0 0
        %367 = vmatmul.mubr.bf16.gmra.mrb[0].mxu0 %v277
        %v368 = vpop.f32.mrb[0].mxu0
        %v369 = vadd.f32 0.0, %v368
        %v370 = vpop.f32.mrb[0].mxu0
        %v371 = vpop.f32.mrb[0].mxu0
        %v372 = vadd.f32 0.0, %v371
        %v373 = vpop.f32.mrb[0].mxu0
        %374 = vmatprep.mubr.bf16.mxu0 0
        %375 = vmatmul.mubr.bf16.gmra.mrb[0].mxu0 %v280
        %v376 = vpop.f32.mrb[0].mxu0
        %v377 = vadd.f32 0.0, %v376
        %v378 = vpop.f32.mrb[0].mxu0
        %v379 = vpop.f32.mrb[0].mxu0
        %v380 = vadd.f32 0.0, %v379
        %v381 = vpop.f32.mrb[0].mxu0
        %382 = vmatprep.mubr.bf16.mxu0 0
        %383 = vmatmul.mubr.bf16.gmra.mrb[0].mxu0 %v283
        %v384 = vpop.f32.mrb[0].mxu0
        %v385 = vadd.f32 0.0, %v384
        %v386 = vpop.f32.mrb[0].mxu0
        %v387 = vpop.f32.mrb[0].mxu0
        %v388 = vadd.f32 0.0, %v387
        %v389 = vpop.f32.mrb[0].mxu0
        %390 = vmatprep.mubr.bf16.mxu0 0
        %391 = vmatmul.mubr.bf16.gmra.mrb[0].mxu0 %v286
        %v392 = vpop.f32.mrb[0].mxu0
        %v393 = vadd.f32 0.0, %v392
        %v394 = vpop.f32.mrb[0].mxu0
        %v395 = vpop.f32.mrb[0].mxu0
        %v396 = vadd.f32 0.0, %v395
        %v397 = vpop.f32.mrb[0].mxu0
        %398 = vmatprep.mubr.bf16.mxu0 0
        %399 = vmatmul.mubr.bf16.gmra.mrb[0].mxu0 %v289
        %v400 = vpop.f32.mrb[0].mxu0
        %v401 = vadd.f32 0.0, %v400
        %v402 = vpop.f32.mrb[0].mxu0
        %v403 = vpop.f32.mrb[0].mxu0
        %v404 = vadd.f32 0.0, %v403
        %v405 = vpop.f32.mrb[0].mxu0
        %406 = vmatprep.mubr.bf16.mxu0 0
        %407 = vmatmul.mubr.bf16.gmra.mrb[0].mxu0 %v292
        %v408 = vpop.f32.mrb[0].mxu0
        %v409 = vadd.f32 0.0, %v408
        %v410 = vpop.f32.mrb[0].mxu0
        %v411 = vpop.f32.mrb[0].mxu0
        %v412 = vadd.f32 0.0, %v411
        %v413 = vpop.f32.mrb[0].mxu0
        %414 = vmatprep.mubr.bf16.mxu0 0
        %415 = vmatmul.mubr.bf16.gmra.mrb[0].mxu0 %v295
        %v416 = vpop.f32.mrb[0].mxu0
        %v417 = vadd.f32 0.0, %v416
        %v418 = vpop.f32.mrb[0].mxu0
        %v419 = vpop.f32.mrb[0].mxu0
        %v420 = vadd.f32 0.0, %v419
        %v421 = vpop.f32.mrb[0].mxu0
        %422 = vmatprep.mubr.bf16.mxu0 0
        %423 = vmatmul.mubr.bf16.gmra.mrb[0].mxu0 %v298
        %v424 = vpop.f32.mrb[0].mxu0
        %v425 = vadd.f32 0.0, %v424
        %v426 = vpop.f32.mrb[0].mxu0
        %v427 = vpop.f32.mrb[0].mxu0
        %v428 = vadd.f32 0.0, %v427
        %v429 = vpop.f32.mrb[0].mxu0
        %430 = vmatprep.mubr.bf16.mxu0 0
        %431 = vmatmul.mubr.bf16.gmra.mrb[0].mxu0 %v301
        %v432 = vpop.f32.mrb[0].mxu0
        %v433 = vadd.f32 0.0, %v432
        %v434 = vpop.f32.mrb[0].mxu0
        %v435 = vpop.f32.mrb[0].mxu0
        %v436 = vadd.f32 0.0, %v435
        %v437 = vpop.f32.mrb[0].mxu0
        %438 = vmatprep.mubr.bf16.mxu0 0
        %439 = vmatmul.mubr.bf16.gmra.mrb[0].mxu0 %v304
        %v440 = vpop.f32.mrb[0].mxu0
        %v441 = vadd.f32 0.0, %v440
        %v442 = vpop.f32.mrb[0].mxu0
        %v443 = vpop.f32.mrb[0].mxu0
        %v444 = vadd.f32 0.0, %v443
        %v445 = vpop.f32.mrb[0].mxu0
        %446 = vmatprep.mubr.bf16.mxu0 0
        %447 = vmatmul.mubr.bf16.gmra.mrb[0].mxu0 %v307
        %v448 = vpop.f32.mrb[0].mxu0
        %v449 = vadd.f32 0.0, %v448
        %v450 = vpop.f32.mrb[0].mxu0
        %v451 = vpop.f32.mrb[0].mxu0
        %v452 = vadd.f32 0.0, %v451
        %v453 = vpop.f32.mrb[0].mxu0
        %454 = vmatprep.mubr.bf16.mxu0 0
        %455 = vmatmul.mubr.bf16.gmra.mrb[0].mxu0 %v310
        %v456 = vpop.f32.mrb[0].mxu0
        %v457 = vadd.f32 0.0, %v456
        %v458 = vpop.f32.mrb[0].mxu0
        %v459 = vpop.f32.mrb[0].mxu0
        %v460 = vadd.f32 0.0, %v459
        %v461 = vpop.f32.mrb[0].mxu0
        %462 = vmatprep.mubr.bf16.mxu0 0
        %463 = vmatmul.mubr.bf16.gmra.mrb[0].mxu0 %v313
        %v464 = vpop.f32.mrb[0].mxu0
        %v465 = vadd.f32 0.0, %v464
        %v466 = vpop.f32.mrb[0].mxu0
        %v467 = vpop.f32.mrb[0].mxu0
        %v468 = vadd.f32 0.0, %v467
        %v469 = vpop.f32.mrb[0].mxu0
        %470 = vmatprep.mubr.bf16.mxu0 0
        %471 = vmatmul.mubr.bf16.gmra.mrb[0].mxu0 %v316
        %v472 = vpop.f32.mrb[0].mxu0
        %v473 = vadd.f32 0.0, %v472
        %v474 = vpop.f32.mrb[0].mxu0
        %v475 = vpop.f32.mrb[0].mxu0
        %v476 = vadd.f32 0.0, %v475
        %v477 = vpop.f32.mrb[0].mxu0
        %478 = vdwg.mxu0
        %v479 = vpack.c.bf16 %v356, %v353
        %v480 = vpack.c.bf16 %v364, %v361
        %v481 = vpack.c.bf16 %v372, %v369
        %v482 = vpack.c.bf16 %v380, %v377
        %v483 = vpack.c.bf16 %v388, %v385
        %v484 = vpack.c.bf16 %v396, %v393
        %v485 = vpack.c.bf16 %v404, %v401
        %v486 = vpack.c.bf16 %v412, %v409
        %v487 = vpack.c.bf16 %v420, %v417
        %v488 = vpack.c.bf16 %v428, %v425
        %v489 = vpack.c.bf16 %v436, %v433
        %v490 = vpack.c.bf16 %v444, %v441
        %v491 = vpack.c.bf16 %v452, %v449
        %v492 = vpack.c.bf16 %v460, %v457
        %v493 = vpack.c.bf16 %v468, %v465
        %v494 = vpack.c.bf16 %v476, %v473
        %v511 = vunpack.c.l.b16 %v479
        %v512 = vunpack.c.h.b16 %v479
        %v513 = vunpack.c.l.b16 %v480
        %v514 = vunpack.c.h.b16 %v480
        %v515 = vunpack.c.l.b16 %v481
        %v516 = vunpack.c.h.b16 %v481
        %v517 = vunpack.c.l.b16 %v482
        %v518 = vunpack.c.h.b16 %v482
        %v519 = vunpack.c.l.b16 %v483
        %v520 = vunpack.c.h.b16 %v483
        %v521 = vunpack.c.l.b16 %v484
        %v522 = vunpack.c.h.b16 %v484
        %v523 = vunpack.c.l.b16 %v485
        %v524 = vunpack.c.h.b16 %v485
        %v525 = vunpack.c.l.b16 %v486
        %v526 = vunpack.c.h.b16 %v486
        %v527 = vunpack.c.l.b16 %v487
        %v528 = vunpack.c.h.b16 %v487
        %v529 = vunpack.c.l.b16 %v488
        %v530 = vunpack.c.h.b16 %v488
        %v531 = vunpack.c.l.b16 %v489
        %v532 = vunpack.c.h.b16 %v489
        %v533 = vunpack.c.l.b16 %v490
        %v534 = vunpack.c.h.b16 %v490
        %v535 = vunpack.c.l.b16 %v491
        %v536 = vunpack.c.h.b16 %v491
        %v537 = vunpack.c.l.b16 %v492
        %v538 = vunpack.c.h.b16 %v492
        %v539 = vunpack.c.l.b16 %v493
        %v540 = vunpack.c.h.b16 %v493
        %v541 = vunpack.c.l.b16 %v494
        %v542 = vunpack.c.h.b16 %v494
        %v543 = vpack.c.b16 %v511, %v511
        %v544 = vpack.c.b16 %v512, %v512
        %v545 = vpack.c.b16 %v513, %v513
        %v546 = vpack.c.b16 %v514, %v514
        %v547 = vpack.c.b16 %v515, %v515
        %v548 = vpack.c.b16 %v516, %v516
        %v549 = vpack.c.b16 %v517, %v517
        %v550 = vpack.c.b16 %v518, %v518
        %v551 = vpack.c.b16 %v519, %v519
        %v552 = vpack.c.b16 %v520, %v520
        %v553 = vpack.c.b16 %v521, %v521
        %v554 = vpack.c.b16 %v522, %v522
        %v555 = vpack.c.b16 %v523, %v523
        %v556 = vpack.c.b16 %v524, %v524
        %v557 = vpack.c.b16 %v525, %v525
        %v558 = vpack.c.b16 %v526, %v526
        %v559 = vpack.c.b16 %v527, %v527
        %v560 = vpack.c.b16 %v528, %v528
        %v561 = vpack.c.b16 %v529, %v529
        %v562 = vpack.c.b16 %v530, %v530
        %v563 = vpack.c.b16 %v531, %v531
        %v564 = vpack.c.b16 %v532, %v532
        %v565 = vpack.c.b16 %v533, %v533
        %v566 = vpack.c.b16 %v534, %v534
        %v567 = vpack.c.b16 %v535, %v535
        %v568 = vpack.c.b16 %v536, %v536
        %v569 = vpack.c.b16 %v537, %v537
        %v570 = vpack.c.b16 %v538, %v538
        %v571 = vpack.c.b16 %v539, %v539
        %v572 = vpack.c.b16 %v540, %v540
        %v573 = vpack.c.b16 %v541, %v541
        %v574 = vpack.c.b16 %v542, %v542
        %vm607 = vcmask 60416
        %608 = vst.msk [vmem:[%s198] sm:$0xf] %vm607, %v543
        %609 = vst.msk [vmem:[%s198 + $0x4] sm:$0xf] %vm607, %v544
        %610 = vst.msk [vmem:[%s198 + $0x8] sm:$0xf] %vm607, %v545
        %611 = vst.msk [vmem:[%s198 + $0xc] sm:$0xf] %vm607, %v546
        %612 = vst.msk [vmem:[%s198 + $0x10] sm:$0xf] %vm607, %v547
        %613 = vst.msk [vmem:[%s198 + $0x14] sm:$0xf] %vm607, %v548
        %614 = vst.msk [vmem:[%s198 + $0x18] sm:$0xf] %vm607, %v549
        %615 = vst.msk [vmem:[%s198 + $0x1c] sm:$0xf] %vm607, %v550
        %616 = vst.msk [vmem:[%s198 + $0x20] sm:$0xf] %vm607, %v551
        %617 = vst.msk [vmem:[%s198 + $0x24] sm:$0xf] %vm607, %v552
        %618 = vst.msk [vmem:[%s198 + $0x28] sm:$0xf] %vm607, %v553
        %619 = vst.msk [vmem:[%s198 + $0x2c] sm:$0xf] %vm607, %v554
        %620 = vst.msk [vmem:[%s198 + $0x30] sm:$0xf] %vm607, %v555
        %621 = vst.msk [vmem:[%s198 + $0x34] sm:$0xf] %vm607, %v556
        %622 = vst.msk [vmem:[%s198 + $0x38] sm:$0xf] %vm607, %v557
        %623 = vst.msk [vmem:[%s198 + $0x3c] sm:$0xf] %vm607, %v558
        %624 = vst.msk [vmem:[%s198 + $0x40] sm:$0xf] %vm607, %v559
        %625 = vst.msk [vmem:[%s198 + $0x44] sm:$0xf] %vm607, %v560
        %626 = vst.msk [vmem:[%s198 + $0x48] sm:$0xf] %vm607, %v561
        %627 = vst.msk [vmem:[%s198 + $0x4c] sm:$0xf] %vm607, %v562
        %628 = vst.msk [vmem:[%s198 + $0x50] sm:$0xf] %vm607, %v563
        %629 = vst.msk [vmem:[%s198 + $0x54] sm:$0xf] %vm607, %v564
        %630 = vst.msk [vmem:[%s198 + $0x58] sm:$0xf] %vm607, %v565
        %631 = vst.msk [vmem:[%s198 + $0x5c] sm:$0xf] %vm607, %v566
        %632 = vst.msk [vmem:[%s198 + $0x60] sm:$0xf] %vm607, %v567
        %633 = vst.msk [vmem:[%s198 + $0x64] sm:$0xf] %vm607, %v568
        %634 = vst.msk [vmem:[%s198 + $0x68] sm:$0xf] %vm607, %v569
        %635 = vst.msk [vmem:[%s198 + $0x6c] sm:$0xf] %vm607, %v570
        %636 = vst.msk [vmem:[%s198 + $0x70] sm:$0xf] %vm607, %v571
        %637 = vst.msk [vmem:[%s198 + $0x74] sm:$0xf] %vm607, %v572
        %638 = vst.msk [vmem:[%s198 + $0x78] sm:$0xf] %vm607, %v573
        %639 = vst.msk [vmem:[%s198 + $0x7c] sm:$0xf] %vm607, %v574
        %vm640 = vcmask 64512
        %v641 = vsel %vm640, %v353, 0.0
        %v642 = vsel %vm640, %v356, 0.0
        %v643 = vadd.f32 %v641, %v642
        %v644 = vsel %vm640, %v361, 0.0
        %v645 = vadd.f32 %v643, %v644
        %v646 = vsel %vm640, %v364, 0.0
        %v647 = vadd.f32 %v645, %v646
        %v648 = vsel %vm640, %v369, 0.0
        %v649 = vadd.f32 %v647, %v648
        %v650 = vsel %vm640, %v372, 0.0
        %v651 = vadd.f32 %v649, %v650
        %v652 = vsel %vm640, %v377, 0.0
        %v653 = vadd.f32 %v651, %v652
        %v654 = vsel %vm640, %v380, 0.0
        %v655 = vadd.f32 %v653, %v654
        %v656 = vsel %vm640, %v385, 0.0
        %v657 = vadd.f32 %v655, %v656
        %v658 = vsel %vm640, %v388, 0.0
        %v659 = vadd.f32 %v657, %v658
        %v660 = vsel %vm640, %v393, 0.0
        %v661 = vadd.f32 %v659, %v660
        %v662 = vsel %vm640, %v396, 0.0
        %v663 = vadd.f32 %v661, %v662
        %v664 = vsel %vm640, %v401, 0.0
        %v665 = vadd.f32 %v663, %v664
        %v666 = vsel %vm640, %v404, 0.0
        %v667 = vadd.f32 %v665, %v666
        %v668 = vsel %vm640, %v409, 0.0
        %v669 = vadd.f32 %v667, %v668
        %v670 = vsel %vm640, %v412, 0.0
        %v671 = vadd.f32 %v669, %v670
        %v672 = vsel %vm640, %v417, 0.0
        %v673 = vadd.f32 %v671, %v672
        %v674 = vsel %vm640, %v420, 0.0
        %v675 = vadd.f32 %v673, %v674
        %v676 = vsel %vm640, %v425, 0.0
        %v677 = vadd.f32 %v675, %v676
        %v678 = vsel %vm640, %v428, 0.0
        %v679 = vadd.f32 %v677, %v678
        %v680 = vsel %vm640, %v433, 0.0
        %v681 = vadd.f32 %v679, %v680
        %v682 = vsel %vm640, %v436, 0.0
        %v683 = vadd.f32 %v681, %v682
        %v684 = vsel %vm640, %v441, 0.0
        %v685 = vadd.f32 %v683, %v684
        %v686 = vsel %vm640, %v444, 0.0
        %v687 = vadd.f32 %v685, %v686
        %v688 = vsel %vm640, %v449, 0.0
        %v689 = vadd.f32 %v687, %v688
        %v690 = vsel %vm640, %v452, 0.0
        %v691 = vadd.f32 %v689, %v690
        %v692 = vsel %vm640, %v457, 0.0
        %v693 = vadd.f32 %v691, %v692
        %v694 = vsel %vm640, %v460, 0.0
        %v695 = vadd.f32 %v693, %v694
        %v696 = vsel %vm640, %v465, 0.0
        %v697 = vadd.f32 %v695, %v696
        %v698 = vsel %vm640, %v468, 0.0
        %v699 = vadd.f32 %v697, %v698
        %v700 = vsel %vm640, %v473, 0.0
        %v701 = vadd.f32 %v699, %v700
        %v702 = vsel %vm640, %v476, 0.0
        %v703 = vadd.f32 %v701, %v702
        %v704 = vrot.slane %v703, 4
        %v705 = vadd.f32 %v703, %v704
        %v706 = vrot.slane %v705, 2
        %v707 = vadd.f32 %v705, %v706
        %v708 = vrot.slane %v707, 1
        %v709 = vadd.f32 %v707, %v708
        %vm710 = vcmask 57344
        %711 = vst.msk [vmem:[%s203] sm:$0x1] %vm710, %v709
        %v712 = vmul.f32 %v353, %v353
        %v713 = vmul.f32 %v356, %v356
        %v714 = vmul.f32 %v361, %v361
        %v715 = vmul.f32 %v364, %v364
        %v716 = vmul.f32 %v369, %v369
        %v717 = vmul.f32 %v372, %v372
        %v718 = vmul.f32 %v377, %v377
        %v719 = vmul.f32 %v380, %v380
        %v720 = vmul.f32 %v385, %v385
        %v721 = vmul.f32 %v388, %v388
        %v722 = vmul.f32 %v393, %v393
        %v723 = vmul.f32 %v396, %v396
        %v724 = vmul.f32 %v401, %v401
        %v725 = vmul.f32 %v404, %v404
        %v726 = vmul.f32 %v409, %v409
        %v727 = vmul.f32 %v412, %v412
        %v728 = vmul.f32 %v417, %v417
        %v729 = vmul.f32 %v420, %v420
        %v730 = vmul.f32 %v425, %v425
        %v731 = vmul.f32 %v428, %v428
        %v732 = vmul.f32 %v433, %v433
        %v733 = vmul.f32 %v436, %v436
        %v734 = vmul.f32 %v441, %v441
        %v735 = vmul.f32 %v444, %v444
        %v736 = vmul.f32 %v449, %v449
        %v737 = vmul.f32 %v452, %v452
        %v738 = vmul.f32 %v457, %v457
        %v739 = vmul.f32 %v460, %v460
        %v740 = vmul.f32 %v465, %v465
        %v741 = vmul.f32 %v468, %v468
        %v742 = vmul.f32 %v473, %v473
        %v743 = vmul.f32 %v476, %v476
        %v744 = vsel %vm640, %v712, 0.0
        %v745 = vsel %vm640, %v713, 0.0
        %v746 = vadd.f32 %v744, %v745
        %v747 = vsel %vm640, %v714, 0.0
        %v748 = vadd.f32 %v746, %v747
        %v749 = vsel %vm640, %v715, 0.0
        %v750 = vadd.f32 %v748, %v749
        %v751 = vsel %vm640, %v716, 0.0
        %v752 = vadd.f32 %v750, %v751
        %v753 = vsel %vm640, %v717, 0.0
        %v754 = vadd.f32 %v752, %v753
        %v755 = vsel %vm640, %v718, 0.0
        %v756 = vadd.f32 %v754, %v755
        %v757 = vsel %vm640, %v719, 0.0
        %v758 = vadd.f32 %v756, %v757
        %v759 = vsel %vm640, %v720, 0.0
        %v760 = vadd.f32 %v758, %v759
        %v761 = vsel %vm640, %v721, 0.0
        %v762 = vadd.f32 %v760, %v761
        %v763 = vsel %vm640, %v722, 0.0
        %v764 = vadd.f32 %v762, %v763
        %v765 = vsel %vm640, %v723, 0.0
        %v766 = vadd.f32 %v764, %v765
        %v767 = vsel %vm640, %v724, 0.0
        %v768 = vadd.f32 %v766, %v767
        %v769 = vsel %vm640, %v725, 0.0
        %v770 = vadd.f32 %v768, %v769
        %v771 = vsel %vm640, %v726, 0.0
        %v772 = vadd.f32 %v770, %v771
        %v773 = vsel %vm640, %v727, 0.0
        %v774 = vadd.f32 %v772, %v773
        %v775 = vsel %vm640, %v728, 0.0
        %v776 = vadd.f32 %v774, %v775
        %v777 = vsel %vm640, %v729, 0.0
        %v778 = vadd.f32 %v776, %v777
        %v779 = vsel %vm640, %v730, 0.0
        %v780 = vadd.f32 %v778, %v779
        %v781 = vsel %vm640, %v731, 0.0
        %v782 = vadd.f32 %v780, %v781
        %v783 = vsel %vm640, %v732, 0.0
        %v784 = vadd.f32 %v782, %v783
        %v785 = vsel %vm640, %v733, 0.0
        %v786 = vadd.f32 %v784, %v785
        %v787 = vsel %vm640, %v734, 0.0
        %v788 = vadd.f32 %v786, %v787
        %v789 = vsel %vm640, %v735, 0.0
        %v790 = vadd.f32 %v788, %v789
        %v791 = vsel %vm640, %v736, 0.0
        %v792 = vadd.f32 %v790, %v791
        %v793 = vsel %vm640, %v737, 0.0
        %v794 = vadd.f32 %v792, %v793
        %v795 = vsel %vm640, %v738, 0.0
        %v796 = vadd.f32 %v794, %v795
        %v797 = vsel %vm640, %v739, 0.0
        %v798 = vadd.f32 %v796, %v797
        %v799 = vsel %vm640, %v740, 0.0
        %v800 = vadd.f32 %v798, %v799
        %v801 = vsel %vm640, %v741, 0.0
        %v802 = vadd.f32 %v800, %v801
        %v803 = vsel %vm640, %v742, 0.0
        %v804 = vadd.f32 %v802, %v803
        %v805 = vsel %vm640, %v743, 0.0
        %v806 = vadd.f32 %v804, %v805
        %v807 = vrot.slane %v806, 4
        %v808 = vadd.f32 %v806, %v807
        %v809 = vrot.slane %v808, 2
        %v810 = vadd.f32 %v808, %v809
        %v811 = vrot.slane %v810, 1
        %v812 = vadd.f32 %v810, %v811
        %813 = vst.msk [vmem:[%s203 + $0x1] sm:$0x1] %vm710, %v812
        %s814 = smul.u32 32, %s18
        %p815 = scmp.lt.s32.totalorder %s814, 63
        %s816 = scalar_select %p815, %s814, 63
        %s817 = smul.addr %s816, 4
        %s818 = scalar_lea.vmem %s2, %s817
        %p819 = scmp.lt.s32.totalorder %s18, 1
        %s820 = scalar_select %p819, %s18, 1
        %s821 = smul.addr %s820, 2
        %s822 = scalar_lea.vmem %s3, %s821
        // Predicated region
        $region33: #{vol_bottleneck.4} parent=27 // pred_check
          %p823 = pneg %p83
        $region34: #{vol_bottleneck.4} parent=27 // pred_check_branch
          %825 = sbr.rel (%p823) target = $region36
        $region35: #{vol_bottleneck.4} parent=27 // pred_region
          %s826 = smul.u32 32, %s18
        $region36: #{vol_bottleneck.4} parent=27 // pred_fallthru
          _
        // Predicated region
        $region37: #{vol_bottleneck.4} parent=27 // pred_check
          %p827 = pneg %p109
        $region38: #{vol_bottleneck.4} parent=27 // pred_check_branch
          %829 = sbr.rel (%p827) target = $region40
        $region39: #{vol_bottleneck.4} parent=27 // pred_region
          _
        $region40: #{vol_bottleneck.4} parent=27 // pred_fallthru
          _
      $region28: #{vol_bottleneck.4} parent=5 // pred_fallthru
        _
      %p830 = scmp.le.s32.totalorder 2, %s13
      // Predicated region
      $region41: #{vol_bottleneck.4} parent=5 // pred_check
        %p831 = pneg %p830
      $region42: #{vol_bottleneck.4} parent=5 // pred_check_branch
        %833 = sbr.rel (%p831) target = $region44
      $region43: #{vol_bottleneck.4} parent=5 // pred_region
        %s834 = ssub.s32 %s13, 2
        // Predicated region
        $region45: #{vol_bottleneck.4} parent=43 // pred_check
          %p835 = pneg %p89
        $region46: #{vol_bottleneck.4} parent=43 // pred_check_branch
          %837 = sbr.rel (%p835) target = $region48
        $region47: #{vol_bottleneck.4} parent=43 // pred_region
          %s838 = smul.u32 32, %s19
          %p839 = scmp.lt.s32.totalorder %s838, 63
          %s840 = scalar_select %p839, %s838, 63
          %s841 = smul.addr %s840, 4
          %s842 = scalar_lea.vmem %s2, %s841
        $region48: #{vol_bottleneck.4} parent=43 // pred_fallthru
          _
        // Predicated region
        $region49: #{vol_bottleneck.4} parent=43 // pred_check
          %p843 = pneg %p115
        $region50: #{vol_bottleneck.4} parent=43 // pred_check_branch
          %845 = sbr.rel (%p843) target = $region52
        $region51: #{vol_bottleneck.4} parent=43 // pred_region
          %p846 = scmp.lt.s32.totalorder %s19, 1
          %s847 = scalar_select %p846, %s19, 1
          %s848 = smul.addr %s847, 2
          %s849 = scalar_lea.vmem %s3, %s848
        $region52: #{vol_bottleneck.4} parent=43 // pred_fallthru
          _
      $region44: #{vol_bottleneck.4} parent=5 // pred_fallthru
        _
    $region6: #{vol_bottleneck.4} parent=1 // loop_footer
      %s17 = sadd.s32 1, %s13
    $region7: #{vol_bottleneck.4} parent=1 // loop_footer_branch
      %12 = sbr.rel target = $region3
    $region8: #{vol_bottleneck.4} parent=1 // loop_exit
      _
    %850 = vsyncpa [#allocation3], 1
    %s851 = scalar_lea.sflag [#allocation3], 1
    %852 = vsyncpa %s851, 1

// kernel: vol_bottleneck.6
$region0: #{vol_bottleneck.6}
  #allocation0 [shape = 'u32[]', space=smem, size = 0x4, offset = 0x4, fixed_abs, tag = 'smem constant byte address 0x4 - core index']
  #allocation1 [shape = 'u32[144,128]{1,0:T(1,128)}', space=vmem, size = 0x12000, scoped, tag = 'internal scratch']
  %s0 = inlined_call_operand.vmem [shape: bf16[512,8], index: 0, kind: input, shape index: {}]
  %s1 = inlined_call_operand.vmem [shape: f32[1,8], index: 1, kind: input, shape index: {}]
  %s2 = inlined_call_operand.vmem [shape: f32[1,8], index: 2, kind: input, shape index: {}]
  %s3 = inlined_call_operand.vmem [shape: bf16[8,32], index: 3, kind: input, shape index: {}]
  %s4 = inlined_call_operand.vmem [shape: bf16[512,32], index: 4, kind: output, shape index: {0}]
  %s5 = inlined_call_operand.vmem [shape: f32[2,2,32], index: 5, kind: output, shape index: {1}]
  %6 = xla_tuple %s4, %s5
  %s7 = sld [smem:[#allocation0]]
  $region57: #{vol_bottleneck.6} parent=0
    _
  %s9 = ssub.s32 1, %s7
  %s10 = scalar_select 0, %s9, %s7
  loop: start=0, step=1, limit=4
  $region2: #{vol_bottleneck.6} parent=0 // loop_pre_header
    _
  $region3: #{vol_bottleneck.6} parent=0 // loop_header
    %s12 = sphi 0, %s16
    %p13 = scmp.ge.s32.totalorder %s12, 4
    %s22 = sphi 0, %s24
    %s25 = sphi 0, %s22
    %s26 = sphi 0, %s25
    %s42 = sphi 0, %s26
    %s46 = sphi 0, %s46
    %s48 = sphi 0, %s46
    %s49 = sphi 0, %s48
    %s63 = sphi 0, %s49
    %s67 = sphi 0, %s67
    %s69 = sphi 0, %s67
    %s70 = sphi 0, %s69
    %s84 = sphi 0, %s70
    %s88 = sphi 0, %s88
    %s90 = sphi 0, %s88
    %s91 = sphi 0, %s90
    %s105 = sphi 0, %s91
    %s111 = sphi 0, %s113
    %s114 = sphi 0, %s111
    %s115 = sphi 0, %s114
    %s131 = sphi 0, %s115
    %s137 = sphi 0, %s139
    %s140 = sphi 0, %s137
    %s141 = sphi 0, %s140
    %s157 = sphi 0, %s141
  $region4: #{vol_bottleneck.6} parent=0 // loop_header_branch
    %15 = sbr.rel (%p13) target = $region8
  $region5: #{vol_bottleneck.6} parent=0 // loop_body
    %s17 = ssub.s32 %s12, 1
    %s18 = ssub.s32 %s12, 2
    %s19 = sadd.s32 %s12, 1
    %s20 = ssub.s32 %s12, %s19
    %p21 = scmp.eq.s32.totalorder %s20, 0
    %s23 = sadd.s32 %s22, 1
    %s24 = scalar_select %p21, %s22, %s23
    %p27 = pneg %p21
    %p28 = scmp.eq.s32.totalorder %s12, 1
    %p29 = por %p27, %p28
    %p30 = scmp.ne.s32.totalorder %s22, %s25
    %p31 = scmp.eq.s32.totalorder %s12, 0
    %p32 = por %p30, %p31
    %p33 = scmp.ne.s32.totalorder %s22, %s25
    %p34 = scmp.eq.s32.totalorder %s17, 1
    %p35 = por %p33, %p34
    %p36 = scmp.ne.s32.totalorder %s25, %s26
    %p37 = scmp.eq.s32.totalorder %s17, 0
    %p38 = por %p36, %p37
    %p39 = scmp.ne.s32.totalorder %s25, %s26
    %p40 = scmp.eq.s32.totalorder %s18, 1
    %p41 = por %p39, %p40
    %p43 = scmp.ne.s32.totalorder %s26, %s42
    %p44 = scmp.eq.s32.totalorder %s18, 0
    %p45 = por %p43, %p44
    %s47 = sadd.s32 %s46, 1
    %p50 = scmp.eq.s32.totalorder %s12, 1
    %p51 = scmp.ne.s32.totalorder %s46, %s48
    %p52 = scmp.eq.s32.totalorder %s12, 0
    %p53 = por %p51, %p52
    %p54 = scmp.ne.s32.totalorder %s46, %s48
    %p55 = scmp.eq.s32.totalorder %s17, 1
    %p56 = por %p54, %p55
    %p57 = scmp.ne.s32.totalorder %s48, %s49
    %p58 = scmp.eq.s32.totalorder %s17, 0
    %p59 = por %p57, %p58
    %p60 = scmp.ne.s32.totalorder %s48, %s49
    %p61 = scmp.eq.s32.totalorder %s18, 1
    %p62 = por %p60, %p61
    %p64 = scmp.ne.s32.totalorder %s49, %s63
    %p65 = scmp.eq.s32.totalorder %s18, 0
    %p66 = por %p64, %p65
    %s68 = sadd.s32 %s67, 1
    %p71 = scmp.eq.s32.totalorder %s12, 1
    %p72 = scmp.ne.s32.totalorder %s67, %s69
    %p73 = scmp.eq.s32.totalorder %s12, 0
    %p74 = por %p72, %p73
    %p75 = scmp.ne.s32.totalorder %s67, %s69
    %p76 = scmp.eq.s32.totalorder %s17, 1
    %p77 = por %p75, %p76
    %p78 = scmp.ne.s32.totalorder %s69, %s70
    %p79 = scmp.eq.s32.totalorder %s17, 0
    %p80 = por %p78, %p79
    %p81 = scmp.ne.s32.totalorder %s69, %s70
    %p82 = scmp.eq.s32.totalorder %s18, 1
    %p83 = por %p81, %p82
    %p85 = scmp.ne.s32.totalorder %s70, %s84
    %p86 = scmp.eq.s32.totalorder %s18, 0
    %p87 = por %p85, %p86
    %s89 = sadd.s32 %s88, 1
    %p92 = scmp.eq.s32.totalorder %s12, 1
    %p93 = scmp.ne.s32.totalorder %s88, %s90
    %p94 = scmp.eq.s32.totalorder %s12, 0
    %p95 = por %p93, %p94
    %p96 = scmp.ne.s32.totalorder %s88, %s90
    %p97 = scmp.eq.s32.totalorder %s17, 1
    %p98 = por %p96, %p97
    %p99 = scmp.ne.s32.totalorder %s90, %s91
    %p100 = scmp.eq.s32.totalorder %s17, 0
    %p101 = por %p99, %p100
    %p102 = scmp.ne.s32.totalorder %s90, %s91
    %p103 = scmp.eq.s32.totalorder %s18, 1
    %p104 = por %p102, %p103
    %p106 = scmp.ne.s32.totalorder %s91, %s105
    %p107 = scmp.eq.s32.totalorder %s18, 0
    %p108 = por %p106, %p107
    %s109 = ssub.s32 %s12, %s19
    %p110 = scmp.eq.s32.totalorder %s109, 0
    %s112 = sadd.s32 %s111, 1
    %s113 = scalar_select %p110, %s111, %s112
    %p116 = pneg %p110
    %p117 = scmp.eq.s32.totalorder %s12, 1
    %p118 = por %p116, %p117
    %p119 = scmp.ne.s32.totalorder %s111, %s114
    %p120 = scmp.eq.s32.totalorder %s12, 0
    %p121 = por %p119, %p120
    %p122 = scmp.ne.s32.totalorder %s111, %s114
    %p123 = scmp.eq.s32.totalorder %s17, 1
    %p124 = por %p122, %p123
    %p125 = scmp.ne.s32.totalorder %s114, %s115
    %p126 = scmp.eq.s32.totalorder %s17, 0
    %p127 = por %p125, %p126
    %p128 = scmp.ne.s32.totalorder %s114, %s115
    %p129 = scmp.eq.s32.totalorder %s18, 1
    %p130 = por %p128, %p129
    %p132 = scmp.ne.s32.totalorder %s115, %s131
    %p133 = scmp.eq.s32.totalorder %s18, 0
    %p134 = por %p132, %p133
    %s135 = ssub.s32 %s12, %s19
    %p136 = scmp.eq.s32.totalorder %s135, 0
    %s138 = sadd.s32 %s137, 1
    %s139 = scalar_select %p136, %s137, %s138
    %p142 = pneg %p136
    %p143 = scmp.eq.s32.totalorder %s12, 1
    %p144 = por %p142, %p143
    %p145 = scmp.ne.s32.totalorder %s137, %s140
    %p146 = scmp.eq.s32.totalorder %s12, 0
    %p147 = por %p145, %p146
    %p148 = scmp.ne.s32.totalorder %s137, %s140
    %p149 = scmp.eq.s32.totalorder %s17, 1
    %p150 = por %p148, %p149
    %p151 = scmp.ne.s32.totalorder %s140, %s141
    %p152 = scmp.eq.s32.totalorder %s17, 0
    %p153 = por %p151, %p152
    %p154 = scmp.ne.s32.totalorder %s140, %s141
    %p155 = scmp.eq.s32.totalorder %s18, 1
    %p156 = por %p154, %p155
    %p158 = scmp.ne.s32.totalorder %s141, %s157
    %p159 = scmp.eq.s32.totalorder %s18, 0
    %p160 = por %p158, %p159
    %p161 = scmp.le.s32.totalorder 1, %s12
    %p162 = scmp.lt.s32.totalorder %s12, 3
    %p163 = pnand %p161, %p162
    %p164 = pneg %p163
    // Predicated region
    $region9: #{vol_bottleneck.6} parent=5 // pred_check
      _
    $region10: #{vol_bottleneck.6} parent=5 // pred_check_branch
      %166 = sbr.rel (%p163) target = $region12
    $region11: #{vol_bottleneck.6} parent=5 // pred_region
      %s167 = ssub.s32 %s12, 1
      // Predicated region
      $region13: #{vol_bottleneck.6} parent=11 // pred_check
        %p168 = pneg %p59
      $region14: #{vol_bottleneck.6} parent=11 // pred_check_branch
        %170 = sbr.rel (%p168) target = $region16
      $region15: #{vol_bottleneck.6} parent=11 // pred_region
        _
      $region16: #{vol_bottleneck.6} parent=11 // pred_fallthru
        _
      // Predicated region
      $region17: #{vol_bottleneck.6} parent=11 // pred_check
        %p171 = pneg %p80
      $region18: #{vol_bottleneck.6} parent=11 // pred_check_branch
        %173 = sbr.rel (%p171) target = $region20
      $region19: #{vol_bottleneck.6} parent=11 // pred_region
        _
      $region20: #{vol_bottleneck.6} parent=11 // pred_fallthru
        _
      // Predicated region
      $region21: #{vol_bottleneck.6} parent=11 // pred_check
        %p174 = pneg %p101
      $region22: #{vol_bottleneck.6} parent=11 // pred_check_branch
        %176 = sbr.rel (%p174) target = $region24
      $region23: #{vol_bottleneck.6} parent=11 // pred_region
        _
      $region24: #{vol_bottleneck.6} parent=11 // pred_fallthru
        _
    $region12: #{vol_bottleneck.6} parent=5 // pred_fallthru
      _
    %p177 = scmp.lt.s32.totalorder %s12, 2
    // Predicated region
    $region25: #{vol_bottleneck.6} parent=5 // pred_check
      %p178 = pneg %p177
    $region26: #{vol_bottleneck.6} parent=5 // pred_check_branch
      %180 = sbr.rel (%p178) target = $region28
    $region27: #{vol_bottleneck.6} parent=5 // pred_region
      // Predicated region
      $region29: #{vol_bottleneck.6} parent=27 // pred_check
        %p181 = pneg %p32
      $region30: #{vol_bottleneck.6} parent=27 // pred_check_branch
        %183 = sbr.rel (%p181) target = $region32
      $region31: #{vol_bottleneck.6} parent=27 // pred_region
        %s184 = smul.u32 32, %s12
        %p185 = scmp.lt.s32.totalorder %s184, 63
        %s186 = scalar_select %p185, %s184, 63
        %s187 = smul.addr %s186, 4
        %s188 = scalar_lea.vmem %s0, %s187
        %s189 = smul.u32 32, %s12
      $region32: #{vol_bottleneck.6} parent=27 // pred_fallthru
        _
    $region28: #{vol_bottleneck.6} parent=5 // pred_fallthru
      _
    %p190 = scmp.le.s32.totalorder 1, %s12
    %p191 = scmp.lt.s32.totalorder %s12, 3
    %p192 = pnand %p190, %p191
    %p193 = pneg %p192
    // Predicated region
    $region33: #{vol_bottleneck.6} parent=5 // pred_check
      _
    $region34: #{vol_bottleneck.6} parent=5 // pred_check_branch
      %195 = sbr.rel (%p192) target = $region36
    $region35: #{vol_bottleneck.6} parent=5 // pred_region
      %s196 = ssub.s32 %s12, 1
      %s197 = smul.u32 32, %s17
      %p198 = scmp.lt.s32.totalorder %s197, 63
      %s199 = scalar_select %p198, %s197, 63
      %s200 = smul.addr %s199, 4
      %s201 = scalar_lea.vmem %s0, %s200
      %p202 = pneg %p38
      %p203 = pneg %p35
      %p204 = pneg %p59
      %p205 = pneg %p56
      %p206 = pneg %p80
      %p207 = pneg %p77
      %p208 = pneg %p101
      %p209 = pneg %p98
      %p210 = pneg %p127
      %p211 = pneg %p124
      %s212 = smul.u32 32, %s17
      %p213 = scmp.lt.s32.totalorder %s212, 63
      %s214 = scalar_select %p213, %s212, 63
      %s215 = smul.addr %s214, 4
      %s216 = scalar_lea.vmem %s4, %s215
      %p217 = pneg %p153
      %p218 = pneg %p150
      %p219 = scmp.lt.s32.totalorder %s17, 1
      %s220 = scalar_select %p219, %s17, 1
      %s221 = smul.addr %s220, 2
      %s222 = scalar_lea.vmem %s5, %s221
      %s223 = smul.u32 32, %s17
      %p224 = scmp.lt.s32.totalorder %s223, 63
      %s225 = scalar_select %p224, %s223, 63
      %s226 = smul.addr %s225, 4
      %s227 = scalar_lea.vmem %s0, %s226
      %s228 = smul.u32 32, %s17
      %s229 = smul.u32 32, %s17
      %p230 = scmp.lt.s32.totalorder %s229, 63
      %s231 = scalar_select %p230, %s229, 63
      %s232 = smul.addr %s231, 4
      %s233 = scalar_lea.vmem %s4, %s232
      %s234 = smul.u32 32, %s17
      %p235 = scmp.lt.s32.totalorder %s17, 1
      %s236 = scalar_select %p235, %s17, 1
      %s237 = smul.addr %s236, 2
      %s238 = scalar_lea.vmem %s5, %s237
      %v240 = vld [vmem:[%s227] sm:$0xf]
      %v241 = vld [vmem:[%s227 + $0x4] sm:$0xf]
      %v242 = vld [vmem:[%s227 + $0x8] sm:$0xf]
      %v243 = vld [vmem:[%s227 + $0xc] sm:$0xf]
      %v244 = vld [vmem:[%s227 + $0x10] sm:$0xf]
      %v245 = vld [vmem:[%s227 + $0x14] sm:$0xf]
      %v246 = vld [vmem:[%s227 + $0x18] sm:$0xf]
      %v247 = vld [vmem:[%s227 + $0x1c] sm:$0xf]
      %v248 = vld [vmem:[%s227 + $0x20] sm:$0xf]
      %v249 = vld [vmem:[%s227 + $0x24] sm:$0xf]
      %v250 = vld [vmem:[%s227 + $0x28] sm:$0xf]
      %v251 = vld [vmem:[%s227 + $0x2c] sm:$0xf]
      %v252 = vld [vmem:[%s227 + $0x30] sm:$0xf]
      %v253 = vld [vmem:[%s227 + $0x34] sm:$0xf]
      %v254 = vld [vmem:[%s227 + $0x38] sm:$0xf]
      %v255 = vld [vmem:[%s227 + $0x3c] sm:$0xf]
      %v256 = vld [vmem:[%s227 + $0x40] sm:$0xf]
      %v257 = vld [vmem:[%s227 + $0x44] sm:$0xf]
      %v258 = vld [vmem:[%s227 + $0x48] sm:$0xf]
      %v259 = vld [vmem:[%s227 + $0x4c] sm:$0xf]
      %v260 = vld [vmem:[%s227 + $0x50] sm:$0xf]
      %v261 = vld [vmem:[%s227 + $0x54] sm:$0xf]
      %v262 = vld [vmem:[%s227 + $0x58] sm:$0xf]
      %v263 = vld [vmem:[%s227 + $0x5c] sm:$0xf]
      %v264 = vld [vmem:[%s227 + $0x60] sm:$0xf]
      %v265 = vld [vmem:[%s227 + $0x64] sm:$0xf]
      %v266 = vld [vmem:[%s227 + $0x68] sm:$0xf]
      %v267 = vld [vmem:[%s227 + $0x6c] sm:$0xf]
      %v268 = vld [vmem:[%s227 + $0x70] sm:$0xf]
      %v269 = vld [vmem:[%s227 + $0x74] sm:$0xf]
      %v270 = vld [vmem:[%s227 + $0x78] sm:$0xf]
      %v271 = vld [vmem:[%s227 + $0x7c] sm:$0xf]
      %v272 = vunpack.c.l.bf16 %v240
      %v273 = vunpack.c.l.bf16 %v241
      %v274 = vunpack.c.l.bf16 %v242
      %v275 = vunpack.c.l.bf16 %v243
      %v276 = vunpack.c.l.bf16 %v244
      %v277 = vunpack.c.l.bf16 %v245
      %v278 = vunpack.c.l.bf16 %v246
      %v279 = vunpack.c.l.bf16 %v247
      %v280 = vunpack.c.l.bf16 %v248
      %v281 = vunpack.c.l.bf16 %v249
      %v282 = vunpack.c.l.bf16 %v250
      %v283 = vunpack.c.l.bf16 %v251
      %v284 = vunpack.c.l.bf16 %v252
      %v285 = vunpack.c.l.bf16 %v253
      %v286 = vunpack.c.l.bf16 %v254
      %v287 = vunpack.c.l.bf16 %v255
      %v288 = vunpack.c.l.bf16 %v256
      %v289 = vunpack.c.l.bf16 %v257
      %v290 = vunpack.c.l.bf16 %v258
      %v291 = vunpack.c.l.bf16 %v259
      %v292 = vunpack.c.l.bf16 %v260
      %v293 = vunpack.c.l.bf16 %v261
      %v294 = vunpack.c.l.bf16 %v262
      %v295 = vunpack.c.l.bf16 %v263
      %v296 = vunpack.c.l.bf16 %v264
      %v297 = vunpack.c.l.bf16 %v265
      %v298 = vunpack.c.l.bf16 %v266
      %v299 = vunpack.c.l.bf16 %v267
      %v300 = vunpack.c.l.bf16 %v268
      %v301 = vunpack.c.l.bf16 %v269
      %v302 = vunpack.c.l.bf16 %v270
      %v303 = vunpack.c.l.bf16 %v271
      %v304 = vld [vmem:[%s1] sm:$0x1]
      %v306 = vlaneseq
      %v307 = vshrl.u32 %v306, 7
      %v308 = vsub.s32 0, %v307
      %v309 = vrot.slane %v304, %v308
      %v311 = vmul.f32 %v272, %v309
      %v312 = vmul.f32 %v273, %v309
      %v313 = vmul.f32 %v274, %v309
      %v314 = vmul.f32 %v275, %v309
      %v315 = vmul.f32 %v276, %v309
      %v316 = vmul.f32 %v277, %v309
      %v317 = vmul.f32 %v278, %v309
      %v318 = vmul.f32 %v279, %v309
      %v319 = vmul.f32 %v280, %v309
      %v320 = vmul.f32 %v281, %v309
      %v321 = vmul.f32 %v282, %v309
      %v322 = vmul.f32 %v283, %v309
      %v323 = vmul.f32 %v284, %v309
      %v324 = vmul.f32 %v285, %v309
      %v325 = vmul.f32 %v286, %v309
      %v326 = vmul.f32 %v287, %v309
      %v327 = vmul.f32 %v288, %v309
      %v328 = vmul.f32 %v289, %v309
      %v329 = vmul.f32 %v290, %v309
      %v330 = vmul.f32 %v291, %v309
      %v331 = vmul.f32 %v292, %v309
      %v332 = vmul.f32 %v293, %v309
      %v333 = vmul.f32 %v294, %v309
      %v334 = vmul.f32 %v295, %v309
      %v335 = vmul.f32 %v296, %v309
      %v336 = vmul.f32 %v297, %v309
      %v337 = vmul.f32 %v298, %v309
      %v338 = vmul.f32 %v299, %v309
      %v339 = vmul.f32 %v300, %v309
      %v340 = vmul.f32 %v301, %v309
      %v341 = vmul.f32 %v302, %v309
      %v342 = vmul.f32 %v303, %v309
      %v343 = vld [vmem:[%s2] sm:$0x1]
      %v345 = vlaneseq
      %v346 = vshrl.u32 %v345, 7
      %v347 = vsub.s32 0, %v346
      %v348 = vrot.slane %v343, %v347
      %v350 = vadd.f32 %v311, %v348
      %v351 = vadd.f32 %v312, %v348
      %v352 = vadd.f32 %v313, %v348
      %v353 = vadd.f32 %v314, %v348
      %v354 = vadd.f32 %v315, %v348
      %v355 = vadd.f32 %v316, %v348
      %v356 = vadd.f32 %v317, %v348
      %v357 = vadd.f32 %v318, %v348
      %v358 = vadd.f32 %v319, %v348
      %v359 = vadd.f32 %v320, %v348
      %v360 = vadd.f32 %v321, %v348
      %v361 = vadd.f32 %v322, %v348
      %v362 = vadd.f32 %v323, %v348
      %v363 = vadd.f32 %v324, %v348
      %v364 = vadd.f32 %v325, %v348
      %v365 = vadd.f32 %v326, %v348
      %v366 = vadd.f32 %v327, %v348
      %v367 = vadd.f32 %v328, %v348
      %v368 = vadd.f32 %v329, %v348
      %v369 = vadd.f32 %v330, %v348
      %v370 = vadd.f32 %v331, %v348
      %v371 = vadd.f32 %v332, %v348
      %v372 = vadd.f32 %v333, %v348
      %v373 = vadd.f32 %v334, %v348
      %v374 = vadd.f32 %v335, %v348
      %v375 = vadd.f32 %v336, %v348
      %v376 = vadd.f32 %v337, %v348
      %v377 = vadd.f32 %v338, %v348
      %v378 = vadd.f32 %v339, %v348
      %v379 = vadd.f32 %v340, %v348
      %v380 = vadd.f32 %v341, %v348
      %v381 = vadd.f32 %v342, %v348
      %v382 = vtanh.pop %v350
      %v383 = vtanh.pop %v351
      %v384 = vtanh.pop %v352
      %v385 = vtanh.pop %v353
      %v386 = vtanh.pop %v354
      %v387 = vtanh.pop %v355
      %v388 = vtanh.pop %v356
      %v389 = vtanh.pop %v357
      %v390 = vtanh.pop %v358
      %v391 = vtanh.pop %v359
      %v392 = vtanh.pop %v360
      %v393 = vtanh.pop %v361
      %v394 = vtanh.pop %v362
      %v395 = vtanh.pop %v363
      %v396 = vtanh.pop %v364
      %v397 = vtanh.pop %v365
      %v398 = vtanh.pop %v366
      %v399 = vtanh.pop %v367
      %v400 = vtanh.pop %v368
      %v401 = vtanh.pop %v369
      %v402 = vtanh.pop %v370
      %v403 = vtanh.pop %v371
      %v404 = vtanh.pop %v372
      %v405 = vtanh.pop %v373
      %v406 = vtanh.pop %v374
      %v407 = vtanh.pop %v375
      %v408 = vtanh.pop %v376
      %v409 = vtanh.pop %v377
      %v410 = vtanh.pop %v378
      %v411 = vtanh.pop %v379
      %v412 = vtanh.pop %v380
      %v413 = vtanh.pop %v381
      %v414 = vpack.c.bf16 %v383, %v382
      %v415 = vpack.c.bf16 %v385, %v384
      %v416 = vpack.c.bf16 %v387, %v386
      %v417 = vpack.c.bf16 %v389, %v388
      %v418 = vpack.c.bf16 %v391, %v390
      %v419 = vpack.c.bf16 %v393, %v392
      %v420 = vpack.c.bf16 %v395, %v394
      %v421 = vpack.c.bf16 %v397, %v396
      %v422 = vpack.c.bf16 %v399, %v398
      %v423 = vpack.c.bf16 %v401, %v400
      %v424 = vpack.c.bf16 %v403, %v402
      %v425 = vpack.c.bf16 %v405, %v404
      %v426 = vpack.c.bf16 %v407, %v406
      %v427 = vpack.c.bf16 %v409, %v408
      %v428 = vpack.c.bf16 %v411, %v410
      %v429 = vpack.c.bf16 %v413, %v412
      %v430 = vld [vmem:[%s3] sm:$0xf]
      %vm431 = vcmask 64512
      %v433 = vsel %vm431, %v414, 0
      %v436 = vsel %vm431, %v415, 0
      %v439 = vsel %vm431, %v416, 0
      %v442 = vsel %vm431, %v417, 0
      %v445 = vsel %vm431, %v418, 0
      %v448 = vsel %vm431, %v419, 0
      %v451 = vsel %vm431, %v420, 0
      %v454 = vsel %vm431, %v421, 0
      %v457 = vsel %vm431, %v422, 0
      %v460 = vsel %vm431, %v423, 0
      %v463 = vsel %vm431, %v424, 0
      %v466 = vsel %vm431, %v425, 0
      %v469 = vsel %vm431, %v426, 0
      %v472 = vsel %vm431, %v427, 0
      %v475 = vsel %vm431, %v428, 0
      %v478 = vsel %vm431, %v429, 0
      %vm480 = vcmask 1043456
      %v482 = vsel %vm480, %v430, 0
      %484 = vmatprep.subr.bf16.mxu0 0
      %485 = vmatpush1.bf16.msra.mxu0 %v482
      %486 = vmatprep.subr.bf16.mxu0 0
      %487 = vmatpush1.bf16.msra.mxu0 0
      %488 = vmatprep.subr.bf16.mxu0 0
      %489 = vmatpush1.bf16.msra.mxu0 0
      %490 = vmatprep.subr.bf16.mxu0 0
      %491 = vmatpush1.bf16.msra.mxu0 0
      %492 = vmatprep.subr.bf16.mxu0 0
      %493 = vmatpush1.bf16.msra.mxu0 0
      %494 = vmatprep.subr.bf16.mxu0 0
      %495 = vmatpush1.bf16.msra.mxu0 0
      %496 = vmatprep.subr.bf16.mxu0 0
      %497 = vmatpush1.bf16.msra.mxu0 0
      %498 = vmatprep.subr.bf16.mxu0 0
      %499 = vmatpush1.bf16.msra.mxu0 0
      %500 = vmatprep.subr.bf16.mxu0 0
      %501 = vmatpush1.bf16.msra.mxu0 0
      %502 = vmatprep.subr.bf16.mxu0 0
      %503 = vmatpush1.bf16.msra.mxu0 0
      %504 = vmatprep.subr.bf16.mxu0 0
      %505 = vmatpush1.bf16.msra.mxu0 0
      %506 = vmatprep.subr.bf16.mxu0 0
      %507 = vmatpush1.bf16.msra.mxu0 0
      %508 = vmatprep.subr.bf16.mxu0 0
      %509 = vmatpush1.bf16.msra.mxu0 0
      %510 = vmatprep.subr.bf16.mxu0 0
      %511 = vmatpush1.bf16.msra.mxu0 0
      %512 = vmatprep.subr.bf16.mxu0 0
      %513 = vmatpush1.bf16.msra.mxu0 0
      %514 = vmatprep.subr.bf16.mxu0 0
      %515 = vmatpush1.bf16.msra.mxu0 0
      %516 = vmatprep.mubr.bf16.mxu0 0
      %517 = vmatmul.mubr.bf16.gmra.mrb[0].mxu0 %v433
      %v518 = vpop.f32.mrb[0].mxu0
      %v519 = vadd.f32 0.0, %v518
      %v520 = vpop.f32.mrb[0].mxu0
      %v521 = vpop.f32.mrb[0].mxu0
      %v522 = vadd.f32 0.0, %v521
      %v523 = vpop.f32.mrb[0].mxu0
      %524 = vmatprep.mubr.bf16.mxu0 0
      %525 = vmatmul.mubr.bf16.gmra.mrb[0].mxu0 %v436
      %v526 = vpop.f32.mrb[0].mxu0
      %v527 = vadd.f32 0.0, %v526
      %v528 = vpop.f32.mrb[0].mxu0
      %v529 = vpop.f32.mrb[0].mxu0
      %v530 = vadd.f32 0.0, %v529
      %v531 = vpop.f32.mrb[0].mxu0
      %532 = vmatprep.mubr.bf16.mxu0 0
      %533 = vmatmul.mubr.bf16.gmra.mrb[0].mxu0 %v439
      %v534 = vpop.f32.mrb[0].mxu0
      %v535 = vadd.f32 0.0, %v534
      %v536 = vpop.f32.mrb[0].mxu0
      %v537 = vpop.f32.mrb[0].mxu0
      %v538 = vadd.f32 0.0, %v537
      %v539 = vpop.f32.mrb[0].mxu0
      %540 = vmatprep.mubr.bf16.mxu0 0
      %541 = vmatmul.mubr.bf16.gmra.mrb[0].mxu0 %v442
      %v542 = vpop.f32.mrb[0].mxu0
      %v543 = vadd.f32 0.0, %v542
      %v544 = vpop.f32.mrb[0].mxu0
      %v545 = vpop.f32.mrb[0].mxu0
      %v546 = vadd.f32 0.0, %v545
      %v547 = vpop.f32.mrb[0].mxu0
      %548 = vmatprep.mubr.bf16.mxu0 0
      %549 = vmatmul.mubr.bf16.gmra.mrb[0].mxu0 %v445
      %v550 = vpop.f32.mrb[0].mxu0
      %v551 = vadd.f32 0.0, %v550
      %v552 = vpop.f32.mrb[0].mxu0
      %v553 = vpop.f32.mrb[0].mxu0
      %v554 = vadd.f32 0.0, %v553
      %v555 = vpop.f32.mrb[0].mxu0
      %556 = vmatprep.mubr.bf16.mxu0 0
      %557 = vmatmul.mubr.bf16.gmra.mrb[0].mxu0 %v448
      %v558 = vpop.f32.mrb[0].mxu0
      %v559 = vadd.f32 0.0, %v558
      %v560 = vpop.f32.mrb[0].mxu0
      %v561 = vpop.f32.mrb[0].mxu0
      %v562 = vadd.f32 0.0, %v561
      %v563 = vpop.f32.mrb[0].mxu0
      %564 = vmatprep.mubr.bf16.mxu0 0
      %565 = vmatmul.mubr.bf16.gmra.mrb[0].mxu0 %v451
      %v566 = vpop.f32.mrb[0].mxu0
      %v567 = vadd.f32 0.0, %v566
      %v568 = vpop.f32.mrb[0].mxu0
      %v569 = vpop.f32.mrb[0].mxu0
      %v570 = vadd.f32 0.0, %v569
      %v571 = vpop.f32.mrb[0].mxu0
      %572 = vmatprep.mubr.bf16.mxu0 0
      %573 = vmatmul.mubr.bf16.gmra.mrb[0].mxu0 %v454
      %v574 = vpop.f32.mrb[0].mxu0
      %v575 = vadd.f32 0.0, %v574
      %v576 = vpop.f32.mrb[0].mxu0
      %v577 = vpop.f32.mrb[0].mxu0
      %v578 = vadd.f32 0.0, %v577
      %v579 = vpop.f32.mrb[0].mxu0
      %580 = vmatprep.mubr.bf16.mxu0 0
      %581 = vmatmul.mubr.bf16.gmra.mrb[0].mxu0 %v457
      %v582 = vpop.f32.mrb[0].mxu0
      %v583 = vadd.f32 0.0, %v582
      %v584 = vpop.f32.mrb[0].mxu0
      %v585 = vpop.f32.mrb[0].mxu0
      %v586 = vadd.f32 0.0, %v585
      %v587 = vpop.f32.mrb[0].mxu0
      %588 = vmatprep.mubr.bf16.mxu0 0
      %589 = vmatmul.mubr.bf16.gmra.mrb[0].mxu0 %v460
      %v590 = vpop.f32.mrb[0].mxu0
      %v591 = vadd.f32 0.0, %v590
      %v592 = vpop.f32.mrb[0].mxu0
      %v593 = vpop.f32.mrb[0].mxu0
      %v594 = vadd.f32 0.0, %v593
      %v595 = vpop.f32.mrb[0].mxu0
      %596 = vmatprep.mubr.bf16.mxu0 0
      %597 = vmatmul.mubr.bf16.gmra.mrb[0].mxu0 %v463
      %v598 = vpop.f32.mrb[0].mxu0
      %v599 = vadd.f32 0.0, %v598
      %v600 = vpop.f32.mrb[0].mxu0
      %v601 = vpop.f32.mrb[0].mxu0
      %v602 = vadd.f32 0.0, %v601
      %v603 = vpop.f32.mrb[0].mxu0
      %604 = vmatprep.mubr.bf16.mxu0 0
      %605 = vmatmul.mubr.bf16.gmra.mrb[0].mxu0 %v466
      %v606 = vpop.f32.mrb[0].mxu0
      %v607 = vadd.f32 0.0, %v606
      %v608 = vpop.f32.mrb[0].mxu0
      %v609 = vpop.f32.mrb[0].mxu0
      %v610 = vadd.f32 0.0, %v609
      %v611 = vpop.f32.mrb[0].mxu0
      %612 = vmatprep.mubr.bf16.mxu0 0
      %613 = vmatmul.mubr.bf16.gmra.mrb[0].mxu0 %v469
      %v614 = vpop.f32.mrb[0].mxu0
      %v615 = vadd.f32 0.0, %v614
      %v616 = vpop.f32.mrb[0].mxu0
      %v617 = vpop.f32.mrb[0].mxu0
      %v618 = vadd.f32 0.0, %v617
      %v619 = vpop.f32.mrb[0].mxu0
      %620 = vmatprep.mubr.bf16.mxu0 0
      %621 = vmatmul.mubr.bf16.gmra.mrb[0].mxu0 %v472
      %v622 = vpop.f32.mrb[0].mxu0
      %v623 = vadd.f32 0.0, %v622
      %v624 = vpop.f32.mrb[0].mxu0
      %v625 = vpop.f32.mrb[0].mxu0
      %v626 = vadd.f32 0.0, %v625
      %v627 = vpop.f32.mrb[0].mxu0
      %628 = vmatprep.mubr.bf16.mxu0 0
      %629 = vmatmul.mubr.bf16.gmra.mrb[0].mxu0 %v475
      %v630 = vpop.f32.mrb[0].mxu0
      %v631 = vadd.f32 0.0, %v630
      %v632 = vpop.f32.mrb[0].mxu0
      %v633 = vpop.f32.mrb[0].mxu0
      %v634 = vadd.f32 0.0, %v633
      %v635 = vpop.f32.mrb[0].mxu0
      %636 = vmatprep.mubr.bf16.mxu0 0
      %637 = vmatmul.mubr.bf16.gmra.mrb[0].mxu0 %v478
      %v638 = vpop.f32.mrb[0].mxu0
      %v639 = vadd.f32 0.0, %v638
      %v640 = vpop.f32.mrb[0].mxu0
      %v641 = vpop.f32.mrb[0].mxu0
      %v642 = vadd.f32 0.0, %v641
      %v643 = vpop.f32.mrb[0].mxu0
      %644 = vdwg.mxu0
      %v645 = vpack.c.bf16 %v522, %v519
      %v646 = vpack.c.bf16 %v530, %v527
      %v647 = vpack.c.bf16 %v538, %v535
      %v648 = vpack.c.bf16 %v546, %v543
      %v649 = vpack.c.bf16 %v554, %v551
      %v650 = vpack.c.bf16 %v562, %v559
      %v651 = vpack.c.bf16 %v570, %v567
      %v652 = vpack.c.bf16 %v578, %v575
      %v653 = vpack.c.bf16 %v586, %v583
      %v654 = vpack.c.bf16 %v594, %v591
      %v655 = vpack.c.bf16 %v602, %v599
      %v656 = vpack.c.bf16 %v610, %v607
      %v657 = vpack.c.bf16 %v618, %v615
      %v658 = vpack.c.bf16 %v626, %v623
      %v659 = vpack.c.bf16 %v634, %v631
      %v660 = vpack.c.bf16 %v642, %v639
      %v677 = vunpack.c.l.b16 %v645
      %v678 = vunpack.c.h.b16 %v645
      %v679 = vunpack.c.l.b16 %v646
      %v680 = vunpack.c.h.b16 %v646
      %v681 = vunpack.c.l.b16 %v647
      %v682 = vunpack.c.h.b16 %v647
      %v683 = vunpack.c.l.b16 %v648
      %v684 = vunpack.c.h.b16 %v648
      %v685 = vunpack.c.l.b16 %v649
      %v686 = vunpack.c.h.b16 %v649
      %v687 = vunpack.c.l.b16 %v650
      %v688 = vunpack.c.h.b16 %v650
      %v689 = vunpack.c.l.b16 %v651
      %v690 = vunpack.c.h.b16 %v651
      %v691 = vunpack.c.l.b16 %v652
      %v692 = vunpack.c.h.b16 %v652
      %v693 = vunpack.c.l.b16 %v653
      %v694 = vunpack.c.h.b16 %v653
      %v695 = vunpack.c.l.b16 %v654
      %v696 = vunpack.c.h.b16 %v654
      %v697 = vunpack.c.l.b16 %v655
      %v698 = vunpack.c.h.b16 %v655
      %v699 = vunpack.c.l.b16 %v656
      %v700 = vunpack.c.h.b16 %v656
      %v701 = vunpack.c.l.b16 %v657
      %v702 = vunpack.c.h.b16 %v657
      %v703 = vunpack.c.l.b16 %v658
      %v704 = vunpack.c.h.b16 %v658
      %v705 = vunpack.c.l.b16 %v659
      %v706 = vunpack.c.h.b16 %v659
      %v707 = vunpack.c.l.b16 %v660
      %v708 = vunpack.c.h.b16 %v660
      %v709 = vpack.c.b16 %v677, %v677
      %v710 = vpack.c.b16 %v678, %v678
      %v711 = vpack.c.b16 %v679, %v679
      %v712 = vpack.c.b16 %v680, %v680
      %v713 = vpack.c.b16 %v681, %v681
      %v714 = vpack.c.b16 %v682, %v682
      %v715 = vpack.c.b16 %v683, %v683
      %v716 = vpack.c.b16 %v684, %v684
      %v717 = vpack.c.b16 %v685, %v685
      %v718 = vpack.c.b16 %v686, %v686
      %v719 = vpack.c.b16 %v687, %v687
      %v720 = vpack.c.b16 %v688, %v688
      %v721 = vpack.c.b16 %v689, %v689
      %v722 = vpack.c.b16 %v690, %v690
      %v723 = vpack.c.b16 %v691, %v691
      %v724 = vpack.c.b16 %v692, %v692
      %v725 = vpack.c.b16 %v693, %v693
      %v726 = vpack.c.b16 %v694, %v694
      %v727 = vpack.c.b16 %v695, %v695
      %v728 = vpack.c.b16 %v696, %v696
      %v729 = vpack.c.b16 %v697, %v697
      %v730 = vpack.c.b16 %v698, %v698
      %v731 = vpack.c.b16 %v699, %v699
      %v732 = vpack.c.b16 %v700, %v700
      %v733 = vpack.c.b16 %v701, %v701
      %v734 = vpack.c.b16 %v702, %v702
      %v735 = vpack.c.b16 %v703, %v703
      %v736 = vpack.c.b16 %v704, %v704
      %v737 = vpack.c.b16 %v705, %v705
      %v738 = vpack.c.b16 %v706, %v706
      %v739 = vpack.c.b16 %v707, %v707
      %v740 = vpack.c.b16 %v708, %v708
      %vm773 = vcmask 257024
      %774 = vst.msk [vmem:[%s233] sm:$0xf] %vm773, %v709
      %775 = vst.msk [vmem:[%s233 + $0x4] sm:$0xf] %vm773, %v710
      %776 = vst.msk [vmem:[%s233 + $0x8] sm:$0xf] %vm773, %v711
      %777 = vst.msk [vmem:[%s233 + $0xc] sm:$0xf] %vm773, %v712
      %778 = vst.msk [vmem:[%s233 + $0x10] sm:$0xf] %vm773, %v713
      %779 = vst.msk [vmem:[%s233 + $0x14] sm:$0xf] %vm773, %v714
      %780 = vst.msk [vmem:[%s233 + $0x18] sm:$0xf] %vm773, %v715
      %781 = vst.msk [vmem:[%s233 + $0x1c] sm:$0xf] %vm773, %v716
      %782 = vst.msk [vmem:[%s233 + $0x20] sm:$0xf] %vm773, %v717
      %783 = vst.msk [vmem:[%s233 + $0x24] sm:$0xf] %vm773, %v718
      %784 = vst.msk [vmem:[%s233 + $0x28] sm:$0xf] %vm773, %v719
      %785 = vst.msk [vmem:[%s233 + $0x2c] sm:$0xf] %vm773, %v720
      %786 = vst.msk [vmem:[%s233 + $0x30] sm:$0xf] %vm773, %v721
      %787 = vst.msk [vmem:[%s233 + $0x34] sm:$0xf] %vm773, %v722
      %788 = vst.msk [vmem:[%s233 + $0x38] sm:$0xf] %vm773, %v723
      %789 = vst.msk [vmem:[%s233 + $0x3c] sm:$0xf] %vm773, %v724
      %790 = vst.msk [vmem:[%s233 + $0x40] sm:$0xf] %vm773, %v725
      %791 = vst.msk [vmem:[%s233 + $0x44] sm:$0xf] %vm773, %v726
      %792 = vst.msk [vmem:[%s233 + $0x48] sm:$0xf] %vm773, %v727
      %793 = vst.msk [vmem:[%s233 + $0x4c] sm:$0xf] %vm773, %v728
      %794 = vst.msk [vmem:[%s233 + $0x50] sm:$0xf] %vm773, %v729
      %795 = vst.msk [vmem:[%s233 + $0x54] sm:$0xf] %vm773, %v730
      %796 = vst.msk [vmem:[%s233 + $0x58] sm:$0xf] %vm773, %v731
      %797 = vst.msk [vmem:[%s233 + $0x5c] sm:$0xf] %vm773, %v732
      %798 = vst.msk [vmem:[%s233 + $0x60] sm:$0xf] %vm773, %v733
      %799 = vst.msk [vmem:[%s233 + $0x64] sm:$0xf] %vm773, %v734
      %800 = vst.msk [vmem:[%s233 + $0x68] sm:$0xf] %vm773, %v735
      %801 = vst.msk [vmem:[%s233 + $0x6c] sm:$0xf] %vm773, %v736
      %802 = vst.msk [vmem:[%s233 + $0x70] sm:$0xf] %vm773, %v737
      %803 = vst.msk [vmem:[%s233 + $0x74] sm:$0xf] %vm773, %v738
      %804 = vst.msk [vmem:[%s233 + $0x78] sm:$0xf] %vm773, %v739
      %805 = vst.msk [vmem:[%s233 + $0x7c] sm:$0xf] %vm773, %v740
      %vm806 = vcmask 261120
      %v807 = vsel %vm806, %v519, 0.0
      %v808 = vsel %vm806, %v522, 0.0
      %v809 = vadd.f32 %v807, %v808
      %v810 = vsel %vm806, %v527, 0.0
      %v811 = vadd.f32 %v809, %v810
      %v812 = vsel %vm806, %v530, 0.0
      %v813 = vadd.f32 %v811, %v812
      %v814 = vsel %vm806, %v535, 0.0
      %v815 = vadd.f32 %v813, %v814
      %v816 = vsel %vm806, %v538, 0.0
      %v817 = vadd.f32 %v815, %v816
      %v818 = vsel %vm806, %v543, 0.0
      %v819 = vadd.f32 %v817, %v818
      %v820 = vsel %vm806, %v546, 0.0
      %v821 = vadd.f32 %v819, %v820
      %v822 = vsel %vm806, %v551, 0.0
      %v823 = vadd.f32 %v821, %v822
      %v824 = vsel %vm806, %v554, 0.0
      %v825 = vadd.f32 %v823, %v824
      %v826 = vsel %vm806, %v559, 0.0
      %v827 = vadd.f32 %v825, %v826
      %v828 = vsel %vm806, %v562, 0.0
      %v829 = vadd.f32 %v827, %v828
      %v830 = vsel %vm806, %v567, 0.0
      %v831 = vadd.f32 %v829, %v830
      %v832 = vsel %vm806, %v570, 0.0
      %v833 = vadd.f32 %v831, %v832
      %v834 = vsel %vm806, %v575, 0.0
      %v835 = vadd.f32 %v833, %v834
      %v836 = vsel %vm806, %v578, 0.0
      %v837 = vadd.f32 %v835, %v836
      %v838 = vsel %vm806, %v583, 0.0
      %v839 = vadd.f32 %v837, %v838
      %v840 = vsel %vm806, %v586, 0.0
      %v841 = vadd.f32 %v839, %v840
      %v842 = vsel %vm806, %v591, 0.0
      %v843 = vadd.f32 %v841, %v842
      %v844 = vsel %vm806, %v594, 0.0
      %v845 = vadd.f32 %v843, %v844
      %v846 = vsel %vm806, %v599, 0.0
      %v847 = vadd.f32 %v845, %v846
      %v848 = vsel %vm806, %v602, 0.0
      %v849 = vadd.f32 %v847, %v848
      %v850 = vsel %vm806, %v607, 0.0
      %v851 = vadd.f32 %v849, %v850
      %v852 = vsel %vm806, %v610, 0.0
      %v853 = vadd.f32 %v851, %v852
      %v854 = vsel %vm806, %v615, 0.0
      %v855 = vadd.f32 %v853, %v854
      %v856 = vsel %vm806, %v618, 0.0
      %v857 = vadd.f32 %v855, %v856
      %v858 = vsel %vm806, %v623, 0.0
      %v859 = vadd.f32 %v857, %v858
      %v860 = vsel %vm806, %v626, 0.0
      %v861 = vadd.f32 %v859, %v860
      %v862 = vsel %vm806, %v631, 0.0
      %v863 = vadd.f32 %v861, %v862
      %v864 = vsel %vm806, %v634, 0.0
      %v865 = vadd.f32 %v863, %v864
      %v866 = vsel %vm806, %v639, 0.0
      %v867 = vadd.f32 %v865, %v866
      %v868 = vsel %vm806, %v642, 0.0
      %v869 = vadd.f32 %v867, %v868
      %v870 = vrot.slane %v869, 4
      %v871 = vadd.f32 %v869, %v870
      %v872 = vrot.slane %v871, 2
      %v873 = vadd.f32 %v871, %v872
      %v874 = vrot.slane %v873, 1
      %v875 = vadd.f32 %v873, %v874
      %vm876 = vcmask 253952
      %877 = vst.msk [vmem:[%s238] sm:$0x1] %vm876, %v875
      %v878 = vmul.f32 %v519, %v519
      %v879 = vmul.f32 %v522, %v522
      %v880 = vmul.f32 %v527, %v527
      %v881 = vmul.f32 %v530, %v530
      %v882 = vmul.f32 %v535, %v535
      %v883 = vmul.f32 %v538, %v538
      %v884 = vmul.f32 %v543, %v543
      %v885 = vmul.f32 %v546, %v546
      %v886 = vmul.f32 %v551, %v551
      %v887 = vmul.f32 %v554, %v554
      %v888 = vmul.f32 %v559, %v559
      %v889 = vmul.f32 %v562, %v562
      %v890 = vmul.f32 %v567, %v567
      %v891 = vmul.f32 %v570, %v570
      %v892 = vmul.f32 %v575, %v575
      %v893 = vmul.f32 %v578, %v578
      %v894 = vmul.f32 %v583, %v583
      %v895 = vmul.f32 %v586, %v586
      %v896 = vmul.f32 %v591, %v591
      %v897 = vmul.f32 %v594, %v594
      %v898 = vmul.f32 %v599, %v599
      %v899 = vmul.f32 %v602, %v602
      %v900 = vmul.f32 %v607, %v607
      %v901 = vmul.f32 %v610, %v610
      %v902 = vmul.f32 %v615, %v615
      %v903 = vmul.f32 %v618, %v618
      %v904 = vmul.f32 %v623, %v623
      %v905 = vmul.f32 %v626, %v626
      %v906 = vmul.f32 %v631, %v631
      %v907 = vmul.f32 %v634, %v634
      %v908 = vmul.f32 %v639, %v639
      %v909 = vmul.f32 %v642, %v642
      %v910 = vsel %vm806, %v878, 0.0
      %v911 = vsel %vm806, %v879, 0.0
      %v912 = vadd.f32 %v910, %v911
      %v913 = vsel %vm806, %v880, 0.0
      %v914 = vadd.f32 %v912, %v913
      %v915 = vsel %vm806, %v881, 0.0
      %v916 = vadd.f32 %v914, %v915
      %v917 = vsel %vm806, %v882, 0.0
      %v918 = vadd.f32 %v916, %v917
      %v919 = vsel %vm806, %v883, 0.0
      %v920 = vadd.f32 %v918, %v919
      %v921 = vsel %vm806, %v884, 0.0
      %v922 = vadd.f32 %v920, %v921
      %v923 = vsel %vm806, %v885, 0.0
      %v924 = vadd.f32 %v922, %v923
      %v925 = vsel %vm806, %v886, 0.0
      %v926 = vadd.f32 %v924, %v925
      %v927 = vsel %vm806, %v887, 0.0
      %v928 = vadd.f32 %v926, %v927
      %v929 = vsel %vm806, %v888, 0.0
      %v930 = vadd.f32 %v928, %v929
      %v931 = vsel %vm806, %v889, 0.0
      %v932 = vadd.f32 %v930, %v931
      %v933 = vsel %vm806, %v890, 0.0
      %v934 = vadd.f32 %v932, %v933
      %v935 = vsel %vm806, %v891, 0.0
      %v936 = vadd.f32 %v934, %v935
      %v937 = vsel %vm806, %v892, 0.0
      %v938 = vadd.f32 %v936, %v937
      %v939 = vsel %vm806, %v893, 0.0
      %v940 = vadd.f32 %v938, %v939
      %v941 = vsel %vm806, %v894, 0.0
      %v942 = vadd.f32 %v940, %v941
      %v943 = vsel %vm806, %v895, 0.0
      %v944 = vadd.f32 %v942, %v943
      %v945 = vsel %vm806, %v896, 0.0
      %v946 = vadd.f32 %v944, %v945
      %v947 = vsel %vm806, %v897, 0.0
      %v948 = vadd.f32 %v946, %v947
      %v949 = vsel %vm806, %v898, 0.0
      %v950 = vadd.f32 %v948, %v949
      %v951 = vsel %vm806, %v899, 0.0
      %v952 = vadd.f32 %v950, %v951
      %v953 = vsel %vm806, %v900, 0.0
      %v954 = vadd.f32 %v952, %v953
      %v955 = vsel %vm806, %v901, 0.0
      %v956 = vadd.f32 %v954, %v955
      %v957 = vsel %vm806, %v902, 0.0
      %v958 = vadd.f32 %v956, %v957
      %v959 = vsel %vm806, %v903, 0.0
      %v960 = vadd.f32 %v958, %v959
      %v961 = vsel %vm806, %v904, 0.0
      %v962 = vadd.f32 %v960, %v961
      %v963 = vsel %vm806, %v905, 0.0
      %v964 = vadd.f32 %v962, %v963
      %v965 = vsel %vm806, %v906, 0.0
      %v966 = vadd.f32 %v964, %v965
      %v967 = vsel %vm806, %v907, 0.0
      %v968 = vadd.f32 %v966, %v967
      %v969 = vsel %vm806, %v908, 0.0
      %v970 = vadd.f32 %v968, %v969
      %v971 = vsel %vm806, %v909, 0.0
      %v972 = vadd.f32 %v970, %v971
      %v973 = vrot.slane %v972, 4
      %v974 = vadd.f32 %v972, %v973
      %v975 = vrot.slane %v974, 2
      %v976 = vadd.f32 %v974, %v975
      %v977 = vrot.slane %v976, 1
      %v978 = vadd.f32 %v976, %v977
      %979 = vst.msk [vmem:[%s238 + $0x1] sm:$0x1] %vm876, %v978
      %s980 = smul.u32 32, %s17
      %p981 = scmp.lt.s32.totalorder %s980, 63
      %s982 = scalar_select %p981, %s980, 63
      %s983 = smul.addr %s982, 4
      %s984 = scalar_lea.vmem %s4, %s983
      %p985 = scmp.lt.s32.totalorder %s17, 1
      %s986 = scalar_select %p985, %s17, 1
      %s987 = smul.addr %s986, 2
      %s988 = scalar_lea.vmem %s5, %s987
      // Predicated region
      $region37: #{vol_bottleneck.6} parent=35 // pred_check
        %p989 = pneg %p124
      $region38: #{vol_bottleneck.6} parent=35 // pred_check_branch
        %991 = sbr.rel (%p989) target = $region40
      $region39: #{vol_bottleneck.6} parent=35 // pred_region
        %s992 = smul.u32 32, %s17
      $region40: #{vol_bottleneck.6} parent=35 // pred_fallthru
        _
      // Predicated region
      $region41: #{vol_bottleneck.6} parent=35 // pred_check
        %p993 = pneg %p150
      $region42: #{vol_bottleneck.6} parent=35 // pred_check_branch
        %995 = sbr.rel (%p993) target = $region44
      $region43: #{vol_bottleneck.6} parent=35 // pred_region
        _
      $region44: #{vol_bottleneck.6} parent=35 // pred_fallthru
        _
    $region36: #{vol_bottleneck.6} parent=5 // pred_fallthru
      _
    %p996 = scmp.le.s32.totalorder 2, %s12
    // Predicated region
    $region45: #{vol_bottleneck.6} parent=5 // pred_check
      %p997 = pneg %p996
    $region46: #{vol_bottleneck.6} parent=5 // pred_check_branch
      %999 = sbr.rel (%p997) target = $region48
    $region47: #{vol_bottleneck.6} parent=5 // pred_region
      %s1000 = ssub.s32 %s12, 2
      // Predicated region
      $region49: #{vol_bottleneck.6} parent=47 // pred_check
        %p1001 = pneg %p130
      $region50: #{vol_bottleneck.6} parent=47 // pred_check_branch
        %1003 = sbr.rel (%p1001) target = $region52
      $region51: #{vol_bottleneck.6} parent=47 // pred_region
        %s1004 = smul.u32 32, %s18
        %p1005 = scmp.lt.s32.totalorder %s1004, 63
        %s1006 = scalar_select %p1005, %s1004, 63
        %s1007 = smul.addr %s1006, 4
        %s1008 = scalar_lea.vmem %s4, %s1007
      $region52: #{vol_bottleneck.6} parent=47 // pred_fallthru
        _
      // Predicated region
      $region53: #{vol_bottleneck.6} parent=47 // pred_check
        %p1009 = pneg %p156
      $region54: #{vol_bottleneck.6} parent=47 // pred_check_branch
        %1011 = sbr.rel (%p1009) target = $region56
      $region55: #{vol_bottleneck.6} parent=47 // pred_region
        %p1012 = scmp.lt.s32.totalorder %s18, 1
        %s1013 = scalar_select %p1012, %s18, 1
        %s1014 = smul.addr %s1013, 2
        %s1015 = scalar_lea.vmem %s5, %s1014
      $region56: #{vol_bottleneck.6} parent=47 // pred_fallthru
        _
    $region48: #{vol_bottleneck.6} parent=5 // pred_fallthru
      _
  $region6: #{vol_bottleneck.6} parent=0 // loop_footer
    %s16 = sadd.s32 1, %s12
  $region7: #{vol_bottleneck.6} parent=0 // loop_footer_branch
    %11 = sbr.rel target = $region3
  $region8: #{vol_bottleneck.6} parent=0 // loop_exit
    _

// kernel: vol_bottleneck.7
$region0: #{vol_bottleneck.7}
  #allocation0 [shape = 'u32[]', space=smem, size = 0x4, offset = 0x4, fixed_abs, tag = 'smem constant byte address 0x4 - core index']
  #allocation1 [shape = 'u32[144,128]{1,0:T(1,128)}', space=vmem, size = 0x12000, scoped, tag = 'internal scratch']
  %s0 = inlined_call_operand.vmem [shape: bf16[128,128], index: 0, kind: input, shape index: {}]
  %s1 = inlined_call_operand.vmem [shape: f32[1,128], index: 1, kind: input, shape index: {}]
  %s2 = inlined_call_operand.vmem [shape: f32[1,128], index: 2, kind: input, shape index: {}]
  %s3 = inlined_call_operand.vmem [shape: f32[128,128], index: 3, kind: input, shape index: {}]
  %s4 = inlined_call_operand.vmem [shape: f32[128,128], index: 4, kind: output, shape index: {}]
  %s5 = sld [smem:[#allocation0]]
  $region49: #{vol_bottleneck.7} parent=0
    _
  %s7 = ssub.s32 1, %s5
  %s8 = scalar_select 0, %s7, %s5
  loop: start=0, step=1, limit=4
  $region2: #{vol_bottleneck.7} parent=0 // loop_pre_header
    _
  $region3: #{vol_bottleneck.7} parent=0 // loop_header
    %s10 = sphi 0, %s14
    %p11 = scmp.ge.s32.totalorder %s10, 4
    %s20 = sphi 0, %s22
    %s23 = sphi 0, %s20
    %s24 = sphi 0, %s23
    %s40 = sphi 0, %s24
    %s44 = sphi 0, %s44
    %s46 = sphi 0, %s44
    %s47 = sphi 0, %s46
    %s61 = sphi 0, %s47
    %s65 = sphi 0, %s65
    %s67 = sphi 0, %s65
    %s68 = sphi 0, %s67
    %s82 = sphi 0, %s68
    %s88 = sphi 0, %s90
    %s91 = sphi 0, %s88
    %s92 = sphi 0, %s91
    %s108 = sphi 0, %s92
    %s114 = sphi 0, %s116
    %s117 = sphi 0, %s114
    %s118 = sphi 0, %s117
    %s134 = sphi 0, %s118
  $region4: #{vol_bottleneck.7} parent=0 // loop_header_branch
    %13 = sbr.rel (%p11) target = $region8
  $region5: #{vol_bottleneck.7} parent=0 // loop_body
    %s15 = ssub.s32 %s10, 1
    %s16 = ssub.s32 %s10, 2
    %s17 = sadd.s32 %s10, 1
    %s18 = ssub.s32 %s10, %s17
    %p19 = scmp.eq.s32.totalorder %s18, 0
    %s21 = sadd.s32 %s20, 1
    %s22 = scalar_select %p19, %s20, %s21
    %p25 = pneg %p19
    %p26 = scmp.eq.s32.totalorder %s10, 1
    %p27 = por %p25, %p26
    %p28 = scmp.ne.s32.totalorder %s20, %s23
    %p29 = scmp.eq.s32.totalorder %s10, 0
    %p30 = por %p28, %p29
    %p31 = scmp.ne.s32.totalorder %s20, %s23
    %p32 = scmp.eq.s32.totalorder %s15, 1
    %p33 = por %p31, %p32
    %p34 = scmp.ne.s32.totalorder %s23, %s24
    %p35 = scmp.eq.s32.totalorder %s15, 0
    %p36 = por %p34, %p35
    %p37 = scmp.ne.s32.totalorder %s23, %s24
    %p38 = scmp.eq.s32.totalorder %s16, 1
    %p39 = por %p37, %p38
    %p41 = scmp.ne.s32.totalorder %s24, %s40
    %p42 = scmp.eq.s32.totalorder %s16, 0
    %p43 = por %p41, %p42
    %s45 = sadd.s32 %s44, 1
    %p48 = scmp.eq.s32.totalorder %s10, 1
    %p49 = scmp.ne.s32.totalorder %s44, %s46
    %p50 = scmp.eq.s32.totalorder %s10, 0
    %p51 = por %p49, %p50
    %p52 = scmp.ne.s32.totalorder %s44, %s46
    %p53 = scmp.eq.s32.totalorder %s15, 1
    %p54 = por %p52, %p53
    %p55 = scmp.ne.s32.totalorder %s46, %s47
    %p56 = scmp.eq.s32.totalorder %s15, 0
    %p57 = por %p55, %p56
    %p58 = scmp.ne.s32.totalorder %s46, %s47
    %p59 = scmp.eq.s32.totalorder %s16, 1
    %p60 = por %p58, %p59
    %p62 = scmp.ne.s32.totalorder %s47, %s61
    %p63 = scmp.eq.s32.totalorder %s16, 0
    %p64 = por %p62, %p63
    %s66 = sadd.s32 %s65, 1
    %p69 = scmp.eq.s32.totalorder %s10, 1
    %p70 = scmp.ne.s32.totalorder %s65, %s67
    %p71 = scmp.eq.s32.totalorder %s10, 0
    %p72 = por %p70, %p71
    %p73 = scmp.ne.s32.totalorder %s65, %s67
    %p74 = scmp.eq.s32.totalorder %s15, 1
    %p75 = por %p73, %p74
    %p76 = scmp.ne.s32.totalorder %s67, %s68
    %p77 = scmp.eq.s32.totalorder %s15, 0
    %p78 = por %p76, %p77
    %p79 = scmp.ne.s32.totalorder %s67, %s68
    %p80 = scmp.eq.s32.totalorder %s16, 1
    %p81 = por %p79, %p80
    %p83 = scmp.ne.s32.totalorder %s68, %s82
    %p84 = scmp.eq.s32.totalorder %s16, 0
    %p85 = por %p83, %p84
    %s86 = ssub.s32 %s10, %s17
    %p87 = scmp.eq.s32.totalorder %s86, 0
    %s89 = sadd.s32 %s88, 1
    %s90 = scalar_select %p87, %s88, %s89
    %p93 = pneg %p87
    %p94 = scmp.eq.s32.totalorder %s10, 1
    %p95 = por %p93, %p94
    %p96 = scmp.ne.s32.totalorder %s88, %s91
    %p97 = scmp.eq.s32.totalorder %s10, 0
    %p98 = por %p96, %p97
    %p99 = scmp.ne.s32.totalorder %s88, %s91
    %p100 = scmp.eq.s32.totalorder %s15, 1
    %p101 = por %p99, %p100
    %p102 = scmp.ne.s32.totalorder %s91, %s92
    %p103 = scmp.eq.s32.totalorder %s15, 0
    %p104 = por %p102, %p103
    %p105 = scmp.ne.s32.totalorder %s91, %s92
    %p106 = scmp.eq.s32.totalorder %s16, 1
    %p107 = por %p105, %p106
    %p109 = scmp.ne.s32.totalorder %s92, %s108
    %p110 = scmp.eq.s32.totalorder %s16, 0
    %p111 = por %p109, %p110
    %s112 = ssub.s32 %s10, %s17
    %p113 = scmp.eq.s32.totalorder %s112, 0
    %s115 = sadd.s32 %s114, 1
    %s116 = scalar_select %p113, %s114, %s115
    %p119 = pneg %p113
    %p120 = scmp.eq.s32.totalorder %s10, 1
    %p121 = por %p119, %p120
    %p122 = scmp.ne.s32.totalorder %s114, %s117
    %p123 = scmp.eq.s32.totalorder %s10, 0
    %p124 = por %p122, %p123
    %p125 = scmp.ne.s32.totalorder %s114, %s117
    %p126 = scmp.eq.s32.totalorder %s15, 1
    %p127 = por %p125, %p126
    %p128 = scmp.ne.s32.totalorder %s117, %s118
    %p129 = scmp.eq.s32.totalorder %s15, 0
    %p130 = por %p128, %p129
    %p131 = scmp.ne.s32.totalorder %s117, %s118
    %p132 = scmp.eq.s32.totalorder %s16, 1
    %p133 = por %p131, %p132
    %p135 = scmp.ne.s32.totalorder %s118, %s134
    %p136 = scmp.eq.s32.totalorder %s16, 0
    %p137 = por %p135, %p136
    %p138 = scmp.le.s32.totalorder 1, %s10
    %p139 = scmp.lt.s32.totalorder %s10, 3
    %p140 = pnand %p138, %p139
    %p141 = pneg %p140
    // Predicated region
    $region9: #{vol_bottleneck.7} parent=5 // pred_check
      _
    $region10: #{vol_bottleneck.7} parent=5 // pred_check_branch
      %143 = sbr.rel (%p140) target = $region12
    $region11: #{vol_bottleneck.7} parent=5 // pred_region
      %s144 = ssub.s32 %s10, 1
      // Predicated region
      $region13: #{vol_bottleneck.7} parent=11 // pred_check
        %p145 = pneg %p57
      $region14: #{vol_bottleneck.7} parent=11 // pred_check_branch
        %147 = sbr.rel (%p145) target = $region16
      $region15: #{vol_bottleneck.7} parent=11 // pred_region
        _
      $region16: #{vol_bottleneck.7} parent=11 // pred_fallthru
        _
      // Predicated region
      $region17: #{vol_bottleneck.7} parent=11 // pred_check
        %p148 = pneg %p78
      $region18: #{vol_bottleneck.7} parent=11 // pred_check_branch
        %150 = sbr.rel (%p148) target = $region20
      $region19: #{vol_bottleneck.7} parent=11 // pred_region
        _
      $region20: #{vol_bottleneck.7} parent=11 // pred_fallthru
        _
    $region12: #{vol_bottleneck.7} parent=5 // pred_fallthru
      _
    %p151 = scmp.lt.s32.totalorder %s10, 2
    // Predicated region
    $region21: #{vol_bottleneck.7} parent=5 // pred_check
      %p152 = pneg %p151
    $region22: #{vol_bottleneck.7} parent=5 // pred_check_branch
      %154 = sbr.rel (%p152) target = $region24
    $region23: #{vol_bottleneck.7} parent=5 // pred_region
      // Predicated region
      $region25: #{vol_bottleneck.7} parent=23 // pred_check
        %p155 = pneg %p30
      $region26: #{vol_bottleneck.7} parent=23 // pred_check_branch
        %157 = sbr.rel (%p155) target = $region28
      $region27: #{vol_bottleneck.7} parent=23 // pred_region
        %s158 = smul.u32 8, %s10
        %p159 = scmp.lt.s32.totalorder %s158, 15
        %s160 = scalar_select %p159, %s158, 15
        %s161 = smul.addr %s160, 4
        %s162 = scalar_lea.vmem %s0, %s161
        %s163 = smul.u32 8, %s10
      $region28: #{vol_bottleneck.7} parent=23 // pred_fallthru
        _
      // Predicated region
      $region29: #{vol_bottleneck.7} parent=23 // pred_check
        %p164 = pneg %p98
      $region30: #{vol_bottleneck.7} parent=23 // pred_check_branch
        %166 = sbr.rel (%p164) target = $region32
      $region31: #{vol_bottleneck.7} parent=23 // pred_region
        %s167 = smul.u32 8, %s10
        %p168 = scmp.lt.s32.totalorder %s167, 15
        %s169 = scalar_select %p168, %s167, 15
        %s170 = smul.addr %s169, 8
        %s171 = scalar_lea.vmem %s3, %s170
        %s172 = smul.u32 8, %s10
      $region32: #{vol_bottleneck.7} parent=23 // pred_fallthru
        _
    $region24: #{vol_bottleneck.7} parent=5 // pred_fallthru
      _
    %p173 = scmp.le.s32.totalorder 1, %s10
    %p174 = scmp.lt.s32.totalorder %s10, 3
    %p175 = pnand %p173, %p174
    %p176 = pneg %p175
    // Predicated region
    $region33: #{vol_bottleneck.7} parent=5 // pred_check
      _
    $region34: #{vol_bottleneck.7} parent=5 // pred_check_branch
      %178 = sbr.rel (%p175) target = $region36
    $region35: #{vol_bottleneck.7} parent=5 // pred_region
      %s179 = ssub.s32 %s10, 1
      %s180 = smul.u32 8, %s15
      %p181 = scmp.lt.s32.totalorder %s180, 15
      %s182 = scalar_select %p181, %s180, 15
      %s183 = smul.addr %s182, 4
      %s184 = scalar_lea.vmem %s0, %s183
      %p185 = pneg %p36
      %p186 = pneg %p33
      %p187 = pneg %p57
      %p188 = pneg %p54
      %p189 = pneg %p78
      %p190 = pneg %p75
      %s191 = smul.u32 8, %s15
      %p192 = scmp.lt.s32.totalorder %s191, 15
      %s193 = scalar_select %p192, %s191, 15
      %s194 = smul.addr %s193, 8
      %s195 = scalar_lea.vmem %s3, %s194
      %p196 = pneg %p104
      %p197 = pneg %p101
      %p198 = pneg %p130
      %p199 = pneg %p127
      %s200 = smul.u32 8, %s15
      %p201 = scmp.lt.s32.totalorder %s200, 15
      %s202 = scalar_select %p201, %s200, 15
      %s203 = smul.addr %s202, 8
      %s204 = scalar_lea.vmem %s4, %s203
      %s205 = smul.u32 8, %s15
      %p206 = scmp.lt.s32.totalorder %s205, 15
      %s207 = scalar_select %p206, %s205, 15
      %s208 = smul.addr %s207, 4
      %s209 = scalar_lea.vmem %s0, %s208
      %s210 = smul.u32 8, %s15
      %s211 = smul.u32 8, %s15
      %p212 = scmp.lt.s32.totalorder %s211, 15
      %s213 = scalar_select %p212, %s211, 15
      %s214 = smul.addr %s213, 8
      %s215 = scalar_lea.vmem %s3, %s214
      %s216 = smul.u32 8, %s15
      %s217 = smul.u32 8, %s15
      %p218 = scmp.lt.s32.totalorder %s217, 15
      %s219 = scalar_select %p218, %s217, 15
      %s220 = smul.addr %s219, 8
      %s221 = scalar_lea.vmem %s4, %s220
      %s222 = smul.u32 8, %s15
      %v223 = vld [vmem:[%s209] sm:$0xf]
      %v224 = vld [vmem:[%s209 + $0x4] sm:$0xf]
      %v225 = vld [vmem:[%s209 + $0x8] sm:$0xf]
      %v226 = vld [vmem:[%s209 + $0xc] sm:$0xf]
      %v227 = vld [vmem:[%s209 + $0x10] sm:$0xf]
      %v228 = vld [vmem:[%s209 + $0x14] sm:$0xf]
      %v229 = vld [vmem:[%s209 + $0x18] sm:$0xf]
      %v230 = vld [vmem:[%s209 + $0x1c] sm:$0xf]
      %v231 = vunpack.c.l.bf16 %v223
      %v232 = vunpack.c.l.bf16 %v224
      %v233 = vunpack.c.l.bf16 %v225
      %v234 = vunpack.c.l.bf16 %v226
      %v235 = vunpack.c.l.bf16 %v227
      %v236 = vunpack.c.l.bf16 %v228
      %v237 = vunpack.c.l.bf16 %v229
      %v238 = vunpack.c.l.bf16 %v230
      %v239 = vld [vmem:[%s1] sm:$0x1]
      %v241 = vlaneseq
      %v242 = vshrl.u32 %v241, 7
      %v243 = vsub.s32 0, %v242
      %v244 = vrot.slane %v239, %v243
      %v246 = vmul.f32 %v231, %v244
      %v247 = vmul.f32 %v232, %v244
      %v248 = vmul.f32 %v233, %v244
      %v249 = vmul.f32 %v234, %v244
      %v250 = vmul.f32 %v235, %v244
      %v251 = vmul.f32 %v236, %v244
      %v252 = vmul.f32 %v237, %v244
      %v253 = vmul.f32 %v238, %v244
      %v254 = vld [vmem:[%s2] sm:$0x1]
      %v256 = vlaneseq
      %v257 = vshrl.u32 %v256, 7
      %v258 = vsub.s32 0, %v257
      %v259 = vrot.slane %v254, %v258
      %v261 = vadd.f32 %v246, %v259
      %v262 = vadd.f32 %v247, %v259
      %v263 = vadd.f32 %v248, %v259
      %v264 = vadd.f32 %v249, %v259
      %v265 = vadd.f32 %v250, %v259
      %v266 = vadd.f32 %v251, %v259
      %v267 = vadd.f32 %v252, %v259
      %v268 = vadd.f32 %v253, %v259
      %v269 = vld [vmem:[%s215] sm:$0xff]
      %v270 = vld [vmem:[%s215 + $0x8] sm:$0xff]
      %v271 = vld [vmem:[%s215 + $0x10] sm:$0xff]
      %v272 = vld [vmem:[%s215 + $0x18] sm:$0xff]
      %v273 = vld [vmem:[%s215 + $0x20] sm:$0xff]
      %v274 = vld [vmem:[%s215 + $0x28] sm:$0xff]
      %v275 = vld [vmem:[%s215 + $0x30] sm:$0xff]
      %v276 = vld [vmem:[%s215 + $0x38] sm:$0xff]
      %v277 = vadd.f32 %v261, %v269
      %v278 = vadd.f32 %v262, %v270
      %v279 = vadd.f32 %v263, %v271
      %v280 = vadd.f32 %v264, %v272
      %v281 = vadd.f32 %v265, %v273
      %v282 = vadd.f32 %v266, %v274
      %v283 = vadd.f32 %v267, %v275
      %v284 = vadd.f32 %v268, %v276
      %v285 = vmax.f32 %v277, 0.0
      %v286 = vmax.f32 %v278, 0.0
      %v287 = vmax.f32 %v279, 0.0
      %v288 = vmax.f32 %v280, 0.0
      %v289 = vmax.f32 %v281, 0.0
      %v290 = vmax.f32 %v282, 0.0
      %v291 = vmax.f32 %v283, 0.0
      %v292 = vmax.f32 %v284, 0.0
      %293 = vst [vmem:[%s221] sm:$0xff] %v285
      %294 = vst [vmem:[%s221 + $0x8] sm:$0xff] %v286
      %295 = vst [vmem:[%s221 + $0x10] sm:$0xff] %v287
      %296 = vst [vmem:[%s221 + $0x18] sm:$0xff] %v288
      %297 = vst [vmem:[%s221 + $0x20] sm:$0xff] %v289
      %298 = vst [vmem:[%s221 + $0x28] sm:$0xff] %v290
      %299 = vst [vmem:[%s221 + $0x30] sm:$0xff] %v291
      %300 = vst [vmem:[%s221 + $0x38] sm:$0xff] %v292
      %s301 = smul.u32 8, %s15
      %p302 = scmp.lt.s32.totalorder %s301, 15
      %s303 = scalar_select %p302, %s301, 15
      %s304 = smul.addr %s303, 8
      %s305 = scalar_lea.vmem %s4, %s304
      // Predicated region
      $region37: #{vol_bottleneck.7} parent=35 // pred_check
        %p306 = pneg %p127
      $region38: #{vol_bottleneck.7} parent=35 // pred_check_branch
        %308 = sbr.rel (%p306) target = $region40
      $region39: #{vol_bottleneck.7} parent=35 // pred_region
        %s309 = smul.u32 8, %s15
      $region40: #{vol_bottleneck.7} parent=35 // pred_fallthru
        _
    $region36: #{vol_bottleneck.7} parent=5 // pred_fallthru
      _
    %p310 = scmp.le.s32.totalorder 2, %s10
    // Predicated region
    $region41: #{vol_bottleneck.7} parent=5 // pred_check
      %p311 = pneg %p310
    $region42: #{vol_bottleneck.7} parent=5 // pred_check_branch
      %313 = sbr.rel (%p311) target = $region44
    $region43: #{vol_bottleneck.7} parent=5 // pred_region
      %s314 = ssub.s32 %s10, 2
      // Predicated region
      $region45: #{vol_bottleneck.7} parent=43 // pred_check
        %p315 = pneg %p133
      $region46: #{vol_bottleneck.7} parent=43 // pred_check_branch
        %317 = sbr.rel (%p315) target = $region48
      $region47: #{vol_bottleneck.7} parent=43 // pred_region
        %s318 = smul.u32 8, %s16
        %p319 = scmp.lt.s32.totalorder %s318, 15
        %s320 = scalar_select %p319, %s318, 15
        %s321 = smul.addr %s320, 8
        %s322 = scalar_lea.vmem %s4, %s321
      $region48: #{vol_bottleneck.7} parent=43 // pred_fallthru
        _
    $region44: #{vol_bottleneck.7} parent=5 // pred_fallthru
      _
  $region6: #{vol_bottleneck.7} parent=0 // loop_footer
    %s14 = sadd.s32 1, %s10
  $region7: #{vol_bottleneck.7} parent=0 // loop_footer_branch
    %9 = sbr.rel target = $region3
  $region8: #{vol_bottleneck.7} parent=0 // loop_exit
    _

// kernel: vol_bottleneck.5
$region0: #{vol_bottleneck.5}
  #allocation0 [shape = 'u32[]', space=smem, size = 0x4, offset = 0x4, fixed_abs, tag = 'smem constant byte address 0x4 - core index']
  #allocation1 [shape = 'u32[144,128]{1,0:T(1,128)}', space=vmem, size = 0x12000, scoped, tag = 'internal scratch']
  #allocation2 [shape = 'f32[320,8]{1,0:T(8,128)}', space=vmem, size = 0x28000, scoped, tag = 'scratch operand']
  %s0 = inlined_call_operand.vmem [shape: bf16[512,8], index: 0, kind: input, shape index: {}]
  %s1 = inlined_call_operand.vmem [shape: f32[1,8], index: 1, kind: input, shape index: {}]
  %s2 = inlined_call_operand.vmem [shape: f32[1,8], index: 2, kind: input, shape index: {}]
  %s3 = inlined_call_operand.vmem [shape: bf16[9,8,8], index: 3, kind: input, shape index: {}]
  %s4 = inlined_call_operand.vmem [shape: bf16[512,8], index: 4, kind: output, shape index: {0}]
  %s5 = inlined_call_operand.vmem [shape: f32[2,2,8], index: 5, kind: output, shape index: {1}]
  %6 = xla_tuple %s4, %s5
  %s7 = sld [smem:[#allocation0]]
  $region57: #{vol_bottleneck.5} parent=0
    _
  %s9 = ssub.s32 1, %s7
  %s10 = scalar_select 0, %s9, %s7
  loop: start=0, step=1, limit=4
  $region2: #{vol_bottleneck.5} parent=0 // loop_pre_header
    _
  $region3: #{vol_bottleneck.5} parent=0 // loop_header
    %s12 = sphi 0, %s16
    %p13 = scmp.ge.s32.totalorder %s12, 4
    %s22 = sphi 0, %s24
    %s25 = sphi 0, %s22
    %s26 = sphi 0, %s25
    %s42 = sphi 0, %s26
    %s46 = sphi 0, %s46
    %s48 = sphi 0, %s46
    %s49 = sphi 0, %s48
    %s63 = sphi 0, %s49
    %s67 = sphi 0, %s67
    %s69 = sphi 0, %s67
    %s70 = sphi 0, %s69
    %s84 = sphi 0, %s70
    %s88 = sphi 0, %s88
    %s90 = sphi 0, %s88
    %s91 = sphi 0, %s90
    %s105 = sphi 0, %s91
    %s111 = sphi 0, %s113
    %s114 = sphi 0, %s111
    %s115 = sphi 0, %s114
    %s131 = sphi 0, %s115
    %s137 = sphi 0, %s139
    %s140 = sphi 0, %s137
    %s141 = sphi 0, %s140
    %s157 = sphi 0, %s141
  $region4: #{vol_bottleneck.5} parent=0 // loop_header_branch
    %15 = sbr.rel (%p13) target = $region8
  $region5: #{vol_bottleneck.5} parent=0 // loop_body
    %s17 = ssub.s32 %s12, 1
    %s18 = ssub.s32 %s12, 2
    %s19 = sadd.s32 %s12, 1
    %s20 = ssub.s32 %s12, %s19
    %p21 = scmp.eq.s32.totalorder %s20, 0
    %s23 = sadd.s32 %s22, 1
    %s24 = scalar_select %p21, %s22, %s23
    %p27 = pneg %p21
    %p28 = scmp.eq.s32.totalorder %s12, 1
    %p29 = por %p27, %p28
    %p30 = scmp.ne.s32.totalorder %s22, %s25
    %p31 = scmp.eq.s32.totalorder %s12, 0
    %p32 = por %p30, %p31
    %p33 = scmp.ne.s32.totalorder %s22, %s25
    %p34 = scmp.eq.s32.totalorder %s17, 1
    %p35 = por %p33, %p34
    %p36 = scmp.ne.s32.totalorder %s25, %s26
    %p37 = scmp.eq.s32.totalorder %s17, 0
    %p38 = por %p36, %p37
    %p39 = scmp.ne.s32.totalorder %s25, %s26
    %p40 = scmp.eq.s32.totalorder %s18, 1
    %p41 = por %p39, %p40
    %p43 = scmp.ne.s32.totalorder %s26, %s42
    %p44 = scmp.eq.s32.totalorder %s18, 0
    %p45 = por %p43, %p44
    %s47 = sadd.s32 %s46, 1
    %p50 = scmp.eq.s32.totalorder %s12, 1
    %p51 = scmp.ne.s32.totalorder %s46, %s48
    %p52 = scmp.eq.s32.totalorder %s12, 0
    %p53 = por %p51, %p52
    %p54 = scmp.ne.s32.totalorder %s46, %s48
    %p55 = scmp.eq.s32.totalorder %s17, 1
    %p56 = por %p54, %p55
    %p57 = scmp.ne.s32.totalorder %s48, %s49
    %p58 = scmp.eq.s32.totalorder %s17, 0
    %p59 = por %p57, %p58
    %p60 = scmp.ne.s32.totalorder %s48, %s49
    %p61 = scmp.eq.s32.totalorder %s18, 1
    %p62 = por %p60, %p61
    %p64 = scmp.ne.s32.totalorder %s49, %s63
    %p65 = scmp.eq.s32.totalorder %s18, 0
    %p66 = por %p64, %p65
    %s68 = sadd.s32 %s67, 1
    %p71 = scmp.eq.s32.totalorder %s12, 1
    %p72 = scmp.ne.s32.totalorder %s67, %s69
    %p73 = scmp.eq.s32.totalorder %s12, 0
    %p74 = por %p72, %p73
    %p75 = scmp.ne.s32.totalorder %s67, %s69
    %p76 = scmp.eq.s32.totalorder %s17, 1
    %p77 = por %p75, %p76
    %p78 = scmp.ne.s32.totalorder %s69, %s70
    %p79 = scmp.eq.s32.totalorder %s17, 0
    %p80 = por %p78, %p79
    %p81 = scmp.ne.s32.totalorder %s69, %s70
    %p82 = scmp.eq.s32.totalorder %s18, 1
    %p83 = por %p81, %p82
    %p85 = scmp.ne.s32.totalorder %s70, %s84
    %p86 = scmp.eq.s32.totalorder %s18, 0
    %p87 = por %p85, %p86
    %s89 = sadd.s32 %s88, 1
    %p92 = scmp.eq.s32.totalorder %s12, 1
    %p93 = scmp.ne.s32.totalorder %s88, %s90
    %p94 = scmp.eq.s32.totalorder %s12, 0
    %p95 = por %p93, %p94
    %p96 = scmp.ne.s32.totalorder %s88, %s90
    %p97 = scmp.eq.s32.totalorder %s17, 1
    %p98 = por %p96, %p97
    %p99 = scmp.ne.s32.totalorder %s90, %s91
    %p100 = scmp.eq.s32.totalorder %s17, 0
    %p101 = por %p99, %p100
    %p102 = scmp.ne.s32.totalorder %s90, %s91
    %p103 = scmp.eq.s32.totalorder %s18, 1
    %p104 = por %p102, %p103
    %p106 = scmp.ne.s32.totalorder %s91, %s105
    %p107 = scmp.eq.s32.totalorder %s18, 0
    %p108 = por %p106, %p107
    %s109 = ssub.s32 %s12, %s19
    %p110 = scmp.eq.s32.totalorder %s109, 0
    %s112 = sadd.s32 %s111, 1
    %s113 = scalar_select %p110, %s111, %s112
    %p116 = pneg %p110
    %p117 = scmp.eq.s32.totalorder %s12, 1
    %p118 = por %p116, %p117
    %p119 = scmp.ne.s32.totalorder %s111, %s114
    %p120 = scmp.eq.s32.totalorder %s12, 0
    %p121 = por %p119, %p120
    %p122 = scmp.ne.s32.totalorder %s111, %s114
    %p123 = scmp.eq.s32.totalorder %s17, 1
    %p124 = por %p122, %p123
    %p125 = scmp.ne.s32.totalorder %s114, %s115
    %p126 = scmp.eq.s32.totalorder %s17, 0
    %p127 = por %p125, %p126
    %p128 = scmp.ne.s32.totalorder %s114, %s115
    %p129 = scmp.eq.s32.totalorder %s18, 1
    %p130 = por %p128, %p129
    %p132 = scmp.ne.s32.totalorder %s115, %s131
    %p133 = scmp.eq.s32.totalorder %s18, 0
    %p134 = por %p132, %p133
    %s135 = ssub.s32 %s12, %s19
    %p136 = scmp.eq.s32.totalorder %s135, 0
    %s138 = sadd.s32 %s137, 1
    %s139 = scalar_select %p136, %s137, %s138
    %p142 = pneg %p136
    %p143 = scmp.eq.s32.totalorder %s12, 1
    %p144 = por %p142, %p143
    %p145 = scmp.ne.s32.totalorder %s137, %s140
    %p146 = scmp.eq.s32.totalorder %s12, 0
    %p147 = por %p145, %p146
    %p148 = scmp.ne.s32.totalorder %s137, %s140
    %p149 = scmp.eq.s32.totalorder %s17, 1
    %p150 = por %p148, %p149
    %p151 = scmp.ne.s32.totalorder %s140, %s141
    %p152 = scmp.eq.s32.totalorder %s17, 0
    %p153 = por %p151, %p152
    %p154 = scmp.ne.s32.totalorder %s140, %s141
    %p155 = scmp.eq.s32.totalorder %s18, 1
    %p156 = por %p154, %p155
    %p158 = scmp.ne.s32.totalorder %s141, %s157
    %p159 = scmp.eq.s32.totalorder %s18, 0
    %p160 = por %p158, %p159
    %p161 = scmp.le.s32.totalorder 1, %s12
    %p162 = scmp.lt.s32.totalorder %s12, 3
    %p163 = pnand %p161, %p162
    %p164 = pneg %p163
    // Predicated region
    $region9: #{vol_bottleneck.5} parent=5 // pred_check
      _
    $region10: #{vol_bottleneck.5} parent=5 // pred_check_branch
      %166 = sbr.rel (%p163) target = $region12
    $region11: #{vol_bottleneck.5} parent=5 // pred_region
      %s167 = ssub.s32 %s12, 1
      // Predicated region
      $region13: #{vol_bottleneck.5} parent=11 // pred_check
        %p168 = pneg %p59
      $region14: #{vol_bottleneck.5} parent=11 // pred_check_branch
        %170 = sbr.rel (%p168) target = $region16
      $region15: #{vol_bottleneck.5} parent=11 // pred_region
        _
      $region16: #{vol_bottleneck.5} parent=11 // pred_fallthru
        _
      // Predicated region
      $region17: #{vol_bottleneck.5} parent=11 // pred_check
        %p171 = pneg %p80
      $region18: #{vol_bottleneck.5} parent=11 // pred_check_branch
        %173 = sbr.rel (%p171) target = $region20
      $region19: #{vol_bottleneck.5} parent=11 // pred_region
        _
      $region20: #{vol_bottleneck.5} parent=11 // pred_fallthru
        _
      // Predicated region
      $region21: #{vol_bottleneck.5} parent=11 // pred_check
        %p174 = pneg %p101
      $region22: #{vol_bottleneck.5} parent=11 // pred_check_branch
        %176 = sbr.rel (%p174) target = $region24
      $region23: #{vol_bottleneck.5} parent=11 // pred_region
        _
      $region24: #{vol_bottleneck.5} parent=11 // pred_fallthru
        _
    $region12: #{vol_bottleneck.5} parent=5 // pred_fallthru
      _
    %p177 = scmp.lt.s32.totalorder %s12, 2
    // Predicated region
    $region25: #{vol_bottleneck.5} parent=5 // pred_check
      %p178 = pneg %p177
    $region26: #{vol_bottleneck.5} parent=5 // pred_check_branch
      %180 = sbr.rel (%p178) target = $region28
    $region27: #{vol_bottleneck.5} parent=5 // pred_region
      // Predicated region
      $region29: #{vol_bottleneck.5} parent=27 // pred_check
        %p181 = pneg %p32
      $region30: #{vol_bottleneck.5} parent=27 // pred_check_branch
        %183 = sbr.rel (%p181) target = $region32
      $region31: #{vol_bottleneck.5} parent=27 // pred_region
        %s184 = smul.u32 32, %s12
        %p185 = scmp.lt.s32.totalorder %s184, 63
        %s186 = scalar_select %p185, %s184, 63
        %s187 = smul.addr %s186, 4
        %s188 = scalar_lea.vmem %s0, %s187
        %s189 = smul.u32 32, %s12
      $region32: #{vol_bottleneck.5} parent=27 // pred_fallthru
        _
    $region28: #{vol_bottleneck.5} parent=5 // pred_fallthru
      _
    %p190 = scmp.le.s32.totalorder 1, %s12
    %p191 = scmp.lt.s32.totalorder %s12, 3
    %p192 = pnand %p190, %p191
    %p193 = pneg %p192
    // Predicated region
    $region33: #{vol_bottleneck.5} parent=5 // pred_check
      _
    $region34: #{vol_bottleneck.5} parent=5 // pred_check_branch
      %195 = sbr.rel (%p192) target = $region36
    $region35: #{vol_bottleneck.5} parent=5 // pred_region
      %s196 = ssub.s32 %s12, 1
      %s197 = smul.u32 32, %s17
      %p198 = scmp.lt.s32.totalorder %s197, 63
      %s199 = scalar_select %p198, %s197, 63
      %s200 = smul.addr %s199, 4
      %s201 = scalar_lea.vmem %s0, %s200
      %p202 = pneg %p38
      %p203 = pneg %p35
      %p204 = pneg %p59
      %p205 = pneg %p56
      %p206 = pneg %p80
      %p207 = pneg %p77
      %p208 = pneg %p101
      %p209 = pneg %p98
      %p210 = pneg %p127
      %p211 = pneg %p124
      %s212 = smul.u32 32, %s17
      %p213 = scmp.lt.s32.totalorder %s212, 63
      %s214 = scalar_select %p213, %s212, 63
      %s215 = smul.addr %s214, 4
      %s216 = scalar_lea.vmem %s4, %s215
      %p217 = pneg %p153
      %p218 = pneg %p150
      %p219 = scmp.lt.s32.totalorder %s17, 1
      %s220 = scalar_select %p219, %s17, 1
      %s221 = smul.addr %s220, 2
      %s222 = scalar_lea.vmem %s5, %s221
      %s223 = smul.u32 32, %s17
      %p224 = scmp.lt.s32.totalorder %s223, 63
      %s225 = scalar_select %p224, %s223, 63
      %s226 = smul.addr %s225, 4
      %s227 = scalar_lea.vmem %s0, %s226
      %s228 = smul.u32 32, %s17
      %s229 = smul.u32 32, %s17
      %p230 = scmp.lt.s32.totalorder %s229, 63
      %s231 = scalar_select %p230, %s229, 63
      %s232 = smul.addr %s231, 4
      %s233 = scalar_lea.vmem %s4, %s232
      %s234 = smul.u32 32, %s17
      %p235 = scmp.lt.s32.totalorder %s17, 1
      %s236 = scalar_select %p235, %s17, 1
      %s237 = smul.addr %s236, 2
      %s238 = scalar_lea.vmem %s5, %s237
      %v240 = vld [vmem:[%s227] sm:$0xf]
      %v241 = vld [vmem:[%s227 + $0x4] sm:$0xf]
      %v242 = vld [vmem:[%s227 + $0x8] sm:$0xf]
      %v243 = vld [vmem:[%s227 + $0xc] sm:$0xf]
      %v244 = vld [vmem:[%s227 + $0x10] sm:$0xf]
      %v245 = vld [vmem:[%s227 + $0x14] sm:$0xf]
      %v246 = vld [vmem:[%s227 + $0x18] sm:$0xf]
      %v247 = vld [vmem:[%s227 + $0x1c] sm:$0xf]
      %v248 = vld [vmem:[%s227 + $0x20] sm:$0xf]
      %v249 = vld [vmem:[%s227 + $0x24] sm:$0xf]
      %v250 = vld [vmem:[%s227 + $0x28] sm:$0xf]
      %v251 = vld [vmem:[%s227 + $0x2c] sm:$0xf]
      %v252 = vld [vmem:[%s227 + $0x30] sm:$0xf]
      %v253 = vld [vmem:[%s227 + $0x34] sm:$0xf]
      %v254 = vld [vmem:[%s227 + $0x38] sm:$0xf]
      %v255 = vld [vmem:[%s227 + $0x3c] sm:$0xf]
      %v256 = vld [vmem:[%s227 + $0x40] sm:$0xf]
      %v257 = vld [vmem:[%s227 + $0x44] sm:$0xf]
      %v258 = vld [vmem:[%s227 + $0x48] sm:$0xf]
      %v259 = vld [vmem:[%s227 + $0x4c] sm:$0xf]
      %v260 = vld [vmem:[%s227 + $0x50] sm:$0xf]
      %v261 = vld [vmem:[%s227 + $0x54] sm:$0xf]
      %v262 = vld [vmem:[%s227 + $0x58] sm:$0xf]
      %v263 = vld [vmem:[%s227 + $0x5c] sm:$0xf]
      %v264 = vld [vmem:[%s227 + $0x60] sm:$0xf]
      %v265 = vld [vmem:[%s227 + $0x64] sm:$0xf]
      %v266 = vld [vmem:[%s227 + $0x68] sm:$0xf]
      %v267 = vld [vmem:[%s227 + $0x6c] sm:$0xf]
      %v268 = vld [vmem:[%s227 + $0x70] sm:$0xf]
      %v269 = vld [vmem:[%s227 + $0x74] sm:$0xf]
      %v270 = vld [vmem:[%s227 + $0x78] sm:$0xf]
      %v271 = vld [vmem:[%s227 + $0x7c] sm:$0xf]
      %v272 = vunpack.c.l.bf16 %v240
      %v273 = vunpack.c.l.bf16 %v241
      %v274 = vunpack.c.l.bf16 %v242
      %v275 = vunpack.c.l.bf16 %v243
      %v276 = vunpack.c.l.bf16 %v244
      %v277 = vunpack.c.l.bf16 %v245
      %v278 = vunpack.c.l.bf16 %v246
      %v279 = vunpack.c.l.bf16 %v247
      %v280 = vunpack.c.l.bf16 %v248
      %v281 = vunpack.c.l.bf16 %v249
      %v282 = vunpack.c.l.bf16 %v250
      %v283 = vunpack.c.l.bf16 %v251
      %v284 = vunpack.c.l.bf16 %v252
      %v285 = vunpack.c.l.bf16 %v253
      %v286 = vunpack.c.l.bf16 %v254
      %v287 = vunpack.c.l.bf16 %v255
      %v288 = vunpack.c.l.bf16 %v256
      %v289 = vunpack.c.l.bf16 %v257
      %v290 = vunpack.c.l.bf16 %v258
      %v291 = vunpack.c.l.bf16 %v259
      %v292 = vunpack.c.l.bf16 %v260
      %v293 = vunpack.c.l.bf16 %v261
      %v294 = vunpack.c.l.bf16 %v262
      %v295 = vunpack.c.l.bf16 %v263
      %v296 = vunpack.c.l.bf16 %v264
      %v297 = vunpack.c.l.bf16 %v265
      %v298 = vunpack.c.l.bf16 %v266
      %v299 = vunpack.c.l.bf16 %v267
      %v300 = vunpack.c.l.bf16 %v268
      %v301 = vunpack.c.l.bf16 %v269
      %v302 = vunpack.c.l.bf16 %v270
      %v303 = vunpack.c.l.bf16 %v271
      %v304 = vld [vmem:[%s1] sm:$0x1]
      %v306 = vlaneseq
      %v307 = vshrl.u32 %v306, 7
      %v308 = vsub.s32 0, %v307
      %v309 = vrot.slane %v304, %v308
      %v311 = vmul.f32 %v272, %v309
      %v312 = vmul.f32 %v273, %v309
      %v313 = vmul.f32 %v274, %v309
      %v314 = vmul.f32 %v275, %v309
      %v315 = vmul.f32 %v276, %v309
      %v316 = vmul.f32 %v277, %v309
      %v317 = vmul.f32 %v278, %v309
      %v318 = vmul.f32 %v279, %v309
      %v319 = vmul.f32 %v280, %v309
      %v320 = vmul.f32 %v281, %v309
      %v321 = vmul.f32 %v282, %v309
      %v322 = vmul.f32 %v283, %v309
      %v323 = vmul.f32 %v284, %v309
      %v324 = vmul.f32 %v285, %v309
      %v325 = vmul.f32 %v286, %v309
      %v326 = vmul.f32 %v287, %v309
      %v327 = vmul.f32 %v288, %v309
      %v328 = vmul.f32 %v289, %v309
      %v329 = vmul.f32 %v290, %v309
      %v330 = vmul.f32 %v291, %v309
      %v331 = vmul.f32 %v292, %v309
      %v332 = vmul.f32 %v293, %v309
      %v333 = vmul.f32 %v294, %v309
      %v334 = vmul.f32 %v295, %v309
      %v335 = vmul.f32 %v296, %v309
      %v336 = vmul.f32 %v297, %v309
      %v337 = vmul.f32 %v298, %v309
      %v338 = vmul.f32 %v299, %v309
      %v339 = vmul.f32 %v300, %v309
      %v340 = vmul.f32 %v301, %v309
      %v341 = vmul.f32 %v302, %v309
      %v342 = vmul.f32 %v303, %v309
      %v343 = vld [vmem:[%s2] sm:$0x1]
      %v345 = vlaneseq
      %v346 = vshrl.u32 %v345, 7
      %v347 = vsub.s32 0, %v346
      %v348 = vrot.slane %v343, %v347
      %v350 = vadd.f32 %v311, %v348
      %v351 = vadd.f32 %v312, %v348
      %v352 = vadd.f32 %v313, %v348
      %v353 = vadd.f32 %v314, %v348
      %v354 = vadd.f32 %v315, %v348
      %v355 = vadd.f32 %v316, %v348
      %v356 = vadd.f32 %v317, %v348
      %v357 = vadd.f32 %v318, %v348
      %v358 = vadd.f32 %v319, %v348
      %v359 = vadd.f32 %v320, %v348
      %v360 = vadd.f32 %v321, %v348
      %v361 = vadd.f32 %v322, %v348
      %v362 = vadd.f32 %v323, %v348
      %v363 = vadd.f32 %v324, %v348
      %v364 = vadd.f32 %v325, %v348
      %v365 = vadd.f32 %v326, %v348
      %v366 = vadd.f32 %v327, %v348
      %v367 = vadd.f32 %v328, %v348
      %v368 = vadd.f32 %v329, %v348
      %v369 = vadd.f32 %v330, %v348
      %v370 = vadd.f32 %v331, %v348
      %v371 = vadd.f32 %v332, %v348
      %v372 = vadd.f32 %v333, %v348
      %v373 = vadd.f32 %v334, %v348
      %v374 = vadd.f32 %v335, %v348
      %v375 = vadd.f32 %v336, %v348
      %v376 = vadd.f32 %v337, %v348
      %v377 = vadd.f32 %v338, %v348
      %v378 = vadd.f32 %v339, %v348
      %v379 = vadd.f32 %v340, %v348
      %v380 = vadd.f32 %v341, %v348
      %v381 = vadd.f32 %v342, %v348
      %v382 = vmax.f32 %v350, 0.0
      %v383 = vmax.f32 %v351, 0.0
      %v384 = vmax.f32 %v352, 0.0
      %v385 = vmax.f32 %v353, 0.0
      %v386 = vmax.f32 %v354, 0.0
      %v387 = vmax.f32 %v355, 0.0
      %v388 = vmax.f32 %v356, 0.0
      %v389 = vmax.f32 %v357, 0.0
      %v390 = vmax.f32 %v358, 0.0
      %v391 = vmax.f32 %v359, 0.0
      %v392 = vmax.f32 %v360, 0.0
      %v393 = vmax.f32 %v361, 0.0
      %v394 = vmax.f32 %v362, 0.0
      %v395 = vmax.f32 %v363, 0.0
      %v396 = vmax.f32 %v364, 0.0
      %v397 = vmax.f32 %v365, 0.0
      %v398 = vmax.f32 %v366, 0.0
      %v399 = vmax.f32 %v367, 0.0
      %v400 = vmax.f32 %v368, 0.0
      %v401 = vmax.f32 %v369, 0.0
      %v402 = vmax.f32 %v370, 0.0
      %v403 = vmax.f32 %v371, 0.0
      %v404 = vmax.f32 %v372, 0.0
      %v405 = vmax.f32 %v373, 0.0
      %v406 = vmax.f32 %v374, 0.0
      %v407 = vmax.f32 %v375, 0.0
      %v408 = vmax.f32 %v376, 0.0
      %v409 = vmax.f32 %v377, 0.0
      %v410 = vmax.f32 %v378, 0.0
      %v411 = vmax.f32 %v379, 0.0
      %v412 = vmax.f32 %v380, 0.0
      %v413 = vmax.f32 %v381, 0.0
      %vm414 = vcmask 64512
      %415 = vst.msk [vmem:[#allocation2] sm:$0xff] %vm414, 0.0
      %416 = vst.msk [vmem:[#allocation2 + $0x8] sm:$0xff] %vm414, 0.0
      %417 = vst.msk [vmem:[#allocation2 + $0x10] sm:$0xff] %vm414, 0.0
      %418 = vst.msk [vmem:[#allocation2 + $0x18] sm:$0xff] %vm414, 0.0
      %419 = vst.msk [vmem:[#allocation2 + $0x120] sm:$0xff] %vm414, 0.0
      %420 = vst.msk [vmem:[#allocation2 + $0x128] sm:$0xff] %vm414, 0.0
      %421 = vst.msk [vmem:[#allocation2 + $0x130] sm:$0xff] %vm414, 0.0
      %422 = vst.msk [vmem:[#allocation2 + $0x138] sm:$0xff] %vm414, 0.0
      %423 = vst.msk [vmem:[#allocation2 + $0x20] sm:$0xff] %vm414, %v382
      %424 = vst.msk [vmem:[#allocation2 + $0x28] sm:$0xff] %vm414, %v383
      %425 = vst.msk [vmem:[#allocation2 + $0x30] sm:$0xff] %vm414, %v384
      %426 = vst.msk [vmem:[#allocation2 + $0x38] sm:$0xff] %vm414, %v385
      %427 = vst.msk [vmem:[#allocation2 + $0x40] sm:$0xff] %vm414, %v386
      %428 = vst.msk [vmem:[#allocation2 + $0x48] sm:$0xff] %vm414, %v387
      %429 = vst.msk [vmem:[#allocation2 + $0x50] sm:$0xff] %vm414, %v388
      %430 = vst.msk [vmem:[#allocation2 + $0x58] sm:$0xff] %vm414, %v389
      %431 = vst.msk [vmem:[#allocation2 + $0x60] sm:$0xff] %vm414, %v390
      %432 = vst.msk [vmem:[#allocation2 + $0x68] sm:$0xff] %vm414, %v391
      %433 = vst.msk [vmem:[#allocation2 + $0x70] sm:$0xff] %vm414, %v392
      %434 = vst.msk [vmem:[#allocation2 + $0x78] sm:$0xff] %vm414, %v393
      %435 = vst.msk [vmem:[#allocation2 + $0x80] sm:$0xff] %vm414, %v394
      %436 = vst.msk [vmem:[#allocation2 + $0x88] sm:$0xff] %vm414, %v395
      %437 = vst.msk [vmem:[#allocation2 + $0x90] sm:$0xff] %vm414, %v396
      %438 = vst.msk [vmem:[#allocation2 + $0x98] sm:$0xff] %vm414, %v397
      %439 = vst.msk [vmem:[#allocation2 + $0xa0] sm:$0xff] %vm414, %v398
      %440 = vst.msk [vmem:[#allocation2 + $0xa8] sm:$0xff] %vm414, %v399
      %441 = vst.msk [vmem:[#allocation2 + $0xb0] sm:$0xff] %vm414, %v400
      %442 = vst.msk [vmem:[#allocation2 + $0xb8] sm:$0xff] %vm414, %v401
      %443 = vst.msk [vmem:[#allocation2 + $0xc0] sm:$0xff] %vm414, %v402
      %444 = vst.msk [vmem:[#allocation2 + $0xc8] sm:$0xff] %vm414, %v403
      %445 = vst.msk [vmem:[#allocation2 + $0xd0] sm:$0xff] %vm414, %v404
      %446 = vst.msk [vmem:[#allocation2 + $0xd8] sm:$0xff] %vm414, %v405
      %447 = vst.msk [vmem:[#allocation2 + $0xe0] sm:$0xff] %vm414, %v406
      %448 = vst.msk [vmem:[#allocation2 + $0xe8] sm:$0xff] %vm414, %v407
      %449 = vst.msk [vmem:[#allocation2 + $0xf0] sm:$0xff] %vm414, %v408
      %450 = vst.msk [vmem:[#allocation2 + $0xf8] sm:$0xff] %vm414, %v409
      %451 = vst.msk [vmem:[#allocation2 + $0x100] sm:$0xff] %vm414, %v410
      %452 = vst.msk [vmem:[#allocation2 + $0x108] sm:$0xff] %vm414, %v411
      %453 = vst.msk [vmem:[#allocation2 + $0x110] sm:$0xff] %vm414, %v412
      %454 = vst.msk [vmem:[#allocation2 + $0x118] sm:$0xff] %vm414, %v413
      %v455 = vlaneseq
      %v456 = vshrl.u32 %v455, 7
      %v457 = vadd.s32 %v456, 8
      %v458 = vadd.s32 %v456, 16
      %v459 = vadd.s32 %v456, 24
      %v460 = vadd.s32 %v456, 32
      %v461 = vadd.s32 %v456, 40
      %v462 = vadd.s32 %v456, 48
      %v463 = vadd.s32 %v456, 56
      %v464 = vadd.s32 %v456, 64
      %v465 = vadd.s32 %v456, 72
      %v466 = vadd.s32 %v456, 80
      %v467 = vadd.s32 %v456, 88
      %v468 = vadd.s32 %v456, 96
      %v469 = vadd.s32 %v456, 104
      %v470 = vadd.s32 %v456, 112
      %v471 = vadd.s32 %v456, 120
      %v472 = vadd.s32 %v456, 128
      %v473 = vadd.s32 %v456, 136
      %v474 = vadd.s32 %v456, 144
      %v475 = vadd.s32 %v456, 152
      %v476 = vadd.s32 %v456, 160
      %v477 = vadd.s32 %v456, 168
      %v478 = vadd.s32 %v456, 176
      %v479 = vadd.s32 %v456, 184
      %v480 = vadd.s32 %v456, 192
      %v481 = vadd.s32 %v456, 200
      %v482 = vadd.s32 %v456, 208
      %v483 = vadd.s32 %v456, 216
      %v484 = vadd.s32 %v456, 224
      %v485 = vadd.s32 %v456, 232
      %v486 = vadd.s32 %v456, 240
      %v487 = vadd.s32 %v456, 248
      %vm488 = vcmp.lt.s32.totalorder %v456, 0
      %v489 = vsub.s32 0, %v456
      %v490 = vsel %vm488, %v489, %v456
      %v491 = vshrl.u32 %v490, 4
      %v492 = vand.u32 %v490, 15
      %v493 = vsub.s32 0, %v492
      %v494 = vsel %vm488, %v493, %v492
      %vm495 = vcmp.lt.s32.totalorder %v457, 0
      %v496 = vsub.s32 0, %v457
      %v497 = vsel %vm495, %v496, %v457
      %v498 = vshrl.u32 %v497, 4
      %v499 = vand.u32 %v497, 15
      %v500 = vsub.s32 0, %v499
      %v501 = vsel %vm495, %v500, %v499
      %vm502 = vcmp.lt.s32.totalorder %v458, 0
      %v503 = vsub.s32 0, %v458
      %v504 = vsel %vm502, %v503, %v458
      %v505 = vshrl.u32 %v504, 4
      %v506 = vand.u32 %v504, 15
      %v507 = vsub.s32 0, %v506
      %v508 = vsel %vm502, %v507, %v506
      %vm509 = vcmp.lt.s32.totalorder %v459, 0
      %v510 = vsub.s32 0, %v459
      %v511 = vsel %vm509, %v510, %v459
      %v512 = vshrl.u32 %v511, 4
      %v513 = vand.u32 %v511, 15
      %v514 = vsub.s32 0, %v513
      %v515 = vsel %vm509, %v514, %v513
      %vm516 = vcmp.lt.s32.totalorder %v460, 0
      %v517 = vsub.s32 0, %v460
      %v518 = vsel %vm516, %v517, %v460
      %v519 = vshrl.u32 %v518, 4
      %v520 = vand.u32 %v518, 15
      %v521 = vsub.s32 0, %v520
      %v522 = vsel %vm516, %v521, %v520
      %vm523 = vcmp.lt.s32.totalorder %v461, 0
      %v524 = vsub.s32 0, %v461
      %v525 = vsel %vm523, %v524, %v461
      %v526 = vshrl.u32 %v525, 4
      %v527 = vand.u32 %v525, 15
      %v528 = vsub.s32 0, %v527
      %v529 = vsel %vm523, %v528, %v527
      %vm530 = vcmp.lt.s32.totalorder %v462, 0
      %v531 = vsub.s32 0, %v462
      %v532 = vsel %vm530, %v531, %v462
      %v533 = vshrl.u32 %v532, 4
      %v534 = vand.u32 %v532, 15
      %v535 = vsub.s32 0, %v534
      %v536 = vsel %vm530, %v535, %v534
      %vm537 = vcmp.lt.s32.totalorder %v463, 0
      %v538 = vsub.s32 0, %v463
      %v539 = vsel %vm537, %v538, %v463
      %v540 = vshrl.u32 %v539, 4
      %v541 = vand.u32 %v539, 15
      %v542 = vsub.s32 0, %v541
      %v543 = vsel %vm537, %v542, %v541
      %vm544 = vcmp.lt.s32.totalorder %v464, 0
      %v545 = vsub.s32 0, %v464
      %v546 = vsel %vm544, %v545, %v464
      %v547 = vshrl.u32 %v546, 4
      %v548 = vand.u32 %v546, 15
      %v549 = vsub.s32 0, %v548
      %v550 = vsel %vm544, %v549, %v548
      %vm551 = vcmp.lt.s32.totalorder %v465, 0
      %v552 = vsub.s32 0, %v465
      %v553 = vsel %vm551, %v552, %v465
      %v554 = vshrl.u32 %v553, 4
      %v555 = vand.u32 %v553, 15
      %v556 = vsub.s32 0, %v555
      %v557 = vsel %vm551, %v556, %v555
      %vm558 = vcmp.lt.s32.totalorder %v466, 0
      %v559 = vsub.s32 0, %v466
      %v560 = vsel %vm558, %v559, %v466
      %v561 = vshrl.u32 %v560, 4
      %v562 = vand.u32 %v560, 15
      %v563 = vsub.s32 0, %v562
      %v564 = vsel %vm558, %v563, %v562
      %vm565 = vcmp.lt.s32.totalorder %v467, 0
      %v566 = vsub.s32 0, %v467
      %v567 = vsel %vm565, %v566, %v467
      %v568 = vshrl.u32 %v567, 4
      %v569 = vand.u32 %v567, 15
      %v570 = vsub.s32 0, %v569
      %v571 = vsel %vm565, %v570, %v569
      %vm572 = vcmp.lt.s32.totalorder %v468, 0
      %v573 = vsub.s32 0, %v468
      %v574 = vsel %vm572, %v573, %v468
      %v575 = vshrl.u32 %v574, 4
      %v576 = vand.u32 %v574, 15
      %v577 = vsub.s32 0, %v576
      %v578 = vsel %vm572, %v577, %v576
      %vm579 = vcmp.lt.s32.totalorder %v469, 0
      %v580 = vsub.s32 0, %v469
      %v581 = vsel %vm579, %v580, %v469
      %v582 = vshrl.u32 %v581, 4
      %v583 = vand.u32 %v581, 15
      %v584 = vsub.s32 0, %v583
      %v585 = vsel %vm579, %v584, %v583
      %vm586 = vcmp.lt.s32.totalorder %v470, 0
      %v587 = vsub.s32 0, %v470
      %v588 = vsel %vm586, %v587, %v470
      %v589 = vshrl.u32 %v588, 4
      %v590 = vand.u32 %v588, 15
      %v591 = vsub.s32 0, %v590
      %v592 = vsel %vm586, %v591, %v590
      %vm593 = vcmp.lt.s32.totalorder %v471, 0
      %v594 = vsub.s32 0, %v471
      %v595 = vsel %vm593, %v594, %v471
      %v596 = vshrl.u32 %v595, 4
      %v597 = vand.u32 %v595, 15
      %v598 = vsub.s32 0, %v597
      %v599 = vsel %vm593, %v598, %v597
      %vm600 = vcmp.lt.s32.totalorder %v472, 0
      %v601 = vsub.s32 0, %v472
      %v602 = vsel %vm600, %v601, %v472
      %v603 = vshrl.u32 %v602, 4
      %v604 = vand.u32 %v602, 15
      %v605 = vsub.s32 0, %v604
      %v606 = vsel %vm600, %v605, %v604
      %vm607 = vcmp.lt.s32.totalorder %v473, 0
      %v608 = vsub.s32 0, %v473
      %v609 = vsel %vm607, %v608, %v473
      %v610 = vshrl.u32 %v609, 4
      %v611 = vand.u32 %v609, 15
      %v612 = vsub.s32 0, %v611
      %v613 = vsel %vm607, %v612, %v611
      %vm614 = vcmp.lt.s32.totalorder %v474, 0
      %v615 = vsub.s32 0, %v474
      %v616 = vsel %vm614, %v615, %v474
      %v617 = vshrl.u32 %v616, 4
      %v618 = vand.u32 %v616, 15
      %v619 = vsub.s32 0, %v618
      %v620 = vsel %vm614, %v619, %v618
      %vm621 = vcmp.lt.s32.totalorder %v475, 0
      %v622 = vsub.s32 0, %v475
      %v623 = vsel %vm621, %v622, %v475
      %v624 = vshrl.u32 %v623, 4
      %v625 = vand.u32 %v623, 15
      %v626 = vsub.s32 0, %v625
      %v627 = vsel %vm621, %v626, %v625
      %vm628 = vcmp.lt.s32.totalorder %v476, 0
      %v629 = vsub.s32 0, %v476
      %v630 = vsel %vm628, %v629, %v476
      %v631 = vshrl.u32 %v630, 4
      %v632 = vand.u32 %v630, 15
      %v633 = vsub.s32 0, %v632
      %v634 = vsel %vm628, %v633, %v632
      %vm635 = vcmp.lt.s32.totalorder %v477, 0
      %v636 = vsub.s32 0, %v477
      %v637 = vsel %vm635, %v636, %v477
      %v638 = vshrl.u32 %v637, 4
      %v639 = vand.u32 %v637, 15
      %v640 = vsub.s32 0, %v639
      %v641 = vsel %vm635, %v640, %v639
      %vm642 = vcmp.lt.s32.totalorder %v478, 0
      %v643 = vsub.s32 0, %v478
      %v644 = vsel %vm642, %v643, %v478
      %v645 = vshrl.u32 %v644, 4
      %v646 = vand.u32 %v644, 15
      %v647 = vsub.s32 0, %v646
      %v648 = vsel %vm642, %v647, %v646
      %vm649 = vcmp.lt.s32.totalorder %v479, 0
      %v650 = vsub.s32 0, %v479
      %v651 = vsel %vm649, %v650, %v479
      %v652 = vshrl.u32 %v651, 4
      %v653 = vand.u32 %v651, 15
      %v654 = vsub.s32 0, %v653
      %v655 = vsel %vm649, %v654, %v653
      %vm656 = vcmp.lt.s32.totalorder %v480, 0
      %v657 = vsub.s32 0, %v480
      %v658 = vsel %vm656, %v657, %v480
      %v659 = vshrl.u32 %v658, 4
      %v660 = vand.u32 %v658, 15
      %v661 = vsub.s32 0, %v660
      %v662 = vsel %vm656, %v661, %v660
      %vm663 = vcmp.lt.s32.totalorder %v481, 0
      %v664 = vsub.s32 0, %v481
      %v665 = vsel %vm663, %v664, %v481
      %v666 = vshrl.u32 %v665, 4
      %v667 = vand.u32 %v665, 15
      %v668 = vsub.s32 0, %v667
      %v669 = vsel %vm663, %v668, %v667
      %vm670 = vcmp.lt.s32.totalorder %v482, 0
      %v671 = vsub.s32 0, %v482
      %v672 = vsel %vm670, %v671, %v482
      %v673 = vshrl.u32 %v672, 4
      %v674 = vand.u32 %v672, 15
      %v675 = vsub.s32 0, %v674
      %v676 = vsel %vm670, %v675, %v674
      %vm677 = vcmp.lt.s32.totalorder %v483, 0
      %v678 = vsub.s32 0, %v483
      %v679 = vsel %vm677, %v678, %v483
      %v680 = vshrl.u32 %v679, 4
      %v681 = vand.u32 %v679, 15
      %v682 = vsub.s32 0, %v681
      %v683 = vsel %vm677, %v682, %v681
      %vm684 = vcmp.lt.s32.totalorder %v484, 0
      %v685 = vsub.s32 0, %v484
      %v686 = vsel %vm684, %v685, %v484
      %v687 = vshrl.u32 %v686, 4
      %v688 = vand.u32 %v686, 15
      %v689 = vsub.s32 0, %v688
      %v690 = vsel %vm684, %v689, %v688
      %vm691 = vcmp.lt.s32.totalorder %v485, 0
      %v692 = vsub.s32 0, %v485
      %v693 = vsel %vm691, %v692, %v485
      %v694 = vshrl.u32 %v693, 4
      %v695 = vand.u32 %v693, 15
      %v696 = vsub.s32 0, %v695
      %v697 = vsel %vm691, %v696, %v695
      %vm698 = vcmp.lt.s32.totalorder %v486, 0
      %v699 = vsub.s32 0, %v486
      %v700 = vsel %vm698, %v699, %v486
      %v701 = vshrl.u32 %v700, 4
      %v702 = vand.u32 %v700, 15
      %v703 = vsub.s32 0, %v702
      %v704 = vsel %vm698, %v703, %v702
      %vm705 = vcmp.lt.s32.totalorder %v487, 0
      %v706 = vsub.s32 0, %v487
      %v707 = vsel %vm705, %v706, %v487
      %v708 = vshrl.u32 %v707, 4
      %v709 = vand.u32 %v707, 15
      %v710 = vsub.s32 0, %v709
      %v711 = vsel %vm705, %v710, %v709
      %vm712 = vcmp.ne.s32.totalorder %v494, 0
      %vm713 = vcmp.ne.s32.totalorder %v501, 0
      %vm714 = vcmp.ne.s32.totalorder %v508, 0
      %vm715 = vcmp.ne.s32.totalorder %v515, 0
      %vm716 = vcmp.ne.s32.totalorder %v522, 0
      %vm717 = vcmp.ne.s32.totalorder %v529, 0
      %vm718 = vcmp.ne.s32.totalorder %v536, 0
      %vm719 = vcmp.ne.s32.totalorder %v543, 0
      %vm720 = vcmp.ne.s32.totalorder %v550, 0
      %vm721 = vcmp.ne.s32.totalorder %v557, 0
      %vm722 = vcmp.ne.s32.totalorder %v564, 0
      %vm723 = vcmp.ne.s32.totalorder %v571, 0
      %vm724 = vcmp.ne.s32.totalorder %v578, 0
      %vm725 = vcmp.ne.s32.totalorder %v585, 0
      %vm726 = vcmp.ne.s32.totalorder %v592, 0
      %vm727 = vcmp.ne.s32.totalorder %v599, 0
      %vm728 = vcmp.ne.s32.totalorder %v606, 0
      %vm729 = vcmp.ne.s32.totalorder %v613, 0
      %vm730 = vcmp.ne.s32.totalorder %v620, 0
      %vm731 = vcmp.ne.s32.totalorder %v627, 0
      %vm732 = vcmp.ne.s32.totalorder %v634, 0
      %vm733 = vcmp.ne.s32.totalorder %v641, 0
      %vm734 = vcmp.ne.s32.totalorder %v648, 0
      %vm735 = vcmp.ne.s32.totalorder %v655, 0
      %vm736 = vcmp.ne.s32.totalorder %v662, 0
      %vm737 = vcmp.ne.s32.totalorder %v669, 0
      %vm738 = vcmp.ne.s32.totalorder %v676, 0
      %vm739 = vcmp.ne.s32.totalorder %v683, 0
      %vm740 = vcmp.ne.s32.totalorder %v690, 0
      %vm741 = vcmp.ne.s32.totalorder %v697, 0
      %vm742 = vcmp.ne.s32.totalorder %v704, 0
      %vm743 = vcmp.ne.s32.totalorder %v711, 0
      %vm744 = vcmp.lt.s32.totalorder %v494, 0
      %vm745 = vcmp.lt.s32.totalorder %v501, 0
      %vm746 = vcmp.lt.s32.totalorder %v508, 0
      %vm747 = vcmp.lt.s32.totalorder %v515, 0
      %vm748 = vcmp.lt.s32.totalorder %v522, 0
      %vm749 = vcmp.lt.s32.totalorder %v529, 0
      %vm750 = vcmp.lt.s32.totalorder %v536, 0
      %vm751 = vcmp.lt.s32.totalorder %v543, 0
      %vm752 = vcmp.lt.s32.totalorder %v550, 0
      %vm753 = vcmp.lt.s32.totalorder %v557, 0
      %vm754 = vcmp.lt.s32.totalorder %v564, 0
      %vm755 = vcmp.lt.s32.totalorder %v571, 0
      %vm756 = vcmp.lt.s32.totalorder %v578, 0
      %vm757 = vcmp.lt.s32.totalorder %v585, 0
      %vm758 = vcmp.lt.s32.totalorder %v592, 0
      %vm759 = vcmp.lt.s32.totalorder %v599, 0
      %vm760 = vcmp.lt.s32.totalorder %v606, 0
      %vm761 = vcmp.lt.s32.totalorder %v613, 0
      %vm762 = vcmp.lt.s32.totalorder %v620, 0
      %vm763 = vcmp.lt.s32.totalorder %v627, 0
      %vm764 = vcmp.lt.s32.totalorder %v634, 0
      %vm765 = vcmp.lt.s32.totalorder %v641, 0
      %vm766 = vcmp.lt.s32.totalorder %v648, 0
      %vm767 = vcmp.lt.s32.totalorder %v655, 0
      %vm768 = vcmp.lt.s32.totalorder %v662, 0
      %vm769 = vcmp.lt.s32.totalorder %v669, 0
      %vm770 = vcmp.lt.s32.totalorder %v676, 0
      %vm771 = vcmp.lt.s32.totalorder %v683, 0
      %vm772 = vcmp.lt.s32.totalorder %v690, 0
      %vm773 = vcmp.lt.s32.totalorder %v697, 0
      %vm774 = vcmp.lt.s32.totalorder %v704, 0
      %vm775 = vcmp.lt.s32.totalorder %v711, 0
      %vm776 = vmand %vm744, %vm712
      %vm777 = vmand %vm745, %vm713
      %vm778 = vmand %vm746, %vm714
      %vm779 = vmand %vm747, %vm715
      %vm780 = vmand %vm748, %vm716
      %vm781 = vmand %vm749, %vm717
      %vm782 = vmand %vm750, %vm718
      %vm783 = vmand %vm751, %vm719
      %vm784 = vmand %vm752, %vm720
      %vm785 = vmand %vm753, %vm721
      %vm786 = vmand %vm754, %vm722
      %vm787 = vmand %vm755, %vm723
      %vm788 = vmand %vm756, %vm724
      %vm789 = vmand %vm757, %vm725
      %vm790 = vmand %vm758, %vm726
      %vm791 = vmand %vm759, %vm727
      %vm792 = vmand %vm760, %vm728
      %vm793 = vmand %vm761, %vm729
      %vm794 = vmand %vm762, %vm730
      %vm795 = vmand %vm763, %vm731
      %vm796 = vmand %vm764, %vm732
      %vm797 = vmand %vm765, %vm733
      %vm798 = vmand %vm766, %vm734
      %vm799 = vmand %vm767, %vm735
      %vm800 = vmand %vm768, %vm736
      %vm801 = vmand %vm769, %vm737
      %vm802 = vmand %vm770, %vm738
      %vm803 = vmand %vm771, %vm739
      %vm804 = vmand %vm772, %vm740
      %vm805 = vmand %vm773, %vm741
      %vm806 = vmand %vm774, %vm742
      %vm807 = vmand %vm775, %vm743
      %v808 = vadd.s32 %v494, 16
      %v809 = vadd.s32 %v501, 16
      %v810 = vadd.s32 %v508, 16
      %v811 = vadd.s32 %v515, 16
      %v812 = vadd.s32 %v522, 16
      %v813 = vadd.s32 %v529, 16
      %v814 = vadd.s32 %v536, 16
      %v815 = vadd.s32 %v543, 16
      %v816 = vadd.s32 %v550, 16
      %v817 = vadd.s32 %v557, 16
      %v818 = vadd.s32 %v564, 16
      %v819 = vadd.s32 %v571, 16
      %v820 = vadd.s32 %v578, 16
      %v821 = vadd.s32 %v585, 16
      %v822 = vadd.s32 %v592, 16
      %v823 = vadd.s32 %v599, 16
      %v824 = vadd.s32 %v606, 16
      %v825 = vadd.s32 %v613, 16
      %v826 = vadd.s32 %v620, 16
      %v827 = vadd.s32 %v627, 16
      %v828 = vadd.s32 %v634, 16
      %v829 = vadd.s32 %v641, 16
      %v830 = vadd.s32 %v648, 16
      %v831 = vadd.s32 %v655, 16
      %v832 = vadd.s32 %v662, 16
      %v833 = vadd.s32 %v669, 16
      %v834 = vadd.s32 %v676, 16
      %v835 = vadd.s32 %v683, 16
      %v836 = vadd.s32 %v690, 16
      %v837 = vadd.s32 %v697, 16
      %v838 = vadd.s32 %v704, 16
      %v839 = vadd.s32 %v711, 16
      %v840 = vsel %vm776, %v808, %v494
      %v841 = vsel %vm777, %v809, %v501
      %v842 = vsel %vm778, %v810, %v508
      %v843 = vsel %vm779, %v811, %v515
      %v844 = vsel %vm780, %v812, %v522
      %v845 = vsel %vm781, %v813, %v529
      %v846 = vsel %vm782, %v814, %v536
      %v847 = vsel %vm783, %v815, %v543
      %v848 = vsel %vm784, %v816, %v550
      %v849 = vsel %vm785, %v817, %v557
      %v850 = vsel %vm786, %v818, %v564
      %v851 = vsel %vm787, %v819, %v571
      %v852 = vsel %vm788, %v820, %v578
      %v853 = vsel %vm789, %v821, %v585
      %v854 = vsel %vm790, %v822, %v592
      %v855 = vsel %vm791, %v823, %v599
      %v856 = vsel %vm792, %v824, %v606
      %v857 = vsel %vm793, %v825, %v613
      %v858 = vsel %vm794, %v826, %v620
      %v859 = vsel %vm795, %v827, %v627
      %v860 = vsel %vm796, %v828, %v634
      %v861 = vsel %vm797, %v829, %v641
      %v862 = vsel %vm798, %v830, %v648
      %v863 = vsel %vm799, %v831, %v655
      %v864 = vsel %vm800, %v832, %v662
      %v865 = vsel %vm801, %v833, %v669
      %v866 = vsel %vm802, %v834, %v676
      %v867 = vsel %vm803, %v835, %v683
      %v868 = vsel %vm804, %v836, %v690
      %v869 = vsel %vm805, %v837, %v697
      %v870 = vsel %vm806, %v838, %v704
      %v871 = vsel %vm807, %v839, %v711
      %vm872 = vcmp.ge.s32.totalorder %v840, 1
      %vm873 = vcmp.ge.s32.totalorder %v841, 1
      %vm874 = vcmp.ge.s32.totalorder %v842, 1
      %vm875 = vcmp.ge.s32.totalorder %v843, 1
      %vm876 = vcmp.ge.s32.totalorder %v844, 1
      %vm877 = vcmp.ge.s32.totalorder %v845, 1
      %vm878 = vcmp.ge.s32.totalorder %v846, 1
      %vm879 = vcmp.ge.s32.totalorder %v847, 1
      %vm880 = vcmp.ge.s32.totalorder %v848, 1
      %vm881 = vcmp.ge.s32.totalorder %v849, 1
      %vm882 = vcmp.ge.s32.totalorder %v850, 1
      %vm883 = vcmp.ge.s32.totalorder %v851, 1
      %vm884 = vcmp.ge.s32.totalorder %v852, 1
      %vm885 = vcmp.ge.s32.totalorder %v853, 1
      %vm886 = vcmp.ge.s32.totalorder %v854, 1
      %vm887 = vcmp.ge.s32.totalorder %v855, 1
      %vm888 = vcmp.ge.s32.totalorder %v856, 1
      %vm889 = vcmp.ge.s32.totalorder %v857, 1
      %vm890 = vcmp.ge.s32.totalorder %v858, 1
      %vm891 = vcmp.ge.s32.totalorder %v859, 1
      %vm892 = vcmp.ge.s32.totalorder %v860, 1
      %vm893 = vcmp.ge.s32.totalorder %v861, 1
      %vm894 = vcmp.ge.s32.totalorder %v862, 1
      %vm895 = vcmp.ge.s32.totalorder %v863, 1
      %vm896 = vcmp.ge.s32.totalorder %v864, 1
      %vm897 = vcmp.ge.s32.totalorder %v865, 1
      %vm898 = vcmp.ge.s32.totalorder %v866, 1
      %vm899 = vcmp.ge.s32.totalorder %v867, 1
      %vm900 = vcmp.ge.s32.totalorder %v868, 1
      %vm901 = vcmp.ge.s32.totalorder %v869, 1
      %vm902 = vcmp.ge.s32.totalorder %v870, 1
      %vm903 = vcmp.ge.s32.totalorder %v871, 1
      %vm904 = vcmp.le.s32.totalorder %v840, 14
      %vm905 = vcmp.le.s32.totalorder %v841, 14
      %vm906 = vcmp.le.s32.totalorder %v842, 14
      %vm907 = vcmp.le.s32.totalorder %v843, 14
      %vm908 = vcmp.le.s32.totalorder %v844, 14
      %vm909 = vcmp.le.s32.totalorder %v845, 14
      %vm910 = vcmp.le.s32.totalorder %v846, 14
      %vm911 = vcmp.le.s32.totalorder %v847, 14
      %vm912 = vcmp.le.s32.totalorder %v848, 14
      %vm913 = vcmp.le.s32.totalorder %v849, 14
      %vm914 = vcmp.le.s32.totalorder %v850, 14
      %vm915 = vcmp.le.s32.totalorder %v851, 14
      %vm916 = vcmp.le.s32.totalorder %v852, 14
      %vm917 = vcmp.le.s32.totalorder %v853, 14
      %vm918 = vcmp.le.s32.totalorder %v854, 14
      %vm919 = vcmp.le.s32.totalorder %v855, 14
      %vm920 = vcmp.le.s32.totalorder %v856, 14
      %vm921 = vcmp.le.s32.totalorder %v857, 14
      %vm922 = vcmp.le.s32.totalorder %v858, 14
      %vm923 = vcmp.le.s32.totalorder %v859, 14
      %vm924 = vcmp.le.s32.totalorder %v860, 14
      %vm925 = vcmp.le.s32.totalorder %v861, 14
      %vm926 = vcmp.le.s32.totalorder %v862, 14
      %vm927 = vcmp.le.s32.totalorder %v863, 14
      %vm928 = vcmp.le.s32.totalorder %v864, 14
      %vm929 = vcmp.le.s32.totalorder %v865, 14
      %vm930 = vcmp.le.s32.totalorder %v866, 14
      %vm931 = vcmp.le.s32.totalorder %v867, 14
      %vm932 = vcmp.le.s32.totalorder %v868, 14
      %vm933 = vcmp.le.s32.totalorder %v869, 14
      %vm934 = vcmp.le.s32.totalorder %v870, 14
      %vm935 = vcmp.le.s32.totalorder %v871, 14
      %v936 = vld [vmem:[#allocation2 + $0xf] sm:$0xff]
      %v937 = vld [vmem:[#allocation2 + $0x17] sm:$0xff]
      %v938 = vld [vmem:[#allocation2 + $0x1f] sm:$0xff]
      %v939 = vld [vmem:[#allocation2 + $0x27] sm:$0xff]
      %v940 = vld [vmem:[#allocation2 + $0x2f] sm:$0xff]
      %v941 = vld [vmem:[#allocation2 + $0x37] sm:$0xff]
      %v942 = vld [vmem:[#allocation2 + $0x3f] sm:$0xff]
      %v943 = vld [vmem:[#allocation2 + $0x47] sm:$0xff]
      %v944 = vld [vmem:[#allocation2 + $0x4f] sm:$0xff]
      %v945 = vld [vmem:[#allocation2 + $0x57] sm:$0xff]
      %v946 = vld [vmem:[#allocation2 + $0x5f] sm:$0xff]
      %v947 = vld [vmem:[#allocation2 + $0x67] sm:$0xff]
      %v948 = vld [vmem:[#allocation2 + $0x6f] sm:$0xff]
      %v949 = vld [vmem:[#allocation2 + $0x77] sm:$0xff]
      %v950 = vld [vmem:[#allocation2 + $0x7f] sm:$0xff]
      %v951 = vld [vmem:[#allocation2 + $0x87] sm:$0xff]
      %v952 = vld [vmem:[#allocation2 + $0x8f] sm:$0xff]
      %v953 = vld [vmem:[#allocation2 + $0x97] sm:$0xff]
      %v954 = vld [vmem:[#allocation2 + $0x9f] sm:$0xff]
      %v955 = vld [vmem:[#allocation2 + $0xa7] sm:$0xff]
      %v956 = vld [vmem:[#allocation2 + $0xaf] sm:$0xff]
      %v957 = vld [vmem:[#allocation2 + $0xb7] sm:$0xff]
      %v958 = vld [vmem:[#allocation2 + $0xbf] sm:$0xff]
      %v959 = vld [vmem:[#allocation2 + $0xc7] sm:$0xff]
      %v960 = vld [vmem:[#allocation2 + $0xcf] sm:$0xff]
      %v961 = vld [vmem:[#allocation2 + $0xd7] sm:$0xff]
      %v962 = vld [vmem:[#allocation2 + $0xdf] sm:$0xff]
      %v963 = vld [vmem:[#allocation2 + $0xe7] sm:$0xff]
      %v964 = vld [vmem:[#allocation2 + $0xef] sm:$0xff]
      %v965 = vld [vmem:[#allocation2 + $0xf7] sm:$0xff]
      %v966 = vld [vmem:[#allocation2 + $0xff] sm:$0xff]
      %v967 = vld [vmem:[#allocation2 + $0x107] sm:$0xff]
      %v968 = vsel %vm872, 1, 0
      %v969 = vsel %vm873, 1, 0
      %v970 = vsel %vm874, 1, 0
      %v971 = vsel %vm875, 1, 0
      %v972 = vsel %vm876, 1, 0
      %v973 = vsel %vm877, 1, 0
      %v974 = vsel %vm878, 1, 0
      %v975 = vsel %vm879, 1, 0
      %v976 = vsel %vm880, 1, 0
      %v977 = vsel %vm881, 1, 0
      %v978 = vsel %vm882, 1, 0
      %v979 = vsel %vm883, 1, 0
      %v980 = vsel %vm884, 1, 0
      %v981 = vsel %vm885, 1, 0
      %v982 = vsel %vm886, 1, 0
      %v983 = vsel %vm887, 1, 0
      %v984 = vsel %vm888, 1, 0
      %v985 = vsel %vm889, 1, 0
      %v986 = vsel %vm890, 1, 0
      %v987 = vsel %vm891, 1, 0
      %v988 = vsel %vm892, 1, 0
      %v989 = vsel %vm893, 1, 0
      %v990 = vsel %vm894, 1, 0
      %v991 = vsel %vm895, 1, 0
      %v992 = vsel %vm896, 1, 0
      %v993 = vsel %vm897, 1, 0
      %v994 = vsel %vm898, 1, 0
      %v995 = vsel %vm899, 1, 0
      %v996 = vsel %vm900, 1, 0
      %v997 = vsel %vm901, 1, 0
      %v998 = vsel %vm902, 1, 0
      %v999 = vsel %vm903, 1, 0
      %vm1000 = vcmp.eq.s32.totalorder %v968, 1
      %vm1001 = vcmp.eq.s32.totalorder %v969, 1
      %vm1002 = vcmp.eq.s32.totalorder %v970, 1
      %vm1003 = vcmp.eq.s32.totalorder %v971, 1
      %vm1004 = vcmp.eq.s32.totalorder %v972, 1
      %vm1005 = vcmp.eq.s32.totalorder %v973, 1
      %vm1006 = vcmp.eq.s32.totalorder %v974, 1
      %vm1007 = vcmp.eq.s32.totalorder %v975, 1
      %vm1008 = vcmp.eq.s32.totalorder %v976, 1
      %vm1009 = vcmp.eq.s32.totalorder %v977, 1
      %vm1010 = vcmp.eq.s32.totalorder %v978, 1
      %vm1011 = vcmp.eq.s32.totalorder %v979, 1
      %vm1012 = vcmp.eq.s32.totalorder %v980, 1
      %vm1013 = vcmp.eq.s32.totalorder %v981, 1
      %vm1014 = vcmp.eq.s32.totalorder %v982, 1
      %vm1015 = vcmp.eq.s32.totalorder %v983, 1
      %vm1016 = vcmp.eq.s32.totalorder %v984, 1
      %vm1017 = vcmp.eq.s32.totalorder %v985, 1
      %vm1018 = vcmp.eq.s32.totalorder %v986, 1
      %vm1019 = vcmp.eq.s32.totalorder %v987, 1
      %vm1020 = vcmp.eq.s32.totalorder %v988, 1
      %vm1021 = vcmp.eq.s32.totalorder %v989, 1
      %vm1022 = vcmp.eq.s32.totalorder %v990, 1
      %vm1023 = vcmp.eq.s32.totalorder %v991, 1
      %vm1024 = vcmp.eq.s32.totalorder %v992, 1
      %vm1025 = vcmp.eq.s32.totalorder %v993, 1
      %vm1026 = vcmp.eq.s32.totalorder %v994, 1
      %vm1027 = vcmp.eq.s32.totalorder %v995, 1
      %vm1028 = vcmp.eq.s32.totalorder %v996, 1
      %vm1029 = vcmp.eq.s32.totalorder %v997, 1
      %vm1030 = vcmp.eq.s32.totalorder %v998, 1
      %vm1031 = vcmp.eq.s32.totalorder %v999, 1
      %v1032 = vsel %vm1000, %v936, 0.0
      %v1033 = vsel %vm1001, %v937, 0.0
      %v1034 = vsel %vm1002, %v938, 0.0
      %v1035 = vsel %vm1003, %v939, 0.0
      %v1036 = vsel %vm1004, %v940, 0.0
      %v1037 = vsel %vm1005, %v941, 0.0
      %v1038 = vsel %vm1006, %v942, 0.0
      %v1039 = vsel %vm1007, %v943, 0.0
      %v1040 = vsel %vm1008, %v944, 0.0
      %v1041 = vsel %vm1009, %v945, 0.0
      %v1042 = vsel %vm1010, %v946, 0.0
      %v1043 = vsel %vm1011, %v947, 0.0
      %v1044 = vsel %vm1012, %v948, 0.0
      %v1045 = vsel %vm1013, %v949, 0.0
      %v1046 = vsel %vm1014, %v950, 0.0
      %v1047 = vsel %vm1015, %v951, 0.0
      %v1048 = vsel %vm1016, %v952, 0.0
      %v1049 = vsel %vm1017, %v953, 0.0
      %v1050 = vsel %vm1018, %v954, 0.0
      %v1051 = vsel %vm1019, %v955, 0.0
      %v1052 = vsel %vm1020, %v956, 0.0
      %v1053 = vsel %vm1021, %v957, 0.0
      %v1054 = vsel %vm1022, %v958, 0.0
      %v1055 = vsel %vm1023, %v959, 0.0
      %v1056 = vsel %vm1024, %v960, 0.0
      %v1057 = vsel %vm1025, %v961, 0.0
      %v1058 = vsel %vm1026, %v962, 0.0
      %v1059 = vsel %vm1027, %v963, 0.0
      %v1060 = vsel %vm1028, %v964, 0.0
      %v1061 = vsel %vm1029, %v965, 0.0
      %v1062 = vsel %vm1030, %v966, 0.0
      %v1063 = vsel %vm1031, %v967, 0.0
      %v1064 = vpack.c.bf16 %v1033, %v1032
      %v1065 = vpack.c.bf16 %v1035, %v1034
      %v1066 = vpack.c.bf16 %v1037, %v1036
      %v1067 = vpack.c.bf16 %v1039, %v1038
      %v1068 = vpack.c.bf16 %v1041, %v1040
      %v1069 = vpack.c.bf16 %v1043, %v1042
      %v1070 = vpack.c.bf16 %v1045, %v1044
      %v1071 = vpack.c.bf16 %v1047, %v1046
      %v1072 = vpack.c.bf16 %v1049, %v1048
      %v1073 = vpack.c.bf16 %v1051, %v1050
      %v1074 = vpack.c.bf16 %v1053, %v1052
      %v1075 = vpack.c.bf16 %v1055, %v1054
      %v1076 = vpack.c.bf16 %v1057, %v1056
      %v1077 = vpack.c.bf16 %v1059, %v1058
      %v1078 = vpack.c.bf16 %v1061, %v1060
      %v1079 = vpack.c.bf16 %v1063, %v1062
      %v1080 = vld [vmem:[%s3] sm:$0xf]
      %v1081 = vld [vmem:[#allocation2 + $0x10] sm:$0xff]
      %v1082 = vld [vmem:[#allocation2 + $0x18] sm:$0xff]
      %v1083 = vld [vmem:[#allocation2 + $0x20] sm:$0xff]
      %v1084 = vld [vmem:[#allocation2 + $0x28] sm:$0xff]
      %v1085 = vld [vmem:[#allocation2 + $0x30] sm:$0xff]
      %v1086 = vld [vmem:[#allocation2 + $0x38] sm:$0xff]
      %v1087 = vld [vmem:[#allocation2 + $0x40] sm:$0xff]
      %v1088 = vld [vmem:[#allocation2 + $0x48] sm:$0xff]
      %v1089 = vld [vmem:[#allocation2 + $0x50] sm:$0xff]
      %v1090 = vld [vmem:[#allocation2 + $0x58] sm:$0xff]
      %v1091 = vld [vmem:[#allocation2 + $0x60] sm:$0xff]
      %v1092 = vld [vmem:[#allocation2 + $0x68] sm:$0xff]
      %v1093 = vld [vmem:[#allocation2 + $0x70] sm:$0xff]
      %v1094 = vld [vmem:[#allocation2 + $0x78] sm:$0xff]
      %v1095 = vld [vmem:[#allocation2 + $0x80] sm:$0xff]
      %v1096 = vld [vmem:[#allocation2 + $0x88] sm:$0xff]
      %v1097 = vld [vmem:[#allocation2 + $0x90] sm:$0xff]
      %v1098 = vld [vmem:[#allocation2 + $0x98] sm:$0xff]
      %v1099 = vld [vmem:[#allocation2 + $0xa0] sm:$0xff]
      %v1100 = vld [vmem:[#allocation2 + $0xa8] sm:$0xff]
      %v1101 = vld [vmem:[#allocation2 + $0xb0] sm:$0xff]
      %v1102 = vld [vmem:[#allocation2 + $0xb8] sm:$0xff]
      %v1103 = vld [vmem:[#allocation2 + $0xc0] sm:$0xff]
      %v1104 = vld [vmem:[#allocation2 + $0xc8] sm:$0xff]
      %v1105 = vld [vmem:[#allocation2 + $0xd0] sm:$0xff]
      %v1106 = vld [vmem:[#allocation2 + $0xd8] sm:$0xff]
      %v1107 = vld [vmem:[#allocation2 + $0xe0] sm:$0xff]
      %v1108 = vld [vmem:[#allocation2 + $0xe8] sm:$0xff]
      %v1109 = vld [vmem:[#allocation2 + $0xf0] sm:$0xff]
      %v1110 = vld [vmem:[#allocation2 + $0xf8] sm:$0xff]
      %v1111 = vld [vmem:[#allocation2 + $0x100] sm:$0xff]
      %v1112 = vld [vmem:[#allocation2 + $0x108] sm:$0xff]
      %v1113 = vpack.c.bf16 %v1082, %v1081
      %v1114 = vpack.c.bf16 %v1084, %v1083
      %v1115 = vpack.c.bf16 %v1086, %v1085
      %v1116 = vpack.c.bf16 %v1088, %v1087
      %v1117 = vpack.c.bf16 %v1090, %v1089
      %v1118 = vpack.c.bf16 %v1092, %v1091
      %v1119 = vpack.c.bf16 %v1094, %v1093
      %v1120 = vpack.c.bf16 %v1096, %v1095
      %v1121 = vpack.c.bf16 %v1098, %v1097
      %v1122 = vpack.c.bf16 %v1100, %v1099
      %v1123 = vpack.c.bf16 %v1102, %v1101
      %v1124 = vpack.c.bf16 %v1104, %v1103
      %v1125 = vpack.c.bf16 %v1106, %v1105
      %v1126 = vpack.c.bf16 %v1108, %v1107
      %v1127 = vpack.c.bf16 %v1110, %v1109
      %v1128 = vpack.c.bf16 %v1112, %v1111
      %s1129 = scalar_lea.vmem %s3, 4
      %v1130 = vld [vmem:[%s1129] sm:$0xf]
      %v1132 = vsel %vm414, %v1113, 0
      %v1135 = vsel %vm414, %v1114, 0
      %v1138 = vsel %vm414, %v1115, 0
      %v1141 = vsel %vm414, %v1116, 0
      %v1144 = vsel %vm414, %v1117, 0
      %v1147 = vsel %vm414, %v1118, 0
      %v1150 = vsel %vm414, %v1119, 0
      %v1153 = vsel %vm414, %v1120, 0
      %v1156 = vsel %vm414, %v1121, 0
      %v1159 = vsel %vm414, %v1122, 0
      %v1162 = vsel %vm414, %v1123, 0
      %v1165 = vsel %vm414, %v1124, 0
      %v1168 = vsel %vm414, %v1125, 0
      %v1171 = vsel %vm414, %v1126, 0
      %v1174 = vsel %vm414, %v1127, 0
      %v1177 = vsel %vm414, %v1128, 0
      %vm1179 = vcmask 1043456
      %v1181 = vsel %vm1179, %v1130, 0
      %1183 = vmatprep.subr.bf16.mxu0 0
      %1184 = vmatpush1.bf16.msra.mxu0 %v1181
      %1185 = vmatprep.subr.bf16.mxu0 0
      %1186 = vmatpush1.bf16.msra.mxu0 0
      %1187 = vmatprep.subr.bf16.mxu0 0
      %1188 = vmatpush1.bf16.msra.mxu0 0
      %1189 = vmatprep.subr.bf16.mxu0 0
      %1190 = vmatpush1.bf16.msra.mxu0 0
      %1191 = vmatprep.subr.bf16.mxu0 0
      %1192 = vmatpush1.bf16.msra.mxu0 0
      %1193 = vmatprep.subr.bf16.mxu0 0
      %1194 = vmatpush1.bf16.msra.mxu0 0
      %1195 = vmatprep.subr.bf16.mxu0 0
      %1196 = vmatpush1.bf16.msra.mxu0 0
      %1197 = vmatprep.subr.bf16.mxu0 0
      %1198 = vmatpush1.bf16.msra.mxu0 0
      %1199 = vmatprep.subr.bf16.mxu0 0
      %1200 = vmatpush1.bf16.msra.mxu0 0
      %1201 = vmatprep.subr.bf16.mxu0 0
      %1202 = vmatpush1.bf16.msra.mxu0 0
      %1203 = vmatprep.subr.bf16.mxu0 0
      %1204 = vmatpush1.bf16.msra.mxu0 0
      %1205 = vmatprep.subr.bf16.mxu0 0
      %1206 = vmatpush1.bf16.msra.mxu0 0
      %1207 = vmatprep.subr.bf16.mxu0 0
      %1208 = vmatpush1.bf16.msra.mxu0 0
      %1209 = vmatprep.subr.bf16.mxu0 0
      %1210 = vmatpush1.bf16.msra.mxu0 0
      %1211 = vmatprep.subr.bf16.mxu0 0
      %1212 = vmatpush1.bf16.msra.mxu0 0
      %1213 = vmatprep.subr.bf16.mxu0 0
      %1214 = vmatpush1.bf16.msra.mxu0 0
      %1215 = vmatprep.mubr.bf16.mxu0 0
      %1216 = vmatmul.mubr.bf16.gmra.mrb[0].mxu0 %v1132
      %v1217 = vpop.f32.mrb[0].mxu0
      %v1218 = vadd.f32 0.0, %v1217
      %v1219 = vpop.f32.mrb[0].mxu0
      %v1220 = vpop.f32.mrb[0].mxu0
      %v1221 = vadd.f32 0.0, %v1220
      %v1222 = vpop.f32.mrb[0].mxu0
      %1223 = vmatprep.mubr.bf16.mxu0 0
      %1224 = vmatmul.mubr.bf16.gmra.mrb[0].mxu0 %v1135
      %v1225 = vpop.f32.mrb[0].mxu0
      %v1226 = vadd.f32 0.0, %v1225
      %v1227 = vpop.f32.mrb[0].mxu0
      %v1228 = vpop.f32.mrb[0].mxu0
      %v1229 = vadd.f32 0.0, %v1228
      %v1230 = vpop.f32.mrb[0].mxu0
      %1231 = vmatprep.mubr.bf16.mxu0 0
      %1232 = vmatmul.mubr.bf16.gmra.mrb[0].mxu0 %v1138
      %v1233 = vpop.f32.mrb[0].mxu0
      %v1234 = vadd.f32 0.0, %v1233
      %v1235 = vpop.f32.mrb[0].mxu0
      %v1236 = vpop.f32.mrb[0].mxu0
      %v1237 = vadd.f32 0.0, %v1236
      %v1238 = vpop.f32.mrb[0].mxu0
      %1239 = vmatprep.mubr.bf16.mxu0 0
      %1240 = vmatmul.mubr.bf16.gmra.mrb[0].mxu0 %v1141
      %v1241 = vpop.f32.mrb[0].mxu0
      %v1242 = vadd.f32 0.0, %v1241
      %v1243 = vpop.f32.mrb[0].mxu0
      %v1244 = vpop.f32.mrb[0].mxu0
      %v1245 = vadd.f32 0.0, %v1244
      %v1246 = vpop.f32.mrb[0].mxu0
      %1247 = vmatprep.mubr.bf16.mxu0 0
      %1248 = vmatmul.mubr.bf16.gmra.mrb[0].mxu0 %v1144
      %v1249 = vpop.f32.mrb[0].mxu0
      %v1250 = vadd.f32 0.0, %v1249
      %v1251 = vpop.f32.mrb[0].mxu0
      %v1252 = vpop.f32.mrb[0].mxu0
      %v1253 = vadd.f32 0.0, %v1252
      %v1254 = vpop.f32.mrb[0].mxu0
      %1255 = vmatprep.mubr.bf16.mxu0 0
      %1256 = vmatmul.mubr.bf16.gmra.mrb[0].mxu0 %v1147
      %v1257 = vpop.f32.mrb[0].mxu0
      %v1258 = vadd.f32 0.0, %v1257
      %v1259 = vpop.f32.mrb[0].mxu0
      %v1260 = vpop.f32.mrb[0].mxu0
      %v1261 = vadd.f32 0.0, %v1260
      %v1262 = vpop.f32.mrb[0].mxu0
      %1263 = vmatprep.mubr.bf16.mxu0 0
      %1264 = vmatmul.mubr.bf16.gmra.mrb[0].mxu0 %v1150
      %v1265 = vpop.f32.mrb[0].mxu0
      %v1266 = vadd.f32 0.0, %v1265
      %v1267 = vpop.f32.mrb[0].mxu0
      %v1268 = vpop.f32.mrb[0].mxu0
      %v1269 = vadd.f32 0.0, %v1268
      %v1270 = vpop.f32.mrb[0].mxu0
      %1271 = vmatprep.mubr.bf16.mxu0 0
      %1272 = vmatmul.mubr.bf16.gmra.mrb[0].mxu0 %v1153
      %v1273 = vpop.f32.mrb[0].mxu0
      %v1274 = vadd.f32 0.0, %v1273
      %v1275 = vpop.f32.mrb[0].mxu0
      %v1276 = vpop.f32.mrb[0].mxu0
      %v1277 = vadd.f32 0.0, %v1276
      %v1278 = vpop.f32.mrb[0].mxu0
      %1279 = vmatprep.mubr.bf16.mxu0 0
      %1280 = vmatmul.mubr.bf16.gmra.mrb[0].mxu0 %v1156
      %v1281 = vpop.f32.mrb[0].mxu0
      %v1282 = vadd.f32 0.0, %v1281
      %v1283 = vpop.f32.mrb[0].mxu0
      %v1284 = vpop.f32.mrb[0].mxu0
      %v1285 = vadd.f32 0.0, %v1284
      %v1286 = vpop.f32.mrb[0].mxu0
      %1287 = vmatprep.mubr.bf16.mxu0 0
      %1288 = vmatmul.mubr.bf16.gmra.mrb[0].mxu0 %v1159
      %v1289 = vpop.f32.mrb[0].mxu0
      %v1290 = vadd.f32 0.0, %v1289
      %v1291 = vpop.f32.mrb[0].mxu0
      %v1292 = vpop.f32.mrb[0].mxu0
      %v1293 = vadd.f32 0.0, %v1292
      %v1294 = vpop.f32.mrb[0].mxu0
      %1295 = vmatprep.mubr.bf16.mxu0 0
      %1296 = vmatmul.mubr.bf16.gmra.mrb[0].mxu0 %v1162
      %v1297 = vpop.f32.mrb[0].mxu0
      %v1298 = vadd.f32 0.0, %v1297
      %v1299 = vpop.f32.mrb[0].mxu0
      %v1300 = vpop.f32.mrb[0].mxu0
      %v1301 = vadd.f32 0.0, %v1300
      %v1302 = vpop.f32.mrb[0].mxu0
      %1303 = vmatprep.mubr.bf16.mxu0 0
      %1304 = vmatmul.mubr.bf16.gmra.mrb[0].mxu0 %v1165
      %v1305 = vpop.f32.mrb[0].mxu0
      %v1306 = vadd.f32 0.0, %v1305
      %v1307 = vpop.f32.mrb[0].mxu0
      %v1308 = vpop.f32.mrb[0].mxu0
      %v1309 = vadd.f32 0.0, %v1308
      %v1310 = vpop.f32.mrb[0].mxu0
      %1311 = vmatprep.mubr.bf16.mxu0 0
      %1312 = vmatmul.mubr.bf16.gmra.mrb[0].mxu0 %v1168
      %v1313 = vpop.f32.mrb[0].mxu0
      %v1314 = vadd.f32 0.0, %v1313
      %v1315 = vpop.f32.mrb[0].mxu0
      %v1316 = vpop.f32.mrb[0].mxu0
      %v1317 = vadd.f32 0.0, %v1316
      %v1318 = vpop.f32.mrb[0].mxu0
      %1319 = vmatprep.mubr.bf16.mxu0 0
      %1320 = vmatmul.mubr.bf16.gmra.mrb[0].mxu0 %v1171
      %v1321 = vpop.f32.mrb[0].mxu0
      %v1322 = vadd.f32 0.0, %v1321
      %v1323 = vpop.f32.mrb[0].mxu0
      %v1324 = vpop.f32.mrb[0].mxu0
      %v1325 = vadd.f32 0.0, %v1324
      %v1326 = vpop.f32.mrb[0].mxu0
      %1327 = vmatprep.mubr.bf16.mxu0 0
      %1328 = vmatmul.mubr.bf16.gmra.mrb[0].mxu0 %v1174
      %v1329 = vpop.f32.mrb[0].mxu0
      %v1330 = vadd.f32 0.0, %v1329
      %v1331 = vpop.f32.mrb[0].mxu0
      %v1332 = vpop.f32.mrb[0].mxu0
      %v1333 = vadd.f32 0.0, %v1332
      %v1334 = vpop.f32.mrb[0].mxu0
      %1335 = vmatprep.mubr.bf16.mxu0 0
      %1336 = vmatmul.mubr.bf16.gmra.mrb[0].mxu0 %v1177
      %v1337 = vpop.f32.mrb[0].mxu0
      %v1338 = vadd.f32 0.0, %v1337
      %v1339 = vpop.f32.mrb[0].mxu0
      %v1340 = vpop.f32.mrb[0].mxu0
      %v1341 = vadd.f32 0.0, %v1340
      %v1342 = vpop.f32.mrb[0].mxu0
      %1343 = vdwg.mxu0
      %v1345 = vsel %vm414, %v1064, 0
      %v1348 = vsel %vm414, %v1065, 0
      %v1351 = vsel %vm414, %v1066, 0
      %v1354 = vsel %vm414, %v1067, 0
      %v1357 = vsel %vm414, %v1068, 0
      %v1360 = vsel %vm414, %v1069, 0
      %v1363 = vsel %vm414, %v1070, 0
      %v1366 = vsel %vm414, %v1071, 0
      %v1369 = vsel %vm414, %v1072, 0
      %v1372 = vsel %vm414, %v1073, 0
      %v1375 = vsel %vm414, %v1074, 0
      %v1378 = vsel %vm414, %v1075, 0
      %v1381 = vsel %vm414, %v1076, 0
      %v1384 = vsel %vm414, %v1077, 0
      %v1387 = vsel %vm414, %v1078, 0
      %v1390 = vsel %vm414, %v1079, 0
      %v1393 = vsel %vm1179, %v1080, 0
      %1395 = vmatprep.subr.bf16.mxu0 0
      %1396 = vmatpush1.bf16.msra.mxu0 %v1393
      %1397 = vmatprep.subr.bf16.mxu0 0
      %1398 = vmatpush1.bf16.msra.mxu0 0
      %1399 = vmatprep.subr.bf16.mxu0 0
      %1400 = vmatpush1.bf16.msra.mxu0 0
      %1401 = vmatprep.subr.bf16.mxu0 0
      %1402 = vmatpush1.bf16.msra.mxu0 0
      %1403 = vmatprep.subr.bf16.mxu0 0
      %1404 = vmatpush1.bf16.msra.mxu0 0
      %1405 = vmatprep.subr.bf16.mxu0 0
      %1406 = vmatpush1.bf16.msra.mxu0 0
      %1407 = vmatprep.subr.bf16.mxu0 0
      %1408 = vmatpush1.bf16.msra.mxu0 0
      %1409 = vmatprep.subr.bf16.mxu0 0
      %1410 = vmatpush1.bf16.msra.mxu0 0
      %1411 = vmatprep.subr.bf16.mxu0 0
      %1412 = vmatpush1.bf16.msra.mxu0 0
      %1413 = vmatprep.subr.bf16.mxu0 0
      %1414 = vmatpush1.bf16.msra.mxu0 0
      %1415 = vmatprep.subr.bf16.mxu0 0
      %1416 = vmatpush1.bf16.msra.mxu0 0
      %1417 = vmatprep.subr.bf16.mxu0 0
      %1418 = vmatpush1.bf16.msra.mxu0 0
      %1419 = vmatprep.subr.bf16.mxu0 0
      %1420 = vmatpush1.bf16.msra.mxu0 0
      %1421 = vmatprep.subr.bf16.mxu0 0
      %1422 = vmatpush1.bf16.msra.mxu0 0
      %1423 = vmatprep.subr.bf16.mxu0 0
      %1424 = vmatpush1.bf16.msra.mxu0 0
      %1425 = vmatprep.subr.bf16.mxu0 0
      %1426 = vmatpush1.bf16.msra.mxu0 0
      %1427 = vmatprep.mubr.bf16.mxu0 0
      %1428 = vmatmul.mubr.bf16.gmra.mrb[0].mxu0 %v1345
      %v1429 = vpop.f32.mrb[0].mxu0
      %v1430 = vadd.f32 %v1218, %v1429
      %v1431 = vpop.f32.mrb[0].mxu0
      %v1432 = vpop.f32.mrb[0].mxu0
      %v1433 = vadd.f32 %v1221, %v1432
      %v1434 = vpop.f32.mrb[0].mxu0
      %1435 = vmatprep.mubr.bf16.mxu0 0
      %1436 = vmatmul.mubr.bf16.gmra.mrb[0].mxu0 %v1348
      %v1437 = vpop.f32.mrb[0].mxu0
      %v1438 = vadd.f32 %v1226, %v1437
      %v1439 = vpop.f32.mrb[0].mxu0
      %v1440 = vpop.f32.mrb[0].mxu0
      %v1441 = vadd.f32 %v1229, %v1440
      %v1442 = vpop.f32.mrb[0].mxu0
      %1443 = vmatprep.mubr.bf16.mxu0 0
      %1444 = vmatmul.mubr.bf16.gmra.mrb[0].mxu0 %v1351
      %v1445 = vpop.f32.mrb[0].mxu0
      %v1446 = vadd.f32 %v1234, %v1445
      %v1447 = vpop.f32.mrb[0].mxu0
      %v1448 = vpop.f32.mrb[0].mxu0
      %v1449 = vadd.f32 %v1237, %v1448
      %v1450 = vpop.f32.mrb[0].mxu0
      %1451 = vmatprep.mubr.bf16.mxu0 0
      %1452 = vmatmul.mubr.bf16.gmra.mrb[0].mxu0 %v1354
      %v1453 = vpop.f32.mrb[0].mxu0
      %v1454 = vadd.f32 %v1242, %v1453
      %v1455 = vpop.f32.mrb[0].mxu0
      %v1456 = vpop.f32.mrb[0].mxu0
      %v1457 = vadd.f32 %v1245, %v1456
      %v1458 = vpop.f32.mrb[0].mxu0
      %1459 = vmatprep.mubr.bf16.mxu0 0
      %1460 = vmatmul.mubr.bf16.gmra.mrb[0].mxu0 %v1357
      %v1461 = vpop.f32.mrb[0].mxu0
      %v1462 = vadd.f32 %v1250, %v1461
      %v1463 = vpop.f32.mrb[0].mxu0
      %v1464 = vpop.f32.mrb[0].mxu0
      %v1465 = vadd.f32 %v1253, %v1464
      %v1466 = vpop.f32.mrb[0].mxu0
      %1467 = vmatprep.mubr.bf16.mxu0 0
      %1468 = vmatmul.mubr.bf16.gmra.mrb[0].mxu0 %v1360
      %v1469 = vpop.f32.mrb[0].mxu0
      %v1470 = vadd.f32 %v1258, %v1469
      %v1471 = vpop.f32.mrb[0].mxu0
      %v1472 = vpop.f32.mrb[0].mxu0
      %v1473 = vadd.f32 %v1261, %v1472
      %v1474 = vpop.f32.mrb[0].mxu0
      %1475 = vmatprep.mubr.bf16.mxu0 0
      %1476 = vmatmul.mubr.bf16.gmra.mrb[0].mxu0 %v1363
      %v1477 = vpop.f32.mrb[0].mxu0
      %v1478 = vadd.f32 %v1266, %v1477
      %v1479 = vpop.f32.mrb[0].mxu0
      %v1480 = vpop.f32.mrb[0].mxu0
      %v1481 = vadd.f32 %v1269, %v1480
      %v1482 = vpop.f32.mrb[0].mxu0
      %1483 = vmatprep.mubr.bf16.mxu0 0
      %1484 = vmatmul.mubr.bf16.gmra.mrb[0].mxu0 %v1366
      %v1485 = vpop.f32.mrb[0].mxu0
      %v1486 = vadd.f32 %v1274, %v1485
      %v1487 = vpop.f32.mrb[0].mxu0
      %v1488 = vpop.f32.mrb[0].mxu0
      %v1489 = vadd.f32 %v1277, %v1488
      %v1490 = vpop.f32.mrb[0].mxu0
      %1491 = vmatprep.mubr.bf16.mxu0 0
      %1492 = vmatmul.mubr.bf16.gmra.mrb[0].mxu0 %v1369
      %v1493 = vpop.f32.mrb[0].mxu0
      %v1494 = vadd.f32 %v1282, %v1493
      %v1495 = vpop.f32.mrb[0].mxu0
      %v1496 = vpop.f32.mrb[0].mxu0
      %v1497 = vadd.f32 %v1285, %v1496
      %v1498 = vpop.f32.mrb[0].mxu0
      %1499 = vmatprep.mubr.bf16.mxu0 0
      %1500 = vmatmul.mubr.bf16.gmra.mrb[0].mxu0 %v1372
      %v1501 = vpop.f32.mrb[0].mxu0
      %v1502 = vadd.f32 %v1290, %v1501
      %v1503 = vpop.f32.mrb[0].mxu0
      %v1504 = vpop.f32.mrb[0].mxu0
      %v1505 = vadd.f32 %v1293, %v1504
      %v1506 = vpop.f32.mrb[0].mxu0
      %1507 = vmatprep.mubr.bf16.mxu0 0
      %1508 = vmatmul.mubr.bf16.gmra.mrb[0].mxu0 %v1375
      %v1509 = vpop.f32.mrb[0].mxu0
      %v1510 = vadd.f32 %v1298, %v1509
      %v1511 = vpop.f32.mrb[0].mxu0
      %v1512 = vpop.f32.mrb[0].mxu0
      %v1513 = vadd.f32 %v1301, %v1512
      %v1514 = vpop.f32.mrb[0].mxu0
      %1515 = vmatprep.mubr.bf16.mxu0 0
      %1516 = vmatmul.mubr.bf16.gmra.mrb[0].mxu0 %v1378
      %v1517 = vpop.f32.mrb[0].mxu0
      %v1518 = vadd.f32 %v1306, %v1517
      %v1519 = vpop.f32.mrb[0].mxu0
      %v1520 = vpop.f32.mrb[0].mxu0
      %v1521 = vadd.f32 %v1309, %v1520
      %v1522 = vpop.f32.mrb[0].mxu0
      %1523 = vmatprep.mubr.bf16.mxu0 0
      %1524 = vmatmul.mubr.bf16.gmra.mrb[0].mxu0 %v1381
      %v1525 = vpop.f32.mrb[0].mxu0
      %v1526 = vadd.f32 %v1314, %v1525
      %v1527 = vpop.f32.mrb[0].mxu0
      %v1528 = vpop.f32.mrb[0].mxu0
      %v1529 = vadd.f32 %v1317, %v1528
      %v1530 = vpop.f32.mrb[0].mxu0
      %1531 = vmatprep.mubr.bf16.mxu0 0
      %1532 = vmatmul.mubr.bf16.gmra.mrb[0].mxu0 %v1384
      %v1533 = vpop.f32.mrb[0].mxu0
      %v1534 = vadd.f32 %v1322, %v1533
      %v1535 = vpop.f32.mrb[0].mxu0
      %v1536 = vpop.f32.mrb[0].mxu0
      %v1537 = vadd.f32 %v1325, %v1536
      %v1538 = vpop.f32.mrb[0].mxu0
      %1539 = vmatprep.mubr.bf16.mxu0 0
      %1540 = vmatmul.mubr.bf16.gmra.mrb[0].mxu0 %v1387
      %v1541 = vpop.f32.mrb[0].mxu0
      %v1542 = vadd.f32 %v1330, %v1541
      %v1543 = vpop.f32.mrb[0].mxu0
      %v1544 = vpop.f32.mrb[0].mxu0
      %v1545 = vadd.f32 %v1333, %v1544
      %v1546 = vpop.f32.mrb[0].mxu0
      %1547 = vmatprep.mubr.bf16.mxu0 0
      %1548 = vmatmul.mubr.bf16.gmra.mrb[0].mxu0 %v1390
      %v1549 = vpop.f32.mrb[0].mxu0
      %v1550 = vadd.f32 %v1338, %v1549
      %v1551 = vpop.f32.mrb[0].mxu0
      %v1552 = vpop.f32.mrb[0].mxu0
      %v1553 = vadd.f32 %v1341, %v1552
      %v1554 = vpop.f32.mrb[0].mxu0
      %1555 = vdwg.mxu0
      %v1556 = vld [vmem:[#allocation2 + $0x11] sm:$0xff]
      %v1557 = vld [vmem:[#allocation2 + $0x19] sm:$0xff]
      %v1558 = vld [vmem:[#allocation2 + $0x21] sm:$0xff]
      %v1559 = vld [vmem:[#allocation2 + $0x29] sm:$0xff]
      %v1560 = vld [vmem:[#allocation2 + $0x31] sm:$0xff]
      %v1561 = vld [vmem:[#allocation2 + $0x39] sm:$0xff]
      %v1562 = vld [vmem:[#allocation2 + $0x41] sm:$0xff]
      %v1563 = vld [vmem:[#allocation2 + $0x49] sm:$0xff]
      %v1564 = vld [vmem:[#allocation2 + $0x51] sm:$0xff]
      %v1565 = vld [vmem:[#allocation2 + $0x59] sm:$0xff]
      %v1566 = vld [vmem:[#allocation2 + $0x61] sm:$0xff]
      %v1567 = vld [vmem:[#allocation2 + $0x69] sm:$0xff]
      %v1568 = vld [vmem:[#allocation2 + $0x71] sm:$0xff]
      %v1569 = vld [vmem:[#allocation2 + $0x79] sm:$0xff]
      %v1570 = vld [vmem:[#allocation2 + $0x81] sm:$0xff]
      %v1571 = vld [vmem:[#allocation2 + $0x89] sm:$0xff]
      %v1572 = vld [vmem:[#allocation2 + $0x91] sm:$0xff]
      %v1573 = vld [vmem:[#allocation2 + $0x99] sm:$0xff]
      %v1574 = vld [vmem:[#allocation2 + $0xa1] sm:$0xff]
      %v1575 = vld [vmem:[#allocation2 + $0xa9] sm:$0xff]
      %v1576 = vld [vmem:[#allocation2 + $0xb1] sm:$0xff]
      %v1577 = vld [vmem:[#allocation2 + $0xb9] sm:$0xff]
      %v1578 = vld [vmem:[#allocation2 + $0xc1] sm:$0xff]
      %v1579 = vld [vmem:[#allocation2 + $0xc9] sm:$0xff]
      %v1580 = vld [vmem:[#allocation2 + $0xd1] sm:$0xff]
      %v1581 = vld [vmem:[#allocation2 + $0xd9] sm:$0xff]
      %v1582 = vld [vmem:[#allocation2 + $0xe1] sm:$0xff]
      %v1583 = vld [vmem:[#allocation2 + $0xe9] sm:$0xff]
      %v1584 = vld [vmem:[#allocation2 + $0xf1] sm:$0xff]
      %v1585 = vld [vmem:[#allocation2 + $0xf9] sm:$0xff]
      %v1586 = vld [vmem:[#allocation2 + $0x101] sm:$0xff]
      %v1587 = vld [vmem:[#allocation2 + $0x109] sm:$0xff]
      %v1588 = vsel %vm904, 1, 0
      %v1589 = vsel %vm905, 1, 0
      %v1590 = vsel %vm906, 1, 0
      %v1591 = vsel %vm907, 1, 0
      %v1592 = vsel %vm908, 1, 0
      %v1593 = vsel %vm909, 1, 0
      %v1594 = vsel %vm910, 1, 0
      %v1595 = vsel %vm911, 1, 0
      %v1596 = vsel %vm912, 1, 0
      %v1597 = vsel %vm913, 1, 0
      %v1598 = vsel %vm914, 1, 0
      %v1599 = vsel %vm915, 1, 0
      %v1600 = vsel %vm916, 1, 0
      %v1601 = vsel %vm917, 1, 0
      %v1602 = vsel %vm918, 1, 0
      %v1603 = vsel %vm919, 1, 0
      %v1604 = vsel %vm920, 1, 0
      %v1605 = vsel %vm921, 1, 0
      %v1606 = vsel %vm922, 1, 0
      %v1607 = vsel %vm923, 1, 0
      %v1608 = vsel %vm924, 1, 0
      %v1609 = vsel %vm925, 1, 0
      %v1610 = vsel %vm926, 1, 0
      %v1611 = vsel %vm927, 1, 0
      %v1612 = vsel %vm928, 1, 0
      %v1613 = vsel %vm929, 1, 0
      %v1614 = vsel %vm930, 1, 0
      %v1615 = vsel %vm931, 1, 0
      %v1616 = vsel %vm932, 1, 0
      %v1617 = vsel %vm933, 1, 0
      %v1618 = vsel %vm934, 1, 0
      %v1619 = vsel %vm935, 1, 0
      %vm1620 = vcmp.eq.s32.totalorder %v1588, 1
      %vm1621 = vcmp.eq.s32.totalorder %v1589, 1
      %vm1622 = vcmp.eq.s32.totalorder %v1590, 1
      %vm1623 = vcmp.eq.s32.totalorder %v1591, 1
      %vm1624 = vcmp.eq.s32.totalorder %v1592, 1
      %vm1625 = vcmp.eq.s32.totalorder %v1593, 1
      %vm1626 = vcmp.eq.s32.totalorder %v1594, 1
      %vm1627 = vcmp.eq.s32.totalorder %v1595, 1
      %vm1628 = vcmp.eq.s32.totalorder %v1596, 1
      %vm1629 = vcmp.eq.s32.totalorder %v1597, 1
      %vm1630 = vcmp.eq.s32.totalorder %v1598, 1
      %vm1631 = vcmp.eq.s32.totalorder %v1599, 1
      %vm1632 = vcmp.eq.s32.totalorder %v1600, 1
      %vm1633 = vcmp.eq.s32.totalorder %v1601, 1
      %vm1634 = vcmp.eq.s32.totalorder %v1602, 1
      %vm1635 = vcmp.eq.s32.totalorder %v1603, 1
      %vm1636 = vcmp.eq.s32.totalorder %v1604, 1
      %vm1637 = vcmp.eq.s32.totalorder %v1605, 1
      %vm1638 = vcmp.eq.s32.totalorder %v1606, 1
      %vm1639 = vcmp.eq.s32.totalorder %v1607, 1
      %vm1640 = vcmp.eq.s32.totalorder %v1608, 1
      %vm1641 = vcmp.eq.s32.totalorder %v1609, 1
      %vm1642 = vcmp.eq.s32.totalorder %v1610, 1
      %vm1643 = vcmp.eq.s32.totalorder %v1611, 1
      %vm1644 = vcmp.eq.s32.totalorder %v1612, 1
      %vm1645 = vcmp.eq.s32.totalorder %v1613, 1
      %vm1646 = vcmp.eq.s32.totalorder %v1614, 1
      %vm1647 = vcmp.eq.s32.totalorder %v1615, 1
      %vm1648 = vcmp.eq.s32.totalorder %v1616, 1
      %vm1649 = vcmp.eq.s32.totalorder %v1617, 1
      %vm1650 = vcmp.eq.s32.totalorder %v1618, 1
      %vm1651 = vcmp.eq.s32.totalorder %v1619, 1
      %v1652 = vsel %vm1620, %v1556, 0.0
      %v1653 = vsel %vm1621, %v1557, 0.0
      %v1654 = vsel %vm1622, %v1558, 0.0
      %v1655 = vsel %vm1623, %v1559, 0.0
      %v1656 = vsel %vm1624, %v1560, 0.0
      %v1657 = vsel %vm1625, %v1561, 0.0
      %v1658 = vsel %vm1626, %v1562, 0.0
      %v1659 = vsel %vm1627, %v1563, 0.0
      %v1660 = vsel %vm1628, %v1564, 0.0
      %v1661 = vsel %vm1629, %v1565, 0.0
      %v1662 = vsel %vm1630, %v1566, 0.0
      %v1663 = vsel %vm1631, %v1567, 0.0
      %v1664 = vsel %vm1632, %v1568, 0.0
      %v1665 = vsel %vm1633, %v1569, 0.0
      %v1666 = vsel %vm1634, %v1570, 0.0
      %v1667 = vsel %vm1635, %v1571, 0.0
      %v1668 = vsel %vm1636, %v1572, 0.0
      %v1669 = vsel %vm1637, %v1573, 0.0
      %v1670 = vsel %vm1638, %v1574, 0.0
      %v1671 = vsel %vm1639, %v1575, 0.0
      %v1672 = vsel %vm1640, %v1576, 0.0
      %v1673 = vsel %vm1641, %v1577, 0.0
      %v1674 = vsel %vm1642, %v1578, 0.0
      %v1675 = vsel %vm1643, %v1579, 0.0
      %v1676 = vsel %vm1644, %v1580, 0.0
      %v1677 = vsel %vm1645, %v1581, 0.0
      %v1678 = vsel %vm1646, %v1582, 0.0
      %v1679 = vsel %vm1647, %v1583, 0.0
      %v1680 = vsel %vm1648, %v1584, 0.0
      %v1681 = vsel %vm1649, %v1585, 0.0
      %v1682 = vsel %vm1650, %v1586, 0.0
      %v1683 = vsel %vm1651, %v1587, 0.0
      %v1684 = vpack.c.bf16 %v1653, %v1652
      %v1685 = vpack.c.bf16 %v1655, %v1654
      %v1686 = vpack.c.bf16 %v1657, %v1656
      %v1687 = vpack.c.bf16 %v1659, %v1658
      %v1688 = vpack.c.bf16 %v1661, %v1660
      %v1689 = vpack.c.bf16 %v1663, %v1662
      %v1690 = vpack.c.bf16 %v1665, %v1664
      %v1691 = vpack.c.bf16 %v1667, %v1666
      %v1692 = vpack.c.bf16 %v1669, %v1668
      %v1693 = vpack.c.bf16 %v1671, %v1670
      %v1694 = vpack.c.bf16 %v1673, %v1672
      %v1695 = vpack.c.bf16 %v1675, %v1674
      %v1696 = vpack.c.bf16 %v1677, %v1676
      %v1697 = vpack.c.bf16 %v1679, %v1678
      %v1698 = vpack.c.bf16 %v1681, %v1680
      %v1699 = vpack.c.bf16 %v1683, %v1682
      %s1700 = scalar_lea.vmem %s3, 8
      %v1701 = vld [vmem:[%s1700] sm:$0xf]
      %v1703 = vsel %vm414, %v1684, 0
      %v1706 = vsel %vm414, %v1685, 0
      %v1709 = vsel %vm414, %v1686, 0
      %v1712 = vsel %vm414, %v1687, 0
      %v1715 = vsel %vm414, %v1688, 0
      %v1718 = vsel %vm414, %v1689, 0
      %v1721 = vsel %vm414, %v1690, 0
      %v1724 = vsel %vm414, %v1691, 0
      %v1727 = vsel %vm414, %v1692, 0
      %v1730 = vsel %vm414, %v1693, 0
      %v1733 = vsel %vm414, %v1694, 0
      %v1736 = vsel %vm414, %v1695, 0
      %v1739 = vsel %vm414, %v1696, 0
      %v1742 = vsel %vm414, %v1697, 0
      %v1745 = vsel %vm414, %v1698, 0
      %v1748 = vsel %vm414, %v1699, 0
      %v1751 = vsel %vm1179, %v1701, 0
      %1753 = vmatprep.subr.bf16.mxu0 0
      %1754 = vmatpush1.bf16.msra.mxu0 %v1751
      %1755 = vmatprep.subr.bf16.mxu0 0
      %1756 = vmatpush1.bf16.msra.mxu0 0
      %1757 = vmatprep.subr.bf16.mxu0 0
      %1758 = vmatpush1.bf16.msra.mxu0 0
      %1759 = vmatprep.subr.bf16.mxu0 0
      %1760 = vmatpush1.bf16.msra.mxu0 0
      %1761 = vmatprep.subr.bf16.mxu0 0
      %1762 = vmatpush1.bf16.msra.mxu0 0
      %1763 = vmatprep.subr.bf16.mxu0 0
      %1764 = vmatpush1.bf16.msra.mxu0 0
      %1765 = vmatprep.subr.bf16.mxu0 0
      %1766 = vmatpush1.bf16.msra.mxu0 0
      %1767 = vmatprep.subr.bf16.mxu0 0
      %1768 = vmatpush1.bf16.msra.mxu0 0
      %1769 = vmatprep.subr.bf16.mxu0 0
      %1770 = vmatpush1.bf16.msra.mxu0 0
      %1771 = vmatprep.subr.bf16.mxu0 0
      %1772 = vmatpush1.bf16.msra.mxu0 0
      %1773 = vmatprep.subr.bf16.mxu0 0
      %1774 = vmatpush1.bf16.msra.mxu0 0
      %1775 = vmatprep.subr.bf16.mxu0 0
      %1776 = vmatpush1.bf16.msra.mxu0 0
      %1777 = vmatprep.subr.bf16.mxu0 0
      %1778 = vmatpush1.bf16.msra.mxu0 0
      %1779 = vmatprep.subr.bf16.mxu0 0
      %1780 = vmatpush1.bf16.msra.mxu0 0
      %1781 = vmatprep.subr.bf16.mxu0 0
      %1782 = vmatpush1.bf16.msra.mxu0 0
      %1783 = vmatprep.subr.bf16.mxu0 0
      %1784 = vmatpush1.bf16.msra.mxu0 0
      %1785 = vmatprep.mubr.bf16.mxu0 0
      %1786 = vmatmul.mubr.bf16.gmra.mrb[0].mxu0 %v1703
      %v1787 = vpop.f32.mrb[0].mxu0
      %v1788 = vadd.f32 0.0, %v1787
      %v1789 = vpop.f32.mrb[0].mxu0
      %v1790 = vpop.f32.mrb[0].mxu0
      %v1791 = vadd.f32 0.0, %v1790
      %v1792 = vpop.f32.mrb[0].mxu0
      %1793 = vmatprep.mubr.bf16.mxu0 0
      %1794 = vmatmul.mubr.bf16.gmra.mrb[0].mxu0 %v1706
      %v1795 = vpop.f32.mrb[0].mxu0
      %v1796 = vadd.f32 0.0, %v1795
      %v1797 = vpop.f32.mrb[0].mxu0
      %v1798 = vpop.f32.mrb[0].mxu0
      %v1799 = vadd.f32 0.0, %v1798
      %v1800 = vpop.f32.mrb[0].mxu0
      %1801 = vmatprep.mubr.bf16.mxu0 0
      %1802 = vmatmul.mubr.bf16.gmra.mrb[0].mxu0 %v1709
      %v1803 = vpop.f32.mrb[0].mxu0
      %v1804 = vadd.f32 0.0, %v1803
      %v1805 = vpop.f32.mrb[0].mxu0
      %v1806 = vpop.f32.mrb[0].mxu0
      %v1807 = vadd.f32 0.0, %v1806
      %v1808 = vpop.f32.mrb[0].mxu0
      %1809 = vmatprep.mubr.bf16.mxu0 0
      %1810 = vmatmul.mubr.bf16.gmra.mrb[0].mxu0 %v1712
      %v1811 = vpop.f32.mrb[0].mxu0
      %v1812 = vadd.f32 0.0, %v1811
      %v1813 = vpop.f32.mrb[0].mxu0
      %v1814 = vpop.f32.mrb[0].mxu0
      %v1815 = vadd.f32 0.0, %v1814
      %v1816 = vpop.f32.mrb[0].mxu0
      %1817 = vmatprep.mubr.bf16.mxu0 0
      %1818 = vmatmul.mubr.bf16.gmra.mrb[0].mxu0 %v1715
      %v1819 = vpop.f32.mrb[0].mxu0
      %v1820 = vadd.f32 0.0, %v1819
      %v1821 = vpop.f32.mrb[0].mxu0
      %v1822 = vpop.f32.mrb[0].mxu0
      %v1823 = vadd.f32 0.0, %v1822
      %v1824 = vpop.f32.mrb[0].mxu0
      %1825 = vmatprep.mubr.bf16.mxu0 0
      %1826 = vmatmul.mubr.bf16.gmra.mrb[0].mxu0 %v1718
      %v1827 = vpop.f32.mrb[0].mxu0
      %v1828 = vadd.f32 0.0, %v1827
      %v1829 = vpop.f32.mrb[0].mxu0
      %v1830 = vpop.f32.mrb[0].mxu0
      %v1831 = vadd.f32 0.0, %v1830
      %v1832 = vpop.f32.mrb[0].mxu0
      %1833 = vmatprep.mubr.bf16.mxu0 0
      %1834 = vmatmul.mubr.bf16.gmra.mrb[0].mxu0 %v1721
      %v1835 = vpop.f32.mrb[0].mxu0
      %v1836 = vadd.f32 0.0, %v1835
      %v1837 = vpop.f32.mrb[0].mxu0
      %v1838 = vpop.f32.mrb[0].mxu0
      %v1839 = vadd.f32 0.0, %v1838
      %v1840 = vpop.f32.mrb[0].mxu0
      %1841 = vmatprep.mubr.bf16.mxu0 0
      %1842 = vmatmul.mubr.bf16.gmra.mrb[0].mxu0 %v1724
      %v1843 = vpop.f32.mrb[0].mxu0
      %v1844 = vadd.f32 0.0, %v1843
      %v1845 = vpop.f32.mrb[0].mxu0
      %v1846 = vpop.f32.mrb[0].mxu0
      %v1847 = vadd.f32 0.0, %v1846
      %v1848 = vpop.f32.mrb[0].mxu0
      %1849 = vmatprep.mubr.bf16.mxu0 0
      %1850 = vmatmul.mubr.bf16.gmra.mrb[0].mxu0 %v1727
      %v1851 = vpop.f32.mrb[0].mxu0
      %v1852 = vadd.f32 0.0, %v1851
      %v1853 = vpop.f32.mrb[0].mxu0
      %v1854 = vpop.f32.mrb[0].mxu0
      %v1855 = vadd.f32 0.0, %v1854
      %v1856 = vpop.f32.mrb[0].mxu0
      %1857 = vmatprep.mubr.bf16.mxu0 0
      %1858 = vmatmul.mubr.bf16.gmra.mrb[0].mxu0 %v1730
      %v1859 = vpop.f32.mrb[0].mxu0
      %v1860 = vadd.f32 0.0, %v1859
      %v1861 = vpop.f32.mrb[0].mxu0
      %v1862 = vpop.f32.mrb[0].mxu0
      %v1863 = vadd.f32 0.0, %v1862
      %v1864 = vpop.f32.mrb[0].mxu0
      %1865 = vmatprep.mubr.bf16.mxu0 0
      %1866 = vmatmul.mubr.bf16.gmra.mrb[0].mxu0 %v1733
      %v1867 = vpop.f32.mrb[0].mxu0
      %v1868 = vadd.f32 0.0, %v1867
      %v1869 = vpop.f32.mrb[0].mxu0
      %v1870 = vpop.f32.mrb[0].mxu0
      %v1871 = vadd.f32 0.0, %v1870
      %v1872 = vpop.f32.mrb[0].mxu0
      %1873 = vmatprep.mubr.bf16.mxu0 0
      %1874 = vmatmul.mubr.bf16.gmra.mrb[0].mxu0 %v1736
      %v1875 = vpop.f32.mrb[0].mxu0
      %v1876 = vadd.f32 0.0, %v1875
      %v1877 = vpop.f32.mrb[0].mxu0
      %v1878 = vpop.f32.mrb[0].mxu0
      %v1879 = vadd.f32 0.0, %v1878
      %v1880 = vpop.f32.mrb[0].mxu0
      %1881 = vmatprep.mubr.bf16.mxu0 0
      %1882 = vmatmul.mubr.bf16.gmra.mrb[0].mxu0 %v1739
      %v1883 = vpop.f32.mrb[0].mxu0
      %v1884 = vadd.f32 0.0, %v1883
      %v1885 = vpop.f32.mrb[0].mxu0
      %v1886 = vpop.f32.mrb[0].mxu0
      %v1887 = vadd.f32 0.0, %v1886
      %v1888 = vpop.f32.mrb[0].mxu0
      %1889 = vmatprep.mubr.bf16.mxu0 0
      %1890 = vmatmul.mubr.bf16.gmra.mrb[0].mxu0 %v1742
      %v1891 = vpop.f32.mrb[0].mxu0
      %v1892 = vadd.f32 0.0, %v1891
      %v1893 = vpop.f32.mrb[0].mxu0
      %v1894 = vpop.f32.mrb[0].mxu0
      %v1895 = vadd.f32 0.0, %v1894
      %v1896 = vpop.f32.mrb[0].mxu0
      %1897 = vmatprep.mubr.bf16.mxu0 0
      %1898 = vmatmul.mubr.bf16.gmra.mrb[0].mxu0 %v1745
      %v1899 = vpop.f32.mrb[0].mxu0
      %v1900 = vadd.f32 0.0, %v1899
      %v1901 = vpop.f32.mrb[0].mxu0
      %v1902 = vpop.f32.mrb[0].mxu0
      %v1903 = vadd.f32 0.0, %v1902
      %v1904 = vpop.f32.mrb[0].mxu0
      %1905 = vmatprep.mubr.bf16.mxu0 0
      %1906 = vmatmul.mubr.bf16.gmra.mrb[0].mxu0 %v1748
      %v1907 = vpop.f32.mrb[0].mxu0
      %v1908 = vadd.f32 0.0, %v1907
      %v1909 = vpop.f32.mrb[0].mxu0
      %v1910 = vpop.f32.mrb[0].mxu0
      %v1911 = vadd.f32 0.0, %v1910
      %v1912 = vpop.f32.mrb[0].mxu0
      %1913 = vdwg.mxu0
      %v1914 = vadd.f32 %v1430, %v1788
      %v1915 = vadd.f32 %v1433, %v1791
      %v1916 = vadd.f32 %v1438, %v1796
      %v1917 = vadd.f32 %v1441, %v1799
      %v1918 = vadd.f32 %v1446, %v1804
      %v1919 = vadd.f32 %v1449, %v1807
      %v1920 = vadd.f32 %v1454, %v1812
      %v1921 = vadd.f32 %v1457, %v1815
      %v1922 = vadd.f32 %v1462, %v1820
      %v1923 = vadd.f32 %v1465, %v1823
      %v1924 = vadd.f32 %v1470, %v1828
      %v1925 = vadd.f32 %v1473, %v1831
      %v1926 = vadd.f32 %v1478, %v1836
      %v1927 = vadd.f32 %v1481, %v1839
      %v1928 = vadd.f32 %v1486, %v1844
      %v1929 = vadd.f32 %v1489, %v1847
      %v1930 = vadd.f32 %v1494, %v1852
      %v1931 = vadd.f32 %v1497, %v1855
      %v1932 = vadd.f32 %v1502, %v1860
      %v1933 = vadd.f32 %v1505, %v1863
      %v1934 = vadd.f32 %v1510, %v1868
      %v1935 = vadd.f32 %v1513, %v1871
      %v1936 = vadd.f32 %v1518, %v1876
      %v1937 = vadd.f32 %v1521, %v1879
      %v1938 = vadd.f32 %v1526, %v1884
      %v1939 = vadd.f32 %v1529, %v1887
      %v1940 = vadd.f32 %v1534, %v1892
      %v1941 = vadd.f32 %v1537, %v1895
      %v1942 = vadd.f32 %v1542, %v1900
      %v1943 = vadd.f32 %v1545, %v1903
      %v1944 = vadd.f32 %v1550, %v1908
      %v1945 = vadd.f32 %v1553, %v1911
      %v1946 = vld [vmem:[#allocation2 + $0x1f] sm:$0xff]
      %v1947 = vld [vmem:[#allocation2 + $0x27] sm:$0xff]
      %v1948 = vld [vmem:[#allocation2 + $0x2f] sm:$0xff]
      %v1949 = vld [vmem:[#allocation2 + $0x37] sm:$0xff]
      %v1950 = vld [vmem:[#allocation2 + $0x3f] sm:$0xff]
      %v1951 = vld [vmem:[#allocation2 + $0x47] sm:$0xff]
      %v1952 = vld [vmem:[#allocation2 + $0x4f] sm:$0xff]
      %v1953 = vld [vmem:[#allocation2 + $0x57] sm:$0xff]
      %v1954 = vld [vmem:[#allocation2 + $0x5f] sm:$0xff]
      %v1955 = vld [vmem:[#allocation2 + $0x67] sm:$0xff]
      %v1956 = vld [vmem:[#allocation2 + $0x6f] sm:$0xff]
      %v1957 = vld [vmem:[#allocation2 + $0x77] sm:$0xff]
      %v1958 = vld [vmem:[#allocation2 + $0x7f] sm:$0xff]
      %v1959 = vld [vmem:[#allocation2 + $0x87] sm:$0xff]
      %v1960 = vld [vmem:[#allocation2 + $0x8f] sm:$0xff]
      %v1961 = vld [vmem:[#allocation2 + $0x97] sm:$0xff]
      %v1962 = vld [vmem:[#allocation2 + $0x9f] sm:$0xff]
      %v1963 = vld [vmem:[#allocation2 + $0xa7] sm:$0xff]
      %v1964 = vld [vmem:[#allocation2 + $0xaf] sm:$0xff]
      %v1965 = vld [vmem:[#allocation2 + $0xb7] sm:$0xff]
      %v1966 = vld [vmem:[#allocation2 + $0xbf] sm:$0xff]
      %v1967 = vld [vmem:[#allocation2 + $0xc7] sm:$0xff]
      %v1968 = vld [vmem:[#allocation2 + $0xcf] sm:$0xff]
      %v1969 = vld [vmem:[#allocation2 + $0xd7] sm:$0xff]
      %v1970 = vld [vmem:[#allocation2 + $0xdf] sm:$0xff]
      %v1971 = vld [vmem:[#allocation2 + $0xe7] sm:$0xff]
      %v1972 = vld [vmem:[#allocation2 + $0xef] sm:$0xff]
      %v1973 = vld [vmem:[#allocation2 + $0xf7] sm:$0xff]
      %v1974 = vld [vmem:[#allocation2 + $0xff] sm:$0xff]
      %v1975 = vld [vmem:[#allocation2 + $0x107] sm:$0xff]
      %v1976 = vld [vmem:[#allocation2 + $0x10f] sm:$0xff]
      %v1977 = vld [vmem:[#allocation2 + $0x117] sm:$0xff]
      %v1978 = vsel %vm1000, %v1946, 0.0
      %v1979 = vsel %vm1001, %v1947, 0.0
      %v1980 = vsel %vm1002, %v1948, 0.0
      %v1981 = vsel %vm1003, %v1949, 0.0
      %v1982 = vsel %vm1004, %v1950, 0.0
      %v1983 = vsel %vm1005, %v1951, 0.0
      %v1984 = vsel %vm1006, %v1952, 0.0
      %v1985 = vsel %vm1007, %v1953, 0.0
      %v1986 = vsel %vm1008, %v1954, 0.0
      %v1987 = vsel %vm1009, %v1955, 0.0
      %v1988 = vsel %vm1010, %v1956, 0.0
      %v1989 = vsel %vm1011, %v1957, 0.0
      %v1990 = vsel %vm1012, %v1958, 0.0
      %v1991 = vsel %vm1013, %v1959, 0.0
      %v1992 = vsel %vm1014, %v1960, 0.0
      %v1993 = vsel %vm1015, %v1961, 0.0
      %v1994 = vsel %vm1016, %v1962, 0.0
      %v1995 = vsel %vm1017, %v1963, 0.0
      %v1996 = vsel %vm1018, %v1964, 0.0
      %v1997 = vsel %vm1019, %v1965, 0.0
      %v1998 = vsel %vm1020, %v1966, 0.0
      %v1999 = vsel %vm1021, %v1967, 0.0
      %v2000 = vsel %vm1022, %v1968, 0.0
      %v2001 = vsel %vm1023, %v1969, 0.0
      %v2002 = vsel %vm1024, %v1970, 0.0
      %v2003 = vsel %vm1025, %v1971, 0.0
      %v2004 = vsel %vm1026, %v1972, 0.0
      %v2005 = vsel %vm1027, %v1973, 0.0
      %v2006 = vsel %vm1028, %v1974, 0.0
      %v2007 = vsel %vm1029, %v1975, 0.0
      %v2008 = vsel %vm1030, %v1976, 0.0
      %v2009 = vsel %vm1031, %v1977, 0.0
      %v2010 = vpack.c.bf16 %v1979, %v1978
      %v2011 = vpack.c.bf16 %v1981, %v1980
      %v2012 = vpack.c.bf16 %v1983, %v1982
      %v2013 = vpack.c.bf16 %v1985, %v1984
      %v2014 = vpack.c.bf16 %v1987, %v1986
      %v2015 = vpack.c.bf16 %v1989, %v1988
      %v2016 = vpack.c.bf16 %v1991, %v1990
      %v2017 = vpack.c.bf16 %v1993, %v1992
      %v2018 = vpack.c.bf16 %v1995, %v1994
      %v2019 = vpack.c.bf16 %v1997, %v1996
      %v2020 = vpack.c.bf16 %v1999, %v1998
      %v2021 = vpack.c.bf16 %v2001, %v2000
      %v2022 = vpack.c.bf16 %v2003, %v2002
      %v2023 = vpack.c.bf16 %v2005, %v2004
      %v2024 = vpack.c.bf16 %v2007, %v2006
      %v2025 = vpack.c.bf16 %v2009, %v2008
      %s2026 = scalar_lea.vmem %s3, 12
      %v2027 = vld [vmem:[%s2026] sm:$0xf]
      %v2029 = vsel %vm414, %v2010, 0
      %v2032 = vsel %vm414, %v2011, 0
      %v2035 = vsel %vm414, %v2012, 0
      %v2038 = vsel %vm414, %v2013, 0
      %v2041 = vsel %vm414, %v2014, 0
      %v2044 = vsel %vm414, %v2015, 0
      %v2047 = vsel %vm414, %v2016, 0
      %v2050 = vsel %vm414, %v2017, 0
      %v2053 = vsel %vm414, %v2018, 0
      %v2056 = vsel %vm414, %v2019, 0
      %v2059 = vsel %vm414, %v2020, 0
      %v2062 = vsel %vm414, %v2021, 0
      %v2065 = vsel %vm414, %v2022, 0
      %v2068 = vsel %vm414, %v2023, 0
      %v2071 = vsel %vm414, %v2024, 0
      %v2074 = vsel %vm414, %v2025, 0
      %v2077 = vsel %vm1179, %v2027, 0
      %2079 = vmatprep.subr.bf16.mxu0 0
      %2080 = vmatpush1.bf16.msra.mxu0 %v2077
      %2081 = vmatprep.subr.bf16.mxu0 0
      %2082 = vmatpush1.bf16.msra.mxu0 0
      %2083 = vmatprep.subr.bf16.mxu0 0
      %2084 = vmatpush1.bf16.msra.mxu0 0
      %2085 = vmatprep.subr.bf16.mxu0 0
      %2086 = vmatpush1.bf16.msra.mxu0 0
      %2087 = vmatprep.subr.bf16.mxu0 0
      %2088 = vmatpush1.bf16.msra.mxu0 0
      %2089 = vmatprep.subr.bf16.mxu0 0
      %2090 = vmatpush1.bf16.msra.mxu0 0
      %2091 = vmatprep.subr.bf16.mxu0 0
      %2092 = vmatpush1.bf16.msra.mxu0 0
      %2093 = vmatprep.subr.bf16.mxu0 0
      %2094 = vmatpush1.bf16.msra.mxu0 0
      %2095 = vmatprep.subr.bf16.mxu0 0
      %2096 = vmatpush1.bf16.msra.mxu0 0
      %2097 = vmatprep.subr.bf16.mxu0 0
      %2098 = vmatpush1.bf16.msra.mxu0 0
      %2099 = vmatprep.subr.bf16.mxu0 0
      %2100 = vmatpush1.bf16.msra.mxu0 0
      %2101 = vmatprep.subr.bf16.mxu0 0
      %2102 = vmatpush1.bf16.msra.mxu0 0
      %2103 = vmatprep.subr.bf16.mxu0 0
      %2104 = vmatpush1.bf16.msra.mxu0 0
      %2105 = vmatprep.subr.bf16.mxu0 0
      %2106 = vmatpush1.bf16.msra.mxu0 0
      %2107 = vmatprep.subr.bf16.mxu0 0
      %2108 = vmatpush1.bf16.msra.mxu0 0
      %2109 = vmatprep.subr.bf16.mxu0 0
      %2110 = vmatpush1.bf16.msra.mxu0 0
      %2111 = vmatprep.mubr.bf16.mxu0 0
      %2112 = vmatmul.mubr.bf16.gmra.mrb[0].mxu0 %v2029
      %v2113 = vpop.f32.mrb[0].mxu0
      %v2114 = vadd.f32 0.0, %v2113
      %v2115 = vpop.f32.mrb[0].mxu0
      %v2116 = vpop.f32.mrb[0].mxu0
      %v2117 = vadd.f32 0.0, %v2116
      %v2118 = vpop.f32.mrb[0].mxu0
      %2119 = vmatprep.mubr.bf16.mxu0 0
      %2120 = vmatmul.mubr.bf16.gmra.mrb[0].mxu0 %v2032
      %v2121 = vpop.f32.mrb[0].mxu0
      %v2122 = vadd.f32 0.0, %v2121
      %v2123 = vpop.f32.mrb[0].mxu0
      %v2124 = vpop.f32.mrb[0].mxu0
      %v2125 = vadd.f32 0.0, %v2124
      %v2126 = vpop.f32.mrb[0].mxu0
      %2127 = vmatprep.mubr.bf16.mxu0 0
      %2128 = vmatmul.mubr.bf16.gmra.mrb[0].mxu0 %v2035
      %v2129 = vpop.f32.mrb[0].mxu0
      %v2130 = vadd.f32 0.0, %v2129
      %v2131 = vpop.f32.mrb[0].mxu0
      %v2132 = vpop.f32.mrb[0].mxu0
      %v2133 = vadd.f32 0.0, %v2132
      %v2134 = vpop.f32.mrb[0].mxu0
      %2135 = vmatprep.mubr.bf16.mxu0 0
      %2136 = vmatmul.mubr.bf16.gmra.mrb[0].mxu0 %v2038
      %v2137 = vpop.f32.mrb[0].mxu0
      %v2138 = vadd.f32 0.0, %v2137
      %v2139 = vpop.f32.mrb[0].mxu0
      %v2140 = vpop.f32.mrb[0].mxu0
      %v2141 = vadd.f32 0.0, %v2140
      %v2142 = vpop.f32.mrb[0].mxu0
      %2143 = vmatprep.mubr.bf16.mxu0 0
      %2144 = vmatmul.mubr.bf16.gmra.mrb[0].mxu0 %v2041
      %v2145 = vpop.f32.mrb[0].mxu0
      %v2146 = vadd.f32 0.0, %v2145
      %v2147 = vpop.f32.mrb[0].mxu0
      %v2148 = vpop.f32.mrb[0].mxu0
      %v2149 = vadd.f32 0.0, %v2148
      %v2150 = vpop.f32.mrb[0].mxu0
      %2151 = vmatprep.mubr.bf16.mxu0 0
      %2152 = vmatmul.mubr.bf16.gmra.mrb[0].mxu0 %v2044
      %v2153 = vpop.f32.mrb[0].mxu0
      %v2154 = vadd.f32 0.0, %v2153
      %v2155 = vpop.f32.mrb[0].mxu0
      %v2156 = vpop.f32.mrb[0].mxu0
      %v2157 = vadd.f32 0.0, %v2156
      %v2158 = vpop.f32.mrb[0].mxu0
      %2159 = vmatprep.mubr.bf16.mxu0 0
      %2160 = vmatmul.mubr.bf16.gmra.mrb[0].mxu0 %v2047
      %v2161 = vpop.f32.mrb[0].mxu0
      %v2162 = vadd.f32 0.0, %v2161
      %v2163 = vpop.f32.mrb[0].mxu0
      %v2164 = vpop.f32.mrb[0].mxu0
      %v2165 = vadd.f32 0.0, %v2164
      %v2166 = vpop.f32.mrb[0].mxu0
      %2167 = vmatprep.mubr.bf16.mxu0 0
      %2168 = vmatmul.mubr.bf16.gmra.mrb[0].mxu0 %v2050
      %v2169 = vpop.f32.mrb[0].mxu0
      %v2170 = vadd.f32 0.0, %v2169
      %v2171 = vpop.f32.mrb[0].mxu0
      %v2172 = vpop.f32.mrb[0].mxu0
      %v2173 = vadd.f32 0.0, %v2172
      %v2174 = vpop.f32.mrb[0].mxu0
      %2175 = vmatprep.mubr.bf16.mxu0 0
      %2176 = vmatmul.mubr.bf16.gmra.mrb[0].mxu0 %v2053
      %v2177 = vpop.f32.mrb[0].mxu0
      %v2178 = vadd.f32 0.0, %v2177
      %v2179 = vpop.f32.mrb[0].mxu0
      %v2180 = vpop.f32.mrb[0].mxu0
      %v2181 = vadd.f32 0.0, %v2180
      %v2182 = vpop.f32.mrb[0].mxu0
      %2183 = vmatprep.mubr.bf16.mxu0 0
      %2184 = vmatmul.mubr.bf16.gmra.mrb[0].mxu0 %v2056
      %v2185 = vpop.f32.mrb[0].mxu0
      %v2186 = vadd.f32 0.0, %v2185
      %v2187 = vpop.f32.mrb[0].mxu0
      %v2188 = vpop.f32.mrb[0].mxu0
      %v2189 = vadd.f32 0.0, %v2188
      %v2190 = vpop.f32.mrb[0].mxu0
      %2191 = vmatprep.mubr.bf16.mxu0 0
      %2192 = vmatmul.mubr.bf16.gmra.mrb[0].mxu0 %v2059
      %v2193 = vpop.f32.mrb[0].mxu0
      %v2194 = vadd.f32 0.0, %v2193
      %v2195 = vpop.f32.mrb[0].mxu0
      %v2196 = vpop.f32.mrb[0].mxu0
      %v2197 = vadd.f32 0.0, %v2196
      %v2198 = vpop.f32.mrb[0].mxu0
      %2199 = vmatprep.mubr.bf16.mxu0 0
      %2200 = vmatmul.mubr.bf16.gmra.mrb[0].mxu0 %v2062
      %v2201 = vpop.f32.mrb[0].mxu0
      %v2202 = vadd.f32 0.0, %v2201
      %v2203 = vpop.f32.mrb[0].mxu0
      %v2204 = vpop.f32.mrb[0].mxu0
      %v2205 = vadd.f32 0.0, %v2204
      %v2206 = vpop.f32.mrb[0].mxu0
      %2207 = vmatprep.mubr.bf16.mxu0 0
      %2208 = vmatmul.mubr.bf16.gmra.mrb[0].mxu0 %v2065
      %v2209 = vpop.f32.mrb[0].mxu0
      %v2210 = vadd.f32 0.0, %v2209
      %v2211 = vpop.f32.mrb[0].mxu0
      %v2212 = vpop.f32.mrb[0].mxu0
      %v2213 = vadd.f32 0.0, %v2212
      %v2214 = vpop.f32.mrb[0].mxu0
      %2215 = vmatprep.mubr.bf16.mxu0 0
      %2216 = vmatmul.mubr.bf16.gmra.mrb[0].mxu0 %v2068
      %v2217 = vpop.f32.mrb[0].mxu0
      %v2218 = vadd.f32 0.0, %v2217
      %v2219 = vpop.f32.mrb[0].mxu0
      %v2220 = vpop.f32.mrb[0].mxu0
      %v2221 = vadd.f32 0.0, %v2220
      %v2222 = vpop.f32.mrb[0].mxu0
      %2223 = vmatprep.mubr.bf16.mxu0 0
      %2224 = vmatmul.mubr.bf16.gmra.mrb[0].mxu0 %v2071
      %v2225 = vpop.f32.mrb[0].mxu0
      %v2226 = vadd.f32 0.0, %v2225
      %v2227 = vpop.f32.mrb[0].mxu0
      %v2228 = vpop.f32.mrb[0].mxu0
      %v2229 = vadd.f32 0.0, %v2228
      %v2230 = vpop.f32.mrb[0].mxu0
      %2231 = vmatprep.mubr.bf16.mxu0 0
      %2232 = vmatmul.mubr.bf16.gmra.mrb[0].mxu0 %v2074
      %v2233 = vpop.f32.mrb[0].mxu0
      %v2234 = vadd.f32 0.0, %v2233
      %v2235 = vpop.f32.mrb[0].mxu0
      %v2236 = vpop.f32.mrb[0].mxu0
      %v2237 = vadd.f32 0.0, %v2236
      %v2238 = vpop.f32.mrb[0].mxu0
      %2239 = vdwg.mxu0
      %v2240 = vadd.f32 %v1914, %v2114
      %v2241 = vadd.f32 %v1915, %v2117
      %v2242 = vadd.f32 %v1916, %v2122
      %v2243 = vadd.f32 %v1917, %v2125
      %v2244 = vadd.f32 %v1918, %v2130
      %v2245 = vadd.f32 %v1919, %v2133
      %v2246 = vadd.f32 %v1920, %v2138
      %v2247 = vadd.f32 %v1921, %v2141
      %v2248 = vadd.f32 %v1922, %v2146
      %v2249 = vadd.f32 %v1923, %v2149
      %v2250 = vadd.f32 %v1924, %v2154
      %v2251 = vadd.f32 %v1925, %v2157
      %v2252 = vadd.f32 %v1926, %v2162
      %v2253 = vadd.f32 %v1927, %v2165
      %v2254 = vadd.f32 %v1928, %v2170
      %v2255 = vadd.f32 %v1929, %v2173
      %v2256 = vadd.f32 %v1930, %v2178
      %v2257 = vadd.f32 %v1931, %v2181
      %v2258 = vadd.f32 %v1932, %v2186
      %v2259 = vadd.f32 %v1933, %v2189
      %v2260 = vadd.f32 %v1934, %v2194
      %v2261 = vadd.f32 %v1935, %v2197
      %v2262 = vadd.f32 %v1936, %v2202
      %v2263 = vadd.f32 %v1937, %v2205
      %v2264 = vadd.f32 %v1938, %v2210
      %v2265 = vadd.f32 %v1939, %v2213
      %v2266 = vadd.f32 %v1940, %v2218
      %v2267 = vadd.f32 %v1941, %v2221
      %v2268 = vadd.f32 %v1942, %v2226
      %v2269 = vadd.f32 %v1943, %v2229
      %v2270 = vadd.f32 %v1944, %v2234
      %v2271 = vadd.f32 %v1945, %v2237
      %v2272 = vld [vmem:[#allocation2 + $0x20] sm:$0xff]
      %v2273 = vld [vmem:[#allocation2 + $0x28] sm:$0xff]
      %v2274 = vld [vmem:[#allocation2 + $0x30] sm:$0xff]
      %v2275 = vld [vmem:[#allocation2 + $0x38] sm:$0xff]
      %v2276 = vld [vmem:[#allocation2 + $0x40] sm:$0xff]
      %v2277 = vld [vmem:[#allocation2 + $0x48] sm:$0xff]
      %v2278 = vld [vmem:[#allocation2 + $0x50] sm:$0xff]
      %v2279 = vld [vmem:[#allocation2 + $0x58] sm:$0xff]
      %v2280 = vld [vmem:[#allocation2 + $0x60] sm:$0xff]
      %v2281 = vld [vmem:[#allocation2 + $0x68] sm:$0xff]
      %v2282 = vld [vmem:[#allocation2 + $0x70] sm:$0xff]
      %v2283 = vld [vmem:[#allocation2 + $0x78] sm:$0xff]
      %v2284 = vld [vmem:[#allocation2 + $0x80] sm:$0xff]
      %v2285 = vld [vmem:[#allocation2 + $0x88] sm:$0xff]
      %v2286 = vld [vmem:[#allocation2 + $0x90] sm:$0xff]
      %v2287 = vld [vmem:[#allocation2 + $0x98] sm:$0xff]
      %v2288 = vld [vmem:[#allocation2 + $0xa0] sm:$0xff]
      %v2289 = vld [vmem:[#allocation2 + $0xa8] sm:$0xff]
      %v2290 = vld [vmem:[#allocation2 + $0xb0] sm:$0xff]
      %v2291 = vld [vmem:[#allocation2 + $0xb8] sm:$0xff]
      %v2292 = vld [vmem:[#allocation2 + $0xc0] sm:$0xff]
      %v2293 = vld [vmem:[#allocation2 + $0xc8] sm:$0xff]
      %v2294 = vld [vmem:[#allocation2 + $0xd0] sm:$0xff]
      %v2295 = vld [vmem:[#allocation2 + $0xd8] sm:$0xff]
      %v2296 = vld [vmem:[#allocation2 + $0xe0] sm:$0xff]
      %v2297 = vld [vmem:[#allocation2 + $0xe8] sm:$0xff]
      %v2298 = vld [vmem:[#allocation2 + $0xf0] sm:$0xff]
      %v2299 = vld [vmem:[#allocation2 + $0xf8] sm:$0xff]
      %v2300 = vld [vmem:[#allocation2 + $0x100] sm:$0xff]
      %v2301 = vld [vmem:[#allocation2 + $0x108] sm:$0xff]
      %v2302 = vld [vmem:[#allocation2 + $0x110] sm:$0xff]
      %v2303 = vld [vmem:[#allocation2 + $0x118] sm:$0xff]
      %v2304 = vpack.c.bf16 %v2273, %v2272
      %v2305 = vpack.c.bf16 %v2275, %v2274
      %v2306 = vpack.c.bf16 %v2277, %v2276
      %v2307 = vpack.c.bf16 %v2279, %v2278
      %v2308 = vpack.c.bf16 %v2281, %v2280
      %v2309 = vpack.c.bf16 %v2283, %v2282
      %v2310 = vpack.c.bf16 %v2285, %v2284
      %v2311 = vpack.c.bf16 %v2287, %v2286
      %v2312 = vpack.c.bf16 %v2289, %v2288
      %v2313 = vpack.c.bf16 %v2291, %v2290
      %v2314 = vpack.c.bf16 %v2293, %v2292
      %v2315 = vpack.c.bf16 %v2295, %v2294
      %v2316 = vpack.c.bf16 %v2297, %v2296
      %v2317 = vpack.c.bf16 %v2299, %v2298
      %v2318 = vpack.c.bf16 %v2301, %v2300
      %v2319 = vpack.c.bf16 %v2303, %v2302
      %s2320 = scalar_lea.vmem %s3, 16
      %v2321 = vld [vmem:[%s2320] sm:$0xf]
      %v2323 = vsel %vm414, %v2304, 0
      %v2326 = vsel %vm414, %v2305, 0
      %v2329 = vsel %vm414, %v2306, 0
      %v2332 = vsel %vm414, %v2307, 0
      %v2335 = vsel %vm414, %v2308, 0
      %v2338 = vsel %vm414, %v2309, 0
      %v2341 = vsel %vm414, %v2310, 0
      %v2344 = vsel %vm414, %v2311, 0
      %v2347 = vsel %vm414, %v2312, 0
      %v2350 = vsel %vm414, %v2313, 0
      %v2353 = vsel %vm414, %v2314, 0
      %v2356 = vsel %vm414, %v2315, 0
      %v2359 = vsel %vm414, %v2316, 0
      %v2362 = vsel %vm414, %v2317, 0
      %v2365 = vsel %vm414, %v2318, 0
      %v2368 = vsel %vm414, %v2319, 0
      %v2371 = vsel %vm1179, %v2321, 0
      %2373 = vmatprep.subr.bf16.mxu0 0
      %2374 = vmatpush1.bf16.msra.mxu0 %v2371
      %2375 = vmatprep.subr.bf16.mxu0 0
      %2376 = vmatpush1.bf16.msra.mxu0 0
      %2377 = vmatprep.subr.bf16.mxu0 0
      %2378 = vmatpush1.bf16.msra.mxu0 0
      %2379 = vmatprep.subr.bf16.mxu0 0
      %2380 = vmatpush1.bf16.msra.mxu0 0
      %2381 = vmatprep.subr.bf16.mxu0 0
      %2382 = vmatpush1.bf16.msra.mxu0 0
      %2383 = vmatprep.subr.bf16.mxu0 0
      %2384 = vmatpush1.bf16.msra.mxu0 0
      %2385 = vmatprep.subr.bf16.mxu0 0
      %2386 = vmatpush1.bf16.msra.mxu0 0
      %2387 = vmatprep.subr.bf16.mxu0 0
      %2388 = vmatpush1.bf16.msra.mxu0 0
      %2389 = vmatprep.subr.bf16.mxu0 0
      %2390 = vmatpush1.bf16.msra.mxu0 0
      %2391 = vmatprep.subr.bf16.mxu0 0
      %2392 = vmatpush1.bf16.msra.mxu0 0
      %2393 = vmatprep.subr.bf16.mxu0 0
      %2394 = vmatpush1.bf16.msra.mxu0 0
      %2395 = vmatprep.subr.bf16.mxu0 0
      %2396 = vmatpush1.bf16.msra.mxu0 0
      %2397 = vmatprep.subr.bf16.mxu0 0
      %2398 = vmatpush1.bf16.msra.mxu0 0
      %2399 = vmatprep.subr.bf16.mxu0 0
      %2400 = vmatpush1.bf16.msra.mxu0 0
      %2401 = vmatprep.subr.bf16.mxu0 0
      %2402 = vmatpush1.bf16.msra.mxu0 0
      %2403 = vmatprep.subr.bf16.mxu0 0
      %2404 = vmatpush1.bf16.msra.mxu0 0
      %2405 = vmatprep.mubr.bf16.mxu0 0
      %2406 = vmatmul.mubr.bf16.gmra.mrb[0].mxu0 %v2323
      %v2407 = vpop.f32.mrb[0].mxu0
      %v2408 = vadd.f32 0.0, %v2407
      %v2409 = vpop.f32.mrb[0].mxu0
      %v2410 = vpop.f32.mrb[0].mxu0
      %v2411 = vadd.f32 0.0, %v2410
      %v2412 = vpop.f32.mrb[0].mxu0
      %2413 = vmatprep.mubr.bf16.mxu0 0
      %2414 = vmatmul.mubr.bf16.gmra.mrb[0].mxu0 %v2326
      %v2415 = vpop.f32.mrb[0].mxu0
      %v2416 = vadd.f32 0.0, %v2415
      %v2417 = vpop.f32.mrb[0].mxu0
      %v2418 = vpop.f32.mrb[0].mxu0
      %v2419 = vadd.f32 0.0, %v2418
      %v2420 = vpop.f32.mrb[0].mxu0
      %2421 = vmatprep.mubr.bf16.mxu0 0
      %2422 = vmatmul.mubr.bf16.gmra.mrb[0].mxu0 %v2329
      %v2423 = vpop.f32.mrb[0].mxu0
      %v2424 = vadd.f32 0.0, %v2423
      %v2425 = vpop.f32.mrb[0].mxu0
      %v2426 = vpop.f32.mrb[0].mxu0
      %v2427 = vadd.f32 0.0, %v2426
      %v2428 = vpop.f32.mrb[0].mxu0
      %2429 = vmatprep.mubr.bf16.mxu0 0
      %2430 = vmatmul.mubr.bf16.gmra.mrb[0].mxu0 %v2332
      %v2431 = vpop.f32.mrb[0].mxu0
      %v2432 = vadd.f32 0.0, %v2431
      %v2433 = vpop.f32.mrb[0].mxu0
      %v2434 = vpop.f32.mrb[0].mxu0
      %v2435 = vadd.f32 0.0, %v2434
      %v2436 = vpop.f32.mrb[0].mxu0
      %2437 = vmatprep.mubr.bf16.mxu0 0
      %2438 = vmatmul.mubr.bf16.gmra.mrb[0].mxu0 %v2335
      %v2439 = vpop.f32.mrb[0].mxu0
      %v2440 = vadd.f32 0.0, %v2439
      %v2441 = vpop.f32.mrb[0].mxu0
      %v2442 = vpop.f32.mrb[0].mxu0
      %v2443 = vadd.f32 0.0, %v2442
      %v2444 = vpop.f32.mrb[0].mxu0
      %2445 = vmatprep.mubr.bf16.mxu0 0
      %2446 = vmatmul.mubr.bf16.gmra.mrb[0].mxu0 %v2338
      %v2447 = vpop.f32.mrb[0].mxu0
      %v2448 = vadd.f32 0.0, %v2447
      %v2449 = vpop.f32.mrb[0].mxu0
      %v2450 = vpop.f32.mrb[0].mxu0
      %v2451 = vadd.f32 0.0, %v2450
      %v2452 = vpop.f32.mrb[0].mxu0
      %2453 = vmatprep.mubr.bf16.mxu0 0
      %2454 = vmatmul.mubr.bf16.gmra.mrb[0].mxu0 %v2341
      %v2455 = vpop.f32.mrb[0].mxu0
      %v2456 = vadd.f32 0.0, %v2455
      %v2457 = vpop.f32.mrb[0].mxu0
      %v2458 = vpop.f32.mrb[0].mxu0
      %v2459 = vadd.f32 0.0, %v2458
      %v2460 = vpop.f32.mrb[0].mxu0
      %2461 = vmatprep.mubr.bf16.mxu0 0
      %2462 = vmatmul.mubr.bf16.gmra.mrb[0].mxu0 %v2344
      %v2463 = vpop.f32.mrb[0].mxu0
      %v2464 = vadd.f32 0.0, %v2463
      %v2465 = vpop.f32.mrb[0].mxu0
      %v2466 = vpop.f32.mrb[0].mxu0
      %v2467 = vadd.f32 0.0, %v2466
      %v2468 = vpop.f32.mrb[0].mxu0
      %2469 = vmatprep.mubr.bf16.mxu0 0
      %2470 = vmatmul.mubr.bf16.gmra.mrb[0].mxu0 %v2347
      %v2471 = vpop.f32.mrb[0].mxu0
      %v2472 = vadd.f32 0.0, %v2471
      %v2473 = vpop.f32.mrb[0].mxu0
      %v2474 = vpop.f32.mrb[0].mxu0
      %v2475 = vadd.f32 0.0, %v2474
      %v2476 = vpop.f32.mrb[0].mxu0
      %2477 = vmatprep.mubr.bf16.mxu0 0
      %2478 = vmatmul.mubr.bf16.gmra.mrb[0].mxu0 %v2350
      %v2479 = vpop.f32.mrb[0].mxu0
      %v2480 = vadd.f32 0.0, %v2479
      %v2481 = vpop.f32.mrb[0].mxu0
      %v2482 = vpop.f32.mrb[0].mxu0
      %v2483 = vadd.f32 0.0, %v2482
      %v2484 = vpop.f32.mrb[0].mxu0
      %2485 = vmatprep.mubr.bf16.mxu0 0
      %2486 = vmatmul.mubr.bf16.gmra.mrb[0].mxu0 %v2353
      %v2487 = vpop.f32.mrb[0].mxu0
      %v2488 = vadd.f32 0.0, %v2487
      %v2489 = vpop.f32.mrb[0].mxu0
      %v2490 = vpop.f32.mrb[0].mxu0
      %v2491 = vadd.f32 0.0, %v2490
      %v2492 = vpop.f32.mrb[0].mxu0
      %2493 = vmatprep.mubr.bf16.mxu0 0
      %2494 = vmatmul.mubr.bf16.gmra.mrb[0].mxu0 %v2356
      %v2495 = vpop.f32.mrb[0].mxu0
      %v2496 = vadd.f32 0.0, %v2495
      %v2497 = vpop.f32.mrb[0].mxu0
      %v2498 = vpop.f32.mrb[0].mxu0
      %v2499 = vadd.f32 0.0, %v2498
      %v2500 = vpop.f32.mrb[0].mxu0
      %2501 = vmatprep.mubr.bf16.mxu0 0
      %2502 = vmatmul.mubr.bf16.gmra.mrb[0].mxu0 %v2359
      %v2503 = vpop.f32.mrb[0].mxu0
      %v2504 = vadd.f32 0.0, %v2503
      %v2505 = vpop.f32.mrb[0].mxu0
      %v2506 = vpop.f32.mrb[0].mxu0
      %v2507 = vadd.f32 0.0, %v2506
      %v2508 = vpop.f32.mrb[0].mxu0
      %2509 = vmatprep.mubr.bf16.mxu0 0
      %2510 = vmatmul.mubr.bf16.gmra.mrb[0].mxu0 %v2362
      %v2511 = vpop.f32.mrb[0].mxu0
      %v2512 = vadd.f32 0.0, %v2511
      %v2513 = vpop.f32.mrb[0].mxu0
      %v2514 = vpop.f32.mrb[0].mxu0
      %v2515 = vadd.f32 0.0, %v2514
      %v2516 = vpop.f32.mrb[0].mxu0
      %2517 = vmatprep.mubr.bf16.mxu0 0
      %2518 = vmatmul.mubr.bf16.gmra.mrb[0].mxu0 %v2365
      %v2519 = vpop.f32.mrb[0].mxu0
      %v2520 = vadd.f32 0.0, %v2519
      %v2521 = vpop.f32.mrb[0].mxu0
      %v2522 = vpop.f32.mrb[0].mxu0
      %v2523 = vadd.f32 0.0, %v2522
      %v2524 = vpop.f32.mrb[0].mxu0
      %2525 = vmatprep.mubr.bf16.mxu0 0
      %2526 = vmatmul.mubr.bf16.gmra.mrb[0].mxu0 %v2368
      %v2527 = vpop.f32.mrb[0].mxu0
      %v2528 = vadd.f32 0.0, %v2527
      %v2529 = vpop.f32.mrb[0].mxu0
      %v2530 = vpop.f32.mrb[0].mxu0
      %v2531 = vadd.f32 0.0, %v2530
      %v2532 = vpop.f32.mrb[0].mxu0
      %2533 = vdwg.mxu0
      %v2534 = vadd.f32 %v2240, %v2408
      %v2535 = vadd.f32 %v2241, %v2411
      %v2536 = vadd.f32 %v2242, %v2416
      %v2537 = vadd.f32 %v2243, %v2419
      %v2538 = vadd.f32 %v2244, %v2424
      %v2539 = vadd.f32 %v2245, %v2427
      %v2540 = vadd.f32 %v2246, %v2432
      %v2541 = vadd.f32 %v2247, %v2435
      %v2542 = vadd.f32 %v2248, %v2440
      %v2543 = vadd.f32 %v2249, %v2443
      %v2544 = vadd.f32 %v2250, %v2448
      %v2545 = vadd.f32 %v2251, %v2451
      %v2546 = vadd.f32 %v2252, %v2456
      %v2547 = vadd.f32 %v2253, %v2459
      %v2548 = vadd.f32 %v2254, %v2464
      %v2549 = vadd.f32 %v2255, %v2467
      %v2550 = vadd.f32 %v2256, %v2472
      %v2551 = vadd.f32 %v2257, %v2475
      %v2552 = vadd.f32 %v2258, %v2480
      %v2553 = vadd.f32 %v2259, %v2483
      %v2554 = vadd.f32 %v2260, %v2488
      %v2555 = vadd.f32 %v2261, %v2491
      %v2556 = vadd.f32 %v2262, %v2496
      %v2557 = vadd.f32 %v2263, %v2499
      %v2558 = vadd.f32 %v2264, %v2504
      %v2559 = vadd.f32 %v2265, %v2507
      %v2560 = vadd.f32 %v2266, %v2512
      %v2561 = vadd.f32 %v2267, %v2515
      %v2562 = vadd.f32 %v2268, %v2520
      %v2563 = vadd.f32 %v2269, %v2523
      %v2564 = vadd.f32 %v2270, %v2528
      %v2565 = vadd.f32 %v2271, %v2531
      %v2566 = vld [vmem:[#allocation2 + $0x21] sm:$0xff]
      %v2567 = vld [vmem:[#allocation2 + $0x29] sm:$0xff]
      %v2568 = vld [vmem:[#allocation2 + $0x31] sm:$0xff]
      %v2569 = vld [vmem:[#allocation2 + $0x39] sm:$0xff]
      %v2570 = vld [vmem:[#allocation2 + $0x41] sm:$0xff]
      %v2571 = vld [vmem:[#allocation2 + $0x49] sm:$0xff]
      %v2572 = vld [vmem:[#allocation2 + $0x51] sm:$0xff]
      %v2573 = vld [vmem:[#allocation2 + $0x59] sm:$0xff]
      %v2574 = vld [vmem:[#allocation2 + $0x61] sm:$0xff]
      %v2575 = vld [vmem:[#allocation2 + $0x69] sm:$0xff]
      %v2576 = vld [vmem:[#allocation2 + $0x71] sm:$0xff]
      %v2577 = vld [vmem:[#allocation2 + $0x79] sm:$0xff]
      %v2578 = vld [vmem:[#allocation2 + $0x81] sm:$0xff]
      %v2579 = vld [vmem:[#allocation2 + $0x89] sm:$0xff]
      %v2580 = vld [vmem:[#allocation2 + $0x91] sm:$0xff]
      %v2581 = vld [vmem:[#allocation2 + $0x99] sm:$0xff]
      %v2582 = vld [vmem:[#allocation2 + $0xa1] sm:$0xff]
      %v2583 = vld [vmem:[#allocation2 + $0xa9] sm:$0xff]
      %v2584 = vld [vmem:[#allocation2 + $0xb1] sm:$0xff]
      %v2585 = vld [vmem:[#allocation2 + $0xb9] sm:$0xff]
      %v2586 = vld [vmem:[#allocation2 + $0xc1] sm:$0xff]
      %v2587 = vld [vmem:[#allocation2 + $0xc9] sm:$0xff]
      %v2588 = vld [vmem:[#allocation2 + $0xd1] sm:$0xff]
      %v2589 = vld [vmem:[#allocation2 + $0xd9] sm:$0xff]
      %v2590 = vld [vmem:[#allocation2 + $0xe1] sm:$0xff]
      %v2591 = vld [vmem:[#allocation2 + $0xe9] sm:$0xff]
      %v2592 = vld [vmem:[#allocation2 + $0xf1] sm:$0xff]
      %v2593 = vld [vmem:[#allocation2 + $0xf9] sm:$0xff]
      %v2594 = vld [vmem:[#allocation2 + $0x101] sm:$0xff]
      %v2595 = vld [vmem:[#allocation2 + $0x109] sm:$0xff]
      %v2596 = vld [vmem:[#allocation2 + $0x111] sm:$0xff]
      %v2597 = vld [vmem:[#allocation2 + $0x119] sm:$0xff]
      %v2598 = vsel %vm1620, %v2566, 0.0
      %v2599 = vsel %vm1621, %v2567, 0.0
      %v2600 = vsel %vm1622, %v2568, 0.0
      %v2601 = vsel %vm1623, %v2569, 0.0
      %v2602 = vsel %vm1624, %v2570, 0.0
      %v2603 = vsel %vm1625, %v2571, 0.0
      %v2604 = vsel %vm1626, %v2572, 0.0
      %v2605 = vsel %vm1627, %v2573, 0.0
      %v2606 = vsel %vm1628, %v2574, 0.0
      %v2607 = vsel %vm1629, %v2575, 0.0
      %v2608 = vsel %vm1630, %v2576, 0.0
      %v2609 = vsel %vm1631, %v2577, 0.0
      %v2610 = vsel %vm1632, %v2578, 0.0
      %v2611 = vsel %vm1633, %v2579, 0.0
      %v2612 = vsel %vm1634, %v2580, 0.0
      %v2613 = vsel %vm1635, %v2581, 0.0
      %v2614 = vsel %vm1636, %v2582, 0.0
      %v2615 = vsel %vm1637, %v2583, 0.0
      %v2616 = vsel %vm1638, %v2584, 0.0
      %v2617 = vsel %vm1639, %v2585, 0.0
      %v2618 = vsel %vm1640, %v2586, 0.0
      %v2619 = vsel %vm1641, %v2587, 0.0
      %v2620 = vsel %vm1642, %v2588, 0.0
      %v2621 = vsel %vm1643, %v2589, 0.0
      %v2622 = vsel %vm1644, %v2590, 0.0
      %v2623 = vsel %vm1645, %v2591, 0.0
      %v2624 = vsel %vm1646, %v2592, 0.0
      %v2625 = vsel %vm1647, %v2593, 0.0
      %v2626 = vsel %vm1648, %v2594, 0.0
      %v2627 = vsel %vm1649, %v2595, 0.0
      %v2628 = vsel %vm1650, %v2596, 0.0
      %v2629 = vsel %vm1651, %v2597, 0.0
      %v2630 = vpack.c.bf16 %v2599, %v2598
      %v2631 = vpack.c.bf16 %v2601, %v2600
      %v2632 = vpack.c.bf16 %v2603, %v2602
      %v2633 = vpack.c.bf16 %v2605, %v2604
      %v2634 = vpack.c.bf16 %v2607, %v2606
      %v2635 = vpack.c.bf16 %v2609, %v2608
      %v2636 = vpack.c.bf16 %v2611, %v2610
      %v2637 = vpack.c.bf16 %v2613, %v2612
      %v2638 = vpack.c.bf16 %v2615, %v2614
      %v2639 = vpack.c.bf16 %v2617, %v2616
      %v2640 = vpack.c.bf16 %v2619, %v2618
      %v2641 = vpack.c.bf16 %v2621, %v2620
      %v2642 = vpack.c.bf16 %v2623, %v2622
      %v2643 = vpack.c.bf16 %v2625, %v2624
      %v2644 = vpack.c.bf16 %v2627, %v2626
      %v2645 = vpack.c.bf16 %v2629, %v2628
      %s2646 = scalar_lea.vmem %s3, 20
      %v2647 = vld [vmem:[%s2646] sm:$0xf]
      %v2649 = vsel %vm414, %v2630, 0
      %v2652 = vsel %vm414, %v2631, 0
      %v2655 = vsel %vm414, %v2632, 0
      %v2658 = vsel %vm414, %v2633, 0
      %v2661 = vsel %vm414, %v2634, 0
      %v2664 = vsel %vm414, %v2635, 0
      %v2667 = vsel %vm414, %v2636, 0
      %v2670 = vsel %vm414, %v2637, 0
      %v2673 = vsel %vm414, %v2638, 0
      %v2676 = vsel %vm414, %v2639, 0
      %v2679 = vsel %vm414, %v2640, 0
      %v2682 = vsel %vm414, %v2641, 0
      %v2685 = vsel %vm414, %v2642, 0
      %v2688 = vsel %vm414, %v2643, 0
      %v2691 = vsel %vm414, %v2644, 0
      %v2694 = vsel %vm414, %v2645, 0
      %v2697 = vsel %vm1179, %v2647, 0
      %2699 = vmatprep.subr.bf16.mxu0 0
      %2700 = vmatpush1.bf16.msra.mxu0 %v2697
      %2701 = vmatprep.subr.bf16.mxu0 0
      %2702 = vmatpush1.bf16.msra.mxu0 0
      %2703 = vmatprep.subr.bf16.mxu0 0
      %2704 = vmatpush1.bf16.msra.mxu0 0
      %2705 = vmatprep.subr.bf16.mxu0 0
      %2706 = vmatpush1.bf16.msra.mxu0 0
      %2707 = vmatprep.subr.bf16.mxu0 0
      %2708 = vmatpush1.bf16.msra.mxu0 0
      %2709 = vmatprep.subr.bf16.mxu0 0
      %2710 = vmatpush1.bf16.msra.mxu0 0
      %2711 = vmatprep.subr.bf16.mxu0 0
      %2712 = vmatpush1.bf16.msra.mxu0 0
      %2713 = vmatprep.subr.bf16.mxu0 0
      %2714 = vmatpush1.bf16.msra.mxu0 0
      %2715 = vmatprep.subr.bf16.mxu0 0
      %2716 = vmatpush1.bf16.msra.mxu0 0
      %2717 = vmatprep.subr.bf16.mxu0 0
      %2718 = vmatpush1.bf16.msra.mxu0 0
      %2719 = vmatprep.subr.bf16.mxu0 0
      %2720 = vmatpush1.bf16.msra.mxu0 0
      %2721 = vmatprep.subr.bf16.mxu0 0
      %2722 = vmatpush1.bf16.msra.mxu0 0
      %2723 = vmatprep.subr.bf16.mxu0 0
      %2724 = vmatpush1.bf16.msra.mxu0 0
      %2725 = vmatprep.subr.bf16.mxu0 0
      %2726 = vmatpush1.bf16.msra.mxu0 0
      %2727 = vmatprep.subr.bf16.mxu0 0
      %2728 = vmatpush1.bf16.msra.mxu0 0
      %2729 = vmatprep.subr.bf16.mxu0 0
      %2730 = vmatpush1.bf16.msra.mxu0 0
      %2731 = vmatprep.mubr.bf16.mxu0 0
      %2732 = vmatmul.mubr.bf16.gmra.mrb[0].mxu0 %v2649
      %v2733 = vpop.f32.mrb[0].mxu0
      %v2734 = vadd.f32 0.0, %v2733
      %v2735 = vpop.f32.mrb[0].mxu0
      %v2736 = vpop.f32.mrb[0].mxu0
      %v2737 = vadd.f32 0.0, %v2736
      %v2738 = vpop.f32.mrb[0].mxu0
      %2739 = vmatprep.mubr.bf16.mxu0 0
      %2740 = vmatmul.mubr.bf16.gmra.mrb[0].mxu0 %v2652
      %v2741 = vpop.f32.mrb[0].mxu0
      %v2742 = vadd.f32 0.0, %v2741
      %v2743 = vpop.f32.mrb[0].mxu0
      %v2744 = vpop.f32.mrb[0].mxu0
      %v2745 = vadd.f32 0.0, %v2744
      %v2746 = vpop.f32.mrb[0].mxu0
      %2747 = vmatprep.mubr.bf16.mxu0 0
      %2748 = vmatmul.mubr.bf16.gmra.mrb[0].mxu0 %v2655
      %v2749 = vpop.f32.mrb[0].mxu0
      %v2750 = vadd.f32 0.0, %v2749
      %v2751 = vpop.f32.mrb[0].mxu0
      %v2752 = vpop.f32.mrb[0].mxu0
      %v2753 = vadd.f32 0.0, %v2752
      %v2754 = vpop.f32.mrb[0].mxu0
      %2755 = vmatprep.mubr.bf16.mxu0 0
      %2756 = vmatmul.mubr.bf16.gmra.mrb[0].mxu0 %v2658
      %v2757 = vpop.f32.mrb[0].mxu0
      %v2758 = vadd.f32 0.0, %v2757
      %v2759 = vpop.f32.mrb[0].mxu0
      %v2760 = vpop.f32.mrb[0].mxu0
      %v2761 = vadd.f32 0.0, %v2760
      %v2762 = vpop.f32.mrb[0].mxu0
      %2763 = vmatprep.mubr.bf16.mxu0 0
      %2764 = vmatmul.mubr.bf16.gmra.mrb[0].mxu0 %v2661
      %v2765 = vpop.f32.mrb[0].mxu0
      %v2766 = vadd.f32 0.0, %v2765
      %v2767 = vpop.f32.mrb[0].mxu0
      %v2768 = vpop.f32.mrb[0].mxu0
      %v2769 = vadd.f32 0.0, %v2768
      %v2770 = vpop.f32.mrb[0].mxu0
      %2771 = vmatprep.mubr.bf16.mxu0 0
      %2772 = vmatmul.mubr.bf16.gmra.mrb[0].mxu0 %v2664
      %v2773 = vpop.f32.mrb[0].mxu0
      %v2774 = vadd.f32 0.0, %v2773
      %v2775 = vpop.f32.mrb[0].mxu0
      %v2776 = vpop.f32.mrb[0].mxu0
      %v2777 = vadd.f32 0.0, %v2776
      %v2778 = vpop.f32.mrb[0].mxu0
      %2779 = vmatprep.mubr.bf16.mxu0 0
      %2780 = vmatmul.mubr.bf16.gmra.mrb[0].mxu0 %v2667
      %v2781 = vpop.f32.mrb[0].mxu0
      %v2782 = vadd.f32 0.0, %v2781
      %v2783 = vpop.f32.mrb[0].mxu0
      %v2784 = vpop.f32.mrb[0].mxu0
      %v2785 = vadd.f32 0.0, %v2784
      %v2786 = vpop.f32.mrb[0].mxu0
      %2787 = vmatprep.mubr.bf16.mxu0 0
      %2788 = vmatmul.mubr.bf16.gmra.mrb[0].mxu0 %v2670
      %v2789 = vpop.f32.mrb[0].mxu0
      %v2790 = vadd.f32 0.0, %v2789
      %v2791 = vpop.f32.mrb[0].mxu0
      %v2792 = vpop.f32.mrb[0].mxu0
      %v2793 = vadd.f32 0.0, %v2792
      %v2794 = vpop.f32.mrb[0].mxu0
      %2795 = vmatprep.mubr.bf16.mxu0 0
      %2796 = vmatmul.mubr.bf16.gmra.mrb[0].mxu0 %v2673
      %v2797 = vpop.f32.mrb[0].mxu0
      %v2798 = vadd.f32 0.0, %v2797
      %v2799 = vpop.f32.mrb[0].mxu0
      %v2800 = vpop.f32.mrb[0].mxu0
      %v2801 = vadd.f32 0.0, %v2800
      %v2802 = vpop.f32.mrb[0].mxu0
      %2803 = vmatprep.mubr.bf16.mxu0 0
      %2804 = vmatmul.mubr.bf16.gmra.mrb[0].mxu0 %v2676
      %v2805 = vpop.f32.mrb[0].mxu0
      %v2806 = vadd.f32 0.0, %v2805
      %v2807 = vpop.f32.mrb[0].mxu0
      %v2808 = vpop.f32.mrb[0].mxu0
      %v2809 = vadd.f32 0.0, %v2808
      %v2810 = vpop.f32.mrb[0].mxu0
      %2811 = vmatprep.mubr.bf16.mxu0 0
      %2812 = vmatmul.mubr.bf16.gmra.mrb[0].mxu0 %v2679
      %v2813 = vpop.f32.mrb[0].mxu0
      %v2814 = vadd.f32 0.0, %v2813
      %v2815 = vpop.f32.mrb[0].mxu0
      %v2816 = vpop.f32.mrb[0].mxu0
      %v2817 = vadd.f32 0.0, %v2816
      %v2818 = vpop.f32.mrb[0].mxu0
      %2819 = vmatprep.mubr.bf16.mxu0 0
      %2820 = vmatmul.mubr.bf16.gmra.mrb[0].mxu0 %v2682
      %v2821 = vpop.f32.mrb[0].mxu0
      %v2822 = vadd.f32 0.0, %v2821
      %v2823 = vpop.f32.mrb[0].mxu0
      %v2824 = vpop.f32.mrb[0].mxu0
      %v2825 = vadd.f32 0.0, %v2824
      %v2826 = vpop.f32.mrb[0].mxu0
      %2827 = vmatprep.mubr.bf16.mxu0 0
      %2828 = vmatmul.mubr.bf16.gmra.mrb[0].mxu0 %v2685
      %v2829 = vpop.f32.mrb[0].mxu0
      %v2830 = vadd.f32 0.0, %v2829
      %v2831 = vpop.f32.mrb[0].mxu0
      %v2832 = vpop.f32.mrb[0].mxu0
      %v2833 = vadd.f32 0.0, %v2832
      %v2834 = vpop.f32.mrb[0].mxu0
      %2835 = vmatprep.mubr.bf16.mxu0 0
      %2836 = vmatmul.mubr.bf16.gmra.mrb[0].mxu0 %v2688
      %v2837 = vpop.f32.mrb[0].mxu0
      %v2838 = vadd.f32 0.0, %v2837
      %v2839 = vpop.f32.mrb[0].mxu0
      %v2840 = vpop.f32.mrb[0].mxu0
      %v2841 = vadd.f32 0.0, %v2840
      %v2842 = vpop.f32.mrb[0].mxu0
      %2843 = vmatprep.mubr.bf16.mxu0 0
      %2844 = vmatmul.mubr.bf16.gmra.mrb[0].mxu0 %v2691
      %v2845 = vpop.f32.mrb[0].mxu0
      %v2846 = vadd.f32 0.0, %v2845
      %v2847 = vpop.f32.mrb[0].mxu0
      %v2848 = vpop.f32.mrb[0].mxu0
      %v2849 = vadd.f32 0.0, %v2848
      %v2850 = vpop.f32.mrb[0].mxu0
      %2851 = vmatprep.mubr.bf16.mxu0 0
      %2852 = vmatmul.mubr.bf16.gmra.mrb[0].mxu0 %v2694
      %v2853 = vpop.f32.mrb[0].mxu0
      %v2854 = vadd.f32 0.0, %v2853
      %v2855 = vpop.f32.mrb[0].mxu0
      %v2856 = vpop.f32.mrb[0].mxu0
      %v2857 = vadd.f32 0.0, %v2856
      %v2858 = vpop.f32.mrb[0].mxu0
      %2859 = vdwg.mxu0
      %v2860 = vadd.f32 %v2534, %v2734
      %v2861 = vadd.f32 %v2535, %v2737
      %v2862 = vadd.f32 %v2536, %v2742
      %v2863 = vadd.f32 %v2537, %v2745
      %v2864 = vadd.f32 %v2538, %v2750
      %v2865 = vadd.f32 %v2539, %v2753
      %v2866 = vadd.f32 %v2540, %v2758
      %v2867 = vadd.f32 %v2541, %v2761
      %v2868 = vadd.f32 %v2542, %v2766
      %v2869 = vadd.f32 %v2543, %v2769
      %v2870 = vadd.f32 %v2544, %v2774
      %v2871 = vadd.f32 %v2545, %v2777
      %v2872 = vadd.f32 %v2546, %v2782
      %v2873 = vadd.f32 %v2547, %v2785
      %v2874 = vadd.f32 %v2548, %v2790
      %v2875 = vadd.f32 %v2549, %v2793
      %v2876 = vadd.f32 %v2550, %v2798
      %v2877 = vadd.f32 %v2551, %v2801
      %v2878 = vadd.f32 %v2552, %v2806
      %v2879 = vadd.f32 %v2553, %v2809
      %v2880 = vadd.f32 %v2554, %v2814
      %v2881 = vadd.f32 %v2555, %v2817
      %v2882 = vadd.f32 %v2556, %v2822
      %v2883 = vadd.f32 %v2557, %v2825
      %v2884 = vadd.f32 %v2558, %v2830
      %v2885 = vadd.f32 %v2559, %v2833
      %v2886 = vadd.f32 %v2560, %v2838
      %v2887 = vadd.f32 %v2561, %v2841
      %v2888 = vadd.f32 %v2562, %v2846
      %v2889 = vadd.f32 %v2563, %v2849
      %v2890 = vadd.f32 %v2564, %v2854
      %v2891 = vadd.f32 %v2565, %v2857
      %v2892 = vld [vmem:[#allocation2 + $0x2f] sm:$0xff]
      %v2893 = vld [vmem:[#allocation2 + $0x37] sm:$0xff]
      %v2894 = vld [vmem:[#allocation2 + $0x3f] sm:$0xff]
      %v2895 = vld [vmem:[#allocation2 + $0x47] sm:$0xff]
      %v2896 = vld [vmem:[#allocation2 + $0x4f] sm:$0xff]
      %v2897 = vld [vmem:[#allocation2 + $0x57] sm:$0xff]
      %v2898 = vld [vmem:[#allocation2 + $0x5f] sm:$0xff]
      %v2899 = vld [vmem:[#allocation2 + $0x67] sm:$0xff]
      %v2900 = vld [vmem:[#allocation2 + $0x6f] sm:$0xff]
      %v2901 = vld [vmem:[#allocation2 + $0x77] sm:$0xff]
      %v2902 = vld [vmem:[#allocation2 + $0x7f] sm:$0xff]
      %v2903 = vld [vmem:[#allocation2 + $0x87] sm:$0xff]
      %v2904 = vld [vmem:[#allocation2 + $0x8f] sm:$0xff]
      %v2905 = vld [vmem:[#allocation2 + $0x97] sm:$0xff]
      %v2906 = vld [vmem:[#allocation2 + $0x9f] sm:$0xff]
      %v2907 = vld [vmem:[#allocation2 + $0xa7] sm:$0xff]
      %v2908 = vld [vmem:[#allocation2 + $0xaf] sm:$0xff]
      %v2909 = vld [vmem:[#allocation2 + $0xb7] sm:$0xff]
      %v2910 = vld [vmem:[#allocation2 + $0xbf] sm:$0xff]
      %v2911 = vld [vmem:[#allocation2 + $0xc7] sm:$0xff]
      %v2912 = vld [vmem:[#allocation2 + $0xcf] sm:$0xff]
      %v2913 = vld [vmem:[#allocation2 + $0xd7] sm:$0xff]
      %v2914 = vld [vmem:[#allocation2 + $0xdf] sm:$0xff]
      %v2915 = vld [vmem:[#allocation2 + $0xe7] sm:$0xff]
      %v2916 = vld [vmem:[#allocation2 + $0xef] sm:$0xff]
      %v2917 = vld [vmem:[#allocation2 + $0xf7] sm:$0xff]
      %v2918 = vld [vmem:[#allocation2 + $0xff] sm:$0xff]
      %v2919 = vld [vmem:[#allocation2 + $0x107] sm:$0xff]
      %v2920 = vld [vmem:[#allocation2 + $0x10f] sm:$0xff]
      %v2921 = vld [vmem:[#allocation2 + $0x117] sm:$0xff]
      %v2922 = vld [vmem:[#allocation2 + $0x11f] sm:$0xff]
      %v2923 = vld [vmem:[#allocation2 + $0x127] sm:$0xff]
      %v2924 = vsel %vm1000, %v2892, 0.0
      %v2925 = vsel %vm1001, %v2893, 0.0
      %v2926 = vsel %vm1002, %v2894, 0.0
      %v2927 = vsel %vm1003, %v2895, 0.0
      %v2928 = vsel %vm1004, %v2896, 0.0
      %v2929 = vsel %vm1005, %v2897, 0.0
      %v2930 = vsel %vm1006, %v2898, 0.0
      %v2931 = vsel %vm1007, %v2899, 0.0
      %v2932 = vsel %vm1008, %v2900, 0.0
      %v2933 = vsel %vm1009, %v2901, 0.0
      %v2934 = vsel %vm1010, %v2902, 0.0
      %v2935 = vsel %vm1011, %v2903, 0.0
      %v2936 = vsel %vm1012, %v2904, 0.0
      %v2937 = vsel %vm1013, %v2905, 0.0
      %v2938 = vsel %vm1014, %v2906, 0.0
      %v2939 = vsel %vm1015, %v2907, 0.0
      %v2940 = vsel %vm1016, %v2908, 0.0
      %v2941 = vsel %vm1017, %v2909, 0.0
      %v2942 = vsel %vm1018, %v2910, 0.0
      %v2943 = vsel %vm1019, %v2911, 0.0
      %v2944 = vsel %vm1020, %v2912, 0.0
      %v2945 = vsel %vm1021, %v2913, 0.0
      %v2946 = vsel %vm1022, %v2914, 0.0
      %v2947 = vsel %vm1023, %v2915, 0.0
      %v2948 = vsel %vm1024, %v2916, 0.0
      %v2949 = vsel %vm1025, %v2917, 0.0
      %v2950 = vsel %vm1026, %v2918, 0.0
      %v2951 = vsel %vm1027, %v2919, 0.0
      %v2952 = vsel %vm1028, %v2920, 0.0
      %v2953 = vsel %vm1029, %v2921, 0.0
      %v2954 = vsel %vm1030, %v2922, 0.0
      %v2955 = vsel %vm1031, %v2923, 0.0
      %v2956 = vpack.c.bf16 %v2925, %v2924
      %v2957 = vpack.c.bf16 %v2927, %v2926
      %v2958 = vpack.c.bf16 %v2929, %v2928
      %v2959 = vpack.c.bf16 %v2931, %v2930
      %v2960 = vpack.c.bf16 %v2933, %v2932
      %v2961 = vpack.c.bf16 %v2935, %v2934
      %v2962 = vpack.c.bf16 %v2937, %v2936
      %v2963 = vpack.c.bf16 %v2939, %v2938
      %v2964 = vpack.c.bf16 %v2941, %v2940
      %v2965 = vpack.c.bf16 %v2943, %v2942
      %v2966 = vpack.c.bf16 %v2945, %v2944
      %v2967 = vpack.c.bf16 %v2947, %v2946
      %v2968 = vpack.c.bf16 %v2949, %v2948
      %v2969 = vpack.c.bf16 %v2951, %v2950
      %v2970 = vpack.c.bf16 %v2953, %v2952
      %v2971 = vpack.c.bf16 %v2955, %v2954
      %s2972 = scalar_lea.vmem %s3, 24
      %v2973 = vld [vmem:[%s2972] sm:$0xf]
      %v2975 = vsel %vm414, %v2956, 0
      %v2978 = vsel %vm414, %v2957, 0
      %v2981 = vsel %vm414, %v2958, 0
      %v2984 = vsel %vm414, %v2959, 0
      %v2987 = vsel %vm414, %v2960, 0
      %v2990 = vsel %vm414, %v2961, 0
      %v2993 = vsel %vm414, %v2962, 0
      %v2996 = vsel %vm414, %v2963, 0
      %v2999 = vsel %vm414, %v2964, 0
      %v3002 = vsel %vm414, %v2965, 0
      %v3005 = vsel %vm414, %v2966, 0
      %v3008 = vsel %vm414, %v2967, 0
      %v3011 = vsel %vm414, %v2968, 0
      %v3014 = vsel %vm414, %v2969, 0
      %v3017 = vsel %vm414, %v2970, 0
      %v3020 = vsel %vm414, %v2971, 0
      %v3023 = vsel %vm1179, %v2973, 0
      %3025 = vmatprep.subr.bf16.mxu0 0
      %3026 = vmatpush1.bf16.msra.mxu0 %v3023
      %3027 = vmatprep.subr.bf16.mxu0 0
      %3028 = vmatpush1.bf16.msra.mxu0 0
      %3029 = vmatprep.subr.bf16.mxu0 0
      %3030 = vmatpush1.bf16.msra.mxu0 0
      %3031 = vmatprep.subr.bf16.mxu0 0
      %3032 = vmatpush1.bf16.msra.mxu0 0
      %3033 = vmatprep.subr.bf16.mxu0 0
      %3034 = vmatpush1.bf16.msra.mxu0 0
      %3035 = vmatprep.subr.bf16.mxu0 0
      %3036 = vmatpush1.bf16.msra.mxu0 0
      %3037 = vmatprep.subr.bf16.mxu0 0
      %3038 = vmatpush1.bf16.msra.mxu0 0
      %3039 = vmatprep.subr.bf16.mxu0 0
      %3040 = vmatpush1.bf16.msra.mxu0 0
      %3041 = vmatprep.subr.bf16.mxu0 0
      %3042 = vmatpush1.bf16.msra.mxu0 0
      %3043 = vmatprep.subr.bf16.mxu0 0
      %3044 = vmatpush1.bf16.msra.mxu0 0
      %3045 = vmatprep.subr.bf16.mxu0 0
      %3046 = vmatpush1.bf16.msra.mxu0 0
      %3047 = vmatprep.subr.bf16.mxu0 0
      %3048 = vmatpush1.bf16.msra.mxu0 0
      %3049 = vmatprep.subr.bf16.mxu0 0
      %3050 = vmatpush1.bf16.msra.mxu0 0
      %3051 = vmatprep.subr.bf16.mxu0 0
      %3052 = vmatpush1.bf16.msra.mxu0 0
      %3053 = vmatprep.subr.bf16.mxu0 0
      %3054 = vmatpush1.bf16.msra.mxu0 0
      %3055 = vmatprep.subr.bf16.mxu0 0
      %3056 = vmatpush1.bf16.msra.mxu0 0
      %3057 = vmatprep.mubr.bf16.mxu0 0
      %3058 = vmatmul.mubr.bf16.gmra.mrb[0].mxu0 %v2975
      %v3059 = vpop.f32.mrb[0].mxu0
      %v3060 = vadd.f32 0.0, %v3059
      %v3061 = vpop.f32.mrb[0].mxu0
      %v3062 = vpop.f32.mrb[0].mxu0
      %v3063 = vadd.f32 0.0, %v3062
      %v3064 = vpop.f32.mrb[0].mxu0
      %3065 = vmatprep.mubr.bf16.mxu0 0
      %3066 = vmatmul.mubr.bf16.gmra.mrb[0].mxu0 %v2978
      %v3067 = vpop.f32.mrb[0].mxu0
      %v3068 = vadd.f32 0.0, %v3067
      %v3069 = vpop.f32.mrb[0].mxu0
      %v3070 = vpop.f32.mrb[0].mxu0
      %v3071 = vadd.f32 0.0, %v3070
      %v3072 = vpop.f32.mrb[0].mxu0
      %3073 = vmatprep.mubr.bf16.mxu0 0
      %3074 = vmatmul.mubr.bf16.gmra.mrb[0].mxu0 %v2981
      %v3075 = vpop.f32.mrb[0].mxu0
      %v3076 = vadd.f32 0.0, %v3075
      %v3077 = vpop.f32.mrb[0].mxu0
      %v3078 = vpop.f32.mrb[0].mxu0
      %v3079 = vadd.f32 0.0, %v3078
      %v3080 = vpop.f32.mrb[0].mxu0
      %3081 = vmatprep.mubr.bf16.mxu0 0
      %3082 = vmatmul.mubr.bf16.gmra.mrb[0].mxu0 %v2984
      %v3083 = vpop.f32.mrb[0].mxu0
      %v3084 = vadd.f32 0.0, %v3083
      %v3085 = vpop.f32.mrb[0].mxu0
      %v3086 = vpop.f32.mrb[0].mxu0
      %v3087 = vadd.f32 0.0, %v3086
      %v3088 = vpop.f32.mrb[0].mxu0
      %3089 = vmatprep.mubr.bf16.mxu0 0
      %3090 = vmatmul.mubr.bf16.gmra.mrb[0].mxu0 %v2987
      %v3091 = vpop.f32.mrb[0].mxu0
      %v3092 = vadd.f32 0.0, %v3091
      %v3093 = vpop.f32.mrb[0].mxu0
      %v3094 = vpop.f32.mrb[0].mxu0
      %v3095 = vadd.f32 0.0, %v3094
      %v3096 = vpop.f32.mrb[0].mxu0
      %3097 = vmatprep.mubr.bf16.mxu0 0
      %3098 = vmatmul.mubr.bf16.gmra.mrb[0].mxu0 %v2990
      %v3099 = vpop.f32.mrb[0].mxu0
      %v3100 = vadd.f32 0.0, %v3099
      %v3101 = vpop.f32.mrb[0].mxu0
      %v3102 = vpop.f32.mrb[0].mxu0
      %v3103 = vadd.f32 0.0, %v3102
      %v3104 = vpop.f32.mrb[0].mxu0
      %3105 = vmatprep.mubr.bf16.mxu0 0
      %3106 = vmatmul.mubr.bf16.gmra.mrb[0].mxu0 %v2993
      %v3107 = vpop.f32.mrb[0].mxu0
      %v3108 = vadd.f32 0.0, %v3107
      %v3109 = vpop.f32.mrb[0].mxu0
      %v3110 = vpop.f32.mrb[0].mxu0
      %v3111 = vadd.f32 0.0, %v3110
      %v3112 = vpop.f32.mrb[0].mxu0
      %3113 = vmatprep.mubr.bf16.mxu0 0
      %3114 = vmatmul.mubr.bf16.gmra.mrb[0].mxu0 %v2996
      %v3115 = vpop.f32.mrb[0].mxu0
      %v3116 = vadd.f32 0.0, %v3115
      %v3117 = vpop.f32.mrb[0].mxu0
      %v3118 = vpop.f32.mrb[0].mxu0
      %v3119 = vadd.f32 0.0, %v3118
      %v3120 = vpop.f32.mrb[0].mxu0
      %3121 = vmatprep.mubr.bf16.mxu0 0
      %3122 = vmatmul.mubr.bf16.gmra.mrb[0].mxu0 %v2999
      %v3123 = vpop.f32.mrb[0].mxu0
      %v3124 = vadd.f32 0.0, %v3123
      %v3125 = vpop.f32.mrb[0].mxu0
      %v3126 = vpop.f32.mrb[0].mxu0
      %v3127 = vadd.f32 0.0, %v3126
      %v3128 = vpop.f32.mrb[0].mxu0
      %3129 = vmatprep.mubr.bf16.mxu0 0
      %3130 = vmatmul.mubr.bf16.gmra.mrb[0].mxu0 %v3002
      %v3131 = vpop.f32.mrb[0].mxu0
      %v3132 = vadd.f32 0.0, %v3131
      %v3133 = vpop.f32.mrb[0].mxu0
      %v3134 = vpop.f32.mrb[0].mxu0
      %v3135 = vadd.f32 0.0, %v3134
      %v3136 = vpop.f32.mrb[0].mxu0
      %3137 = vmatprep.mubr.bf16.mxu0 0
      %3138 = vmatmul.mubr.bf16.gmra.mrb[0].mxu0 %v3005
      %v3139 = vpop.f32.mrb[0].mxu0
      %v3140 = vadd.f32 0.0, %v3139
      %v3141 = vpop.f32.mrb[0].mxu0
      %v3142 = vpop.f32.mrb[0].mxu0
      %v3143 = vadd.f32 0.0, %v3142
      %v3144 = vpop.f32.mrb[0].mxu0
      %3145 = vmatprep.mubr.bf16.mxu0 0
      %3146 = vmatmul.mubr.bf16.gmra.mrb[0].mxu0 %v3008
      %v3147 = vpop.f32.mrb[0].mxu0
      %v3148 = vadd.f32 0.0, %v3147
      %v3149 = vpop.f32.mrb[0].mxu0
      %v3150 = vpop.f32.mrb[0].mxu0
      %v3151 = vadd.f32 0.0, %v3150
      %v3152 = vpop.f32.mrb[0].mxu0
      %3153 = vmatprep.mubr.bf16.mxu0 0
      %3154 = vmatmul.mubr.bf16.gmra.mrb[0].mxu0 %v3011
      %v3155 = vpop.f32.mrb[0].mxu0
      %v3156 = vadd.f32 0.0, %v3155
      %v3157 = vpop.f32.mrb[0].mxu0
      %v3158 = vpop.f32.mrb[0].mxu0
      %v3159 = vadd.f32 0.0, %v3158
      %v3160 = vpop.f32.mrb[0].mxu0
      %3161 = vmatprep.mubr.bf16.mxu0 0
      %3162 = vmatmul.mubr.bf16.gmra.mrb[0].mxu0 %v3014
      %v3163 = vpop.f32.mrb[0].mxu0
      %v3164 = vadd.f32 0.0, %v3163
      %v3165 = vpop.f32.mrb[0].mxu0
      %v3166 = vpop.f32.mrb[0].mxu0
      %v3167 = vadd.f32 0.0, %v3166
      %v3168 = vpop.f32.mrb[0].mxu0
      %3169 = vmatprep.mubr.bf16.mxu0 0
      %3170 = vmatmul.mubr.bf16.gmra.mrb[0].mxu0 %v3017
      %v3171 = vpop.f32.mrb[0].mxu0
      %v3172 = vadd.f32 0.0, %v3171
      %v3173 = vpop.f32.mrb[0].mxu0
      %v3174 = vpop.f32.mrb[0].mxu0
      %v3175 = vadd.f32 0.0, %v3174
      %v3176 = vpop.f32.mrb[0].mxu0
      %3177 = vmatprep.mubr.bf16.mxu0 0
      %3178 = vmatmul.mubr.bf16.gmra.mrb[0].mxu0 %v3020
      %v3179 = vpop.f32.mrb[0].mxu0
      %v3180 = vadd.f32 0.0, %v3179
      %v3181 = vpop.f32.mrb[0].mxu0
      %v3182 = vpop.f32.mrb[0].mxu0
      %v3183 = vadd.f32 0.0, %v3182
      %v3184 = vpop.f32.mrb[0].mxu0
      %3185 = vdwg.mxu0
      %v3186 = vadd.f32 %v2860, %v3060
      %v3187 = vadd.f32 %v2861, %v3063
      %v3188 = vadd.f32 %v2862, %v3068
      %v3189 = vadd.f32 %v2863, %v3071
      %v3190 = vadd.f32 %v2864, %v3076
      %v3191 = vadd.f32 %v2865, %v3079
      %v3192 = vadd.f32 %v2866, %v3084
      %v3193 = vadd.f32 %v2867, %v3087
      %v3194 = vadd.f32 %v2868, %v3092
      %v3195 = vadd.f32 %v2869, %v3095
      %v3196 = vadd.f32 %v2870, %v3100
      %v3197 = vadd.f32 %v2871, %v3103
      %v3198 = vadd.f32 %v2872, %v3108
      %v3199 = vadd.f32 %v2873, %v3111
      %v3200 = vadd.f32 %v2874, %v3116
      %v3201 = vadd.f32 %v2875, %v3119
      %v3202 = vadd.f32 %v2876, %v3124
      %v3203 = vadd.f32 %v2877, %v3127
      %v3204 = vadd.f32 %v2878, %v3132
      %v3205 = vadd.f32 %v2879, %v3135
      %v3206 = vadd.f32 %v2880, %v3140
      %v3207 = vadd.f32 %v2881, %v3143
      %v3208 = vadd.f32 %v2882, %v3148
      %v3209 = vadd.f32 %v2883, %v3151
      %v3210 = vadd.f32 %v2884, %v3156
      %v3211 = vadd.f32 %v2885, %v3159
      %v3212 = vadd.f32 %v2886, %v3164
      %v3213 = vadd.f32 %v2887, %v3167
      %v3214 = vadd.f32 %v2888, %v3172
      %v3215 = vadd.f32 %v2889, %v3175
      %v3216 = vadd.f32 %v2890, %v3180
      %v3217 = vadd.f32 %v2891, %v3183
      %v3218 = vld [vmem:[#allocation2 + $0x30] sm:$0xff]
      %v3219 = vld [vmem:[#allocation2 + $0x38] sm:$0xff]
      %v3220 = vld [vmem:[#allocation2 + $0x40] sm:$0xff]
      %v3221 = vld [vmem:[#allocation2 + $0x48] sm:$0xff]
      %v3222 = vld [vmem:[#allocation2 + $0x50] sm:$0xff]
      %v3223 = vld [vmem:[#allocation2 + $0x58] sm:$0xff]
      %v3224 = vld [vmem:[#allocation2 + $0x60] sm:$0xff]
      %v3225 = vld [vmem:[#allocation2 + $0x68] sm:$0xff]
      %v3226 = vld [vmem:[#allocation2 + $0x70] sm:$0xff]
      %v3227 = vld [vmem:[#allocation2 + $0x78] sm:$0xff]
      %v3228 = vld [vmem:[#allocation2 + $0x80] sm:$0xff]
      %v3229 = vld [vmem:[#allocation2 + $0x88] sm:$0xff]
      %v3230 = vld [vmem:[#allocation2 + $0x90] sm:$0xff]
      %v3231 = vld [vmem:[#allocation2 + $0x98] sm:$0xff]
      %v3232 = vld [vmem:[#allocation2 + $0xa0] sm:$0xff]
      %v3233 = vld [vmem:[#allocation2 + $0xa8] sm:$0xff]
      %v3234 = vld [vmem:[#allocation2 + $0xb0] sm:$0xff]
      %v3235 = vld [vmem:[#allocation2 + $0xb8] sm:$0xff]
      %v3236 = vld [vmem:[#allocation2 + $0xc0] sm:$0xff]
      %v3237 = vld [vmem:[#allocation2 + $0xc8] sm:$0xff]
      %v3238 = vld [vmem:[#allocation2 + $0xd0] sm:$0xff]
      %v3239 = vld [vmem:[#allocation2 + $0xd8] sm:$0xff]
      %v3240 = vld [vmem:[#allocation2 + $0xe0] sm:$0xff]
      %v3241 = vld [vmem:[#allocation2 + $0xe8] sm:$0xff]
      %v3242 = vld [vmem:[#allocation2 + $0xf0] sm:$0xff]
      %v3243 = vld [vmem:[#allocation2 + $0xf8] sm:$0xff]
      %v3244 = vld [vmem:[#allocation2 + $0x100] sm:$0xff]
      %v3245 = vld [vmem:[#allocation2 + $0x108] sm:$0xff]
      %v3246 = vld [vmem:[#allocation2 + $0x110] sm:$0xff]
      %v3247 = vld [vmem:[#allocation2 + $0x118] sm:$0xff]
      %v3248 = vld [vmem:[#allocation2 + $0x120] sm:$0xff]
      %v3249 = vld [vmem:[#allocation2 + $0x128] sm:$0xff]
      %v3250 = vpack.c.bf16 %v3219, %v3218
      %v3251 = vpack.c.bf16 %v3221, %v3220
      %v3252 = vpack.c.bf16 %v3223, %v3222
      %v3253 = vpack.c.bf16 %v3225, %v3224
      %v3254 = vpack.c.bf16 %v3227, %v3226
      %v3255 = vpack.c.bf16 %v3229, %v3228
      %v3256 = vpack.c.bf16 %v3231, %v3230
      %v3257 = vpack.c.bf16 %v3233, %v3232
      %v3258 = vpack.c.bf16 %v3235, %v3234
      %v3259 = vpack.c.bf16 %v3237, %v3236
      %v3260 = vpack.c.bf16 %v3239, %v3238
      %v3261 = vpack.c.bf16 %v3241, %v3240
      %v3262 = vpack.c.bf16 %v3243, %v3242
      %v3263 = vpack.c.bf16 %v3245, %v3244
      %v3264 = vpack.c.bf16 %v3247, %v3246
      %v3265 = vpack.c.bf16 %v3249, %v3248
      %s3266 = scalar_lea.vmem %s3, 28
      %v3267 = vld [vmem:[%s3266] sm:$0xf]
      %v3269 = vsel %vm414, %v3250, 0
      %v3272 = vsel %vm414, %v3251, 0
      %v3275 = vsel %vm414, %v3252, 0
      %v3278 = vsel %vm414, %v3253, 0
      %v3281 = vsel %vm414, %v3254, 0
      %v3284 = vsel %vm414, %v3255, 0
      %v3287 = vsel %vm414, %v3256, 0
      %v3290 = vsel %vm414, %v3257, 0
      %v3293 = vsel %vm414, %v3258, 0
      %v3296 = vsel %vm414, %v3259, 0
      %v3299 = vsel %vm414, %v3260, 0
      %v3302 = vsel %vm414, %v3261, 0
      %v3305 = vsel %vm414, %v3262, 0
      %v3308 = vsel %vm414, %v3263, 0
      %v3311 = vsel %vm414, %v3264, 0
      %v3314 = vsel %vm414, %v3265, 0
      %v3317 = vsel %vm1179, %v3267, 0
      %3319 = vmatprep.subr.bf16.mxu0 0
      %3320 = vmatpush1.bf16.msra.mxu0 %v3317
      %3321 = vmatprep.subr.bf16.mxu0 0
      %3322 = vmatpush1.bf16.msra.mxu0 0
      %3323 = vmatprep.subr.bf16.mxu0 0
      %3324 = vmatpush1.bf16.msra.mxu0 0
      %3325 = vmatprep.subr.bf16.mxu0 0
      %3326 = vmatpush1.bf16.msra.mxu0 0
      %3327 = vmatprep.subr.bf16.mxu0 0
      %3328 = vmatpush1.bf16.msra.mxu0 0
      %3329 = vmatprep.subr.bf16.mxu0 0
      %3330 = vmatpush1.bf16.msra.mxu0 0
      %3331 = vmatprep.subr.bf16.mxu0 0
      %3332 = vmatpush1.bf16.msra.mxu0 0
      %3333 = vmatprep.subr.bf16.mxu0 0
      %3334 = vmatpush1.bf16.msra.mxu0 0
      %3335 = vmatprep.subr.bf16.mxu0 0
      %3336 = vmatpush1.bf16.msra.mxu0 0
      %3337 = vmatprep.subr.bf16.mxu0 0
      %3338 = vmatpush1.bf16.msra.mxu0 0
      %3339 = vmatprep.subr.bf16.mxu0 0
      %3340 = vmatpush1.bf16.msra.mxu0 0
      %3341 = vmatprep.subr.bf16.mxu0 0
      %3342 = vmatpush1.bf16.msra.mxu0 0
      %3343 = vmatprep.subr.bf16.mxu0 0
      %3344 = vmatpush1.bf16.msra.mxu0 0
      %3345 = vmatprep.subr.bf16.mxu0 0
      %3346 = vmatpush1.bf16.msra.mxu0 0
      %3347 = vmatprep.subr.bf16.mxu0 0
      %3348 = vmatpush1.bf16.msra.mxu0 0
      %3349 = vmatprep.subr.bf16.mxu0 0
      %3350 = vmatpush1.bf16.msra.mxu0 0
      %3351 = vmatprep.mubr.bf16.mxu0 0
      %3352 = vmatmul.mubr.bf16.gmra.mrb[0].mxu0 %v3269
      %v3353 = vpop.f32.mrb[0].mxu0
      %v3354 = vadd.f32 0.0, %v3353
      %v3355 = vpop.f32.mrb[0].mxu0
      %v3356 = vpop.f32.mrb[0].mxu0
      %v3357 = vadd.f32 0.0, %v3356
      %v3358 = vpop.f32.mrb[0].mxu0
      %3359 = vmatprep.mubr.bf16.mxu0 0
      %3360 = vmatmul.mubr.bf16.gmra.mrb[0].mxu0 %v3272
      %v3361 = vpop.f32.mrb[0].mxu0
      %v3362 = vadd.f32 0.0, %v3361
      %v3363 = vpop.f32.mrb[0].mxu0
      %v3364 = vpop.f32.mrb[0].mxu0
      %v3365 = vadd.f32 0.0, %v3364
      %v3366 = vpop.f32.mrb[0].mxu0
      %3367 = vmatprep.mubr.bf16.mxu0 0
      %3368 = vmatmul.mubr.bf16.gmra.mrb[0].mxu0 %v3275
      %v3369 = vpop.f32.mrb[0].mxu0
      %v3370 = vadd.f32 0.0, %v3369
      %v3371 = vpop.f32.mrb[0].mxu0
      %v3372 = vpop.f32.mrb[0].mxu0
      %v3373 = vadd.f32 0.0, %v3372
      %v3374 = vpop.f32.mrb[0].mxu0
      %3375 = vmatprep.mubr.bf16.mxu0 0
      %3376 = vmatmul.mubr.bf16.gmra.mrb[0].mxu0 %v3278
      %v3377 = vpop.f32.mrb[0].mxu0
      %v3378 = vadd.f32 0.0, %v3377
      %v3379 = vpop.f32.mrb[0].mxu0
      %v3380 = vpop.f32.mrb[0].mxu0
      %v3381 = vadd.f32 0.0, %v3380
      %v3382 = vpop.f32.mrb[0].mxu0
      %3383 = vmatprep.mubr.bf16.mxu0 0
      %3384 = vmatmul.mubr.bf16.gmra.mrb[0].mxu0 %v3281
      %v3385 = vpop.f32.mrb[0].mxu0
      %v3386 = vadd.f32 0.0, %v3385
      %v3387 = vpop.f32.mrb[0].mxu0
      %v3388 = vpop.f32.mrb[0].mxu0
      %v3389 = vadd.f32 0.0, %v3388
      %v3390 = vpop.f32.mrb[0].mxu0
      %3391 = vmatprep.mubr.bf16.mxu0 0
      %3392 = vmatmul.mubr.bf16.gmra.mrb[0].mxu0 %v3284
      %v3393 = vpop.f32.mrb[0].mxu0
      %v3394 = vadd.f32 0.0, %v3393
      %v3395 = vpop.f32.mrb[0].mxu0
      %v3396 = vpop.f32.mrb[0].mxu0
      %v3397 = vadd.f32 0.0, %v3396
      %v3398 = vpop.f32.mrb[0].mxu0
      %3399 = vmatprep.mubr.bf16.mxu0 0
      %3400 = vmatmul.mubr.bf16.gmra.mrb[0].mxu0 %v3287
      %v3401 = vpop.f32.mrb[0].mxu0
      %v3402 = vadd.f32 0.0, %v3401
      %v3403 = vpop.f32.mrb[0].mxu0
      %v3404 = vpop.f32.mrb[0].mxu0
      %v3405 = vadd.f32 0.0, %v3404
      %v3406 = vpop.f32.mrb[0].mxu0
      %3407 = vmatprep.mubr.bf16.mxu0 0
      %3408 = vmatmul.mubr.bf16.gmra.mrb[0].mxu0 %v3290
      %v3409 = vpop.f32.mrb[0].mxu0
      %v3410 = vadd.f32 0.0, %v3409
      %v3411 = vpop.f32.mrb[0].mxu0
      %v3412 = vpop.f32.mrb[0].mxu0
      %v3413 = vadd.f32 0.0, %v3412
      %v3414 = vpop.f32.mrb[0].mxu0
      %3415 = vmatprep.mubr.bf16.mxu0 0
      %3416 = vmatmul.mubr.bf16.gmra.mrb[0].mxu0 %v3293
      %v3417 = vpop.f32.mrb[0].mxu0
      %v3418 = vadd.f32 0.0, %v3417
      %v3419 = vpop.f32.mrb[0].mxu0
      %v3420 = vpop.f32.mrb[0].mxu0
      %v3421 = vadd.f32 0.0, %v3420
      %v3422 = vpop.f32.mrb[0].mxu0
      %3423 = vmatprep.mubr.bf16.mxu0 0
      %3424 = vmatmul.mubr.bf16.gmra.mrb[0].mxu0 %v3296
      %v3425 = vpop.f32.mrb[0].mxu0
      %v3426 = vadd.f32 0.0, %v3425
      %v3427 = vpop.f32.mrb[0].mxu0
      %v3428 = vpop.f32.mrb[0].mxu0
      %v3429 = vadd.f32 0.0, %v3428
      %v3430 = vpop.f32.mrb[0].mxu0
      %3431 = vmatprep.mubr.bf16.mxu0 0
      %3432 = vmatmul.mubr.bf16.gmra.mrb[0].mxu0 %v3299
      %v3433 = vpop.f32.mrb[0].mxu0
      %v3434 = vadd.f32 0.0, %v3433
      %v3435 = vpop.f32.mrb[0].mxu0
      %v3436 = vpop.f32.mrb[0].mxu0
      %v3437 = vadd.f32 0.0, %v3436
      %v3438 = vpop.f32.mrb[0].mxu0
      %3439 = vmatprep.mubr.bf16.mxu0 0
      %3440 = vmatmul.mubr.bf16.gmra.mrb[0].mxu0 %v3302
      %v3441 = vpop.f32.mrb[0].mxu0
      %v3442 = vadd.f32 0.0, %v3441
      %v3443 = vpop.f32.mrb[0].mxu0
      %v3444 = vpop.f32.mrb[0].mxu0
      %v3445 = vadd.f32 0.0, %v3444
      %v3446 = vpop.f32.mrb[0].mxu0
      %3447 = vmatprep.mubr.bf16.mxu0 0
      %3448 = vmatmul.mubr.bf16.gmra.mrb[0].mxu0 %v3305
      %v3449 = vpop.f32.mrb[0].mxu0
      %v3450 = vadd.f32 0.0, %v3449
      %v3451 = vpop.f32.mrb[0].mxu0
      %v3452 = vpop.f32.mrb[0].mxu0
      %v3453 = vadd.f32 0.0, %v3452
      %v3454 = vpop.f32.mrb[0].mxu0
      %3455 = vmatprep.mubr.bf16.mxu0 0
      %3456 = vmatmul.mubr.bf16.gmra.mrb[0].mxu0 %v3308
      %v3457 = vpop.f32.mrb[0].mxu0
      %v3458 = vadd.f32 0.0, %v3457
      %v3459 = vpop.f32.mrb[0].mxu0
      %v3460 = vpop.f32.mrb[0].mxu0
      %v3461 = vadd.f32 0.0, %v3460
      %v3462 = vpop.f32.mrb[0].mxu0
      %3463 = vmatprep.mubr.bf16.mxu0 0
      %3464 = vmatmul.mubr.bf16.gmra.mrb[0].mxu0 %v3311
      %v3465 = vpop.f32.mrb[0].mxu0
      %v3466 = vadd.f32 0.0, %v3465
      %v3467 = vpop.f32.mrb[0].mxu0
      %v3468 = vpop.f32.mrb[0].mxu0
      %v3469 = vadd.f32 0.0, %v3468
      %v3470 = vpop.f32.mrb[0].mxu0
      %3471 = vmatprep.mubr.bf16.mxu0 0
      %3472 = vmatmul.mubr.bf16.gmra.mrb[0].mxu0 %v3314
      %v3473 = vpop.f32.mrb[0].mxu0
      %v3474 = vadd.f32 0.0, %v3473
      %v3475 = vpop.f32.mrb[0].mxu0
      %v3476 = vpop.f32.mrb[0].mxu0
      %v3477 = vadd.f32 0.0, %v3476
      %v3478 = vpop.f32.mrb[0].mxu0
      %3479 = vdwg.mxu0
      %v3480 = vadd.f32 %v3186, %v3354
      %v3481 = vadd.f32 %v3187, %v3357
      %v3482 = vadd.f32 %v3188, %v3362
      %v3483 = vadd.f32 %v3189, %v3365
      %v3484 = vadd.f32 %v3190, %v3370
      %v3485 = vadd.f32 %v3191, %v3373
      %v3486 = vadd.f32 %v3192, %v3378
      %v3487 = vadd.f32 %v3193, %v3381
      %v3488 = vadd.f32 %v3194, %v3386
      %v3489 = vadd.f32 %v3195, %v3389
      %v3490 = vadd.f32 %v3196, %v3394
      %v3491 = vadd.f32 %v3197, %v3397
      %v3492 = vadd.f32 %v3198, %v3402
      %v3493 = vadd.f32 %v3199, %v3405
      %v3494 = vadd.f32 %v3200, %v3410
      %v3495 = vadd.f32 %v3201, %v3413
      %v3496 = vadd.f32 %v3202, %v3418
      %v3497 = vadd.f32 %v3203, %v3421
      %v3498 = vadd.f32 %v3204, %v3426
      %v3499 = vadd.f32 %v3205, %v3429
      %v3500 = vadd.f32 %v3206, %v3434
      %v3501 = vadd.f32 %v3207, %v3437
      %v3502 = vadd.f32 %v3208, %v3442
      %v3503 = vadd.f32 %v3209, %v3445
      %v3504 = vadd.f32 %v3210, %v3450
      %v3505 = vadd.f32 %v3211, %v3453
      %v3506 = vadd.f32 %v3212, %v3458
      %v3507 = vadd.f32 %v3213, %v3461
      %v3508 = vadd.f32 %v3214, %v3466
      %v3509 = vadd.f32 %v3215, %v3469
      %v3510 = vadd.f32 %v3216, %v3474
      %v3511 = vadd.f32 %v3217, %v3477
      %v3512 = vld [vmem:[#allocation2 + $0x31] sm:$0xff]
      %v3513 = vld [vmem:[#allocation2 + $0x39] sm:$0xff]
      %v3514 = vld [vmem:[#allocation2 + $0x41] sm:$0xff]
      %v3515 = vld [vmem:[#allocation2 + $0x49] sm:$0xff]
      %v3516 = vld [vmem:[#allocation2 + $0x51] sm:$0xff]
      %v3517 = vld [vmem:[#allocation2 + $0x59] sm:$0xff]
      %v3518 = vld [vmem:[#allocation2 + $0x61] sm:$0xff]
      %v3519 = vld [vmem:[#allocation2 + $0x69] sm:$0xff]
      %v3520 = vld [vmem:[#allocation2 + $0x71] sm:$0xff]
      %v3521 = vld [vmem:[#allocation2 + $0x79] sm:$0xff]
      %v3522 = vld [vmem:[#allocation2 + $0x81] sm:$0xff]
      %v3523 = vld [vmem:[#allocation2 + $0x89] sm:$0xff]
      %v3524 = vld [vmem:[#allocation2 + $0x91] sm:$0xff]
      %v3525 = vld [vmem:[#allocation2 + $0x99] sm:$0xff]
      %v3526 = vld [vmem:[#allocation2 + $0xa1] sm:$0xff]
      %v3527 = vld [vmem:[#allocation2 + $0xa9] sm:$0xff]
      %v3528 = vld [vmem:[#allocation2 + $0xb1] sm:$0xff]
      %v3529 = vld [vmem:[#allocation2 + $0xb9] sm:$0xff]
      %v3530 = vld [vmem:[#allocation2 + $0xc1] sm:$0xff]
      %v3531 = vld [vmem:[#allocation2 + $0xc9] sm:$0xff]
      %v3532 = vld [vmem:[#allocation2 + $0xd1] sm:$0xff]
      %v3533 = vld [vmem:[#allocation2 + $0xd9] sm:$0xff]
      %v3534 = vld [vmem:[#allocation2 + $0xe1] sm:$0xff]
      %v3535 = vld [vmem:[#allocation2 + $0xe9] sm:$0xff]
      %v3536 = vld [vmem:[#allocation2 + $0xf1] sm:$0xff]
      %v3537 = vld [vmem:[#allocation2 + $0xf9] sm:$0xff]
      %v3538 = vld [vmem:[#allocation2 + $0x101] sm:$0xff]
      %v3539 = vld [vmem:[#allocation2 + $0x109] sm:$0xff]
      %v3540 = vld [vmem:[#allocation2 + $0x111] sm:$0xff]
      %v3541 = vld [vmem:[#allocation2 + $0x119] sm:$0xff]
      %v3542 = vld [vmem:[#allocation2 + $0x121] sm:$0xff]
      %v3543 = vld [vmem:[#allocation2 + $0x129] sm:$0xff]
      %v3544 = vsel %vm1620, %v3512, 0.0
      %v3545 = vsel %vm1621, %v3513, 0.0
      %v3546 = vsel %vm1622, %v3514, 0.0
      %v3547 = vsel %vm1623, %v3515, 0.0
      %v3548 = vsel %vm1624, %v3516, 0.0
      %v3549 = vsel %vm1625, %v3517, 0.0
      %v3550 = vsel %vm1626, %v3518, 0.0
      %v3551 = vsel %vm1627, %v3519, 0.0
      %v3552 = vsel %vm1628, %v3520, 0.0
      %v3553 = vsel %vm1629, %v3521, 0.0
      %v3554 = vsel %vm1630, %v3522, 0.0
      %v3555 = vsel %vm1631, %v3523, 0.0
      %v3556 = vsel %vm1632, %v3524, 0.0
      %v3557 = vsel %vm1633, %v3525, 0.0
      %v3558 = vsel %vm1634, %v3526, 0.0
      %v3559 = vsel %vm1635, %v3527, 0.0
      %v3560 = vsel %vm1636, %v3528, 0.0
      %v3561 = vsel %vm1637, %v3529, 0.0
      %v3562 = vsel %vm1638, %v3530, 0.0
      %v3563 = vsel %vm1639, %v3531, 0.0
      %v3564 = vsel %vm1640, %v3532, 0.0
      %v3565 = vsel %vm1641, %v3533, 0.0
      %v3566 = vsel %vm1642, %v3534, 0.0
      %v3567 = vsel %vm1643, %v3535, 0.0
      %v3568 = vsel %vm1644, %v3536, 0.0
      %v3569 = vsel %vm1645, %v3537, 0.0
      %v3570 = vsel %vm1646, %v3538, 0.0
      %v3571 = vsel %vm1647, %v3539, 0.0
      %v3572 = vsel %vm1648, %v3540, 0.0
      %v3573 = vsel %vm1649, %v3541, 0.0
      %v3574 = vsel %vm1650, %v3542, 0.0
      %v3575 = vsel %vm1651, %v3543, 0.0
      %v3576 = vpack.c.bf16 %v3545, %v3544
      %v3577 = vpack.c.bf16 %v3547, %v3546
      %v3578 = vpack.c.bf16 %v3549, %v3548
      %v3579 = vpack.c.bf16 %v3551, %v3550
      %v3580 = vpack.c.bf16 %v3553, %v3552
      %v3581 = vpack.c.bf16 %v3555, %v3554
      %v3582 = vpack.c.bf16 %v3557, %v3556
      %v3583 = vpack.c.bf16 %v3559, %v3558
      %v3584 = vpack.c.bf16 %v3561, %v3560
      %v3585 = vpack.c.bf16 %v3563, %v3562
      %v3586 = vpack.c.bf16 %v3565, %v3564
      %v3587 = vpack.c.bf16 %v3567, %v3566
      %v3588 = vpack.c.bf16 %v3569, %v3568
      %v3589 = vpack.c.bf16 %v3571, %v3570
      %v3590 = vpack.c.bf16 %v3573, %v3572
      %v3591 = vpack.c.bf16 %v3575, %v3574
      %s3592 = scalar_lea.vmem %s3, 32
      %v3593 = vld [vmem:[%s3592] sm:$0xf]
      %v3595 = vsel %vm414, %v3576, 0
      %v3598 = vsel %vm414, %v3577, 0
      %v3601 = vsel %vm414, %v3578, 0
      %v3604 = vsel %vm414, %v3579, 0
      %v3607 = vsel %vm414, %v3580, 0
      %v3610 = vsel %vm414, %v3581, 0
      %v3613 = vsel %vm414, %v3582, 0
      %v3616 = vsel %vm414, %v3583, 0
      %v3619 = vsel %vm414, %v3584, 0
      %v3622 = vsel %vm414, %v3585, 0
      %v3625 = vsel %vm414, %v3586, 0
      %v3628 = vsel %vm414, %v3587, 0
      %v3631 = vsel %vm414, %v3588, 0
      %v3634 = vsel %vm414, %v3589, 0
      %v3637 = vsel %vm414, %v3590, 0
      %v3640 = vsel %vm414, %v3591, 0
      %v3643 = vsel %vm1179, %v3593, 0
      %3645 = vmatprep.subr.bf16.mxu0 0
      %3646 = vmatpush1.bf16.msra.mxu0 %v3643
      %3647 = vmatprep.subr.bf16.mxu0 0
      %3648 = vmatpush1.bf16.msra.mxu0 0
      %3649 = vmatprep.subr.bf16.mxu0 0
      %3650 = vmatpush1.bf16.msra.mxu0 0
      %3651 = vmatprep.subr.bf16.mxu0 0
      %3652 = vmatpush1.bf16.msra.mxu0 0
      %3653 = vmatprep.subr.bf16.mxu0 0
      %3654 = vmatpush1.bf16.msra.mxu0 0
      %3655 = vmatprep.subr.bf16.mxu0 0
      %3656 = vmatpush1.bf16.msra.mxu0 0
      %3657 = vmatprep.subr.bf16.mxu0 0
      %3658 = vmatpush1.bf16.msra.mxu0 0
      %3659 = vmatprep.subr.bf16.mxu0 0
      %3660 = vmatpush1.bf16.msra.mxu0 0
      %3661 = vmatprep.subr.bf16.mxu0 0
      %3662 = vmatpush1.bf16.msra.mxu0 0
      %3663 = vmatprep.subr.bf16.mxu0 0
      %3664 = vmatpush1.bf16.msra.mxu0 0
      %3665 = vmatprep.subr.bf16.mxu0 0
      %3666 = vmatpush1.bf16.msra.mxu0 0
      %3667 = vmatprep.subr.bf16.mxu0 0
      %3668 = vmatpush1.bf16.msra.mxu0 0
      %3669 = vmatprep.subr.bf16.mxu0 0
      %3670 = vmatpush1.bf16.msra.mxu0 0
      %3671 = vmatprep.subr.bf16.mxu0 0
      %3672 = vmatpush1.bf16.msra.mxu0 0
      %3673 = vmatprep.subr.bf16.mxu0 0
      %3674 = vmatpush1.bf16.msra.mxu0 0
      %3675 = vmatprep.subr.bf16.mxu0 0
      %3676 = vmatpush1.bf16.msra.mxu0 0
      %3677 = vmatprep.mubr.bf16.mxu0 0
      %3678 = vmatmul.mubr.bf16.gmra.mrb[0].mxu0 %v3595
      %v3679 = vpop.f32.mrb[0].mxu0
      %v3680 = vadd.f32 0.0, %v3679
      %v3681 = vpop.f32.mrb[0].mxu0
      %v3682 = vpop.f32.mrb[0].mxu0
      %v3683 = vadd.f32 0.0, %v3682
      %v3684 = vpop.f32.mrb[0].mxu0
      %3685 = vmatprep.mubr.bf16.mxu0 0
      %3686 = vmatmul.mubr.bf16.gmra.mrb[0].mxu0 %v3598
      %v3687 = vpop.f32.mrb[0].mxu0
      %v3688 = vadd.f32 0.0, %v3687
      %v3689 = vpop.f32.mrb[0].mxu0
      %v3690 = vpop.f32.mrb[0].mxu0
      %v3691 = vadd.f32 0.0, %v3690
      %v3692 = vpop.f32.mrb[0].mxu0
      %3693 = vmatprep.mubr.bf16.mxu0 0
      %3694 = vmatmul.mubr.bf16.gmra.mrb[0].mxu0 %v3601
      %v3695 = vpop.f32.mrb[0].mxu0
      %v3696 = vadd.f32 0.0, %v3695
      %v3697 = vpop.f32.mrb[0].mxu0
      %v3698 = vpop.f32.mrb[0].mxu0
      %v3699 = vadd.f32 0.0, %v3698
      %v3700 = vpop.f32.mrb[0].mxu0
      %3701 = vmatprep.mubr.bf16.mxu0 0
      %3702 = vmatmul.mubr.bf16.gmra.mrb[0].mxu0 %v3604
      %v3703 = vpop.f32.mrb[0].mxu0
      %v3704 = vadd.f32 0.0, %v3703
      %v3705 = vpop.f32.mrb[0].mxu0
      %v3706 = vpop.f32.mrb[0].mxu0
      %v3707 = vadd.f32 0.0, %v3706
      %v3708 = vpop.f32.mrb[0].mxu0
      %3709 = vmatprep.mubr.bf16.mxu0 0
      %3710 = vmatmul.mubr.bf16.gmra.mrb[0].mxu0 %v3607
      %v3711 = vpop.f32.mrb[0].mxu0
      %v3712 = vadd.f32 0.0, %v3711
      %v3713 = vpop.f32.mrb[0].mxu0
      %v3714 = vpop.f32.mrb[0].mxu0
      %v3715 = vadd.f32 0.0, %v3714
      %v3716 = vpop.f32.mrb[0].mxu0
      %3717 = vmatprep.mubr.bf16.mxu0 0
      %3718 = vmatmul.mubr.bf16.gmra.mrb[0].mxu0 %v3610
      %v3719 = vpop.f32.mrb[0].mxu0
      %v3720 = vadd.f32 0.0, %v3719
      %v3721 = vpop.f32.mrb[0].mxu0
      %v3722 = vpop.f32.mrb[0].mxu0
      %v3723 = vadd.f32 0.0, %v3722
      %v3724 = vpop.f32.mrb[0].mxu0
      %3725 = vmatprep.mubr.bf16.mxu0 0
      %3726 = vmatmul.mubr.bf16.gmra.mrb[0].mxu0 %v3613
      %v3727 = vpop.f32.mrb[0].mxu0
      %v3728 = vadd.f32 0.0, %v3727
      %v3729 = vpop.f32.mrb[0].mxu0
      %v3730 = vpop.f32.mrb[0].mxu0
      %v3731 = vadd.f32 0.0, %v3730
      %v3732 = vpop.f32.mrb[0].mxu0
      %3733 = vmatprep.mubr.bf16.mxu0 0
      %3734 = vmatmul.mubr.bf16.gmra.mrb[0].mxu0 %v3616
      %v3735 = vpop.f32.mrb[0].mxu0
      %v3736 = vadd.f32 0.0, %v3735
      %v3737 = vpop.f32.mrb[0].mxu0
      %v3738 = vpop.f32.mrb[0].mxu0
      %v3739 = vadd.f32 0.0, %v3738
      %v3740 = vpop.f32.mrb[0].mxu0
      %3741 = vmatprep.mubr.bf16.mxu0 0
      %3742 = vmatmul.mubr.bf16.gmra.mrb[0].mxu0 %v3619
      %v3743 = vpop.f32.mrb[0].mxu0
      %v3744 = vadd.f32 0.0, %v3743
      %v3745 = vpop.f32.mrb[0].mxu0
      %v3746 = vpop.f32.mrb[0].mxu0
      %v3747 = vadd.f32 0.0, %v3746
      %v3748 = vpop.f32.mrb[0].mxu0
      %3749 = vmatprep.mubr.bf16.mxu0 0
      %3750 = vmatmul.mubr.bf16.gmra.mrb[0].mxu0 %v3622
      %v3751 = vpop.f32.mrb[0].mxu0
      %v3752 = vadd.f32 0.0, %v3751
      %v3753 = vpop.f32.mrb[0].mxu0
      %v3754 = vpop.f32.mrb[0].mxu0
      %v3755 = vadd.f32 0.0, %v3754
      %v3756 = vpop.f32.mrb[0].mxu0
      %3757 = vmatprep.mubr.bf16.mxu0 0
      %3758 = vmatmul.mubr.bf16.gmra.mrb[0].mxu0 %v3625
      %v3759 = vpop.f32.mrb[0].mxu0
      %v3760 = vadd.f32 0.0, %v3759
      %v3761 = vpop.f32.mrb[0].mxu0
      %v3762 = vpop.f32.mrb[0].mxu0
      %v3763 = vadd.f32 0.0, %v3762
      %v3764 = vpop.f32.mrb[0].mxu0
      %3765 = vmatprep.mubr.bf16.mxu0 0
      %3766 = vmatmul.mubr.bf16.gmra.mrb[0].mxu0 %v3628
      %v3767 = vpop.f32.mrb[0].mxu0
      %v3768 = vadd.f32 0.0, %v3767
      %v3769 = vpop.f32.mrb[0].mxu0
      %v3770 = vpop.f32.mrb[0].mxu0
      %v3771 = vadd.f32 0.0, %v3770
      %v3772 = vpop.f32.mrb[0].mxu0
      %3773 = vmatprep.mubr.bf16.mxu0 0
      %3774 = vmatmul.mubr.bf16.gmra.mrb[0].mxu0 %v3631
      %v3775 = vpop.f32.mrb[0].mxu0
      %v3776 = vadd.f32 0.0, %v3775
      %v3777 = vpop.f32.mrb[0].mxu0
      %v3778 = vpop.f32.mrb[0].mxu0
      %v3779 = vadd.f32 0.0, %v3778
      %v3780 = vpop.f32.mrb[0].mxu0
      %3781 = vmatprep.mubr.bf16.mxu0 0
      %3782 = vmatmul.mubr.bf16.gmra.mrb[0].mxu0 %v3634
      %v3783 = vpop.f32.mrb[0].mxu0
      %v3784 = vadd.f32 0.0, %v3783
      %v3785 = vpop.f32.mrb[0].mxu0
      %v3786 = vpop.f32.mrb[0].mxu0
      %v3787 = vadd.f32 0.0, %v3786
      %v3788 = vpop.f32.mrb[0].mxu0
      %3789 = vmatprep.mubr.bf16.mxu0 0
      %3790 = vmatmul.mubr.bf16.gmra.mrb[0].mxu0 %v3637
      %v3791 = vpop.f32.mrb[0].mxu0
      %v3792 = vadd.f32 0.0, %v3791
      %v3793 = vpop.f32.mrb[0].mxu0
      %v3794 = vpop.f32.mrb[0].mxu0
      %v3795 = vadd.f32 0.0, %v3794
      %v3796 = vpop.f32.mrb[0].mxu0
      %3797 = vmatprep.mubr.bf16.mxu0 0
      %3798 = vmatmul.mubr.bf16.gmra.mrb[0].mxu0 %v3640
      %v3799 = vpop.f32.mrb[0].mxu0
      %v3800 = vadd.f32 0.0, %v3799
      %v3801 = vpop.f32.mrb[0].mxu0
      %v3802 = vpop.f32.mrb[0].mxu0
      %v3803 = vadd.f32 0.0, %v3802
      %v3804 = vpop.f32.mrb[0].mxu0
      %3805 = vdwg.mxu0
      %v3806 = vadd.f32 %v3480, %v3680
      %v3807 = vadd.f32 %v3481, %v3683
      %v3808 = vadd.f32 %v3482, %v3688
      %v3809 = vadd.f32 %v3483, %v3691
      %v3810 = vadd.f32 %v3484, %v3696
      %v3811 = vadd.f32 %v3485, %v3699
      %v3812 = vadd.f32 %v3486, %v3704
      %v3813 = vadd.f32 %v3487, %v3707
      %v3814 = vadd.f32 %v3488, %v3712
      %v3815 = vadd.f32 %v3489, %v3715
      %v3816 = vadd.f32 %v3490, %v3720
      %v3817 = vadd.f32 %v3491, %v3723
      %v3818 = vadd.f32 %v3492, %v3728
      %v3819 = vadd.f32 %v3493, %v3731
      %v3820 = vadd.f32 %v3494, %v3736
      %v3821 = vadd.f32 %v3495, %v3739
      %v3822 = vadd.f32 %v3496, %v3744
      %v3823 = vadd.f32 %v3497, %v3747
      %v3824 = vadd.f32 %v3498, %v3752
      %v3825 = vadd.f32 %v3499, %v3755
      %v3826 = vadd.f32 %v3500, %v3760
      %v3827 = vadd.f32 %v3501, %v3763
      %v3828 = vadd.f32 %v3502, %v3768
      %v3829 = vadd.f32 %v3503, %v3771
      %v3830 = vadd.f32 %v3504, %v3776
      %v3831 = vadd.f32 %v3505, %v3779
      %v3832 = vadd.f32 %v3506, %v3784
      %v3833 = vadd.f32 %v3507, %v3787
      %v3834 = vadd.f32 %v3508, %v3792
      %v3835 = vadd.f32 %v3509, %v3795
      %v3836 = vadd.f32 %v3510, %v3800
      %v3837 = vadd.f32 %v3511, %v3803
      %v3838 = vpack.c.bf16 %v3807, %v3806
      %v3839 = vpack.c.bf16 %v3809, %v3808
      %v3840 = vpack.c.bf16 %v3811, %v3810
      %v3841 = vpack.c.bf16 %v3813, %v3812
      %v3842 = vpack.c.bf16 %v3815, %v3814
      %v3843 = vpack.c.bf16 %v3817, %v3816
      %v3844 = vpack.c.bf16 %v3819, %v3818
      %v3845 = vpack.c.bf16 %v3821, %v3820
      %v3846 = vpack.c.bf16 %v3823, %v3822
      %v3847 = vpack.c.bf16 %v3825, %v3824
      %v3848 = vpack.c.bf16 %v3827, %v3826
      %v3849 = vpack.c.bf16 %v3829, %v3828
      %v3850 = vpack.c.bf16 %v3831, %v3830
      %v3851 = vpack.c.bf16 %v3833, %v3832
      %v3852 = vpack.c.bf16 %v3835, %v3834
      %v3853 = vpack.c.bf16 %v3837, %v3836
      %v3870 = vunpack.c.l.b16 %v3838
      %v3871 = vunpack.c.h.b16 %v3838
      %v3872 = vunpack.c.l.b16 %v3839
      %v3873 = vunpack.c.h.b16 %v3839
      %v3874 = vunpack.c.l.b16 %v3840
      %v3875 = vunpack.c.h.b16 %v3840
      %v3876 = vunpack.c.l.b16 %v3841
      %v3877 = vunpack.c.h.b16 %v3841
      %v3878 = vunpack.c.l.b16 %v3842
      %v3879 = vunpack.c.h.b16 %v3842
      %v3880 = vunpack.c.l.b16 %v3843
      %v3881 = vunpack.c.h.b16 %v3843
      %v3882 = vunpack.c.l.b16 %v3844
      %v3883 = vunpack.c.h.b16 %v3844
      %v3884 = vunpack.c.l.b16 %v3845
      %v3885 = vunpack.c.h.b16 %v3845
      %v3886 = vunpack.c.l.b16 %v3846
      %v3887 = vunpack.c.h.b16 %v3846
      %v3888 = vunpack.c.l.b16 %v3847
      %v3889 = vunpack.c.h.b16 %v3847
      %v3890 = vunpack.c.l.b16 %v3848
      %v3891 = vunpack.c.h.b16 %v3848
      %v3892 = vunpack.c.l.b16 %v3849
      %v3893 = vunpack.c.h.b16 %v3849
      %v3894 = vunpack.c.l.b16 %v3850
      %v3895 = vunpack.c.h.b16 %v3850
      %v3896 = vunpack.c.l.b16 %v3851
      %v3897 = vunpack.c.h.b16 %v3851
      %v3898 = vunpack.c.l.b16 %v3852
      %v3899 = vunpack.c.h.b16 %v3852
      %v3900 = vunpack.c.l.b16 %v3853
      %v3901 = vunpack.c.h.b16 %v3853
      %v3902 = vpack.c.b16 %v3870, %v3870
      %v3903 = vpack.c.b16 %v3871, %v3871
      %v3904 = vpack.c.b16 %v3872, %v3872
      %v3905 = vpack.c.b16 %v3873, %v3873
      %v3906 = vpack.c.b16 %v3874, %v3874
      %v3907 = vpack.c.b16 %v3875, %v3875
      %v3908 = vpack.c.b16 %v3876, %v3876
      %v3909 = vpack.c.b16 %v3877, %v3877
      %v3910 = vpack.c.b16 %v3878, %v3878
      %v3911 = vpack.c.b16 %v3879, %v3879
      %v3912 = vpack.c.b16 %v3880, %v3880
      %v3913 = vpack.c.b16 %v3881, %v3881
      %v3914 = vpack.c.b16 %v3882, %v3882
      %v3915 = vpack.c.b16 %v3883, %v3883
      %v3916 = vpack.c.b16 %v3884, %v3884
      %v3917 = vpack.c.b16 %v3885, %v3885
      %v3918 = vpack.c.b16 %v3886, %v3886
      %v3919 = vpack.c.b16 %v3887, %v3887
      %v3920 = vpack.c.b16 %v3888, %v3888
      %v3921 = vpack.c.b16 %v3889, %v3889
      %v3922 = vpack.c.b16 %v3890, %v3890
      %v3923 = vpack.c.b16 %v3891, %v3891
      %v3924 = vpack.c.b16 %v3892, %v3892
      %v3925 = vpack.c.b16 %v3893, %v3893
      %v3926 = vpack.c.b16 %v3894, %v3894
      %v3927 = vpack.c.b16 %v3895, %v3895
      %v3928 = vpack.c.b16 %v3896, %v3896
      %v3929 = vpack.c.b16 %v3897, %v3897
      %v3930 = vpack.c.b16 %v3898, %v3898
      %v3931 = vpack.c.b16 %v3899, %v3899
      %v3932 = vpack.c.b16 %v3900, %v3900
      %v3933 = vpack.c.b16 %v3901, %v3901
      %vm3966 = vcmask 60416
      %3967 = vst.msk [vmem:[%s233] sm:$0xf] %vm3966, %v3902
      %3968 = vst.msk [vmem:[%s233 + $0x4] sm:$0xf] %vm3966, %v3903
      %3969 = vst.msk [vmem:[%s233 + $0x8] sm:$0xf] %vm3966, %v3904
      %3970 = vst.msk [vmem:[%s233 + $0xc] sm:$0xf] %vm3966, %v3905
      %3971 = vst.msk [vmem:[%s233 + $0x10] sm:$0xf] %vm3966, %v3906
      %3972 = vst.msk [vmem:[%s233 + $0x14] sm:$0xf] %vm3966, %v3907
      %3973 = vst.msk [vmem:[%s233 + $0x18] sm:$0xf] %vm3966, %v3908
      %3974 = vst.msk [vmem:[%s233 + $0x1c] sm:$0xf] %vm3966, %v3909
      %3975 = vst.msk [vmem:[%s233 + $0x20] sm:$0xf] %vm3966, %v3910
      %3976 = vst.msk [vmem:[%s233 + $0x24] sm:$0xf] %vm3966, %v3911
      %3977 = vst.msk [vmem:[%s233 + $0x28] sm:$0xf] %vm3966, %v3912
      %3978 = vst.msk [vmem:[%s233 + $0x2c] sm:$0xf] %vm3966, %v3913
      %3979 = vst.msk [vmem:[%s233 + $0x30] sm:$0xf] %vm3966, %v3914
      %3980 = vst.msk [vmem:[%s233 + $0x34] sm:$0xf] %vm3966, %v3915
      %3981 = vst.msk [vmem:[%s233 + $0x38] sm:$0xf] %vm3966, %v3916
      %3982 = vst.msk [vmem:[%s233 + $0x3c] sm:$0xf] %vm3966, %v3917
      %3983 = vst.msk [vmem:[%s233 + $0x40] sm:$0xf] %vm3966, %v3918
      %3984 = vst.msk [vmem:[%s233 + $0x44] sm:$0xf] %vm3966, %v3919
      %3985 = vst.msk [vmem:[%s233 + $0x48] sm:$0xf] %vm3966, %v3920
      %3986 = vst.msk [vmem:[%s233 + $0x4c] sm:$0xf] %vm3966, %v3921
      %3987 = vst.msk [vmem:[%s233 + $0x50] sm:$0xf] %vm3966, %v3922
      %3988 = vst.msk [vmem:[%s233 + $0x54] sm:$0xf] %vm3966, %v3923
      %3989 = vst.msk [vmem:[%s233 + $0x58] sm:$0xf] %vm3966, %v3924
      %3990 = vst.msk [vmem:[%s233 + $0x5c] sm:$0xf] %vm3966, %v3925
      %3991 = vst.msk [vmem:[%s233 + $0x60] sm:$0xf] %vm3966, %v3926
      %3992 = vst.msk [vmem:[%s233 + $0x64] sm:$0xf] %vm3966, %v3927
      %3993 = vst.msk [vmem:[%s233 + $0x68] sm:$0xf] %vm3966, %v3928
      %3994 = vst.msk [vmem:[%s233 + $0x6c] sm:$0xf] %vm3966, %v3929
      %3995 = vst.msk [vmem:[%s233 + $0x70] sm:$0xf] %vm3966, %v3930
      %3996 = vst.msk [vmem:[%s233 + $0x74] sm:$0xf] %vm3966, %v3931
      %3997 = vst.msk [vmem:[%s233 + $0x78] sm:$0xf] %vm3966, %v3932
      %3998 = vst.msk [vmem:[%s233 + $0x7c] sm:$0xf] %vm3966, %v3933
      %v3999 = vsel %vm414, %v3806, 0.0
      %v4000 = vsel %vm414, %v3807, 0.0
      %v4001 = vadd.f32 %v3999, %v4000
      %v4002 = vsel %vm414, %v3808, 0.0
      %v4003 = vadd.f32 %v4001, %v4002
      %v4004 = vsel %vm414, %v3809, 0.0
      %v4005 = vadd.f32 %v4003, %v4004
      %v4006 = vsel %vm414, %v3810, 0.0
      %v4007 = vadd.f32 %v4005, %v4006
      %v4008 = vsel %vm414, %v3811, 0.0
      %v4009 = vadd.f32 %v4007, %v4008
      %v4010 = vsel %vm414, %v3812, 0.0
      %v4011 = vadd.f32 %v4009, %v4010
      %v4012 = vsel %vm414, %v3813, 0.0
      %v4013 = vadd.f32 %v4011, %v4012
      %v4014 = vsel %vm414, %v3814, 0.0
      %v4015 = vadd.f32 %v4013, %v4014
      %v4016 = vsel %vm414, %v3815, 0.0
      %v4017 = vadd.f32 %v4015, %v4016
      %v4018 = vsel %vm414, %v3816, 0.0
      %v4019 = vadd.f32 %v4017, %v4018
      %v4020 = vsel %vm414, %v3817, 0.0
      %v4021 = vadd.f32 %v4019, %v4020
      %v4022 = vsel %vm414, %v3818, 0.0
      %v4023 = vadd.f32 %v4021, %v4022
      %v4024 = vsel %vm414, %v3819, 0.0
      %v4025 = vadd.f32 %v4023, %v4024
      %v4026 = vsel %vm414, %v3820, 0.0
      %v4027 = vadd.f32 %v4025, %v4026
      %v4028 = vsel %vm414, %v3821, 0.0
      %v4029 = vadd.f32 %v4027, %v4028
      %v4030 = vsel %vm414, %v3822, 0.0
      %v4031 = vadd.f32 %v4029, %v4030
      %v4032 = vsel %vm414, %v3823, 0.0
      %v4033 = vadd.f32 %v4031, %v4032
      %v4034 = vsel %vm414, %v3824, 0.0
      %v4035 = vadd.f32 %v4033, %v4034
      %v4036 = vsel %vm414, %v3825, 0.0
      %v4037 = vadd.f32 %v4035, %v4036
      %v4038 = vsel %vm414, %v3826, 0.0
      %v4039 = vadd.f32 %v4037, %v4038
      %v4040 = vsel %vm414, %v3827, 0.0
      %v4041 = vadd.f32 %v4039, %v4040
      %v4042 = vsel %vm414, %v3828, 0.0
      %v4043 = vadd.f32 %v4041, %v4042
      %v4044 = vsel %vm414, %v3829, 0.0
      %v4045 = vadd.f32 %v4043, %v4044
      %v4046 = vsel %vm414, %v3830, 0.0
      %v4047 = vadd.f32 %v4045, %v4046
      %v4048 = vsel %vm414, %v3831, 0.0
      %v4049 = vadd.f32 %v4047, %v4048
      %v4050 = vsel %vm414, %v3832, 0.0
      %v4051 = vadd.f32 %v4049, %v4050
      %v4052 = vsel %vm414, %v3833, 0.0
      %v4053 = vadd.f32 %v4051, %v4052
      %v4054 = vsel %vm414, %v3834, 0.0
      %v4055 = vadd.f32 %v4053, %v4054
      %v4056 = vsel %vm414, %v3835, 0.0
      %v4057 = vadd.f32 %v4055, %v4056
      %v4058 = vsel %vm414, %v3836, 0.0
      %v4059 = vadd.f32 %v4057, %v4058
      %v4060 = vsel %vm414, %v3837, 0.0
      %v4061 = vadd.f32 %v4059, %v4060
      %v4062 = vrot.slane %v4061, 4
      %v4063 = vadd.f32 %v4061, %v4062
      %v4064 = vrot.slane %v4063, 2
      %v4065 = vadd.f32 %v4063, %v4064
      %v4066 = vrot.slane %v4065, 1
      %v4067 = vadd.f32 %v4065, %v4066
      %vm4068 = vcmask 57344
      %4069 = vst.msk [vmem:[%s238] sm:$0x1] %vm4068, %v4067
      %v4070 = vmul.f32 %v3806, %v3806
      %v4071 = vmul.f32 %v3807, %v3807
      %v4072 = vmul.f32 %v3808, %v3808
      %v4073 = vmul.f32 %v3809, %v3809
      %v4074 = vmul.f32 %v3810, %v3810
      %v4075 = vmul.f32 %v3811, %v3811
      %v4076 = vmul.f32 %v3812, %v3812
      %v4077 = vmul.f32 %v3813, %v3813
      %v4078 = vmul.f32 %v3814, %v3814
      %v4079 = vmul.f32 %v3815, %v3815
      %v4080 = vmul.f32 %v3816, %v3816
      %v4081 = vmul.f32 %v3817, %v3817
      %v4082 = vmul.f32 %v3818, %v3818
      %v4083 = vmul.f32 %v3819, %v3819
      %v4084 = vmul.f32 %v3820, %v3820
      %v4085 = vmul.f32 %v3821, %v3821
      %v4086 = vmul.f32 %v3822, %v3822
      %v4087 = vmul.f32 %v3823, %v3823
      %v4088 = vmul.f32 %v3824, %v3824
      %v4089 = vmul.f32 %v3825, %v3825
      %v4090 = vmul.f32 %v3826, %v3826
      %v4091 = vmul.f32 %v3827, %v3827
      %v4092 = vmul.f32 %v3828, %v3828
      %v4093 = vmul.f32 %v3829, %v3829
      %v4094 = vmul.f32 %v3830, %v3830
      %v4095 = vmul.f32 %v3831, %v3831
      %v4096 = vmul.f32 %v3832, %v3832
      %v4097 = vmul.f32 %v3833, %v3833
      %v4098 = vmul.f32 %v3834, %v3834
      %v4099 = vmul.f32 %v3835, %v3835
      %v4100 = vmul.f32 %v3836, %v3836
      %v4101 = vmul.f32 %v3837, %v3837
      %v4102 = vsel %vm414, %v4070, 0.0
      %v4103 = vsel %vm414, %v4071, 0.0
      %v4104 = vadd.f32 %v4102, %v4103
      %v4105 = vsel %vm414, %v4072, 0.0
      %v4106 = vadd.f32 %v4104, %v4105
      %v4107 = vsel %vm414, %v4073, 0.0
      %v4108 = vadd.f32 %v4106, %v4107
      %v4109 = vsel %vm414, %v4074, 0.0
      %v4110 = vadd.f32 %v4108, %v4109
      %v4111 = vsel %vm414, %v4075, 0.0
      %v4112 = vadd.f32 %v4110, %v4111
      %v4113 = vsel %vm414, %v4076, 0.0
      %v4114 = vadd.f32 %v4112, %v4113
      %v4115 = vsel %vm414, %v4077, 0.0
      %v4116 = vadd.f32 %v4114, %v4115
      %v4117 = vsel %vm414, %v4078, 0.0
      %v4118 = vadd.f32 %v4116, %v4117
      %v4119 = vsel %vm414, %v4079, 0.0
      %v4120 = vadd.f32 %v4118, %v4119
      %v4121 = vsel %vm414, %v4080, 0.0
      %v4122 = vadd.f32 %v4120, %v4121
      %v4123 = vsel %vm414, %v4081, 0.0
      %v4124 = vadd.f32 %v4122, %v4123
      %v4125 = vsel %vm414, %v4082, 0.0
      %v4126 = vadd.f32 %v4124, %v4125
      %v4127 = vsel %vm414, %v4083, 0.0
      %v4128 = vadd.f32 %v4126, %v4127
      %v4129 = vsel %vm414, %v4084, 0.0
      %v4130 = vadd.f32 %v4128, %v4129
      %v4131 = vsel %vm414, %v4085, 0.0
      %v4132 = vadd.f32 %v4130, %v4131
      %v4133 = vsel %vm414, %v4086, 0.0
      %v4134 = vadd.f32 %v4132, %v4133
      %v4135 = vsel %vm414, %v4087, 0.0
      %v4136 = vadd.f32 %v4134, %v4135
      %v4137 = vsel %vm414, %v4088, 0.0
      %v4138 = vadd.f32 %v4136, %v4137
      %v4139 = vsel %vm414, %v4089, 0.0
      %v4140 = vadd.f32 %v4138, %v4139
      %v4141 = vsel %vm414, %v4090, 0.0
      %v4142 = vadd.f32 %v4140, %v4141
      %v4143 = vsel %vm414, %v4091, 0.0
      %v4144 = vadd.f32 %v4142, %v4143
      %v4145 = vsel %vm414, %v4092, 0.0
      %v4146 = vadd.f32 %v4144, %v4145
      %v4147 = vsel %vm414, %v4093, 0.0
      %v4148 = vadd.f32 %v4146, %v4147
      %v4149 = vsel %vm414, %v4094, 0.0
      %v4150 = vadd.f32 %v4148, %v4149
      %v4151 = vsel %vm414, %v4095, 0.0
      %v4152 = vadd.f32 %v4150, %v4151
      %v4153 = vsel %vm414, %v4096, 0.0
      %v4154 = vadd.f32 %v4152, %v4153
      %v4155 = vsel %vm414, %v4097, 0.0
      %v4156 = vadd.f32 %v4154, %v4155
      %v4157 = vsel %vm414, %v4098, 0.0
      %v4158 = vadd.f32 %v4156, %v4157
      %v4159 = vsel %vm414, %v4099, 0.0
      %v4160 = vadd.f32 %v4158, %v4159
      %v4161 = vsel %vm414, %v4100, 0.0
      %v4162 = vadd.f32 %v4160, %v4161
      %v4163 = vsel %vm414, %v4101, 0.0
      %v4164 = vadd.f32 %v4162, %v4163
      %v4165 = vrot.slane %v4164, 4
      %v4166 = vadd.f32 %v4164, %v4165
      %v4167 = vrot.slane %v4166, 2
      %v4168 = vadd.f32 %v4166, %v4167
      %v4169 = vrot.slane %v4168, 1
      %v4170 = vadd.f32 %v4168, %v4169
      %4171 = vst.msk [vmem:[%s238 + $0x1] sm:$0x1] %vm4068, %v4170
      %s4172 = smul.u32 32, %s17
      %p4173 = scmp.lt.s32.totalorder %s4172, 63
      %s4174 = scalar_select %p4173, %s4172, 63
      %s4175 = smul.addr %s4174, 4
      %s4176 = scalar_lea.vmem %s4, %s4175
      %p4177 = scmp.lt.s32.totalorder %s17, 1
      %s4178 = scalar_select %p4177, %s17, 1
      %s4179 = smul.addr %s4178, 2
      %s4180 = scalar_lea.vmem %s5, %s4179
      // Predicated region
      $region37: #{vol_bottleneck.5} parent=35 // pred_check
        %p4181 = pneg %p124
      $region38: #{vol_bottleneck.5} parent=35 // pred_check_branch
        %4183 = sbr.rel (%p4181) target = $region40
      $region39: #{vol_bottleneck.5} parent=35 // pred_region
        %s4184 = smul.u32 32, %s17
      $region40: #{vol_bottleneck.5} parent=35 // pred_fallthru
        _
      // Predicated region
      $region41: #{vol_bottleneck.5} parent=35 // pred_check
        %p4185 = pneg %p150
      $region42: #{vol_bottleneck.5} parent=35 // pred_check_branch
        %4187 = sbr.rel (%p4185) target = $region44
      $region43: #{vol_bottleneck.5} parent=35 // pred_region
        _
      $region44: #{vol_bottleneck.5} parent=35 // pred_fallthru
        _
    $region36: #{vol_bottleneck.5} parent=5 // pred_fallthru
      _
    %p4188 = scmp.le.s32.totalorder 2, %s12
    // Predicated region
    $region45: #{vol_bottleneck.5} parent=5 // pred_check
      %p4189 = pneg %p4188
    $region46: #{vol_bottleneck.5} parent=5 // pred_check_branch
      %4191 = sbr.rel (%p4189) target = $region48
    $region47: #{vol_bottleneck.5} parent=5 // pred_region
      %s4192 = ssub.s32 %s12, 2
      // Predicated region
      $region49: #{vol_bottleneck.5} parent=47 // pred_check
        %p4193 = pneg %p130
      $region50: #{vol_bottleneck.5} parent=47 // pred_check_branch
        %4195 = sbr.rel (%p4193) target = $region52
      $region51: #{vol_bottleneck.5} parent=47 // pred_region
        %s4196 = smul.u32 32, %s18
        %p4197 = scmp.lt.s32.totalorder %s4196, 63
        %s4198 = scalar_select %p4197, %s4196, 63
        %s4199 = smul.addr %s4198, 4
        %s4200 = scalar_lea.vmem %s4, %s4199
      $region52: #{vol_bottleneck.5} parent=47 // pred_fallthru
        _
      // Predicated region
      $region53: #{vol_bottleneck.5} parent=47 // pred_check
        %p4201 = pneg %p156
      $region54: #{vol_bottleneck.5} parent=47 // pred_check_branch
        %4203 = sbr.rel (%p4201) target = $region56
      $region55: #{vol_bottleneck.5} parent=47 // pred_region
        %p4204 = scmp.lt.s32.totalorder %s18, 1
        %s4205 = scalar_select %p4204, %s18, 1
        %s4206 = smul.addr %s4205, 2
        %s4207 = scalar_lea.vmem %s5, %s4206
      $region56: #{vol_bottleneck.5} parent=47 // pred_fallthru
        _
    $region48: #{vol_bottleneck.5} parent=5 // pred_fallthru
      _
  $region6: #{vol_bottleneck.5} parent=0 // loop_footer
    %s16 = sadd.s32 1, %s12
  $region7: #{vol_bottleneck.5} parent=0 // loop_footer_branch
    %11 = sbr.rel target = $region3
  $region8: #{vol_bottleneck.5} parent=0 // loop_exit
    _

</llo_original>
